<compile_context>
chip_gen: v7x
topology: tpu7x:2x2x1
jax: 0.10.0
libtpu: 0.0.40
codegen_flags: <defaults>
</compile_context>

<pallas_src>
import functools

import jax
import jax.numpy as jnp
import numpy as np
from jax import lax
from jax.experimental import pallas as pl
from jax.experimental.pallas import tpu as pltpu

LANE = 128
SLOPE = 0.1
VMEM_LIMIT = 32 * 1024 * 1024  # safe on v5e/v6e/v7x scoped VMEM


def _round_up(x, m):
    return (x + m - 1) // m * m


# ----------------------------- Pallas kernels ------------------------------ #

def _gemm_bn_act_kernel(x_ref, w_ref, s_ref, b_ref, o_ref, *, slope):
    # y = leaky_relu((x @ w) * scale + bias); bf16 inputs, f32 accumulate/epilogue.
    y = jnp.dot(x_ref[...], w_ref[...], preferred_element_type=jnp.float32)
    y = y * s_ref[...] + b_ref[...]
    o_ref[...] = jnp.where(y > 0, y, slope * y).astype(o_ref.dtype)


def _crossconv_kernel(a_ref, w1_ref, w2_ref, s1_ref, b1_ref, s2_ref, b2_ref,
                      o_ref, *, H, W, slope):
    # One full image per grid step: a_ref block is (1, H*W, Cp) bf16.
    # cc1: (1,3) conv (pad 0,1) + BN + act ; cc2: (3,1) conv (pad 1,0) + BN + act;
    # then residual add of the block input. Shifts are done in VMEM, no im2col.
    HW = H * W
    C = a_ref.shape[-1]
    a = a_ref[0]                                            # (HW, C) bf16

    col = lax.broadcasted_iota(jnp.int32, (HW, C), 0) % W   # w index of each row
    not_first_col = col > 0
    not_last_col = col < (W - 1)

    zero1 = jnp.zeros((1, C), a.dtype)
    zeroW = jnp.zeros((W, C), a.dtype)

    # a_prev[m] = a[m-1] within the same image row, else 0 (conv zero padding).
    a_prev = jnp.where(not_first_col,
                       jnp.concatenate([zero1, a[:-1]], axis=0),
                       jnp.zeros_like(a))
    # a_next[m] = a[m+1] within the same image row, else 0.
    a_next = jnp.where(not_last_col,
                       jnp.concatenate([a[1:], zero1], axis=0),
                       jnp.zeros_like(a))

    t = jnp.dot(a_prev, w1_ref[0], preferred_element_type=jnp.float32)
    t = t + jnp.dot(a, w1_ref[1], preferred_element_type=jnp.float32)
    t = t + jnp.dot(a_next, w1_ref[2], preferred_element_type=jnp.float32)
    t = t * s1_ref[...] + b1_ref[...]
    t = jnp.where(t > 0, t, slope * t).astype(a.dtype)      # bf16 for next MXU pass

    # H shifts: block holds exactly one image, so zero-fill == conv zero padding.
    t_up = jnp.concatenate([zeroW, t[:-W]], axis=0)          # t[m - W]
    t_dn = jnp.concatenate([t[W:], zeroW], axis=0)           # t[m + W]

    y = jnp.dot(t_up, w2_ref[0], preferred_element_type=jnp.float32)
    y = y + jnp.dot(t, w2_ref[1], preferred_element_type=jnp.float32)
    y = y + jnp.dot(t_dn, w2_ref[2], preferred_element_type=jnp.float32)
    y = y * s2_ref[...] + b2_ref[...]
    y = jnp.where(y > 0, y, slope * y)

    o_ref[0] = (a.astype(jnp.float32) + y).astype(o_ref.dtype)


def _tail_kernel(a_ref, x_ref, w3_ref, w2_ref, w4a_ref, w4b_ref,
                 sa_ref, ba_ref, sb_ref, bb_ref, s4_ref, b4_ref, o_ref, *, slope):
    # z1 = act(bn_half1(a @ W3)); z2 = act(bn_half2(x @ W2))   (concat never built)
    # out = act(bn4(z1 @ W4_top + z2 @ W4_bot))
    z1 = jnp.dot(a_ref[...], w3_ref[...], preferred_element_type=jnp.float32)
    z1 = z1 * sa_ref[...] + ba_ref[...]
    z1 = jnp.where(z1 > 0, z1, slope * z1).astype(jnp.bfloat16)

    z2 = jnp.dot(x_ref[...], w2_ref[...], preferred_element_type=jnp.float32)
    z2 = z2 * sb_ref[...] + bb_ref[...]
    z2 = jnp.where(z2 > 0, z2, slope * z2).astype(jnp.bfloat16)

    y = jnp.dot(z1, w4a_ref[...], preferred_element_type=jnp.float32)
    y = y + jnp.dot(z2, w4b_ref[...], preferred_element_type=jnp.float32)
    y = y * s4_ref[...] + b4_ref[...]
    o_ref[...] = jnp.where(y > 0, y, slope * y).astype(o_ref.dtype)


# ------------------------------ kernel wrappers ----------------------------- #

def _m_tile(m, cap=512):
    # Tile rows in multiples of 8 sublanes, capped so it fits VMEM on all chips.
    return min(cap, _round_up(m, 8))


def gemm_bn_act(x, w, scale, bias, *, out_dtype=jnp.bfloat16, slope=SLOPE):
    """x: (M, K) bf16; w: (K, Cout) bf16; scale/bias: (1, Cout) f32."""
    M, K = x.shape
    Cout = w.shape[1]
    tm = _m_tile(M)
    return pl.pallas_call(
        functools.partial(_gemm_bn_act_kernel, slope=slope),
        out_shape=jax.ShapeDtypeStruct((M, Cout), out_dtype),
        grid=(pl.cdiv(M, tm),),
        in_specs=[
            pl.BlockSpec((tm, K), lambda i: (i, 0)),
            pl.BlockSpec((K, Cout), lambda i: (0, 0)),
            pl.BlockSpec((1, Cout), lambda i: (0, 0)),
            pl.BlockSpec((1, Cout), lambda i: (0, 0)),
        ],
        out_specs=pl.BlockSpec((tm, Cout), lambda i: (i, 0)),
        compiler_params=pltpu.CompilerParams(
            dimension_semantics=("parallel",), vmem_limit_bytes=VMEM_LIMIT),
    )(x, w, scale, bias)


def crossconv_block(a, w1_taps, w2_taps, s1, b1, s2, b2, *, H, W, slope=SLOPE):
    """a: (N, H*W, Cp) bf16; w*_taps: (3, Cp, Cp) bf16; s/b: (1, Cp) f32."""
    N, HW, C = a.shape
    return pl.pallas_call(
        functools.partial(_crossconv_kernel, H=H, W=W, slope=slope),
        out_shape=jax.ShapeDtypeStruct((N, HW, C), a.dtype),
        grid=(N,),
        in_specs=[
            pl.BlockSpec((1, HW, C), lambda i: (i, 0, 0)),
            pl.BlockSpec((3, C, C), lambda i: (0, 0, 0)),
            pl.BlockSpec((3, C, C), lambda i: (0, 0, 0)),
            pl.BlockSpec((1, C), lambda i: (0, 0)),
            pl.BlockSpec((1, C), lambda i: (0, 0)),
            pl.BlockSpec((1, C), lambda i: (0, 0)),
            pl.BlockSpec((1, C), lambda i: (0, 0)),
        ],
        out_specs=pl.BlockSpec((1, HW, C), lambda i: (i, 0, 0)),
        compiler_params=pltpu.CompilerParams(
            dimension_semantics=("parallel",), vmem_limit_bytes=VMEM_LIMIT),
    )(a, w1_taps, w2_taps, s1, b1, s2, b2)


def tail_fused(a, x, w3, w2, w4a, w4b, sa, ba, sb, bb, s4, b4, *, slope=SLOPE):
    """Fused cv3/cv2 + post-concat BN/act + cv4(+BN+act). Output f32 (M, C2p)."""
    M, Cp = a.shape
    C1p = x.shape[1]
    C2p = w4a.shape[1]
    tm = _m_tile(M)

    def vec(c):
        return pl.BlockSpec((1, c), lambda i: (0, 0))

    return pl.pallas_call(
        functools.partial(_tail_kernel, slope=slope),
        out_shape=jax.ShapeDtypeStruct((M, C2p), jnp.float32),
        grid=(pl.cdiv(M, tm),),
        in_specs=[
            pl.BlockSpec((tm, Cp), lambda i: (i, 0)),
            pl.BlockSpec((tm, C1p), lambda i: (i, 0)),
            pl.BlockSpec((Cp, Cp), lambda i: (0, 0)),
            pl.BlockSpec((C1p, Cp), lambda i: (0, 0)),
            pl.BlockSpec((Cp, C2p), lambda i: (0, 0)),
            pl.BlockSpec((Cp, C2p), lambda i: (0, 0)),
            vec(Cp), vec(Cp), vec(Cp), vec(Cp), vec(C2p), vec(C2p),
        ],
        out_specs=pl.BlockSpec((tm, C2p), lambda i: (i, 0)),
        compiler_params=pltpu.CompilerParams(
            dimension_semantics=("parallel",), vmem_limit_bytes=VMEM_LIMIT),
    )(a, x, w3, w2, w4a, w4b, sa, ba, sb, bb, s4, b4)


# --------------------------- parameter preparation -------------------------- #

def bn_fold(gamma, beta, mean, var, eps=1e-5):
    scale = gamma / jnp.sqrt(var + eps)
    shift = beta - mean * scale
    return scale.astype(jnp.float32), shift.astype(jnp.float32)


def _pad_vec(v, c_pad):
    out = jnp.zeros((1, c_pad), jnp.float32)
    return out.at[0, : v.shape[0]].set(v)


def _pad_mat(w, k_pad, c_pad):
    out = jnp.zeros((k_pad, c_pad), jnp.float32)
    out = out.at[: w.shape[0], : w.shape[1]].set(w)
    return out.astype(jnp.bfloat16)


def _w1x1(w):
    # torch conv weight (co, ci, 1, 1) -> GEMM weight (ci, co)
    return jnp.transpose(w[:, :, 0, 0], (1, 0))


def prepare_params(p):
    """Done once, outside the forward hot path: fold BN, reshape/pad/cast weights."""
    c_ = p['cv1_w'].shape[0]
    c1 = p['cv1_w'].shape[1]
    c2 = p['cv4_w'].shape[0]
    C1p, Cp, C2p = _round_up(c1, LANE), _round_up(c_, LANE), _round_up(c2, LANE)

    s1, b1 = bn_fold(*p['cv1_bn'])
    sbn, bbn = bn_fold(*p['bn'])
    s4, b4 = bn_fold(*p['cv4_bn'])
    w4 = _w1x1(p['cv4_w'])                                   # (2*c_, c2)

    prep = {
        'dims': (c_, c2, C1p, Cp, C2p),
        'cv1_w': _pad_mat(_w1x1(p['cv1_w']), C1p, Cp),
        'cv1_s': _pad_vec(s1, Cp), 'cv1_b': _pad_vec(b1, Cp),
        'cv2_w': _pad_mat(_w1x1(p['cv2_w']), C1p, Cp),
        'cv3_w': _pad_mat(_w1x1(p['cv3_w']), Cp, Cp),
        'w4_top': _pad_mat(w4[:c_], Cp, C2p),
        'w4_bot': _pad_mat(w4[c_:], Cp, C2p),
        'bn_sa': _pad_vec(sbn[:c_], Cp), 'bn_ba': _pad_vec(bbn[:c_], Cp),
        'bn_sb': _pad_vec(sbn[c_:], Cp), 'bn_bb': _pad_vec(bbn[c_:], Cp),
        'cv4_s': _pad_vec(s4, C2p), 'cv4_b': _pad_vec(b4, C2p),
        'm': [],
    }
    for blk in p['m']:
        cs1, cb1 = bn_fold(*blk['cc1_bn'])
        cs2, cb2 = bn_fold(*blk['cc2_bn'])
        w1 = blk['cc1_w']   # (c_, c_, 1, 3)
        w2 = blk['cc2_w']   # (c_, c_, 3, 1)
        w1_taps = jnp.stack(
            [_pad_mat(jnp.transpose(w1[:, :, 0, kw], (1, 0)), Cp, Cp) for kw in range(3)], 0)
        w2_taps = jnp.stack(
            [_pad_mat(jnp.transpose(w2[:, :, kh, 0], (1, 0)), Cp, Cp) for kh in range(3)], 0)
        prep['m'].append({
            'w1': w1_taps, 'w2': w2_taps,
            's1': _pad_vec(cs1, Cp), 'b1': _pad_vec(cb1, Cp),
            's2': _pad_vec(cs2, Cp), 'b2': _pad_vec(cb2, Cp),
        })
    return prep


# --------------------------------- forward ---------------------------------- #

def c3_forward(x_nchw, prep):
    N, c1, H, W = x_nchw.shape
    c_, c2, C1p, Cp, C2p = prep['dims']
    M = N * H * W

    # NCHW -> flattened channels-last rows, channel-padded to lanes, bf16 for MXU.
    x_nhwc = jnp.transpose(x_nchw, (0, 2, 3, 1)).astype(jnp.bfloat16)
    xm = jnp.pad(x_nhwc, ((0, 0), (0, 0), (0, 0), (0, C1p - c1))).reshape(M, C1p)

    # cv1: 1x1 conv + BN + LeakyReLU(0.1)
    a = gemm_bn_act(xm, prep['cv1_w'], prep['cv1_s'], prep['cv1_b'])

    # CrossConv blocks: fully fused (1,3)+(3,1)+BN+act+residual, one kernel each.
    a = a.reshape(N, H * W, Cp)
    for blk in prep['m']:
        a = crossconv_block(a, blk['w1'], blk['w2'], blk['s1'], blk['b1'],
                            blk['s2'], blk['b2'], H=H, W=W)
    a = a.reshape(M, Cp)

    # Tail: cv3/cv2 with post-concat BN+act folded into their epilogues, cv4 as
    # split GEMM -> no concat tensor, single HBM pass over a and x.
    out = tail_fused(a, xm, prep['cv3_w'], prep['cv2_w'],
                     prep['w4_top'], prep['w4_bot'],
                     prep['bn_sa'], prep['bn_ba'], prep['bn_sb'], prep['bn_bb'],
                     prep['cv4_s'], prep['cv4_b'])

    out = out[:, :c2].reshape(N, H, W, c2)
    return jnp.transpose(out, (0, 3, 1, 2))


# ------------------------- pure-JAX reference (NCHW) ------------------------ #

def _ref_conv(x, w, pad):
    return jax.lax.conv_general_dilated(
        x, w, (1, 1), pad, dimension_numbers=('NCHW', 'OIHW', 'NCHW'),
        precision=jax.lax.Precision.HIGHEST)


def _ref_bn(x, gamma, beta, mean, var, eps=1e-5):
    scale = gamma / jnp.sqrt(var + eps)
    shift = beta - mean * scale
    return x * scale[None, :, None, None] + shift[None, :, None, None]


def _ref_leaky(x, slope=0.1):
    return jnp.where(x > 0, x, slope * x)


def ref_c3(x, p):
    def conv_block(x, w, bn, pad):
        return _ref_leaky(_ref_bn(_ref_conv(x, w, pad), *bn))

    a = conv_block(x, p['cv1_w'], p['cv1_bn'], ((0, 0), (0, 0)))
    for blk in p['m']:
        t = conv_block(a, blk['cc1_w'], blk['cc1_bn'], ((0, 0), (1, 1)))
        t = conv_block(t, blk['cc2_w'], blk['cc2_bn'], ((1, 1), (0, 0)))
        a = a + t
    y1 = _ref_conv(a, p['cv3_w'], ((0, 0), (0, 0)))
    y2 = _ref_conv(x, p['cv2_w'], ((0, 0), (0, 0)))
    z = _ref_leaky(_ref_bn(jnp.concatenate([y1, y2], axis=1), *p['bn']))
    return conv_block(z, p['cv4_w'], p['cv4_bn'], ((0, 0), (0, 0)))


# ------------------------------ parameter init ------------------------------ #

def init_params(key, c1, c2, n=1, e=0.5):
    c_ = int(c2 * e)
    keys = iter(jax.random.split(key, 64))

    def conv_w(shape):
        return jax.random.normal(next(keys), shape, jnp.float32) * 0.1

    def bn_params(c):
        gamma = jax.random.uniform(next(keys), (c,), jnp.float32, 0.5, 1.5)
        beta = jax.random.normal(next(keys), (c,), jnp.float32) * 0.1
        mean = jax.random.normal(next(keys), (c,), jnp.float32) * 0.1
        var = jax.random.uniform(next(keys), (c,), jnp.float32, 0.5, 1.5)
        return (gamma, beta, mean, var)

    p = {
        'cv1_w': conv_w((c_, c1, 1, 1)), 'cv1_bn': bn_params(c_),
        'cv2_w': conv_w((c_, c1, 1, 1)),
        'cv3_w': conv_w((c_, c_, 1, 1)),
        'cv4_w': conv_w((c2, 2 * c_, 1, 1)), 'cv4_bn': bn_params(c2),
        'bn': bn_params(2 * c_),
        'm': [],
    }
    for _ in range(n):
        p['m'].append({
            'cc1_w': conv_w((c_, c_, 1, 3)), 'cc1_bn': bn_params(c_),
            'cc2_w': conv_w((c_, c_, 3, 1)), 'cc2_bn': bn_params(c_),
        })
    return p


# ----------------------------------- main ----------------------------------- #

if __name__ == "__main__":
    key = jax.random.PRNGKey(0)
    kx, kp = jax.random.split(key)

    N, c1, c2, H, W, n = 2, 4, 8, 16, 16, 1
    x = jax.random.normal(kx, (N, c1, H, W), jnp.float32)
    params = init_params(kp, c1, c2, n=n)

    prep = prepare_params(params)                   # weights/BN prepared once
    fwd = jax.jit(lambda xx: c3_forward(xx, prep))

    out = jax.block_until_ready(fwd(x))
    ref = jax.block_until_ready(ref_c3(x, params))

    assert out.shape == (N, c2, H, W), out.shape
    # Tolerance loosened slightly vs the f32 version because MXU inputs are bf16.
    np.testing.assert_allclose(np.asarray(out), np.asarray(ref), rtol=4e-2, atol=4e-2)

    print("KERNEL_OK")
</pallas_src>

<mosaic_0001>
module attributes {stable_mosaic.version = 11 : i64} {
  func.func @_gemm_bn_act_kernel(%arg0: i32, %arg1: memref<512x128xbf16, #tpu.memory_space<vmem>>, %arg2: memref<128x128xbf16, #tpu.memory_space<vmem>>, %arg3: memref<1x128xf32, #tpu.memory_space<vmem>>, %arg4: memref<1x128xf32, #tpu.memory_space<vmem>>, %arg5: memref<512x128xbf16, #tpu.memory_space<vmem>>) attributes {dimension_semantics = [#tpu.dimension_semantics<parallel>], iteration_bounds = array<i64: 1>, scalar_prefetch = 0 : i64, scratch_operands = 0 : i64, tpu.core_type = #tpu.core_type<tc>, window_params = [{transform_indices = @transform_0, window_bounds = array<i64: 512, 128>}, {pipeline_mode = #tpu.pipeline_mode<synchronous>, transform_indices = @transform_1, window_bounds = array<i64: 128, 128>}, {pipeline_mode = #tpu.pipeline_mode<synchronous>, transform_indices = @transform_2, window_bounds = array<i64: 1, 128>}, {pipeline_mode = #tpu.pipeline_mode<synchronous>, transform_indices = @transform_3, window_bounds = array<i64: 1, 128>}, {transform_indices = @transform_4, window_bounds = array<i64: 512, 128>}]} {
    %c0 = arith.constant 0 : index
    %c0_0 = arith.constant 0 : index
    %0 = vector.load %arg1[%c0, %c0_0] : memref<512x128xbf16, #tpu.memory_space<vmem>>, vector<512x128xbf16>
    %c0_1 = arith.constant 0 : index
    %c0_2 = arith.constant 0 : index
    %1 = vector.load %arg2[%c0_1, %c0_2] : memref<128x128xbf16, #tpu.memory_space<vmem>>, vector<128x128xbf16>
    %cst = arith.constant dense<0.000000e+00> : vector<512x128xf32>
    %2 = tpu.matmul %0, %1, %cst {dimension_numbers = #tpu.dot_dimension_numbers<[1], [0], [0], [1], [0, 0, 1, 1], [], []>} : vector<512x128xbf16>, vector<128x128xbf16>, vector<512x128xf32> -> vector<512x128xf32>
    %c0_3 = arith.constant 0 : index
    %c0_4 = arith.constant 0 : index
    %3 = vector.load %arg3[%c0_3, %c0_4] : memref<1x128xf32, #tpu.memory_space<vmem>>, vector<1x128xf32>
    %4 = vector.broadcast %3 : vector<1x128xf32> to vector<512x128xf32>
    %5 = arith.mulf %2, %4 : vector<512x128xf32>
    %c0_5 = arith.constant 0 : index
    %c0_6 = arith.constant 0 : index
    %6 = vector.load %arg4[%c0_5, %c0_6] : memref<1x128xf32, #tpu.memory_space<vmem>>, vector<1x128xf32>
    %7 = vector.broadcast %6 : vector<1x128xf32> to vector<512x128xf32>
    %8 = arith.addf %5, %7 : vector<512x128xf32>
    %cst_7 = arith.constant 0.000000e+00 : f32
    %9 = vector.broadcast %cst_7 : f32 to vector<512x128xf32>
    %10 = arith.cmpf ogt, %8, %9 : vector<512x128xf32>
    %cst_8 = arith.constant 1.000000e-01 : f32
    %11 = vector.broadcast %cst_8 : f32 to vector<512x128xf32>
    %12 = arith.mulf %11, %8 : vector<512x128xf32>
    %13 = arith.select %10, %8, %12 : vector<512x128xi1>, vector<512x128xf32>
    %14 = arith.truncf %13 : vector<512x128xf32> to vector<512x128xbf16>
    %c0_9 = arith.constant 0 : index
    %c0_10 = arith.constant 0 : index
    %15 = vector.load %arg5[%c0_9, %c0_10] : memref<512x128xbf16, #tpu.memory_space<vmem>>, vector<512x128xbf16>
    tpu.vector_store %arg5[%c0_9, %c0_10], %14 {strides = array<i32>} : memref<512x128xbf16, #tpu.memory_space<vmem>>, vector<512x128xbf16>,
    return
  }
  func.func @transform_0(%arg0: i32) -> (i32, i32) {
    %c0_i32 = arith.constant 0 : i32
    %c0_i32_0 = arith.constant 0 : i32
    return %arg0, %c0_i32 : i32, i32
  }
  func.func @transform_1(%arg0: i32) -> (i32, i32) {
    %c0_i32 = arith.constant 0 : i32
    %c0_i32_0 = arith.constant 0 : i32
    %c0_i32_1 = arith.constant 0 : i32
    return %c0_i32, %c0_i32_0 : i32, i32
  }
  func.func @transform_2(%arg0: i32) -> (i32, i32) {
    %c0_i32 = arith.constant 0 : i32
    %c0_i32_0 = arith.constant 0 : i32
    %c0_i32_1 = arith.constant 0 : i32
    return %c0_i32, %c0_i32_0 : i32, i32
  }
  func.func @transform_3(%arg0: i32) -> (i32, i32) {
    %c0_i32 = arith.constant 0 : i32
    %c0_i32_0 = arith.constant 0 : i32
    %c0_i32_1 = arith.constant 0 : i32
    return %c0_i32, %c0_i32_0 : i32, i32
  }
  func.func @transform_4(%arg0: i32) -> (i32, i32) {
    %c0_i32 = arith.constant 0 : i32
    %c0_i32_0 = arith.constant 0 : i32
    return %arg0, %c0_i32 : i32, i32
  }
}

module attributes {stable_mosaic.version = 11 : i64} {
  func.func @_crossconv_kernel(%arg0: i32, %arg1: memref<1x256x128xbf16, #tpu.memory_space<vmem>>, %arg2: memref<3x128x128xbf16, #tpu.memory_space<vmem>>, %arg3: memref<3x128x128xbf16, #tpu.memory_space<vmem>>, %arg4: memref<1x128xf32, #tpu.memory_space<vmem>>, %arg5: memref<1x128xf32, #tpu.memory_space<vmem>>, %arg6: memref<1x128xf32, #tpu.memory_space<vmem>>, %arg7: memref<1x128xf32, #tpu.memory_space<vmem>>, %arg8: memref<1x256x128xbf16, #tpu.memory_space<vmem>>) attributes {dimension_semantics = [#tpu.dimension_semantics<parallel>], iteration_bounds = array<i64: 2>, scalar_prefetch = 0 : i64, scratch_operands = 0 : i64, tpu.core_type = #tpu.core_type<tc>, window_params = [{transform_indices = @transform_0, window_bounds = array<i64: 1, 256, 128>}, {pipeline_mode = #tpu.pipeline_mode<synchronous>, transform_indices = @transform_1, window_bounds = array<i64: 3, 128, 128>}, {pipeline_mode = #tpu.pipeline_mode<synchronous>, transform_indices = @transform_2, window_bounds = array<i64: 3, 128, 128>}, {pipeline_mode = #tpu.pipeline_mode<synchronous>, transform_indices = @transform_3, window_bounds = array<i64: 1, 128>}, {pipeline_mode = #tpu.pipeline_mode<synchronous>, transform_indices = @transform_4, window_bounds = array<i64: 1, 128>}, {pipeline_mode = #tpu.pipeline_mode<synchronous>, transform_indices = @transform_5, window_bounds = array<i64: 1, 128>}, {pipeline_mode = #tpu.pipeline_mode<synchronous>, transform_indices = @transform_6, window_bounds = array<i64: 1, 128>}, {transform_indices = @transform_7, window_bounds = array<i64: 1, 256, 128>}]} {
    %c0 = arith.constant 0 : index
    %c0_0 = arith.constant 0 : index
    %c0_1 = arith.constant 0 : index
    %0 = vector.load %arg1[%c0, %c0_0, %c0_1] : memref<1x256x128xbf16, #tpu.memory_space<vmem>>, vector<1x256x128xbf16>
    %1 = vector.shape_cast %0 : vector<1x256x128xbf16> to vector<256x128xbf16>
    %2 = tpu.iota {dimensions = array<i32: 0>} : vector<256x128xi32>
    %c16_i32 = arith.constant 16 : i32
    %c0_i32 = arith.constant 0 : i32
    %3 = arith.cmpi eq, %c16_i32, %c0_i32 : i32
    %c1_i32 = arith.constant 1 : i32
    %4 = arith.select %3, %c1_i32, %c16_i32 : i32
    %5 = vector.broadcast %4 : i32 to vector<256x128xi32>
    %6 = arith.remsi %2, %5 : vector<256x128xi32>
    %c0_i32_2 = arith.constant 0 : i32
    %7 = vector.broadcast %c0_i32_2 : i32 to vector<256x128xi32>
    %8 = arith.cmpi ne, %6, %7 : vector<256x128xi32>
    %c0_i32_3 = arith.constant 0 : i32
    %9 = vector.broadcast %c0_i32_3 : i32 to vector<256x128xi32>
    %10 = arith.cmpi slt, %6, %9 : vector<256x128xi32>
    %c0_i32_4 = arith.constant 0 : i32
    %11 = arith.cmpi slt, %4, %c0_i32_4 : i32
    %12 = vector.broadcast %11 : i1 to vector<256x128xi1>
    %13 = vector.broadcast %12 : vector<256x128xi1> to vector<256x128xi1>
    %14 = arith.xori %10, %13 : vector<256x128xi1>
    %15 = arith.andi %14, %8 : vector<256x128xi1>
    %16 = vector.broadcast %4 : i32 to vector<256x128xi32>
    %17 = arith.addi %6, %16 : vector<256x128xi32>
    %18 = arith.select %15, %17, %6 : vector<256x128xi1>, vector<256x128xi32>
    %c0_i32_5 = arith.constant 0 : i32
    %19 = vector.broadcast %c0_i32_5 : i32 to vector<256x128xi32>
    %20 = arith.cmpi sgt, %18, %19 : vector<256x128xi32>
    %c15_i32 = arith.constant 15 : i32
    %21 = vector.broadcast %c15_i32 : i32 to vector<256x128xi32>
    %22 = arith.cmpi slt, %18, %21 : vector<256x128xi32>
    %cst = arith.constant 0.000000e+00 : bf16
    %23 = vector.broadcast %cst : bf16 to vector<1x128xbf16>
    %cst_6 = arith.constant 0.000000e+00 : bf16
    %24 = vector.broadcast %cst_6 : bf16 to vector<16x128xbf16>
    %25 = vector.extract_strided_slice %1 {offsets = [0, 0], sizes = [255, 128], strides = [1, 1]} : vector<256x128xbf16> to vector<255x128xbf16>
    %26 = tpu.concatenate %23, %25 in 0 : vector<1x128xbf16>, vector<255x128xbf16> -> vector<256x128xbf16>
    %cst_7 = arith.constant 0.000000e+00 : bf16
    %27 = vector.broadcast %cst_7 : bf16 to vector<256x128xbf16>
    %28 = arith.select %20, %26, %27 : vector<256x128xi1>, vector<256x128xbf16>
    %29 = vector.extract_strided_slice %1 {offsets = [1, 0], sizes = [255, 128], strides = [1, 1]} : vector<256x128xbf16> to vector<255x128xbf16>
    %30 = tpu.concatenate %29, %23 in 0 : vector<255x128xbf16>, vector<1x128xbf16> -> vector<256x128xbf16>
    %cst_8 = arith.constant 0.000000e+00 : bf16
    %31 = vector.broadcast %cst_8 : bf16 to vector<256x128xbf16>
    %32 = arith.select %22, %30, %31 : vector<256x128xi1>, vector<256x128xbf16>
    %c0_9 = arith.constant 0 : index
    %c0_10 = arith.constant 0 : index
    %c0_11 = arith.constant 0 : index
    %33 = vector.load %arg2[%c0_9, %c0_10, %c0_11] : memref<3x128x128xbf16, #tpu.memory_space<vmem>>, vector<1x128x128xbf16>
    %34 = vector.shape_cast %33 : vector<1x128x128xbf16> to vector<128x128xbf16>
    %cst_12 = arith.constant dense<0.000000e+00> : vector<256x128xf32>
    %35 = tpu.matmul %28, %34, %cst_12 {dimension_numbers = #tpu.dot_dimension_numbers<[1], [0], [0], [1], [0, 0, 1, 1], [], []>} : vector<256x128xbf16>, vector<128x128xbf16>, vector<256x128xf32> -> vector<256x128xf32>
    %c1 = arith.constant 1 : index
    %c0_13 = arith.constant 0 : index
    %c0_14 = arith.constant 0 : index
    %36 = vector.load %arg2[%c1, %c0_13, %c0_14] : memref<3x128x128xbf16, #tpu.memory_space<vmem>>, vector<1x128x128xbf16>
    %37 = vector.shape_cast %36 : vector<1x128x128xbf16> to vector<128x128xbf16>
    %cst_15 = arith.constant dense<0.000000e+00> : vector<256x128xf32>
    %38 = tpu.matmul %1, %37, %cst_15 {dimension_numbers = #tpu.dot_dimension_numbers<[1], [0], [0], [1], [0, 0, 1, 1], [], []>} : vector<256x128xbf16>, vector<128x128xbf16>, vector<256x128xf32> -> vector<256x128xf32>
    %39 = arith.addf %35, %38 : vector<256x128xf32>
    %c2 = arith.constant 2 : index
    %c0_16 = arith.constant 0 : index
    %c0_17 = arith.constant 0 : index
    %40 = vector.load %arg2[%c2, %c0_16, %c0_17] : memref<3x128x128xbf16, #tpu.memory_space<vmem>>, vector<1x128x128xbf16>
    %41 = vector.shape_cast %40 : vector<1x128x128xbf16> to vector<128x128xbf16>
    %cst_18 = arith.constant dense<0.000000e+00> : vector<256x128xf32>
    %42 = tpu.matmul %32, %41, %cst_18 {dimension_numbers = #tpu.dot_dimension_numbers<[1], [0], [0], [1], [0, 0, 1, 1], [], []>} : vector<256x128xbf16>, vector<128x128xbf16>, vector<256x128xf32> -> vector<256x128xf32>
    %43 = arith.addf %39, %42 : vector<256x128xf32>
    %c0_19 = arith.constant 0 : index
    %c0_20 = arith.constant 0 : index
    %44 = vector.load %arg4[%c0_19, %c0_20] : memref<1x128xf32, #tpu.memory_space<vmem>>, vector<1x128xf32>
    %45 = vector.broadcast %44 : vector<1x128xf32> to vector<256x128xf32>
    %46 = arith.mulf %43, %45 : vector<256x128xf32>
    %c0_21 = arith.constant 0 : index
    %c0_22 = arith.constant 0 : index
    %47 = vector.load %arg5[%c0_21, %c0_22] : memref<1x128xf32, #tpu.memory_space<vmem>>, vector<1x128xf32>
    %48 = vector.broadcast %47 : vector<1x128xf32> to vector<256x128xf32>
    %49 = arith.addf %46, %48 : vector<256x128xf32>
    %cst_23 = arith.constant 0.000000e+00 : f32
    %50 = vector.broadcast %cst_23 : f32 to vector<256x128xf32>
    %51 = arith.cmpf ogt, %49, %50 : vector<256x128xf32>
    %cst_24 = arith.constant 1.000000e-01 : f32
    %52 = vector.broadcast %cst_24 : f32 to vector<256x128xf32>
    %53 = arith.mulf %52, %49 : vector<256x128xf32>
    %54 = arith.select %51, %49, %53 : vector<256x128xi1>, vector<256x128xf32>
    %55 = arith.truncf %54 : vector<256x128xf32> to vector<256x128xbf16>
    %56 = vector.extract_strided_slice %55 {offsets = [0, 0], sizes = [240, 128], strides = [1, 1]} : vector<256x128xbf16> to vector<240x128xbf16>
    %57 = tpu.concatenate %24, %56 in 0 : vector<16x128xbf16>, vector<240x128xbf16> -> vector<256x128xbf16>
    %58 = vector.extract_strided_slice %55 {offsets = [16, 0], sizes = [240, 128], strides = [1, 1]} : vector<256x128xbf16> to vector<240x128xbf16>
    %59 = tpu.concatenate %58, %24 in 0 : vector<240x128xbf16>, vector<16x128xbf16> -> vector<256x128xbf16>
    %c0_25 = arith.constant 0 : index
    %c0_26 = arith.constant 0 : index
    %c0_27 = arith.constant 0 : index
    %60 = vector.load %arg3[%c0_25, %c0_26, %c0_27] : memref<3x128x128xbf16, #tpu.memory_space<vmem>>, vector<1x128x128xbf16>
    %61 = vector.shape_cast %60 : vector<1x128x128xbf16> to vector<128x128xbf16>
    %cst_28 = arith.constant dense<0.000000e+00> : vector<256x128xf32>
    %62 = tpu.matmul %57, %61, %cst_28 {dimension_numbers = #tpu.dot_dimension_numbers<[1], [0], [0], [1], [0, 0, 1, 1], [], []>} : vector<256x128xbf16>, vector<128x128xbf16>, vector<256x128xf32> -> vector<256x128xf32>
    %c1_29 = arith.constant 1 : index
    %c0_30 = arith.constant 0 : index
    %c0_31 = arith.constant 0 : index
    %63 = vector.load %arg3[%c1_29, %c0_30, %c0_31] : memref<3x128x128xbf16, #tpu.memory_space<vmem>>, vector<1x128x128xbf16>
    %64 = vector.shape_cast %63 : vector<1x128x128xbf16> to vector<128x128xbf16>
    %cst_32 = arith.constant dense<0.000000e+00> : vector<256x128xf32>
    %65 = tpu.matmul %55, %64, %cst_32 {dimension_numbers = #tpu.dot_dimension_numbers<[1], [0], [0], [1], [0, 0, 1, 1], [], []>} : vector<256x128xbf16>, vector<128x128xbf16>, vector<256x128xf32> -> vector<256x128xf32>
    %66 = arith.addf %62, %65 : vector<256x128xf32>
    %c2_33 = arith.constant 2 : index
    %c0_34 = arith.constant 0 : index
    %c0_35 = arith.constant 0 : index
    %67 = vector.load %arg3[%c2_33, %c0_34, %c0_35] : memref<3x128x128xbf16, #tpu.memory_space<vmem>>, vector<1x128x128xbf16>
    %68 = vector.shape_cast %67 : vector<1x128x128xbf16> to vector<128x128xbf16>
    %cst_36 = arith.constant dense<0.000000e+00> : vector<256x128xf32>
    %69 = tpu.matmul %59, %68, %cst_36 {dimension_numbers = #tpu.dot_dimension_numbers<[1], [0], [0], [1], [0, 0, 1, 1], [], []>} : vector<256x128xbf16>, vector<128x128xbf16>, vector<256x128xf32> -> vector<256x128xf32>
    %70 = arith.addf %66, %69 : vector<256x128xf32>
    %c0_37 = arith.constant 0 : index
    %c0_38 = arith.constant 0 : index
    %71 = vector.load %arg6[%c0_37, %c0_38] : memref<1x128xf32, #tpu.memory_space<vmem>>, vector<1x128xf32>
    %72 = vector.broadcast %71 : vector<1x128xf32> to vector<256x128xf32>
    %73 = arith.mulf %70, %72 : vector<256x128xf32>
    %c0_39 = arith.constant 0 : index
    %c0_40 = arith.constant 0 : index
    %74 = vector.load %arg7[%c0_39, %c0_40] : memref<1x128xf32, #tpu.memory_space<vmem>>, vector<1x128xf32>
    %75 = vector.broadcast %74 : vector<1x128xf32> to vector<256x128xf32>
    %76 = arith.addf %73, %75 : vector<256x128xf32>
    %cst_41 = arith.constant 0.000000e+00 : f32
    %77 = vector.broadcast %cst_41 : f32 to vector<256x128xf32>
    %78 = arith.cmpf ogt, %76, %77 : vector<256x128xf32>
    %cst_42 = arith.constant 1.000000e-01 : f32
    %79 = vector.broadcast %cst_42 : f32 to vector<256x128xf32>
    %80 = arith.mulf %79, %76 : vector<256x128xf32>
    %81 = arith.select %78, %76, %80 : vector<256x128xi1>, vector<256x128xf32>
    %82 = arith.extf %1 : vector<256x128xbf16> to vector<256x128xf32>
    %83 = arith.addf %82, %81 : vector<256x128xf32>
    %84 = arith.truncf %83 : vector<256x128xf32> to vector<256x128xbf16>
    %c0_43 = arith.constant 0 : index
    %c0_44 = arith.constant 0 : index
    %c0_45 = arith.constant 0 : index
    %85 = vector.load %arg8[%c0_43, %c0_44, %c0_45] : memref<1x256x128xbf16, #tpu.memory_space<vmem>>, vector<1x256x128xbf16>
    %86 = vector.shape_cast %85 : vector<1x256x128xbf16> to vector<256x128xbf16>
    %87 = vector.shape_cast %84 : vector<256x128xbf16> to vector<1x256x128xbf16>
    tpu.vector_store %arg8[%c0_43, %c0_44, %c0_45], %87 {strides = array<i32>} : memref<1x256x128xbf16, #tpu.memory_space<vmem>>, vector<1x256x128xbf16>,
    return
  }
  func.func @transform_0(%arg0: i32) -> (i32, i32, i32) {
    %c0_i32 = arith.constant 0 : i32
    %c0_i32_0 = arith.constant 0 : i32
    %c0_i32_1 = arith.constant 0 : i32
    return %arg0, %c0_i32, %c0_i32_0 : i32, i32, i32
  }
  func.func @transform_1(%arg0: i32) -> (i32, i32, i32) {
    %c0_i32 = arith.constant 0 : i32
    %c0_i32_0 = arith.constant 0 : i32
    %c0_i32_1 = arith.constant 0 : i32
    %c0_i32_2 = arith.constant 0 : i32
    return %c0_i32, %c0_i32_0, %c0_i32_1 : i32, i32, i32
  }
  func.func @transform_2(%arg0: i32) -> (i32, i32, i32) {
    %c0_i32 = arith.constant 0 : i32
    %c0_i32_0 = arith.constant 0 : i32
    %c0_i32_1 = arith.constant 0 : i32
    %c0_i32_2 = arith.constant 0 : i32
    return %c0_i32, %c0_i32_0, %c0_i32_1 : i32, i32, i32
  }
  func.func @transform_3(%arg0: i32) -> (i32, i32) {
    %c0_i32 = arith.constant 0 : i32
    %c0_i32_0 = arith.constant 0 : i32
    %c0_i32_1 = arith.constant 0 : i32
    return %c0_i32, %c0_i32_0 : i32, i32
  }
  func.func @transform_4(%arg0: i32) -> (i32, i32) {
    %c0_i32 = arith.constant 0 : i32
    %c0_i32_0 = arith.constant 0 : i32
    %c0_i32_1 = arith.constant 0 : i32
    return %c0_i32, %c0_i32_0 : i32, i32
  }
  func.func @transform_5(%arg0: i32) -> (i32, i32) {
    %c0_i32 = arith.constant 0 : i32
    %c0_i32_0 = arith.constant 0 : i32
    %c0_i32_1 = arith.constant 0 : i32
    return %c0_i32, %c0_i32_0 : i32, i32
  }
  func.func @transform_6(%arg0: i32) -> (i32, i32) {
    %c0_i32 = arith.constant 0 : i32
    %c0_i32_0 = arith.constant 0 : i32
    %c0_i32_1 = arith.constant 0 : i32
    return %c0_i32, %c0_i32_0 : i32, i32
  }
  func.func @transform_7(%arg0: i32) -> (i32, i32, i32) {
    %c0_i32 = arith.constant 0 : i32
    %c0_i32_0 = arith.constant 0 : i32
    %c0_i32_1 = arith.constant 0 : i32
    return %arg0, %c0_i32, %c0_i32_0 : i32, i32, i32
  }
}

module attributes {stable_mosaic.version = 11 : i64} {
  func.func @_tail_kernel(%arg0: i32, %arg1: memref<512x128xbf16, #tpu.memory_space<vmem>>, %arg2: memref<512x128xbf16, #tpu.memory_space<vmem>>, %arg3: memref<128x128xbf16, #tpu.memory_space<vmem>>, %arg4: memref<128x128xbf16, #tpu.memory_space<vmem>>, %arg5: memref<128x128xbf16, #tpu.memory_space<vmem>>, %arg6: memref<128x128xbf16, #tpu.memory_space<vmem>>, %arg7: memref<1x128xf32, #tpu.memory_space<vmem>>, %arg8: memref<1x128xf32, #tpu.memory_space<vmem>>, %arg9: memref<1x128xf32, #tpu.memory_space<vmem>>, %arg10: memref<1x128xf32, #tpu.memory_space<vmem>>, %arg11: memref<1x128xf32, #tpu.memory_space<vmem>>, %arg12: memref<1x128xf32, #tpu.memory_space<vmem>>, %arg13: memref<512x128xf32, #tpu.memory_space<vmem>>) attributes {dimension_semantics = [#tpu.dimension_semantics<parallel>], iteration_bounds = array<i64: 1>, scalar_prefetch = 0 : i64, scratch_operands = 0 : i64, tpu.core_type = #tpu.core_type<tc>, window_params = [{transform_indices = @transform_0, window_bounds = array<i64: 512, 128>}, {transform_indices = @transform_1, window_bounds = array<i64: 512, 128>}, {pipeline_mode = #tpu.pipeline_mode<synchronous>, transform_indices = @transform_2, window_bounds = array<i64: 128, 128>}, {pipeline_mode = #tpu.pipeline_mode<synchronous>, transform_indices = @transform_3, window_bounds = array<i64: 128, 128>}, {pipeline_mode = #tpu.pipeline_mode<synchronous>, transform_indices = @transform_4, window_bounds = array<i64: 128, 128>}, {pipeline_mode = #tpu.pipeline_mode<synchronous>, transform_indices = @transform_5, window_bounds = array<i64: 128, 128>}, {pipeline_mode = #tpu.pipeline_mode<synchronous>, transform_indices = @transform_6, window_bounds = array<i64: 1, 128>}, {pipeline_mode = #tpu.pipeline_mode<synchronous>, transform_indices = @transform_7, window_bounds = array<i64: 1, 128>}, {pipeline_mode = #tpu.pipeline_mode<synchronous>, transform_indices = @transform_8, window_bounds = array<i64: 1, 128>}, {pipeline_mode = #tpu.pipeline_mode<synchronous>, transform_indices = @transform_9, window_bounds = array<i64: 1, 128>}, {pipeline_mode = #tpu.pipeline_mode<synchronous>, transform_indices = @transform_10, window_bounds = array<i64: 1, 128>}, {pipeline_mode = #tpu.pipeline_mode<synchronous>, transform_indices = @transform_11, window_bounds = array<i64: 1, 128>}, {transform_indices = @transform_12, window_bounds = array<i64: 512, 128>}]} {
    %c0 = arith.constant 0 : index
    %c0_0 = arith.constant 0 : index
    %0 = vector.load %arg1[%c0, %c0_0] : memref<512x128xbf16, #tpu.memory_space<vmem>>, vector<512x128xbf16>
    %c0_1 = arith.constant 0 : index
    %c0_2 = arith.constant 0 : index
    %1 = vector.load %arg3[%c0_1, %c0_2] : memref<128x128xbf16, #tpu.memory_space<vmem>>, vector<128x128xbf16>
    %cst = arith.constant dense<0.000000e+00> : vector<512x128xf32>
    %2 = tpu.matmul %0, %1, %cst {dimension_numbers = #tpu.dot_dimension_numbers<[1], [0], [0], [1], [0, 0, 1, 1], [], []>} : vector<512x128xbf16>, vector<128x128xbf16>, vector<512x128xf32> -> vector<512x128xf32>
    %c0_3 = arith.constant 0 : index
    %c0_4 = arith.constant 0 : index
    %3 = vector.load %arg7[%c0_3, %c0_4] : memref<1x128xf32, #tpu.memory_space<vmem>>, vector<1x128xf32>
    %4 = vector.broadcast %3 : vector<1x128xf32> to vector<512x128xf32>
    %5 = arith.mulf %2, %4 : vector<512x128xf32>
    %c0_5 = arith.constant 0 : index
    %c0_6 = arith.constant 0 : index
    %6 = vector.load %arg8[%c0_5, %c0_6] : memref<1x128xf32, #tpu.memory_space<vmem>>, vector<1x128xf32>
    %7 = vector.broadcast %6 : vector<1x128xf32> to vector<512x128xf32>
    %8 = arith.addf %5, %7 : vector<512x128xf32>
    %cst_7 = arith.constant 0.000000e+00 : f32
    %9 = vector.broadcast %cst_7 : f32 to vector<512x128xf32>
    %10 = arith.cmpf ogt, %8, %9 : vector<512x128xf32>
    %cst_8 = arith.constant 1.000000e-01 : f32
    %11 = vector.broadcast %cst_8 : f32 to vector<512x128xf32>
    %12 = arith.mulf %11, %8 : vector<512x128xf32>
    %13 = arith.select %10, %8, %12 : vector<512x128xi1>, vector<512x128xf32>
    %14 = arith.truncf %13 : vector<512x128xf32> to vector<512x128xbf16>
    %c0_9 = arith.constant 0 : index
    %c0_10 = arith.constant 0 : index
    %15 = vector.load %arg2[%c0_9, %c0_10] : memref<512x128xbf16, #tpu.memory_space<vmem>>, vector<512x128xbf16>
    %c0_11 = arith.constant 0 : index
    %c0_12 = arith.constant 0 : index
    %16 = vector.load %arg4[%c0_11, %c0_12] : memref<128x128xbf16, #tpu.memory_space<vmem>>, vector<128x128xbf16>
    %cst_13 = arith.constant dense<0.000000e+00> : vector<512x128xf32>
    %17 = tpu.matmul %15, %16, %cst_13 {dimension_numbers = #tpu.dot_dimension_numbers<[1], [0], [0], [1], [0, 0, 1, 1], [], []>} : vector<512x128xbf16>, vector<128x128xbf16>, vector<512x128xf32> -> vector<512x128xf32>
    %c0_14 = arith.constant 0 : index
    %c0_15 = arith.constant 0 : index
    %18 = vector.load %arg9[%c0_14, %c0_15] : memref<1x128xf32, #tpu.memory_space<vmem>>, vector<1x128xf32>
    %19 = vector.broadcast %18 : vector<1x128xf32> to vector<512x128xf32>
    %20 = arith.mulf %17, %19 : vector<512x128xf32>
    %c0_16 = arith.constant 0 : index
    %c0_17 = arith.constant 0 : index
    %21 = vector.load %arg10[%c0_16, %c0_17] : memref<1x128xf32, #tpu.memory_space<vmem>>, vector<1x128xf32>
    %22 = vector.broadcast %21 : vector<1x128xf32> to vector<512x128xf32>
    %23 = arith.addf %20, %22 : vector<512x128xf32>
    %cst_18 = arith.constant 0.000000e+00 : f32
    %24 = vector.broadcast %cst_18 : f32 to vector<512x128xf32>
    %25 = arith.cmpf ogt, %23, %24 : vector<512x128xf32>
    %cst_19 = arith.constant 1.000000e-01 : f32
    %26 = vector.broadcast %cst_19 : f32 to vector<512x128xf32>
    %27 = arith.mulf %26, %23 : vector<512x128xf32>
    %28 = arith.select %25, %23, %27 : vector<512x128xi1>, vector<512x128xf32>
    %29 = arith.truncf %28 : vector<512x128xf32> to vector<512x128xbf16>
    %c0_20 = arith.constant 0 : index
    %c0_21 = arith.constant 0 : index
    %30 = vector.load %arg5[%c0_20, %c0_21] : memref<128x128xbf16, #tpu.memory_space<vmem>>, vector<128x128xbf16>
    %cst_22 = arith.constant dense<0.000000e+00> : vector<512x128xf32>
    %31 = tpu.matmul %14, %30, %cst_22 {dimension_numbers = #tpu.dot_dimension_numbers<[1], [0], [0], [1], [0, 0, 1, 1], [], []>} : vector<512x128xbf16>, vector<128x128xbf16>, vector<512x128xf32> -> vector<512x128xf32>
    %c0_23 = arith.constant 0 : index
    %c0_24 = arith.constant 0 : index
    %32 = vector.load %arg6[%c0_23, %c0_24] : memref<128x128xbf16, #tpu.memory_space<vmem>>, vector<128x128xbf16>
    %cst_25 = arith.constant dense<0.000000e+00> : vector<512x128xf32>
    %33 = tpu.matmul %29, %32, %cst_25 {dimension_numbers = #tpu.dot_dimension_numbers<[1], [0], [0], [1], [0, 0, 1, 1], [], []>} : vector<512x128xbf16>, vector<128x128xbf16>, vector<512x128xf32> -> vector<512x128xf32>
    %34 = arith.addf %31, %33 : vector<512x128xf32>
    %c0_26 = arith.constant 0 : index
    %c0_27 = arith.constant 0 : index
    %35 = vector.load %arg11[%c0_26, %c0_27] : memref<1x128xf32, #tpu.memory_space<vmem>>, vector<1x128xf32>
    %36 = vector.broadcast %35 : vector<1x128xf32> to vector<512x128xf32>
    %37 = arith.mulf %34, %36 : vector<512x128xf32>
    %c0_28 = arith.constant 0 : index
    %c0_29 = arith.constant 0 : index
    %38 = vector.load %arg12[%c0_28, %c0_29] : memref<1x128xf32, #tpu.memory_space<vmem>>, vector<1x128xf32>
    %39 = vector.broadcast %38 : vector<1x128xf32> to vector<512x128xf32>
    %40 = arith.addf %37, %39 : vector<512x128xf32>
    %cst_30 = arith.constant 0.000000e+00 : f32
    %41 = vector.broadcast %cst_30 : f32 to vector<512x128xf32>
    %42 = arith.cmpf ogt, %40, %41 : vector<512x128xf32>
    %cst_31 = arith.constant 1.000000e-01 : f32
    %43 = vector.broadcast %cst_31 : f32 to vector<512x128xf32>
    %44 = arith.mulf %43, %40 : vector<512x128xf32>
    %45 = arith.select %42, %40, %44 : vector<512x128xi1>, vector<512x128xf32>
    %c0_32 = arith.constant 0 : index
    %c0_33 = arith.constant 0 : index
    %46 = vector.load %arg13[%c0_32, %c0_33] : memref<512x128xf32, #tpu.memory_space<vmem>>, vector<512x128xf32>
    tpu.vector_store %arg13[%c0_32, %c0_33], %45 {strides = array<i32>} : memref<512x128xf32, #tpu.memory_space<vmem>>, vector<512x128xf32>,
    return
  }
  func.func @transform_0(%arg0: i32) -> (i32, i32) {
    %c0_i32 = arith.constant 0 : i32
    %c0_i32_0 = arith.constant 0 : i32
    return %arg0, %c0_i32 : i32, i32
  }
  func.func @transform_1(%arg0: i32) -> (i32, i32) {
    %c0_i32 = arith.constant 0 : i32
    %c0_i32_0 = arith.constant 0 : i32
    return %arg0, %c0_i32 : i32, i32
  }
  func.func @transform_2(%arg0: i32) -> (i32, i32) {
    %c0_i32 = arith.constant 0 : i32
    %c0_i32_0 = arith.constant 0 : i32
    %c0_i32_1 = arith.constant 0 : i32
    return %c0_i32, %c0_i32_0 : i32, i32
  }
  func.func @transform_3(%arg0: i32) -> (i32, i32) {
    %c0_i32 = arith.constant 0 : i32
    %c0_i32_0 = arith.constant 0 : i32
    %c0_i32_1 = arith.constant 0 : i32
    return %c0_i32, %c0_i32_0 : i32, i32
  }
  func.func @transform_4(%arg0: i32) -> (i32, i32) {
    %c0_i32 = arith.constant 0 : i32
    %c0_i32_0 = arith.constant 0 : i32
    %c0_i32_1 = arith.constant 0 : i32
    return %c0_i32, %c0_i32_0 : i32, i32
  }
  func.func @transform_5(%arg0: i32) -> (i32, i32) {
    %c0_i32 = arith.constant 0 : i32
    %c0_i32_0 = arith.constant 0 : i32
    %c0_i32_1 = arith.constant 0 : i32
    return %c0_i32, %c0_i32_0 : i32, i32
  }
  func.func @transform_6(%arg0: i32) -> (i32, i32) {
    %c0_i32 = arith.constant 0 : i32
    %c0_i32_0 = arith.constant 0 : i32
    %c0_i32_1 = arith.constant 0 : i32
    return %c0_i32, %c0_i32_0 : i32, i32
  }
  func.func @transform_7(%arg0: i32) -> (i32, i32) {
    %c0_i32 = arith.constant 0 : i32
    %c0_i32_0 = arith.constant 0 : i32
    %c0_i32_1 = arith.constant 0 : i32
    return %c0_i32, %c0_i32_0 : i32, i32
  }
  func.func @transform_8(%arg0: i32) -> (i32, i32) {
    %c0_i32 = arith.constant 0 : i32
    %c0_i32_0 = arith.constant 0 : i32
    %c0_i32_1 = arith.constant 0 : i32
    return %c0_i32, %c0_i32_0 : i32, i32
  }
  func.func @transform_9(%arg0: i32) -> (i32, i32) {
    %c0_i32 = arith.constant 0 : i32
    %c0_i32_0 = arith.constant 0 : i32
    %c0_i32_1 = arith.constant 0 : i32
    return %c0_i32, %c0_i32_0 : i32, i32
  }
  func.func @transform_10(%arg0: i32) -> (i32, i32) {
    %c0_i32 = arith.constant 0 : i32
    %c0_i32_0 = arith.constant 0 : i32
    %c0_i32_1 = arith.constant 0 : i32
    return %c0_i32, %c0_i32_0 : i32, i32
  }
  func.func @transform_11(%arg0: i32) -> (i32, i32) {
    %c0_i32 = arith.constant 0 : i32
    %c0_i32_0 = arith.constant 0 : i32
    %c0_i32_1 = arith.constant 0 : i32
    return %c0_i32, %c0_i32_0 : i32, i32
  }
  func.func @transform_12(%arg0: i32) -> (i32, i32) {
    %c0_i32 = arith.constant 0 : i32
    %c0_i32_0 = arith.constant 0 : i32
    return %arg0, %c0_i32 : i32, i32
  }
}

</mosaic_0001>

<llo_original>
// kernel: _lambda_.3
$region0: #{_lambda_.3}
  #allocation0 [shape = 'u32[]', space=smem, size = 0x4, offset = 0x4, fixed_abs, tag = 'smem constant byte address 0x4 - core index']
  #allocation1 [shape = 'u32[144,128]{1,0:T(1,128)}', space=vmem, size = 0x12000, scoped, tag = 'internal scratch']
  %s0 = inlined_call_operand.vmem [shape: bf16[512,128], index: 0, kind: input, shape index: {}]
  %s1 = inlined_call_operand.vmem [shape: bf16[128,128], index: 1, kind: input, shape index: {}]
  %s2 = inlined_call_operand.vmem [shape: f32[1,128], index: 2, kind: input, shape index: {}]
  %s3 = inlined_call_operand.vmem [shape: f32[1,128], index: 3, kind: input, shape index: {}]
  %s4 = inlined_call_operand.vmem [shape: bf16[512,128], index: 4, kind: output, shape index: {}]
  %s5 = sld [smem:[#allocation0]]
  $region26: #{_lambda_.3} parent=0
    _
  %s7 = ssub.s32 1, %s5
  %s8 = scalar_select 0, %s7, %s5
  // Predicated region
  $region2: #{_lambda_.3} parent=0 // pred_check
    _
  $region3: #{_lambda_.3} parent=0 // pred_check_branch
    %10 = sbr.rel (0) target = $region5
  $region4: #{_lambda_.3} parent=0 // pred_region
    _
  $region5: #{_lambda_.3} parent=0 // pred_fallthru
    _
  // Predicated region
  $region6: #{_lambda_.3} parent=0 // pred_check
    _
  $region7: #{_lambda_.3} parent=0 // pred_check_branch
    %12 = sbr.rel (0) target = $region9
  $region8: #{_lambda_.3} parent=0 // pred_region
    _
  $region9: #{_lambda_.3} parent=0 // pred_fallthru
    _
  // Predicated region
  $region10: #{_lambda_.3} parent=0 // pred_check
    _
  $region11: #{_lambda_.3} parent=0 // pred_check_branch
    %14 = sbr.rel (0) target = $region13
  $region12: #{_lambda_.3} parent=0 // pred_region
    _
  $region13: #{_lambda_.3} parent=0 // pred_fallthru
    _
  // Predicated region
  $region14: #{_lambda_.3} parent=0 // pred_check
    _
  $region15: #{_lambda_.3} parent=0 // pred_check_branch
    %16 = sbr.rel (0) target = $region17
  $region16: #{_lambda_.3} parent=0 // pred_region
    _
  $region17: #{_lambda_.3} parent=0 // pred_fallthru
    _
  %v18 = vld [vmem:[%s0] sm:$0xf]
  %v19 = vld [vmem:[%s0 + $0x4] sm:$0xf]
  %v20 = vld [vmem:[%s0 + $0x8] sm:$0xf]
  %v21 = vld [vmem:[%s0 + $0xc] sm:$0xf]
  %v22 = vld [vmem:[%s0 + $0x10] sm:$0xf]
  %v23 = vld [vmem:[%s0 + $0x14] sm:$0xf]
  %v24 = vld [vmem:[%s0 + $0x18] sm:$0xf]
  %v25 = vld [vmem:[%s0 + $0x1c] sm:$0xf]
  %v26 = vld [vmem:[%s0 + $0x20] sm:$0xf]
  %v27 = vld [vmem:[%s0 + $0x24] sm:$0xf]
  %v28 = vld [vmem:[%s0 + $0x28] sm:$0xf]
  %v29 = vld [vmem:[%s0 + $0x2c] sm:$0xf]
  %v30 = vld [vmem:[%s0 + $0x30] sm:$0xf]
  %v31 = vld [vmem:[%s0 + $0x34] sm:$0xf]
  %v32 = vld [vmem:[%s0 + $0x38] sm:$0xf]
  %v33 = vld [vmem:[%s0 + $0x3c] sm:$0xf]
  %v34 = vld [vmem:[%s0 + $0x40] sm:$0xf]
  %v35 = vld [vmem:[%s0 + $0x44] sm:$0xf]
  %v36 = vld [vmem:[%s0 + $0x48] sm:$0xf]
  %v37 = vld [vmem:[%s0 + $0x4c] sm:$0xf]
  %v38 = vld [vmem:[%s0 + $0x50] sm:$0xf]
  %v39 = vld [vmem:[%s0 + $0x54] sm:$0xf]
  %v40 = vld [vmem:[%s0 + $0x58] sm:$0xf]
  %v41 = vld [vmem:[%s0 + $0x5c] sm:$0xf]
  %v42 = vld [vmem:[%s0 + $0x60] sm:$0xf]
  %v43 = vld [vmem:[%s0 + $0x64] sm:$0xf]
  %v44 = vld [vmem:[%s0 + $0x68] sm:$0xf]
  %v45 = vld [vmem:[%s0 + $0x6c] sm:$0xf]
  %v46 = vld [vmem:[%s0 + $0x70] sm:$0xf]
  %v47 = vld [vmem:[%s0 + $0x74] sm:$0xf]
  %v48 = vld [vmem:[%s0 + $0x78] sm:$0xf]
  %v49 = vld [vmem:[%s0 + $0x7c] sm:$0xf]
  %v50 = vld [vmem:[%s0 + $0x80] sm:$0xf]
  %v51 = vld [vmem:[%s0 + $0x84] sm:$0xf]
  %v52 = vld [vmem:[%s0 + $0x88] sm:$0xf]
  %v53 = vld [vmem:[%s0 + $0x8c] sm:$0xf]
  %v54 = vld [vmem:[%s0 + $0x90] sm:$0xf]
  %v55 = vld [vmem:[%s0 + $0x94] sm:$0xf]
  %v56 = vld [vmem:[%s0 + $0x98] sm:$0xf]
  %v57 = vld [vmem:[%s0 + $0x9c] sm:$0xf]
  %v58 = vld [vmem:[%s0 + $0xa0] sm:$0xf]
  %v59 = vld [vmem:[%s0 + $0xa4] sm:$0xf]
  %v60 = vld [vmem:[%s0 + $0xa8] sm:$0xf]
  %v61 = vld [vmem:[%s0 + $0xac] sm:$0xf]
  %v62 = vld [vmem:[%s0 + $0xb0] sm:$0xf]
  %v63 = vld [vmem:[%s0 + $0xb4] sm:$0xf]
  %v64 = vld [vmem:[%s0 + $0xb8] sm:$0xf]
  %v65 = vld [vmem:[%s0 + $0xbc] sm:$0xf]
  %v66 = vld [vmem:[%s0 + $0xc0] sm:$0xf]
  %v67 = vld [vmem:[%s0 + $0xc4] sm:$0xf]
  %v68 = vld [vmem:[%s0 + $0xc8] sm:$0xf]
  %v69 = vld [vmem:[%s0 + $0xcc] sm:$0xf]
  %v70 = vld [vmem:[%s0 + $0xd0] sm:$0xf]
  %v71 = vld [vmem:[%s0 + $0xd4] sm:$0xf]
  %v72 = vld [vmem:[%s0 + $0xd8] sm:$0xf]
  %v73 = vld [vmem:[%s0 + $0xdc] sm:$0xf]
  %v74 = vld [vmem:[%s0 + $0xe0] sm:$0xf]
  %v75 = vld [vmem:[%s0 + $0xe4] sm:$0xf]
  %v76 = vld [vmem:[%s0 + $0xe8] sm:$0xf]
  %v77 = vld [vmem:[%s0 + $0xec] sm:$0xf]
  %v78 = vld [vmem:[%s0 + $0xf0] sm:$0xf]
  %v79 = vld [vmem:[%s0 + $0xf4] sm:$0xf]
  %v80 = vld [vmem:[%s0 + $0xf8] sm:$0xf]
  %v81 = vld [vmem:[%s0 + $0xfc] sm:$0xf]
  %v82 = vld [vmem:[%s1] sm:$0xf]
  %v83 = vld [vmem:[%s1 + $0x4] sm:$0xf]
  %v84 = vld [vmem:[%s1 + $0x8] sm:$0xf]
  %v85 = vld [vmem:[%s1 + $0xc] sm:$0xf]
  %v86 = vld [vmem:[%s1 + $0x10] sm:$0xf]
  %v87 = vld [vmem:[%s1 + $0x14] sm:$0xf]
  %v88 = vld [vmem:[%s1 + $0x18] sm:$0xf]
  %v89 = vld [vmem:[%s1 + $0x1c] sm:$0xf]
  %v90 = vld [vmem:[%s1 + $0x20] sm:$0xf]
  %v91 = vld [vmem:[%s1 + $0x24] sm:$0xf]
  %v92 = vld [vmem:[%s1 + $0x28] sm:$0xf]
  %v93 = vld [vmem:[%s1 + $0x2c] sm:$0xf]
  %v94 = vld [vmem:[%s1 + $0x30] sm:$0xf]
  %v95 = vld [vmem:[%s1 + $0x34] sm:$0xf]
  %v96 = vld [vmem:[%s1 + $0x38] sm:$0xf]
  %v97 = vld [vmem:[%s1 + $0x3c] sm:$0xf]
  %v162 = vunpack.c.l.b16 %v18
  %v163 = vunpack.c.l.b16 %v19
  %v164 = vunpack.c.l.b16 %v20
  %v165 = vunpack.c.l.b16 %v21
  %v166 = vunpack.c.l.b16 %v22
  %v167 = vunpack.c.l.b16 %v23
  %v168 = vunpack.c.l.b16 %v24
  %v169 = vunpack.c.l.b16 %v25
  %v170 = vunpack.c.l.b16 %v26
  %v171 = vunpack.c.l.b16 %v27
  %v172 = vunpack.c.l.b16 %v28
  %v173 = vunpack.c.l.b16 %v29
  %v174 = vunpack.c.l.b16 %v30
  %v175 = vunpack.c.l.b16 %v31
  %v176 = vunpack.c.l.b16 %v32
  %v177 = vunpack.c.l.b16 %v33
  %v178 = vunpack.c.l.b16 %v34
  %v179 = vunpack.c.l.b16 %v35
  %v180 = vunpack.c.l.b16 %v36
  %v181 = vunpack.c.l.b16 %v37
  %v182 = vunpack.c.l.b16 %v38
  %v183 = vunpack.c.l.b16 %v39
  %v184 = vunpack.c.l.b16 %v40
  %v185 = vunpack.c.l.b16 %v41
  %v186 = vunpack.c.l.b16 %v42
  %v187 = vunpack.c.l.b16 %v43
  %v188 = vunpack.c.l.b16 %v44
  %v189 = vunpack.c.l.b16 %v45
  %v190 = vunpack.c.l.b16 %v46
  %v191 = vunpack.c.l.b16 %v47
  %v192 = vunpack.c.l.b16 %v48
  %v193 = vunpack.c.l.b16 %v49
  %v194 = vunpack.c.l.b16 %v50
  %v195 = vunpack.c.l.b16 %v51
  %v196 = vunpack.c.l.b16 %v52
  %v197 = vunpack.c.l.b16 %v53
  %v198 = vunpack.c.l.b16 %v54
  %v199 = vunpack.c.l.b16 %v55
  %v200 = vunpack.c.l.b16 %v56
  %v201 = vunpack.c.l.b16 %v57
  %v202 = vunpack.c.l.b16 %v58
  %v203 = vunpack.c.l.b16 %v59
  %v204 = vunpack.c.l.b16 %v60
  %v205 = vunpack.c.l.b16 %v61
  %v206 = vunpack.c.l.b16 %v62
  %v207 = vunpack.c.l.b16 %v63
  %v208 = vunpack.c.l.b16 %v64
  %v209 = vunpack.c.l.b16 %v65
  %v210 = vunpack.c.l.b16 %v66
  %v211 = vunpack.c.l.b16 %v67
  %v212 = vunpack.c.l.b16 %v68
  %v213 = vunpack.c.l.b16 %v69
  %v214 = vunpack.c.l.b16 %v70
  %v215 = vunpack.c.l.b16 %v71
  %v216 = vunpack.c.l.b16 %v72
  %v217 = vunpack.c.l.b16 %v73
  %v218 = vunpack.c.l.b16 %v74
  %v219 = vunpack.c.l.b16 %v75
  %v220 = vunpack.c.l.b16 %v76
  %v221 = vunpack.c.l.b16 %v77
  %v222 = vunpack.c.l.b16 %v78
  %v223 = vunpack.c.l.b16 %v79
  %v224 = vunpack.c.l.b16 %v80
  %v225 = vunpack.c.l.b16 %v81
  %v226 = vpack.c.b16 %v163, %v162
  %v227 = vpack.c.b16 %v165, %v164
  %v228 = vpack.c.b16 %v167, %v166
  %v229 = vpack.c.b16 %v169, %v168
  %v230 = vpack.c.b16 %v171, %v170
  %v231 = vpack.c.b16 %v173, %v172
  %v232 = vpack.c.b16 %v175, %v174
  %v233 = vpack.c.b16 %v177, %v176
  %v234 = vpack.c.b16 %v179, %v178
  %v235 = vpack.c.b16 %v181, %v180
  %v236 = vpack.c.b16 %v183, %v182
  %v237 = vpack.c.b16 %v185, %v184
  %v238 = vpack.c.b16 %v187, %v186
  %v239 = vpack.c.b16 %v189, %v188
  %v240 = vpack.c.b16 %v191, %v190
  %v241 = vpack.c.b16 %v193, %v192
  %v242 = vpack.c.b16 %v195, %v194
  %v243 = vpack.c.b16 %v197, %v196
  %v244 = vpack.c.b16 %v199, %v198
  %v245 = vpack.c.b16 %v201, %v200
  %v246 = vpack.c.b16 %v203, %v202
  %v247 = vpack.c.b16 %v205, %v204
  %v248 = vpack.c.b16 %v207, %v206
  %v249 = vpack.c.b16 %v209, %v208
  %v250 = vpack.c.b16 %v211, %v210
  %v251 = vpack.c.b16 %v213, %v212
  %v252 = vpack.c.b16 %v215, %v214
  %v253 = vpack.c.b16 %v217, %v216
  %v254 = vpack.c.b16 %v219, %v218
  %v255 = vpack.c.b16 %v221, %v220
  %v256 = vpack.c.b16 %v223, %v222
  %v257 = vpack.c.b16 %v225, %v224
  %v306 = vunpack.c.l.b16 %v82
  %v307 = vunpack.c.l.b16 %v83
  %v308 = vunpack.c.l.b16 %v84
  %v309 = vunpack.c.l.b16 %v85
  %v310 = vunpack.c.l.b16 %v86
  %v311 = vunpack.c.l.b16 %v87
  %v312 = vunpack.c.l.b16 %v88
  %v313 = vunpack.c.l.b16 %v89
  %v314 = vunpack.c.l.b16 %v90
  %v315 = vunpack.c.l.b16 %v91
  %v316 = vunpack.c.l.b16 %v92
  %v317 = vunpack.c.l.b16 %v93
  %v318 = vunpack.c.l.b16 %v94
  %v319 = vunpack.c.l.b16 %v95
  %v320 = vunpack.c.l.b16 %v96
  %v321 = vunpack.c.l.b16 %v97
  %v322 = vpack.c.b16 %v307, %v306
  %v323 = vpack.c.b16 %v309, %v308
  %v324 = vpack.c.b16 %v311, %v310
  %v325 = vpack.c.b16 %v313, %v312
  %v326 = vpack.c.b16 %v315, %v314
  %v327 = vpack.c.b16 %v317, %v316
  %v328 = vpack.c.b16 %v319, %v318
  %v329 = vpack.c.b16 %v321, %v320
  %338 = vmatprep.subr.bf16.mxu0 0
  %339 = vmatpush1.bf16.msra.mxu0 %v322
  %340 = vmatprep.subr.bf16.mxu0 0
  %341 = vmatpush1.bf16.msra.mxu0 %v323
  %342 = vmatprep.subr.bf16.mxu0 0
  %343 = vmatpush1.bf16.msra.mxu0 %v324
  %344 = vmatprep.subr.bf16.mxu0 0
  %345 = vmatpush1.bf16.msra.mxu0 %v325
  %346 = vmatprep.subr.bf16.mxu0 0
  %347 = vmatpush1.bf16.msra.mxu0 %v326
  %348 = vmatprep.subr.bf16.mxu0 0
  %349 = vmatpush1.bf16.msra.mxu0 %v327
  %350 = vmatprep.subr.bf16.mxu0 0
  %351 = vmatpush1.bf16.msra.mxu0 %v328
  %352 = vmatprep.subr.bf16.mxu0 0
  %353 = vmatpush1.bf16.msra.mxu0 %v329
  %354 = vmatprep.subr.bf16.mxu0 0
  %355 = vmatpush1.bf16.msra.mxu0 0
  %356 = vmatprep.subr.bf16.mxu0 0
  %357 = vmatpush1.bf16.msra.mxu0 0
  %358 = vmatprep.subr.bf16.mxu0 0
  %359 = vmatpush1.bf16.msra.mxu0 0
  %360 = vmatprep.subr.bf16.mxu0 0
  %361 = vmatpush1.bf16.msra.mxu0 0
  %362 = vmatprep.subr.bf16.mxu0 0
  %363 = vmatpush1.bf16.msra.mxu0 0
  %364 = vmatprep.subr.bf16.mxu0 0
  %365 = vmatpush1.bf16.msra.mxu0 0
  %366 = vmatprep.subr.bf16.mxu0 0
  %367 = vmatpush1.bf16.msra.mxu0 0
  %368 = vmatprep.subr.bf16.mxu0 0
  %369 = vmatpush1.bf16.msra.mxu0 0
  %370 = vmatprep.mubr.bf16.mxu0 0
  %371 = vmatmul.mubr.bf16.gmra.mrb[0].mxu0 %v226
  %v372 = vpop.f32.mrb[0].mxu0
  %v373 = vadd.f32 0.0, %v372
  %v374 = vpop.f32.mrb[0].mxu0
  %v375 = vpop.f32.mrb[0].mxu0
  %v376 = vadd.f32 0.0, %v375
  %v377 = vpop.f32.mrb[0].mxu0
  %378 = vmatprep.mubr.bf16.mxu0 0
  %379 = vmatmul.mubr.bf16.gmra.mrb[0].mxu0 %v227
  %v380 = vpop.f32.mrb[0].mxu0
  %v381 = vadd.f32 0.0, %v380
  %v382 = vpop.f32.mrb[0].mxu0
  %v383 = vpop.f32.mrb[0].mxu0
  %v384 = vadd.f32 0.0, %v383
  %v385 = vpop.f32.mrb[0].mxu0
  %386 = vmatprep.mubr.bf16.mxu0 0
  %387 = vmatmul.mubr.bf16.gmra.mrb[0].mxu0 %v228
  %v388 = vpop.f32.mrb[0].mxu0
  %v389 = vadd.f32 0.0, %v388
  %v390 = vpop.f32.mrb[0].mxu0
  %v391 = vpop.f32.mrb[0].mxu0
  %v392 = vadd.f32 0.0, %v391
  %v393 = vpop.f32.mrb[0].mxu0
  %394 = vmatprep.mubr.bf16.mxu0 0
  %395 = vmatmul.mubr.bf16.gmra.mrb[0].mxu0 %v229
  %v396 = vpop.f32.mrb[0].mxu0
  %v397 = vadd.f32 0.0, %v396
  %v398 = vpop.f32.mrb[0].mxu0
  %v399 = vpop.f32.mrb[0].mxu0
  %v400 = vadd.f32 0.0, %v399
  %v401 = vpop.f32.mrb[0].mxu0
  %402 = vmatprep.mubr.bf16.mxu0 0
  %403 = vmatmul.mubr.bf16.gmra.mrb[0].mxu0 %v230
  %v404 = vpop.f32.mrb[0].mxu0
  %v405 = vadd.f32 0.0, %v404
  %v406 = vpop.f32.mrb[0].mxu0
  %v407 = vpop.f32.mrb[0].mxu0
  %v408 = vadd.f32 0.0, %v407
  %v409 = vpop.f32.mrb[0].mxu0
  %410 = vmatprep.mubr.bf16.mxu0 0
  %411 = vmatmul.mubr.bf16.gmra.mrb[0].mxu0 %v231
  %v412 = vpop.f32.mrb[0].mxu0
  %v413 = vadd.f32 0.0, %v412
  %v414 = vpop.f32.mrb[0].mxu0
  %v415 = vpop.f32.mrb[0].mxu0
  %v416 = vadd.f32 0.0, %v415
  %v417 = vpop.f32.mrb[0].mxu0
  %418 = vmatprep.mubr.bf16.mxu0 0
  %419 = vmatmul.mubr.bf16.gmra.mrb[0].mxu0 %v232
  %v420 = vpop.f32.mrb[0].mxu0
  %v421 = vadd.f32 0.0, %v420
  %v422 = vpop.f32.mrb[0].mxu0
  %v423 = vpop.f32.mrb[0].mxu0
  %v424 = vadd.f32 0.0, %v423
  %v425 = vpop.f32.mrb[0].mxu0
  %426 = vmatprep.mubr.bf16.mxu0 0
  %427 = vmatmul.mubr.bf16.gmra.mrb[0].mxu0 %v233
  %v428 = vpop.f32.mrb[0].mxu0
  %v429 = vadd.f32 0.0, %v428
  %v430 = vpop.f32.mrb[0].mxu0
  %v431 = vpop.f32.mrb[0].mxu0
  %v432 = vadd.f32 0.0, %v431
  %v433 = vpop.f32.mrb[0].mxu0
  %434 = vmatprep.mubr.bf16.mxu0 0
  %435 = vmatmul.mubr.bf16.gmra.mrb[0].mxu0 %v234
  %v436 = vpop.f32.mrb[0].mxu0
  %v437 = vadd.f32 0.0, %v436
  %v438 = vpop.f32.mrb[0].mxu0
  %v439 = vpop.f32.mrb[0].mxu0
  %v440 = vadd.f32 0.0, %v439
  %v441 = vpop.f32.mrb[0].mxu0
  %442 = vmatprep.mubr.bf16.mxu0 0
  %443 = vmatmul.mubr.bf16.gmra.mrb[0].mxu0 %v235
  %v444 = vpop.f32.mrb[0].mxu0
  %v445 = vadd.f32 0.0, %v444
  %v446 = vpop.f32.mrb[0].mxu0
  %v447 = vpop.f32.mrb[0].mxu0
  %v448 = vadd.f32 0.0, %v447
  %v449 = vpop.f32.mrb[0].mxu0
  %450 = vmatprep.mubr.bf16.mxu0 0
  %451 = vmatmul.mubr.bf16.gmra.mrb[0].mxu0 %v236
  %v452 = vpop.f32.mrb[0].mxu0
  %v453 = vadd.f32 0.0, %v452
  %v454 = vpop.f32.mrb[0].mxu0
  %v455 = vpop.f32.mrb[0].mxu0
  %v456 = vadd.f32 0.0, %v455
  %v457 = vpop.f32.mrb[0].mxu0
  %458 = vmatprep.mubr.bf16.mxu0 0
  %459 = vmatmul.mubr.bf16.gmra.mrb[0].mxu0 %v237
  %v460 = vpop.f32.mrb[0].mxu0
  %v461 = vadd.f32 0.0, %v460
  %v462 = vpop.f32.mrb[0].mxu0
  %v463 = vpop.f32.mrb[0].mxu0
  %v464 = vadd.f32 0.0, %v463
  %v465 = vpop.f32.mrb[0].mxu0
  %466 = vmatprep.mubr.bf16.mxu0 0
  %467 = vmatmul.mubr.bf16.gmra.mrb[0].mxu0 %v238
  %v468 = vpop.f32.mrb[0].mxu0
  %v469 = vadd.f32 0.0, %v468
  %v470 = vpop.f32.mrb[0].mxu0
  %v471 = vpop.f32.mrb[0].mxu0
  %v472 = vadd.f32 0.0, %v471
  %v473 = vpop.f32.mrb[0].mxu0
  %474 = vmatprep.mubr.bf16.mxu0 0
  %475 = vmatmul.mubr.bf16.gmra.mrb[0].mxu0 %v239
  %v476 = vpop.f32.mrb[0].mxu0
  %v477 = vadd.f32 0.0, %v476
  %v478 = vpop.f32.mrb[0].mxu0
  %v479 = vpop.f32.mrb[0].mxu0
  %v480 = vadd.f32 0.0, %v479
  %v481 = vpop.f32.mrb[0].mxu0
  %482 = vmatprep.mubr.bf16.mxu0 0
  %483 = vmatmul.mubr.bf16.gmra.mrb[0].mxu0 %v240
  %v484 = vpop.f32.mrb[0].mxu0
  %v485 = vadd.f32 0.0, %v484
  %v486 = vpop.f32.mrb[0].mxu0
  %v487 = vpop.f32.mrb[0].mxu0
  %v488 = vadd.f32 0.0, %v487
  %v489 = vpop.f32.mrb[0].mxu0
  %490 = vmatprep.mubr.bf16.mxu0 0
  %491 = vmatmul.mubr.bf16.gmra.mrb[0].mxu0 %v241
  %v492 = vpop.f32.mrb[0].mxu0
  %v493 = vadd.f32 0.0, %v492
  %v494 = vpop.f32.mrb[0].mxu0
  %v495 = vpop.f32.mrb[0].mxu0
  %v496 = vadd.f32 0.0, %v495
  %v497 = vpop.f32.mrb[0].mxu0
  %498 = vmatprep.mubr.bf16.mxu0 0
  %499 = vmatmul.mubr.bf16.gmra.mrb[0].mxu0 %v242
  %v500 = vpop.f32.mrb[0].mxu0
  %v501 = vadd.f32 0.0, %v500
  %v502 = vpop.f32.mrb[0].mxu0
  %v503 = vpop.f32.mrb[0].mxu0
  %v504 = vadd.f32 0.0, %v503
  %v505 = vpop.f32.mrb[0].mxu0
  %506 = vmatprep.mubr.bf16.mxu0 0
  %507 = vmatmul.mubr.bf16.gmra.mrb[0].mxu0 %v243
  %v508 = vpop.f32.mrb[0].mxu0
  %v509 = vadd.f32 0.0, %v508
  %v510 = vpop.f32.mrb[0].mxu0
  %v511 = vpop.f32.mrb[0].mxu0
  %v512 = vadd.f32 0.0, %v511
  %v513 = vpop.f32.mrb[0].mxu0
  %514 = vmatprep.mubr.bf16.mxu0 0
  %515 = vmatmul.mubr.bf16.gmra.mrb[0].mxu0 %v244
  %v516 = vpop.f32.mrb[0].mxu0
  %v517 = vadd.f32 0.0, %v516
  %v518 = vpop.f32.mrb[0].mxu0
  %v519 = vpop.f32.mrb[0].mxu0
  %v520 = vadd.f32 0.0, %v519
  %v521 = vpop.f32.mrb[0].mxu0
  %522 = vmatprep.mubr.bf16.mxu0 0
  %523 = vmatmul.mubr.bf16.gmra.mrb[0].mxu0 %v245
  %v524 = vpop.f32.mrb[0].mxu0
  %v525 = vadd.f32 0.0, %v524
  %v526 = vpop.f32.mrb[0].mxu0
  %v527 = vpop.f32.mrb[0].mxu0
  %v528 = vadd.f32 0.0, %v527
  %v529 = vpop.f32.mrb[0].mxu0
  %530 = vmatprep.mubr.bf16.mxu0 0
  %531 = vmatmul.mubr.bf16.gmra.mrb[0].mxu0 %v246
  %v532 = vpop.f32.mrb[0].mxu0
  %v533 = vadd.f32 0.0, %v532
  %v534 = vpop.f32.mrb[0].mxu0
  %v535 = vpop.f32.mrb[0].mxu0
  %v536 = vadd.f32 0.0, %v535
  %v537 = vpop.f32.mrb[0].mxu0
  %538 = vmatprep.mubr.bf16.mxu0 0
  %539 = vmatmul.mubr.bf16.gmra.mrb[0].mxu0 %v247
  %v540 = vpop.f32.mrb[0].mxu0
  %v541 = vadd.f32 0.0, %v540
  %v542 = vpop.f32.mrb[0].mxu0
  %v543 = vpop.f32.mrb[0].mxu0
  %v544 = vadd.f32 0.0, %v543
  %v545 = vpop.f32.mrb[0].mxu0
  %546 = vmatprep.mubr.bf16.mxu0 0
  %547 = vmatmul.mubr.bf16.gmra.mrb[0].mxu0 %v248
  %v548 = vpop.f32.mrb[0].mxu0
  %v549 = vadd.f32 0.0, %v548
  %v550 = vpop.f32.mrb[0].mxu0
  %v551 = vpop.f32.mrb[0].mxu0
  %v552 = vadd.f32 0.0, %v551
  %v553 = vpop.f32.mrb[0].mxu0
  %554 = vmatprep.mubr.bf16.mxu0 0
  %555 = vmatmul.mubr.bf16.gmra.mrb[0].mxu0 %v249
  %v556 = vpop.f32.mrb[0].mxu0
  %v557 = vadd.f32 0.0, %v556
  %v558 = vpop.f32.mrb[0].mxu0
  %v559 = vpop.f32.mrb[0].mxu0
  %v560 = vadd.f32 0.0, %v559
  %v561 = vpop.f32.mrb[0].mxu0
  %562 = vmatprep.mubr.bf16.mxu0 0
  %563 = vmatmul.mubr.bf16.gmra.mrb[0].mxu0 %v250
  %v564 = vpop.f32.mrb[0].mxu0
  %v565 = vadd.f32 0.0, %v564
  %v566 = vpop.f32.mrb[0].mxu0
  %v567 = vpop.f32.mrb[0].mxu0
  %v568 = vadd.f32 0.0, %v567
  %v569 = vpop.f32.mrb[0].mxu0
  %570 = vmatprep.mubr.bf16.mxu0 0
  %571 = vmatmul.mubr.bf16.gmra.mrb[0].mxu0 %v251
  %v572 = vpop.f32.mrb[0].mxu0
  %v573 = vadd.f32 0.0, %v572
  %v574 = vpop.f32.mrb[0].mxu0
  %v575 = vpop.f32.mrb[0].mxu0
  %v576 = vadd.f32 0.0, %v575
  %v577 = vpop.f32.mrb[0].mxu0
  %578 = vmatprep.mubr.bf16.mxu0 0
  %579 = vmatmul.mubr.bf16.gmra.mrb[0].mxu0 %v252
  %v580 = vpop.f32.mrb[0].mxu0
  %v581 = vadd.f32 0.0, %v580
  %v582 = vpop.f32.mrb[0].mxu0
  %v583 = vpop.f32.mrb[0].mxu0
  %v584 = vadd.f32 0.0, %v583
  %v585 = vpop.f32.mrb[0].mxu0
  %586 = vmatprep.mubr.bf16.mxu0 0
  %587 = vmatmul.mubr.bf16.gmra.mrb[0].mxu0 %v253
  %v588 = vpop.f32.mrb[0].mxu0
  %v589 = vadd.f32 0.0, %v588
  %v590 = vpop.f32.mrb[0].mxu0
  %v591 = vpop.f32.mrb[0].mxu0
  %v592 = vadd.f32 0.0, %v591
  %v593 = vpop.f32.mrb[0].mxu0
  %594 = vmatprep.mubr.bf16.mxu0 0
  %595 = vmatmul.mubr.bf16.gmra.mrb[0].mxu0 %v254
  %v596 = vpop.f32.mrb[0].mxu0
  %v597 = vadd.f32 0.0, %v596
  %v598 = vpop.f32.mrb[0].mxu0
  %v599 = vpop.f32.mrb[0].mxu0
  %v600 = vadd.f32 0.0, %v599
  %v601 = vpop.f32.mrb[0].mxu0
  %602 = vmatprep.mubr.bf16.mxu0 0
  %603 = vmatmul.mubr.bf16.gmra.mrb[0].mxu0 %v255
  %v604 = vpop.f32.mrb[0].mxu0
  %v605 = vadd.f32 0.0, %v604
  %v606 = vpop.f32.mrb[0].mxu0
  %v607 = vpop.f32.mrb[0].mxu0
  %v608 = vadd.f32 0.0, %v607
  %v609 = vpop.f32.mrb[0].mxu0
  %610 = vmatprep.mubr.bf16.mxu0 0
  %611 = vmatmul.mubr.bf16.gmra.mrb[0].mxu0 %v256
  %v612 = vpop.f32.mrb[0].mxu0
  %v613 = vadd.f32 0.0, %v612
  %v614 = vpop.f32.mrb[0].mxu0
  %v615 = vpop.f32.mrb[0].mxu0
  %v616 = vadd.f32 0.0, %v615
  %v617 = vpop.f32.mrb[0].mxu0
  %618 = vmatprep.mubr.bf16.mxu0 0
  %619 = vmatmul.mubr.bf16.gmra.mrb[0].mxu0 %v257
  %v620 = vpop.f32.mrb[0].mxu0
  %v621 = vadd.f32 0.0, %v620
  %v622 = vpop.f32.mrb[0].mxu0
  %v623 = vpop.f32.mrb[0].mxu0
  %v624 = vadd.f32 0.0, %v623
  %v625 = vpop.f32.mrb[0].mxu0
  %626 = vdwg.mxu0
  %v627 = vld [vmem:[%s2] sm:$0x1]
  %v629 = vlaneseq
  %v630 = vshrl.u32 %v629, 7
  %v631 = vsub.s32 0, %v630
  %v632 = vrot.slane %v627, %v631
  %v634 = vmul.f32 %v373, %v632
  %v635 = vmul.f32 %v376, %v632
  %v636 = vmul.f32 %v381, %v632
  %v637 = vmul.f32 %v384, %v632
  %v638 = vmul.f32 %v389, %v632
  %v639 = vmul.f32 %v392, %v632
  %v640 = vmul.f32 %v397, %v632
  %v641 = vmul.f32 %v400, %v632
  %v642 = vmul.f32 %v405, %v632
  %v643 = vmul.f32 %v408, %v632
  %v644 = vmul.f32 %v413, %v632
  %v645 = vmul.f32 %v416, %v632
  %v646 = vmul.f32 %v421, %v632
  %v647 = vmul.f32 %v424, %v632
  %v648 = vmul.f32 %v429, %v632
  %v649 = vmul.f32 %v432, %v632
  %v650 = vmul.f32 %v437, %v632
  %v651 = vmul.f32 %v440, %v632
  %v652 = vmul.f32 %v445, %v632
  %v653 = vmul.f32 %v448, %v632
  %v654 = vmul.f32 %v453, %v632
  %v655 = vmul.f32 %v456, %v632
  %v656 = vmul.f32 %v461, %v632
  %v657 = vmul.f32 %v464, %v632
  %v658 = vmul.f32 %v469, %v632
  %v659 = vmul.f32 %v472, %v632
  %v660 = vmul.f32 %v477, %v632
  %v661 = vmul.f32 %v480, %v632
  %v662 = vmul.f32 %v485, %v632
  %v663 = vmul.f32 %v488, %v632
  %v664 = vmul.f32 %v493, %v632
  %v665 = vmul.f32 %v496, %v632
  %v666 = vmul.f32 %v501, %v632
  %v667 = vmul.f32 %v504, %v632
  %v668 = vmul.f32 %v509, %v632
  %v669 = vmul.f32 %v512, %v632
  %v670 = vmul.f32 %v517, %v632
  %v671 = vmul.f32 %v520, %v632
  %v672 = vmul.f32 %v525, %v632
  %v673 = vmul.f32 %v528, %v632
  %v674 = vmul.f32 %v533, %v632
  %v675 = vmul.f32 %v536, %v632
  %v676 = vmul.f32 %v541, %v632
  %v677 = vmul.f32 %v544, %v632
  %v678 = vmul.f32 %v549, %v632
  %v679 = vmul.f32 %v552, %v632
  %v680 = vmul.f32 %v557, %v632
  %v681 = vmul.f32 %v560, %v632
  %v682 = vmul.f32 %v565, %v632
  %v683 = vmul.f32 %v568, %v632
  %v684 = vmul.f32 %v573, %v632
  %v685 = vmul.f32 %v576, %v632
  %v686 = vmul.f32 %v581, %v632
  %v687 = vmul.f32 %v584, %v632
  %v688 = vmul.f32 %v589, %v632
  %v689 = vmul.f32 %v592, %v632
  %v690 = vmul.f32 %v597, %v632
  %v691 = vmul.f32 %v600, %v632
  %v692 = vmul.f32 %v605, %v632
  %v693 = vmul.f32 %v608, %v632
  %v694 = vmul.f32 %v613, %v632
  %v695 = vmul.f32 %v616, %v632
  %v696 = vmul.f32 %v621, %v632
  %v697 = vmul.f32 %v624, %v632
  %v698 = vld [vmem:[%s3] sm:$0x1]
  %v700 = vlaneseq
  %v701 = vshrl.u32 %v700, 7
  %v702 = vsub.s32 0, %v701
  %v703 = vrot.slane %v698, %v702
  %v705 = vadd.f32 %v634, %v703
  %v706 = vadd.f32 %v635, %v703
  %v707 = vadd.f32 %v636, %v703
  %v708 = vadd.f32 %v637, %v703
  %v709 = vadd.f32 %v638, %v703
  %v710 = vadd.f32 %v639, %v703
  %v711 = vadd.f32 %v640, %v703
  %v712 = vadd.f32 %v641, %v703
  %v713 = vadd.f32 %v642, %v703
  %v714 = vadd.f32 %v643, %v703
  %v715 = vadd.f32 %v644, %v703
  %v716 = vadd.f32 %v645, %v703
  %v717 = vadd.f32 %v646, %v703
  %v718 = vadd.f32 %v647, %v703
  %v719 = vadd.f32 %v648, %v703
  %v720 = vadd.f32 %v649, %v703
  %v721 = vadd.f32 %v650, %v703
  %v722 = vadd.f32 %v651, %v703
  %v723 = vadd.f32 %v652, %v703
  %v724 = vadd.f32 %v653, %v703
  %v725 = vadd.f32 %v654, %v703
  %v726 = vadd.f32 %v655, %v703
  %v727 = vadd.f32 %v656, %v703
  %v728 = vadd.f32 %v657, %v703
  %v729 = vadd.f32 %v658, %v703
  %v730 = vadd.f32 %v659, %v703
  %v731 = vadd.f32 %v660, %v703
  %v732 = vadd.f32 %v661, %v703
  %v733 = vadd.f32 %v662, %v703
  %v734 = vadd.f32 %v663, %v703
  %v735 = vadd.f32 %v664, %v703
  %v736 = vadd.f32 %v665, %v703
  %v737 = vadd.f32 %v666, %v703
  %v738 = vadd.f32 %v667, %v703
  %v739 = vadd.f32 %v668, %v703
  %v740 = vadd.f32 %v669, %v703
  %v741 = vadd.f32 %v670, %v703
  %v742 = vadd.f32 %v671, %v703
  %v743 = vadd.f32 %v672, %v703
  %v744 = vadd.f32 %v673, %v703
  %v745 = vadd.f32 %v674, %v703
  %v746 = vadd.f32 %v675, %v703
  %v747 = vadd.f32 %v676, %v703
  %v748 = vadd.f32 %v677, %v703
  %v749 = vadd.f32 %v678, %v703
  %v750 = vadd.f32 %v679, %v703
  %v751 = vadd.f32 %v680, %v703
  %v752 = vadd.f32 %v681, %v703
  %v753 = vadd.f32 %v682, %v703
  %v754 = vadd.f32 %v683, %v703
  %v755 = vadd.f32 %v684, %v703
  %v756 = vadd.f32 %v685, %v703
  %v757 = vadd.f32 %v686, %v703
  %v758 = vadd.f32 %v687, %v703
  %v759 = vadd.f32 %v688, %v703
  %v760 = vadd.f32 %v689, %v703
  %v761 = vadd.f32 %v690, %v703
  %v762 = vadd.f32 %v691, %v703
  %v763 = vadd.f32 %v692, %v703
  %v764 = vadd.f32 %v693, %v703
  %v765 = vadd.f32 %v694, %v703
  %v766 = vadd.f32 %v695, %v703
  %v767 = vadd.f32 %v696, %v703
  %v768 = vadd.f32 %v697, %v703
  %vm769 = vcmp.gt.f32.partialorder %v705, 0.0
  %vm770 = vcmp.gt.f32.partialorder %v706, 0.0
  %vm771 = vcmp.gt.f32.partialorder %v707, 0.0
  %vm772 = vcmp.gt.f32.partialorder %v708, 0.0
  %vm773 = vcmp.gt.f32.partialorder %v709, 0.0
  %vm774 = vcmp.gt.f32.partialorder %v710, 0.0
  %vm775 = vcmp.gt.f32.partialorder %v711, 0.0
  %vm776 = vcmp.gt.f32.partialorder %v712, 0.0
  %vm777 = vcmp.gt.f32.partialorder %v713, 0.0
  %vm778 = vcmp.gt.f32.partialorder %v714, 0.0
  %vm779 = vcmp.gt.f32.partialorder %v715, 0.0
  %vm780 = vcmp.gt.f32.partialorder %v716, 0.0
  %vm781 = vcmp.gt.f32.partialorder %v717, 0.0
  %vm782 = vcmp.gt.f32.partialorder %v718, 0.0
  %vm783 = vcmp.gt.f32.partialorder %v719, 0.0
  %vm784 = vcmp.gt.f32.partialorder %v720, 0.0
  %vm785 = vcmp.gt.f32.partialorder %v721, 0.0
  %vm786 = vcmp.gt.f32.partialorder %v722, 0.0
  %vm787 = vcmp.gt.f32.partialorder %v723, 0.0
  %vm788 = vcmp.gt.f32.partialorder %v724, 0.0
  %vm789 = vcmp.gt.f32.partialorder %v725, 0.0
  %vm790 = vcmp.gt.f32.partialorder %v726, 0.0
  %vm791 = vcmp.gt.f32.partialorder %v727, 0.0
  %vm792 = vcmp.gt.f32.partialorder %v728, 0.0
  %vm793 = vcmp.gt.f32.partialorder %v729, 0.0
  %vm794 = vcmp.gt.f32.partialorder %v730, 0.0
  %vm795 = vcmp.gt.f32.partialorder %v731, 0.0
  %vm796 = vcmp.gt.f32.partialorder %v732, 0.0
  %vm797 = vcmp.gt.f32.partialorder %v733, 0.0
  %vm798 = vcmp.gt.f32.partialorder %v734, 0.0
  %vm799 = vcmp.gt.f32.partialorder %v735, 0.0
  %vm800 = vcmp.gt.f32.partialorder %v736, 0.0
  %vm801 = vcmp.gt.f32.partialorder %v737, 0.0
  %vm802 = vcmp.gt.f32.partialorder %v738, 0.0
  %vm803 = vcmp.gt.f32.partialorder %v739, 0.0
  %vm804 = vcmp.gt.f32.partialorder %v740, 0.0
  %vm805 = vcmp.gt.f32.partialorder %v741, 0.0
  %vm806 = vcmp.gt.f32.partialorder %v742, 0.0
  %vm807 = vcmp.gt.f32.partialorder %v743, 0.0
  %vm808 = vcmp.gt.f32.partialorder %v744, 0.0
  %vm809 = vcmp.gt.f32.partialorder %v745, 0.0
  %vm810 = vcmp.gt.f32.partialorder %v746, 0.0
  %vm811 = vcmp.gt.f32.partialorder %v747, 0.0
  %vm812 = vcmp.gt.f32.partialorder %v748, 0.0
  %vm813 = vcmp.gt.f32.partialorder %v749, 0.0
  %vm814 = vcmp.gt.f32.partialorder %v750, 0.0
  %vm815 = vcmp.gt.f32.partialorder %v751, 0.0
  %vm816 = vcmp.gt.f32.partialorder %v752, 0.0
  %vm817 = vcmp.gt.f32.partialorder %v753, 0.0
  %vm818 = vcmp.gt.f32.partialorder %v754, 0.0
  %vm819 = vcmp.gt.f32.partialorder %v755, 0.0
  %vm820 = vcmp.gt.f32.partialorder %v756, 0.0
  %vm821 = vcmp.gt.f32.partialorder %v757, 0.0
  %vm822 = vcmp.gt.f32.partialorder %v758, 0.0
  %vm823 = vcmp.gt.f32.partialorder %v759, 0.0
  %vm824 = vcmp.gt.f32.partialorder %v760, 0.0
  %vm825 = vcmp.gt.f32.partialorder %v761, 0.0
  %vm826 = vcmp.gt.f32.partialorder %v762, 0.0
  %vm827 = vcmp.gt.f32.partialorder %v763, 0.0
  %vm828 = vcmp.gt.f32.partialorder %v764, 0.0
  %vm829 = vcmp.gt.f32.partialorder %v765, 0.0
  %vm830 = vcmp.gt.f32.partialorder %v766, 0.0
  %vm831 = vcmp.gt.f32.partialorder %v767, 0.0
  %vm832 = vcmp.gt.f32.partialorder %v768, 0.0
  %v833 = vmul.f32 %v705, 0.1
  %v834 = vmul.f32 %v706, 0.1
  %v835 = vmul.f32 %v707, 0.1
  %v836 = vmul.f32 %v708, 0.1
  %v837 = vmul.f32 %v709, 0.1
  %v838 = vmul.f32 %v710, 0.1
  %v839 = vmul.f32 %v711, 0.1
  %v840 = vmul.f32 %v712, 0.1
  %v841 = vmul.f32 %v713, 0.1
  %v842 = vmul.f32 %v714, 0.1
  %v843 = vmul.f32 %v715, 0.1
  %v844 = vmul.f32 %v716, 0.1
  %v845 = vmul.f32 %v717, 0.1
  %v846 = vmul.f32 %v718, 0.1
  %v847 = vmul.f32 %v719, 0.1
  %v848 = vmul.f32 %v720, 0.1
  %v849 = vmul.f32 %v721, 0.1
  %v850 = vmul.f32 %v722, 0.1
  %v851 = vmul.f32 %v723, 0.1
  %v852 = vmul.f32 %v724, 0.1
  %v853 = vmul.f32 %v725, 0.1
  %v854 = vmul.f32 %v726, 0.1
  %v855 = vmul.f32 %v727, 0.1
  %v856 = vmul.f32 %v728, 0.1
  %v857 = vmul.f32 %v729, 0.1
  %v858 = vmul.f32 %v730, 0.1
  %v859 = vmul.f32 %v731, 0.1
  %v860 = vmul.f32 %v732, 0.1
  %v861 = vmul.f32 %v733, 0.1
  %v862 = vmul.f32 %v734, 0.1
  %v863 = vmul.f32 %v735, 0.1
  %v864 = vmul.f32 %v736, 0.1
  %v865 = vmul.f32 %v737, 0.1
  %v866 = vmul.f32 %v738, 0.1
  %v867 = vmul.f32 %v739, 0.1
  %v868 = vmul.f32 %v740, 0.1
  %v869 = vmul.f32 %v741, 0.1
  %v870 = vmul.f32 %v742, 0.1
  %v871 = vmul.f32 %v743, 0.1
  %v872 = vmul.f32 %v744, 0.1
  %v873 = vmul.f32 %v745, 0.1
  %v874 = vmul.f32 %v746, 0.1
  %v875 = vmul.f32 %v747, 0.1
  %v876 = vmul.f32 %v748, 0.1
  %v877 = vmul.f32 %v749, 0.1
  %v878 = vmul.f32 %v750, 0.1
  %v879 = vmul.f32 %v751, 0.1
  %v880 = vmul.f32 %v752, 0.1
  %v881 = vmul.f32 %v753, 0.1
  %v882 = vmul.f32 %v754, 0.1
  %v883 = vmul.f32 %v755, 0.1
  %v884 = vmul.f32 %v756, 0.1
  %v885 = vmul.f32 %v757, 0.1
  %v886 = vmul.f32 %v758, 0.1
  %v887 = vmul.f32 %v759, 0.1
  %v888 = vmul.f32 %v760, 0.1
  %v889 = vmul.f32 %v761, 0.1
  %v890 = vmul.f32 %v762, 0.1
  %v891 = vmul.f32 %v763, 0.1
  %v892 = vmul.f32 %v764, 0.1
  %v893 = vmul.f32 %v765, 0.1
  %v894 = vmul.f32 %v766, 0.1
  %v895 = vmul.f32 %v767, 0.1
  %v896 = vmul.f32 %v768, 0.1
  %v897 = vsel %vm769, %v705, %v833
  %v898 = vsel %vm770, %v706, %v834
  %v899 = vsel %vm771, %v707, %v835
  %v900 = vsel %vm772, %v708, %v836
  %v901 = vsel %vm773, %v709, %v837
  %v902 = vsel %vm774, %v710, %v838
  %v903 = vsel %vm775, %v711, %v839
  %v904 = vsel %vm776, %v712, %v840
  %v905 = vsel %vm777, %v713, %v841
  %v906 = vsel %vm778, %v714, %v842
  %v907 = vsel %vm779, %v715, %v843
  %v908 = vsel %vm780, %v716, %v844
  %v909 = vsel %vm781, %v717, %v845
  %v910 = vsel %vm782, %v718, %v846
  %v911 = vsel %vm783, %v719, %v847
  %v912 = vsel %vm784, %v720, %v848
  %v913 = vsel %vm785, %v721, %v849
  %v914 = vsel %vm786, %v722, %v850
  %v915 = vsel %vm787, %v723, %v851
  %v916 = vsel %vm788, %v724, %v852
  %v917 = vsel %vm789, %v725, %v853
  %v918 = vsel %vm790, %v726, %v854
  %v919 = vsel %vm791, %v727, %v855
  %v920 = vsel %vm792, %v728, %v856
  %v921 = vsel %vm793, %v729, %v857
  %v922 = vsel %vm794, %v730, %v858
  %v923 = vsel %vm795, %v731, %v859
  %v924 = vsel %vm796, %v732, %v860
  %v925 = vsel %vm797, %v733, %v861
  %v926 = vsel %vm798, %v734, %v862
  %v927 = vsel %vm799, %v735, %v863
  %v928 = vsel %vm800, %v736, %v864
  %v929 = vsel %vm801, %v737, %v865
  %v930 = vsel %vm802, %v738, %v866
  %v931 = vsel %vm803, %v739, %v867
  %v932 = vsel %vm804, %v740, %v868
  %v933 = vsel %vm805, %v741, %v869
  %v934 = vsel %vm806, %v742, %v870
  %v935 = vsel %vm807, %v743, %v871
  %v936 = vsel %vm808, %v744, %v872
  %v937 = vsel %vm809, %v745, %v873
  %v938 = vsel %vm810, %v746, %v874
  %v939 = vsel %vm811, %v747, %v875
  %v940 = vsel %vm812, %v748, %v876
  %v941 = vsel %vm813, %v749, %v877
  %v942 = vsel %vm814, %v750, %v878
  %v943 = vsel %vm815, %v751, %v879
  %v944 = vsel %vm816, %v752, %v880
  %v945 = vsel %vm817, %v753, %v881
  %v946 = vsel %vm818, %v754, %v882
  %v947 = vsel %vm819, %v755, %v883
  %v948 = vsel %vm820, %v756, %v884
  %v949 = vsel %vm821, %v757, %v885
  %v950 = vsel %vm822, %v758, %v886
  %v951 = vsel %vm823, %v759, %v887
  %v952 = vsel %vm824, %v760, %v888
  %v953 = vsel %vm825, %v761, %v889
  %v954 = vsel %vm826, %v762, %v890
  %v955 = vsel %vm827, %v763, %v891
  %v956 = vsel %vm828, %v764, %v892
  %v957 = vsel %vm829, %v765, %v893
  %v958 = vsel %vm830, %v766, %v894
  %v959 = vsel %vm831, %v767, %v895
  %v960 = vsel %vm832, %v768, %v896
  %v961 = vpack.c.bf16 %v898, %v897
  %v962 = vpack.c.bf16 %v900, %v899
  %v963 = vpack.c.bf16 %v902, %v901
  %v964 = vpack.c.bf16 %v904, %v903
  %v965 = vpack.c.bf16 %v906, %v905
  %v966 = vpack.c.bf16 %v908, %v907
  %v967 = vpack.c.bf16 %v910, %v909
  %v968 = vpack.c.bf16 %v912, %v911
  %v969 = vpack.c.bf16 %v914, %v913
  %v970 = vpack.c.bf16 %v916, %v915
  %v971 = vpack.c.bf16 %v918, %v917
  %v972 = vpack.c.bf16 %v920, %v919
  %v973 = vpack.c.bf16 %v922, %v921
  %v974 = vpack.c.bf16 %v924, %v923
  %v975 = vpack.c.bf16 %v926, %v925
  %v976 = vpack.c.bf16 %v928, %v927
  %v977 = vpack.c.bf16 %v930, %v929
  %v978 = vpack.c.bf16 %v932, %v931
  %v979 = vpack.c.bf16 %v934, %v933
  %v980 = vpack.c.bf16 %v936, %v935
  %v981 = vpack.c.bf16 %v938, %v937
  %v982 = vpack.c.bf16 %v940, %v939
  %v983 = vpack.c.bf16 %v942, %v941
  %v984 = vpack.c.bf16 %v944, %v943
  %v985 = vpack.c.bf16 %v946, %v945
  %v986 = vpack.c.bf16 %v948, %v947
  %v987 = vpack.c.bf16 %v950, %v949
  %v988 = vpack.c.bf16 %v952, %v951
  %v989 = vpack.c.bf16 %v954, %v953
  %v990 = vpack.c.bf16 %v956, %v955
  %v991 = vpack.c.bf16 %v958, %v957
  %v992 = vpack.c.bf16 %v960, %v959
  %v1025 = vunpack.c.l.b16 %v961
  %v1026 = vunpack.c.h.b16 %v961
  %v1027 = vunpack.c.l.b16 %v962
  %v1028 = vunpack.c.h.b16 %v962
  %v1029 = vunpack.c.l.b16 %v963
  %v1030 = vunpack.c.h.b16 %v963
  %v1031 = vunpack.c.l.b16 %v964
  %v1032 = vunpack.c.h.b16 %v964
  %v1033 = vunpack.c.l.b16 %v965
  %v1034 = vunpack.c.h.b16 %v965
  %v1035 = vunpack.c.l.b16 %v966
  %v1036 = vunpack.c.h.b16 %v966
  %v1037 = vunpack.c.l.b16 %v967
  %v1038 = vunpack.c.h.b16 %v967
  %v1039 = vunpack.c.l.b16 %v968
  %v1040 = vunpack.c.h.b16 %v968
  %v1041 = vunpack.c.l.b16 %v969
  %v1042 = vunpack.c.h.b16 %v969
  %v1043 = vunpack.c.l.b16 %v970
  %v1044 = vunpack.c.h.b16 %v970
  %v1045 = vunpack.c.l.b16 %v971
  %v1046 = vunpack.c.h.b16 %v971
  %v1047 = vunpack.c.l.b16 %v972
  %v1048 = vunpack.c.h.b16 %v972
  %v1049 = vunpack.c.l.b16 %v973
  %v1050 = vunpack.c.h.b16 %v973
  %v1051 = vunpack.c.l.b16 %v974
  %v1052 = vunpack.c.h.b16 %v974
  %v1053 = vunpack.c.l.b16 %v975
  %v1054 = vunpack.c.h.b16 %v975
  %v1055 = vunpack.c.l.b16 %v976
  %v1056 = vunpack.c.h.b16 %v976
  %v1057 = vunpack.c.l.b16 %v977
  %v1058 = vunpack.c.h.b16 %v977
  %v1059 = vunpack.c.l.b16 %v978
  %v1060 = vunpack.c.h.b16 %v978
  %v1061 = vunpack.c.l.b16 %v979
  %v1062 = vunpack.c.h.b16 %v979
  %v1063 = vunpack.c.l.b16 %v980
  %v1064 = vunpack.c.h.b16 %v980
  %v1065 = vunpack.c.l.b16 %v981
  %v1066 = vunpack.c.h.b16 %v981
  %v1067 = vunpack.c.l.b16 %v982
  %v1068 = vunpack.c.h.b16 %v982
  %v1069 = vunpack.c.l.b16 %v983
  %v1070 = vunpack.c.h.b16 %v983
  %v1071 = vunpack.c.l.b16 %v984
  %v1072 = vunpack.c.h.b16 %v984
  %v1073 = vunpack.c.l.b16 %v985
  %v1074 = vunpack.c.h.b16 %v985
  %v1075 = vunpack.c.l.b16 %v986
  %v1076 = vunpack.c.h.b16 %v986
  %v1077 = vunpack.c.l.b16 %v987
  %v1078 = vunpack.c.h.b16 %v987
  %v1079 = vunpack.c.l.b16 %v988
  %v1080 = vunpack.c.h.b16 %v988
  %v1081 = vunpack.c.l.b16 %v989
  %v1082 = vunpack.c.h.b16 %v989
  %v1083 = vunpack.c.l.b16 %v990
  %v1084 = vunpack.c.h.b16 %v990
  %v1085 = vunpack.c.l.b16 %v991
  %v1086 = vunpack.c.h.b16 %v991
  %v1087 = vunpack.c.l.b16 %v992
  %v1088 = vunpack.c.h.b16 %v992
  %v1089 = vpack.c.b16 %v1025, %v1025
  %v1090 = vpack.c.b16 %v1026, %v1026
  %v1091 = vpack.c.b16 %v1027, %v1027
  %v1092 = vpack.c.b16 %v1028, %v1028
  %v1093 = vpack.c.b16 %v1029, %v1029
  %v1094 = vpack.c.b16 %v1030, %v1030
  %v1095 = vpack.c.b16 %v1031, %v1031
  %v1096 = vpack.c.b16 %v1032, %v1032
  %v1097 = vpack.c.b16 %v1033, %v1033
  %v1098 = vpack.c.b16 %v1034, %v1034
  %v1099 = vpack.c.b16 %v1035, %v1035
  %v1100 = vpack.c.b16 %v1036, %v1036
  %v1101 = vpack.c.b16 %v1037, %v1037
  %v1102 = vpack.c.b16 %v1038, %v1038
  %v1103 = vpack.c.b16 %v1039, %v1039
  %v1104 = vpack.c.b16 %v1040, %v1040
  %v1105 = vpack.c.b16 %v1041, %v1041
  %v1106 = vpack.c.b16 %v1042, %v1042
  %v1107 = vpack.c.b16 %v1043, %v1043
  %v1108 = vpack.c.b16 %v1044, %v1044
  %v1109 = vpack.c.b16 %v1045, %v1045
  %v1110 = vpack.c.b16 %v1046, %v1046
  %v1111 = vpack.c.b16 %v1047, %v1047
  %v1112 = vpack.c.b16 %v1048, %v1048
  %v1113 = vpack.c.b16 %v1049, %v1049
  %v1114 = vpack.c.b16 %v1050, %v1050
  %v1115 = vpack.c.b16 %v1051, %v1051
  %v1116 = vpack.c.b16 %v1052, %v1052
  %v1117 = vpack.c.b16 %v1053, %v1053
  %v1118 = vpack.c.b16 %v1054, %v1054
  %v1119 = vpack.c.b16 %v1055, %v1055
  %v1120 = vpack.c.b16 %v1056, %v1056
  %v1121 = vpack.c.b16 %v1057, %v1057
  %v1122 = vpack.c.b16 %v1058, %v1058
  %v1123 = vpack.c.b16 %v1059, %v1059
  %v1124 = vpack.c.b16 %v1060, %v1060
  %v1125 = vpack.c.b16 %v1061, %v1061
  %v1126 = vpack.c.b16 %v1062, %v1062
  %v1127 = vpack.c.b16 %v1063, %v1063
  %v1128 = vpack.c.b16 %v1064, %v1064
  %v1129 = vpack.c.b16 %v1065, %v1065
  %v1130 = vpack.c.b16 %v1066, %v1066
  %v1131 = vpack.c.b16 %v1067, %v1067
  %v1132 = vpack.c.b16 %v1068, %v1068
  %v1133 = vpack.c.b16 %v1069, %v1069
  %v1134 = vpack.c.b16 %v1070, %v1070
  %v1135 = vpack.c.b16 %v1071, %v1071
  %v1136 = vpack.c.b16 %v1072, %v1072
  %v1137 = vpack.c.b16 %v1073, %v1073
  %v1138 = vpack.c.b16 %v1074, %v1074
  %v1139 = vpack.c.b16 %v1075, %v1075
  %v1140 = vpack.c.b16 %v1076, %v1076
  %v1141 = vpack.c.b16 %v1077, %v1077
  %v1142 = vpack.c.b16 %v1078, %v1078
  %v1143 = vpack.c.b16 %v1079, %v1079
  %v1144 = vpack.c.b16 %v1080, %v1080
  %v1145 = vpack.c.b16 %v1081, %v1081
  %v1146 = vpack.c.b16 %v1082, %v1082
  %v1147 = vpack.c.b16 %v1083, %v1083
  %v1148 = vpack.c.b16 %v1084, %v1084
  %v1149 = vpack.c.b16 %v1085, %v1085
  %v1150 = vpack.c.b16 %v1086, %v1086
  %v1151 = vpack.c.b16 %v1087, %v1087
  %v1152 = vpack.c.b16 %v1088, %v1088
  %1217 = vst [vmem:[%s4] sm:$0xf] %v1089
  %1218 = vst [vmem:[%s4 + $0x4] sm:$0xf] %v1090
  %1219 = vst [vmem:[%s4 + $0x8] sm:$0xf] %v1091
  %1220 = vst [vmem:[%s4 + $0xc] sm:$0xf] %v1092
  %1221 = vst [vmem:[%s4 + $0x10] sm:$0xf] %v1093
  %1222 = vst [vmem:[%s4 + $0x14] sm:$0xf] %v1094
  %1223 = vst [vmem:[%s4 + $0x18] sm:$0xf] %v1095
  %1224 = vst [vmem:[%s4 + $0x1c] sm:$0xf] %v1096
  %1225 = vst [vmem:[%s4 + $0x20] sm:$0xf] %v1097
  %1226 = vst [vmem:[%s4 + $0x24] sm:$0xf] %v1098
  %1227 = vst [vmem:[%s4 + $0x28] sm:$0xf] %v1099
  %1228 = vst [vmem:[%s4 + $0x2c] sm:$0xf] %v1100
  %1229 = vst [vmem:[%s4 + $0x30] sm:$0xf] %v1101
  %1230 = vst [vmem:[%s4 + $0x34] sm:$0xf] %v1102
  %1231 = vst [vmem:[%s4 + $0x38] sm:$0xf] %v1103
  %1232 = vst [vmem:[%s4 + $0x3c] sm:$0xf] %v1104
  %1233 = vst [vmem:[%s4 + $0x40] sm:$0xf] %v1105
  %1234 = vst [vmem:[%s4 + $0x44] sm:$0xf] %v1106
  %1235 = vst [vmem:[%s4 + $0x48] sm:$0xf] %v1107
  %1236 = vst [vmem:[%s4 + $0x4c] sm:$0xf] %v1108
  %1237 = vst [vmem:[%s4 + $0x50] sm:$0xf] %v1109
  %1238 = vst [vmem:[%s4 + $0x54] sm:$0xf] %v1110
  %1239 = vst [vmem:[%s4 + $0x58] sm:$0xf] %v1111
  %1240 = vst [vmem:[%s4 + $0x5c] sm:$0xf] %v1112
  %1241 = vst [vmem:[%s4 + $0x60] sm:$0xf] %v1113
  %1242 = vst [vmem:[%s4 + $0x64] sm:$0xf] %v1114
  %1243 = vst [vmem:[%s4 + $0x68] sm:$0xf] %v1115
  %1244 = vst [vmem:[%s4 + $0x6c] sm:$0xf] %v1116
  %1245 = vst [vmem:[%s4 + $0x70] sm:$0xf] %v1117
  %1246 = vst [vmem:[%s4 + $0x74] sm:$0xf] %v1118
  %1247 = vst [vmem:[%s4 + $0x78] sm:$0xf] %v1119
  %1248 = vst [vmem:[%s4 + $0x7c] sm:$0xf] %v1120
  %1249 = vst [vmem:[%s4 + $0x80] sm:$0xf] %v1121
  %1250 = vst [vmem:[%s4 + $0x84] sm:$0xf] %v1122
  %1251 = vst [vmem:[%s4 + $0x88] sm:$0xf] %v1123
  %1252 = vst [vmem:[%s4 + $0x8c] sm:$0xf] %v1124
  %1253 = vst [vmem:[%s4 + $0x90] sm:$0xf] %v1125
  %1254 = vst [vmem:[%s4 + $0x94] sm:$0xf] %v1126
  %1255 = vst [vmem:[%s4 + $0x98] sm:$0xf] %v1127
  %1256 = vst [vmem:[%s4 + $0x9c] sm:$0xf] %v1128
  %1257 = vst [vmem:[%s4 + $0xa0] sm:$0xf] %v1129
  %1258 = vst [vmem:[%s4 + $0xa4] sm:$0xf] %v1130
  %1259 = vst [vmem:[%s4 + $0xa8] sm:$0xf] %v1131
  %1260 = vst [vmem:[%s4 + $0xac] sm:$0xf] %v1132
  %1261 = vst [vmem:[%s4 + $0xb0] sm:$0xf] %v1133
  %1262 = vst [vmem:[%s4 + $0xb4] sm:$0xf] %v1134
  %1263 = vst [vmem:[%s4 + $0xb8] sm:$0xf] %v1135
  %1264 = vst [vmem:[%s4 + $0xbc] sm:$0xf] %v1136
  %1265 = vst [vmem:[%s4 + $0xc0] sm:$0xf] %v1137
  %1266 = vst [vmem:[%s4 + $0xc4] sm:$0xf] %v1138
  %1267 = vst [vmem:[%s4 + $0xc8] sm:$0xf] %v1139
  %1268 = vst [vmem:[%s4 + $0xcc] sm:$0xf] %v1140
  %1269 = vst [vmem:[%s4 + $0xd0] sm:$0xf] %v1141
  %1270 = vst [vmem:[%s4 + $0xd4] sm:$0xf] %v1142
  %1271 = vst [vmem:[%s4 + $0xd8] sm:$0xf] %v1143
  %1272 = vst [vmem:[%s4 + $0xdc] sm:$0xf] %v1144
  %1273 = vst [vmem:[%s4 + $0xe0] sm:$0xf] %v1145
  %1274 = vst [vmem:[%s4 + $0xe4] sm:$0xf] %v1146
  %1275 = vst [vmem:[%s4 + $0xe8] sm:$0xf] %v1147
  %1276 = vst [vmem:[%s4 + $0xec] sm:$0xf] %v1148
  %1277 = vst [vmem:[%s4 + $0xf0] sm:$0xf] %v1149
  %1278 = vst [vmem:[%s4 + $0xf4] sm:$0xf] %v1150
  %1279 = vst [vmem:[%s4 + $0xf8] sm:$0xf] %v1151
  %1280 = vst [vmem:[%s4 + $0xfc] sm:$0xf] %v1152
  // Predicated region
  $region18: #{_lambda_.3} parent=0 // pred_check
    _
  $region19: #{_lambda_.3} parent=0 // pred_check_branch
    %1282 = sbr.rel (0) target = $region21
  $region20: #{_lambda_.3} parent=0 // pred_region
    _
  $region21: #{_lambda_.3} parent=0 // pred_fallthru
    _
  // Predicated region
  $region22: #{_lambda_.3} parent=0 // pred_check
    _
  $region23: #{_lambda_.3} parent=0 // pred_check_branch
    %1284 = sbr.rel (0) target = $region25
  $region24: #{_lambda_.3} parent=0 // pred_region
    _
  $region25: #{_lambda_.3} parent=0 // pred_fallthru
    _

// kernel: _lambda_.5
$region0: #{_lambda_.5}
  #allocation0 [shape = 'u32[]', space=smem, size = 0x4, offset = 0x4, fixed_abs, tag = 'smem constant byte address 0x4 - core index']
  #allocation1 [shape = 'u32[144,128]{1,0:T(1,128)}', space=vmem, size = 0x12000, scoped, tag = 'internal scratch']
  %s0 = inlined_call_operand.vmem [shape: bf16[512,128], index: 0, kind: input, shape index: {}]
  %s1 = inlined_call_operand.vmem [shape: bf16[512,128], index: 1, kind: input, shape index: {}]
  %s2 = inlined_call_operand.vmem [shape: bf16[128,128], index: 2, kind: input, shape index: {}]
  %s3 = inlined_call_operand.vmem [shape: bf16[128,128], index: 3, kind: input, shape index: {}]
  %s4 = inlined_call_operand.vmem [shape: bf16[128,128], index: 4, kind: input, shape index: {}]
  %s5 = inlined_call_operand.vmem [shape: bf16[128,128], index: 5, kind: input, shape index: {}]
  %s6 = inlined_call_operand.vmem [shape: f32[1,128], index: 6, kind: input, shape index: {}]
  %s7 = inlined_call_operand.vmem [shape: f32[1,128], index: 7, kind: input, shape index: {}]
  %s8 = inlined_call_operand.vmem [shape: f32[1,128], index: 8, kind: input, shape index: {}]
  %s9 = inlined_call_operand.vmem [shape: f32[1,128], index: 9, kind: input, shape index: {}]
  %s10 = inlined_call_operand.vmem [shape: f32[1,128], index: 10, kind: input, shape index: {}]
  %s11 = inlined_call_operand.vmem [shape: f32[1,128], index: 11, kind: input, shape index: {}]
  %s12 = inlined_call_operand.vmem [shape: f32[512,128], index: 12, kind: output, shape index: {}]
  %s13 = sld [smem:[#allocation0]]
  $region58: #{_lambda_.5} parent=0
    _
  %s15 = ssub.s32 1, %s13
  %s16 = scalar_select 0, %s15, %s13
  // Predicated region
  $region2: #{_lambda_.5} parent=0 // pred_check
    _
  $region3: #{_lambda_.5} parent=0 // pred_check_branch
    %18 = sbr.rel (0) target = $region5
  $region4: #{_lambda_.5} parent=0 // pred_region
    _
  $region5: #{_lambda_.5} parent=0 // pred_fallthru
    _
  // Predicated region
  $region6: #{_lambda_.5} parent=0 // pred_check
    _
  $region7: #{_lambda_.5} parent=0 // pred_check_branch
    %20 = sbr.rel (0) target = $region9
  $region8: #{_lambda_.5} parent=0 // pred_region
    _
  $region9: #{_lambda_.5} parent=0 // pred_fallthru
    _
  // Predicated region
  $region10: #{_lambda_.5} parent=0 // pred_check
    _
  $region11: #{_lambda_.5} parent=0 // pred_check_branch
    %22 = sbr.rel (0) target = $region13
  $region12: #{_lambda_.5} parent=0 // pred_region
    _
  $region13: #{_lambda_.5} parent=0 // pred_fallthru
    _
  // Predicated region
  $region14: #{_lambda_.5} parent=0 // pred_check
    _
  $region15: #{_lambda_.5} parent=0 // pred_check_branch
    %24 = sbr.rel (0) target = $region17
  $region16: #{_lambda_.5} parent=0 // pred_region
    _
  $region17: #{_lambda_.5} parent=0 // pred_fallthru
    _
  // Predicated region
  $region18: #{_lambda_.5} parent=0 // pred_check
    _
  $region19: #{_lambda_.5} parent=0 // pred_check_branch
    %26 = sbr.rel (0) target = $region21
  $region20: #{_lambda_.5} parent=0 // pred_region
    _
  $region21: #{_lambda_.5} parent=0 // pred_fallthru
    _
  // Predicated region
  $region22: #{_lambda_.5} parent=0 // pred_check
    _
  $region23: #{_lambda_.5} parent=0 // pred_check_branch
    %28 = sbr.rel (0) target = $region25
  $region24: #{_lambda_.5} parent=0 // pred_region
    _
  $region25: #{_lambda_.5} parent=0 // pred_fallthru
    _
  // Predicated region
  $region26: #{_lambda_.5} parent=0 // pred_check
    _
  $region27: #{_lambda_.5} parent=0 // pred_check_branch
    %30 = sbr.rel (0) target = $region29
  $region28: #{_lambda_.5} parent=0 // pred_region
    _
  $region29: #{_lambda_.5} parent=0 // pred_fallthru
    _
  // Predicated region
  $region30: #{_lambda_.5} parent=0 // pred_check
    _
  $region31: #{_lambda_.5} parent=0 // pred_check_branch
    %32 = sbr.rel (0) target = $region33
  $region32: #{_lambda_.5} parent=0 // pred_region
    _
  $region33: #{_lambda_.5} parent=0 // pred_fallthru
    _
  // Predicated region
  $region34: #{_lambda_.5} parent=0 // pred_check
    _
  $region35: #{_lambda_.5} parent=0 // pred_check_branch
    %34 = sbr.rel (0) target = $region37
  $region36: #{_lambda_.5} parent=0 // pred_region
    _
  $region37: #{_lambda_.5} parent=0 // pred_fallthru
    _
  // Predicated region
  $region38: #{_lambda_.5} parent=0 // pred_check
    _
  $region39: #{_lambda_.5} parent=0 // pred_check_branch
    %36 = sbr.rel (0) target = $region41
  $region40: #{_lambda_.5} parent=0 // pred_region
    _
  $region41: #{_lambda_.5} parent=0 // pred_fallthru
    _
  // Predicated region
  $region42: #{_lambda_.5} parent=0 // pred_check
    _
  $region43: #{_lambda_.5} parent=0 // pred_check_branch
    %38 = sbr.rel (0) target = $region45
  $region44: #{_lambda_.5} parent=0 // pred_region
    _
  $region45: #{_lambda_.5} parent=0 // pred_fallthru
    _
  // Predicated region
  $region46: #{_lambda_.5} parent=0 // pred_check
    _
  $region47: #{_lambda_.5} parent=0 // pred_check_branch
    %40 = sbr.rel (0) target = $region49
  $region48: #{_lambda_.5} parent=0 // pred_region
    _
  $region49: #{_lambda_.5} parent=0 // pred_fallthru
    _
  %v42 = vld [vmem:[%s0] sm:$0xf]
  %v43 = vld [vmem:[%s0 + $0x4] sm:$0xf]
  %v44 = vld [vmem:[%s0 + $0x8] sm:$0xf]
  %v45 = vld [vmem:[%s0 + $0xc] sm:$0xf]
  %v46 = vld [vmem:[%s0 + $0x10] sm:$0xf]
  %v47 = vld [vmem:[%s0 + $0x14] sm:$0xf]
  %v48 = vld [vmem:[%s0 + $0x18] sm:$0xf]
  %v49 = vld [vmem:[%s0 + $0x1c] sm:$0xf]
  %v50 = vld [vmem:[%s0 + $0x20] sm:$0xf]
  %v51 = vld [vmem:[%s0 + $0x24] sm:$0xf]
  %v52 = vld [vmem:[%s0 + $0x28] sm:$0xf]
  %v53 = vld [vmem:[%s0 + $0x2c] sm:$0xf]
  %v54 = vld [vmem:[%s0 + $0x30] sm:$0xf]
  %v55 = vld [vmem:[%s0 + $0x34] sm:$0xf]
  %v56 = vld [vmem:[%s0 + $0x38] sm:$0xf]
  %v57 = vld [vmem:[%s0 + $0x3c] sm:$0xf]
  %v58 = vld [vmem:[%s0 + $0x40] sm:$0xf]
  %v59 = vld [vmem:[%s0 + $0x44] sm:$0xf]
  %v60 = vld [vmem:[%s0 + $0x48] sm:$0xf]
  %v61 = vld [vmem:[%s0 + $0x4c] sm:$0xf]
  %v62 = vld [vmem:[%s0 + $0x50] sm:$0xf]
  %v63 = vld [vmem:[%s0 + $0x54] sm:$0xf]
  %v64 = vld [vmem:[%s0 + $0x58] sm:$0xf]
  %v65 = vld [vmem:[%s0 + $0x5c] sm:$0xf]
  %v66 = vld [vmem:[%s0 + $0x60] sm:$0xf]
  %v67 = vld [vmem:[%s0 + $0x64] sm:$0xf]
  %v68 = vld [vmem:[%s0 + $0x68] sm:$0xf]
  %v69 = vld [vmem:[%s0 + $0x6c] sm:$0xf]
  %v70 = vld [vmem:[%s0 + $0x70] sm:$0xf]
  %v71 = vld [vmem:[%s0 + $0x74] sm:$0xf]
  %v72 = vld [vmem:[%s0 + $0x78] sm:$0xf]
  %v73 = vld [vmem:[%s0 + $0x7c] sm:$0xf]
  %v74 = vld [vmem:[%s0 + $0x80] sm:$0xf]
  %v75 = vld [vmem:[%s0 + $0x84] sm:$0xf]
  %v76 = vld [vmem:[%s0 + $0x88] sm:$0xf]
  %v77 = vld [vmem:[%s0 + $0x8c] sm:$0xf]
  %v78 = vld [vmem:[%s0 + $0x90] sm:$0xf]
  %v79 = vld [vmem:[%s0 + $0x94] sm:$0xf]
  %v80 = vld [vmem:[%s0 + $0x98] sm:$0xf]
  %v81 = vld [vmem:[%s0 + $0x9c] sm:$0xf]
  %v82 = vld [vmem:[%s0 + $0xa0] sm:$0xf]
  %v83 = vld [vmem:[%s0 + $0xa4] sm:$0xf]
  %v84 = vld [vmem:[%s0 + $0xa8] sm:$0xf]
  %v85 = vld [vmem:[%s0 + $0xac] sm:$0xf]
  %v86 = vld [vmem:[%s0 + $0xb0] sm:$0xf]
  %v87 = vld [vmem:[%s0 + $0xb4] sm:$0xf]
  %v88 = vld [vmem:[%s0 + $0xb8] sm:$0xf]
  %v89 = vld [vmem:[%s0 + $0xbc] sm:$0xf]
  %v90 = vld [vmem:[%s0 + $0xc0] sm:$0xf]
  %v91 = vld [vmem:[%s0 + $0xc4] sm:$0xf]
  %v92 = vld [vmem:[%s0 + $0xc8] sm:$0xf]
  %v93 = vld [vmem:[%s0 + $0xcc] sm:$0xf]
  %v94 = vld [vmem:[%s0 + $0xd0] sm:$0xf]
  %v95 = vld [vmem:[%s0 + $0xd4] sm:$0xf]
  %v96 = vld [vmem:[%s0 + $0xd8] sm:$0xf]
  %v97 = vld [vmem:[%s0 + $0xdc] sm:$0xf]
  %v98 = vld [vmem:[%s0 + $0xe0] sm:$0xf]
  %v99 = vld [vmem:[%s0 + $0xe4] sm:$0xf]
  %v100 = vld [vmem:[%s0 + $0xe8] sm:$0xf]
  %v101 = vld [vmem:[%s0 + $0xec] sm:$0xf]
  %v102 = vld [vmem:[%s0 + $0xf0] sm:$0xf]
  %v103 = vld [vmem:[%s0 + $0xf4] sm:$0xf]
  %v104 = vld [vmem:[%s0 + $0xf8] sm:$0xf]
  %v105 = vld [vmem:[%s0 + $0xfc] sm:$0xf]
  %v106 = vld [vmem:[%s2] sm:$0xf]
  %v107 = vld [vmem:[%s2 + $0x4] sm:$0xf]
  %v108 = vld [vmem:[%s2 + $0x8] sm:$0xf]
  %v109 = vld [vmem:[%s2 + $0xc] sm:$0xf]
  %v110 = vld [vmem:[%s2 + $0x10] sm:$0xf]
  %v111 = vld [vmem:[%s2 + $0x14] sm:$0xf]
  %v112 = vld [vmem:[%s2 + $0x18] sm:$0xf]
  %v113 = vld [vmem:[%s2 + $0x1c] sm:$0xf]
  %v114 = vld [vmem:[%s2 + $0x20] sm:$0xf]
  %v115 = vld [vmem:[%s2 + $0x24] sm:$0xf]
  %v116 = vld [vmem:[%s2 + $0x28] sm:$0xf]
  %v117 = vld [vmem:[%s2 + $0x2c] sm:$0xf]
  %v118 = vld [vmem:[%s2 + $0x30] sm:$0xf]
  %v119 = vld [vmem:[%s2 + $0x34] sm:$0xf]
  %v120 = vld [vmem:[%s2 + $0x38] sm:$0xf]
  %v121 = vld [vmem:[%s2 + $0x3c] sm:$0xf]
  %v186 = vunpack.c.l.b16 %v42
  %v187 = vunpack.c.l.b16 %v43
  %v188 = vunpack.c.l.b16 %v44
  %v189 = vunpack.c.l.b16 %v45
  %v190 = vunpack.c.l.b16 %v46
  %v191 = vunpack.c.l.b16 %v47
  %v192 = vunpack.c.l.b16 %v48
  %v193 = vunpack.c.l.b16 %v49
  %v194 = vunpack.c.l.b16 %v50
  %v195 = vunpack.c.l.b16 %v51
  %v196 = vunpack.c.l.b16 %v52
  %v197 = vunpack.c.l.b16 %v53
  %v198 = vunpack.c.l.b16 %v54
  %v199 = vunpack.c.l.b16 %v55
  %v200 = vunpack.c.l.b16 %v56
  %v201 = vunpack.c.l.b16 %v57
  %v202 = vunpack.c.l.b16 %v58
  %v203 = vunpack.c.l.b16 %v59
  %v204 = vunpack.c.l.b16 %v60
  %v205 = vunpack.c.l.b16 %v61
  %v206 = vunpack.c.l.b16 %v62
  %v207 = vunpack.c.l.b16 %v63
  %v208 = vunpack.c.l.b16 %v64
  %v209 = vunpack.c.l.b16 %v65
  %v210 = vunpack.c.l.b16 %v66
  %v211 = vunpack.c.l.b16 %v67
  %v212 = vunpack.c.l.b16 %v68
  %v213 = vunpack.c.l.b16 %v69
  %v214 = vunpack.c.l.b16 %v70
  %v215 = vunpack.c.l.b16 %v71
  %v216 = vunpack.c.l.b16 %v72
  %v217 = vunpack.c.l.b16 %v73
  %v218 = vunpack.c.l.b16 %v74
  %v219 = vunpack.c.l.b16 %v75
  %v220 = vunpack.c.l.b16 %v76
  %v221 = vunpack.c.l.b16 %v77
  %v222 = vunpack.c.l.b16 %v78
  %v223 = vunpack.c.l.b16 %v79
  %v224 = vunpack.c.l.b16 %v80
  %v225 = vunpack.c.l.b16 %v81
  %v226 = vunpack.c.l.b16 %v82
  %v227 = vunpack.c.l.b16 %v83
  %v228 = vunpack.c.l.b16 %v84
  %v229 = vunpack.c.l.b16 %v85
  %v230 = vunpack.c.l.b16 %v86
  %v231 = vunpack.c.l.b16 %v87
  %v232 = vunpack.c.l.b16 %v88
  %v233 = vunpack.c.l.b16 %v89
  %v234 = vunpack.c.l.b16 %v90
  %v235 = vunpack.c.l.b16 %v91
  %v236 = vunpack.c.l.b16 %v92
  %v237 = vunpack.c.l.b16 %v93
  %v238 = vunpack.c.l.b16 %v94
  %v239 = vunpack.c.l.b16 %v95
  %v240 = vunpack.c.l.b16 %v96
  %v241 = vunpack.c.l.b16 %v97
  %v242 = vunpack.c.l.b16 %v98
  %v243 = vunpack.c.l.b16 %v99
  %v244 = vunpack.c.l.b16 %v100
  %v245 = vunpack.c.l.b16 %v101
  %v246 = vunpack.c.l.b16 %v102
  %v247 = vunpack.c.l.b16 %v103
  %v248 = vunpack.c.l.b16 %v104
  %v249 = vunpack.c.l.b16 %v105
  %v250 = vpack.c.b16 %v187, %v186
  %v251 = vpack.c.b16 %v189, %v188
  %v252 = vpack.c.b16 %v191, %v190
  %v253 = vpack.c.b16 %v193, %v192
  %v254 = vpack.c.b16 %v195, %v194
  %v255 = vpack.c.b16 %v197, %v196
  %v256 = vpack.c.b16 %v199, %v198
  %v257 = vpack.c.b16 %v201, %v200
  %v258 = vpack.c.b16 %v203, %v202
  %v259 = vpack.c.b16 %v205, %v204
  %v260 = vpack.c.b16 %v207, %v206
  %v261 = vpack.c.b16 %v209, %v208
  %v262 = vpack.c.b16 %v211, %v210
  %v263 = vpack.c.b16 %v213, %v212
  %v264 = vpack.c.b16 %v215, %v214
  %v265 = vpack.c.b16 %v217, %v216
  %v266 = vpack.c.b16 %v219, %v218
  %v267 = vpack.c.b16 %v221, %v220
  %v268 = vpack.c.b16 %v223, %v222
  %v269 = vpack.c.b16 %v225, %v224
  %v270 = vpack.c.b16 %v227, %v226
  %v271 = vpack.c.b16 %v229, %v228
  %v272 = vpack.c.b16 %v231, %v230
  %v273 = vpack.c.b16 %v233, %v232
  %v274 = vpack.c.b16 %v235, %v234
  %v275 = vpack.c.b16 %v237, %v236
  %v276 = vpack.c.b16 %v239, %v238
  %v277 = vpack.c.b16 %v241, %v240
  %v278 = vpack.c.b16 %v243, %v242
  %v279 = vpack.c.b16 %v245, %v244
  %v280 = vpack.c.b16 %v247, %v246
  %v281 = vpack.c.b16 %v249, %v248
  %v330 = vunpack.c.l.b16 %v106
  %v331 = vunpack.c.l.b16 %v107
  %v332 = vunpack.c.l.b16 %v108
  %v333 = vunpack.c.l.b16 %v109
  %v334 = vunpack.c.l.b16 %v110
  %v335 = vunpack.c.l.b16 %v111
  %v336 = vunpack.c.l.b16 %v112
  %v337 = vunpack.c.l.b16 %v113
  %v338 = vunpack.c.l.b16 %v114
  %v339 = vunpack.c.l.b16 %v115
  %v340 = vunpack.c.l.b16 %v116
  %v341 = vunpack.c.l.b16 %v117
  %v342 = vunpack.c.l.b16 %v118
  %v343 = vunpack.c.l.b16 %v119
  %v344 = vunpack.c.l.b16 %v120
  %v345 = vunpack.c.l.b16 %v121
  %v346 = vpack.c.b16 %v331, %v330
  %v347 = vpack.c.b16 %v333, %v332
  %v348 = vpack.c.b16 %v335, %v334
  %v349 = vpack.c.b16 %v337, %v336
  %v350 = vpack.c.b16 %v339, %v338
  %v351 = vpack.c.b16 %v341, %v340
  %v352 = vpack.c.b16 %v343, %v342
  %v353 = vpack.c.b16 %v345, %v344
  %362 = vmatprep.subr.bf16.mxu0 0
  %363 = vmatpush1.bf16.msra.mxu0 %v346
  %364 = vmatprep.subr.bf16.mxu0 0
  %365 = vmatpush1.bf16.msra.mxu0 %v347
  %366 = vmatprep.subr.bf16.mxu0 0
  %367 = vmatpush1.bf16.msra.mxu0 %v348
  %368 = vmatprep.subr.bf16.mxu0 0
  %369 = vmatpush1.bf16.msra.mxu0 %v349
  %370 = vmatprep.subr.bf16.mxu0 0
  %371 = vmatpush1.bf16.msra.mxu0 %v350
  %372 = vmatprep.subr.bf16.mxu0 0
  %373 = vmatpush1.bf16.msra.mxu0 %v351
  %374 = vmatprep.subr.bf16.mxu0 0
  %375 = vmatpush1.bf16.msra.mxu0 %v352
  %376 = vmatprep.subr.bf16.mxu0 0
  %377 = vmatpush1.bf16.msra.mxu0 %v353
  %378 = vmatprep.subr.bf16.mxu0 0
  %379 = vmatpush1.bf16.msra.mxu0 0
  %380 = vmatprep.subr.bf16.mxu0 0
  %381 = vmatpush1.bf16.msra.mxu0 0
  %382 = vmatprep.subr.bf16.mxu0 0
  %383 = vmatpush1.bf16.msra.mxu0 0
  %384 = vmatprep.subr.bf16.mxu0 0
  %385 = vmatpush1.bf16.msra.mxu0 0
  %386 = vmatprep.subr.bf16.mxu0 0
  %387 = vmatpush1.bf16.msra.mxu0 0
  %388 = vmatprep.subr.bf16.mxu0 0
  %389 = vmatpush1.bf16.msra.mxu0 0
  %390 = vmatprep.subr.bf16.mxu0 0
  %391 = vmatpush1.bf16.msra.mxu0 0
  %392 = vmatprep.subr.bf16.mxu0 0
  %393 = vmatpush1.bf16.msra.mxu0 0
  %394 = vmatprep.mubr.bf16.mxu0 0
  %395 = vmatmul.mubr.bf16.gmra.mrb[0].mxu0 %v250
  %v396 = vpop.f32.mrb[0].mxu0
  %v397 = vadd.f32 0.0, %v396
  %v398 = vpop.f32.mrb[0].mxu0
  %v399 = vpop.f32.mrb[0].mxu0
  %v400 = vadd.f32 0.0, %v399
  %v401 = vpop.f32.mrb[0].mxu0
  %402 = vmatprep.mubr.bf16.mxu0 0
  %403 = vmatmul.mubr.bf16.gmra.mrb[0].mxu0 %v251
  %v404 = vpop.f32.mrb[0].mxu0
  %v405 = vadd.f32 0.0, %v404
  %v406 = vpop.f32.mrb[0].mxu0
  %v407 = vpop.f32.mrb[0].mxu0
  %v408 = vadd.f32 0.0, %v407
  %v409 = vpop.f32.mrb[0].mxu0
  %410 = vmatprep.mubr.bf16.mxu0 0
  %411 = vmatmul.mubr.bf16.gmra.mrb[0].mxu0 %v252
  %v412 = vpop.f32.mrb[0].mxu0
  %v413 = vadd.f32 0.0, %v412
  %v414 = vpop.f32.mrb[0].mxu0
  %v415 = vpop.f32.mrb[0].mxu0
  %v416 = vadd.f32 0.0, %v415
  %v417 = vpop.f32.mrb[0].mxu0
  %418 = vmatprep.mubr.bf16.mxu0 0
  %419 = vmatmul.mubr.bf16.gmra.mrb[0].mxu0 %v253
  %v420 = vpop.f32.mrb[0].mxu0
  %v421 = vadd.f32 0.0, %v420
  %v422 = vpop.f32.mrb[0].mxu0
  %v423 = vpop.f32.mrb[0].mxu0
  %v424 = vadd.f32 0.0, %v423
  %v425 = vpop.f32.mrb[0].mxu0
  %426 = vmatprep.mubr.bf16.mxu0 0
  %427 = vmatmul.mubr.bf16.gmra.mrb[0].mxu0 %v254
  %v428 = vpop.f32.mrb[0].mxu0
  %v429 = vadd.f32 0.0, %v428
  %v430 = vpop.f32.mrb[0].mxu0
  %v431 = vpop.f32.mrb[0].mxu0
  %v432 = vadd.f32 0.0, %v431
  %v433 = vpop.f32.mrb[0].mxu0
  %434 = vmatprep.mubr.bf16.mxu0 0
  %435 = vmatmul.mubr.bf16.gmra.mrb[0].mxu0 %v255
  %v436 = vpop.f32.mrb[0].mxu0
  %v437 = vadd.f32 0.0, %v436
  %v438 = vpop.f32.mrb[0].mxu0
  %v439 = vpop.f32.mrb[0].mxu0
  %v440 = vadd.f32 0.0, %v439
  %v441 = vpop.f32.mrb[0].mxu0
  %442 = vmatprep.mubr.bf16.mxu0 0
  %443 = vmatmul.mubr.bf16.gmra.mrb[0].mxu0 %v256
  %v444 = vpop.f32.mrb[0].mxu0
  %v445 = vadd.f32 0.0, %v444
  %v446 = vpop.f32.mrb[0].mxu0
  %v447 = vpop.f32.mrb[0].mxu0
  %v448 = vadd.f32 0.0, %v447
  %v449 = vpop.f32.mrb[0].mxu0
  %450 = vmatprep.mubr.bf16.mxu0 0
  %451 = vmatmul.mubr.bf16.gmra.mrb[0].mxu0 %v257
  %v452 = vpop.f32.mrb[0].mxu0
  %v453 = vadd.f32 0.0, %v452
  %v454 = vpop.f32.mrb[0].mxu0
  %v455 = vpop.f32.mrb[0].mxu0
  %v456 = vadd.f32 0.0, %v455
  %v457 = vpop.f32.mrb[0].mxu0
  %458 = vmatprep.mubr.bf16.mxu0 0
  %459 = vmatmul.mubr.bf16.gmra.mrb[0].mxu0 %v258
  %v460 = vpop.f32.mrb[0].mxu0
  %v461 = vadd.f32 0.0, %v460
  %v462 = vpop.f32.mrb[0].mxu0
  %v463 = vpop.f32.mrb[0].mxu0
  %v464 = vadd.f32 0.0, %v463
  %v465 = vpop.f32.mrb[0].mxu0
  %466 = vmatprep.mubr.bf16.mxu0 0
  %467 = vmatmul.mubr.bf16.gmra.mrb[0].mxu0 %v259
  %v468 = vpop.f32.mrb[0].mxu0
  %v469 = vadd.f32 0.0, %v468
  %v470 = vpop.f32.mrb[0].mxu0
  %v471 = vpop.f32.mrb[0].mxu0
  %v472 = vadd.f32 0.0, %v471
  %v473 = vpop.f32.mrb[0].mxu0
  %474 = vmatprep.mubr.bf16.mxu0 0
  %475 = vmatmul.mubr.bf16.gmra.mrb[0].mxu0 %v260
  %v476 = vpop.f32.mrb[0].mxu0
  %v477 = vadd.f32 0.0, %v476
  %v478 = vpop.f32.mrb[0].mxu0
  %v479 = vpop.f32.mrb[0].mxu0
  %v480 = vadd.f32 0.0, %v479
  %v481 = vpop.f32.mrb[0].mxu0
  %482 = vmatprep.mubr.bf16.mxu0 0
  %483 = vmatmul.mubr.bf16.gmra.mrb[0].mxu0 %v261
  %v484 = vpop.f32.mrb[0].mxu0
  %v485 = vadd.f32 0.0, %v484
  %v486 = vpop.f32.mrb[0].mxu0
  %v487 = vpop.f32.mrb[0].mxu0
  %v488 = vadd.f32 0.0, %v487
  %v489 = vpop.f32.mrb[0].mxu0
  %490 = vmatprep.mubr.bf16.mxu0 0
  %491 = vmatmul.mubr.bf16.gmra.mrb[0].mxu0 %v262
  %v492 = vpop.f32.mrb[0].mxu0
  %v493 = vadd.f32 0.0, %v492
  %v494 = vpop.f32.mrb[0].mxu0
  %v495 = vpop.f32.mrb[0].mxu0
  %v496 = vadd.f32 0.0, %v495
  %v497 = vpop.f32.mrb[0].mxu0
  %498 = vmatprep.mubr.bf16.mxu0 0
  %499 = vmatmul.mubr.bf16.gmra.mrb[0].mxu0 %v263
  %v500 = vpop.f32.mrb[0].mxu0
  %v501 = vadd.f32 0.0, %v500
  %v502 = vpop.f32.mrb[0].mxu0
  %v503 = vpop.f32.mrb[0].mxu0
  %v504 = vadd.f32 0.0, %v503
  %v505 = vpop.f32.mrb[0].mxu0
  %506 = vmatprep.mubr.bf16.mxu0 0
  %507 = vmatmul.mubr.bf16.gmra.mrb[0].mxu0 %v264
  %v508 = vpop.f32.mrb[0].mxu0
  %v509 = vadd.f32 0.0, %v508
  %v510 = vpop.f32.mrb[0].mxu0
  %v511 = vpop.f32.mrb[0].mxu0
  %v512 = vadd.f32 0.0, %v511
  %v513 = vpop.f32.mrb[0].mxu0
  %514 = vmatprep.mubr.bf16.mxu0 0
  %515 = vmatmul.mubr.bf16.gmra.mrb[0].mxu0 %v265
  %v516 = vpop.f32.mrb[0].mxu0
  %v517 = vadd.f32 0.0, %v516
  %v518 = vpop.f32.mrb[0].mxu0
  %v519 = vpop.f32.mrb[0].mxu0
  %v520 = vadd.f32 0.0, %v519
  %v521 = vpop.f32.mrb[0].mxu0
  %522 = vmatprep.mubr.bf16.mxu0 0
  %523 = vmatmul.mubr.bf16.gmra.mrb[0].mxu0 %v266
  %v524 = vpop.f32.mrb[0].mxu0
  %v525 = vadd.f32 0.0, %v524
  %v526 = vpop.f32.mrb[0].mxu0
  %v527 = vpop.f32.mrb[0].mxu0
  %v528 = vadd.f32 0.0, %v527
  %v529 = vpop.f32.mrb[0].mxu0
  %530 = vmatprep.mubr.bf16.mxu0 0
  %531 = vmatmul.mubr.bf16.gmra.mrb[0].mxu0 %v267
  %v532 = vpop.f32.mrb[0].mxu0
  %v533 = vadd.f32 0.0, %v532
  %v534 = vpop.f32.mrb[0].mxu0
  %v535 = vpop.f32.mrb[0].mxu0
  %v536 = vadd.f32 0.0, %v535
  %v537 = vpop.f32.mrb[0].mxu0
  %538 = vmatprep.mubr.bf16.mxu0 0
  %539 = vmatmul.mubr.bf16.gmra.mrb[0].mxu0 %v268
  %v540 = vpop.f32.mrb[0].mxu0
  %v541 = vadd.f32 0.0, %v540
  %v542 = vpop.f32.mrb[0].mxu0
  %v543 = vpop.f32.mrb[0].mxu0
  %v544 = vadd.f32 0.0, %v543
  %v545 = vpop.f32.mrb[0].mxu0
  %546 = vmatprep.mubr.bf16.mxu0 0
  %547 = vmatmul.mubr.bf16.gmra.mrb[0].mxu0 %v269
  %v548 = vpop.f32.mrb[0].mxu0
  %v549 = vadd.f32 0.0, %v548
  %v550 = vpop.f32.mrb[0].mxu0
  %v551 = vpop.f32.mrb[0].mxu0
  %v552 = vadd.f32 0.0, %v551
  %v553 = vpop.f32.mrb[0].mxu0
  %554 = vmatprep.mubr.bf16.mxu0 0
  %555 = vmatmul.mubr.bf16.gmra.mrb[0].mxu0 %v270
  %v556 = vpop.f32.mrb[0].mxu0
  %v557 = vadd.f32 0.0, %v556
  %v558 = vpop.f32.mrb[0].mxu0
  %v559 = vpop.f32.mrb[0].mxu0
  %v560 = vadd.f32 0.0, %v559
  %v561 = vpop.f32.mrb[0].mxu0
  %562 = vmatprep.mubr.bf16.mxu0 0
  %563 = vmatmul.mubr.bf16.gmra.mrb[0].mxu0 %v271
  %v564 = vpop.f32.mrb[0].mxu0
  %v565 = vadd.f32 0.0, %v564
  %v566 = vpop.f32.mrb[0].mxu0
  %v567 = vpop.f32.mrb[0].mxu0
  %v568 = vadd.f32 0.0, %v567
  %v569 = vpop.f32.mrb[0].mxu0
  %570 = vmatprep.mubr.bf16.mxu0 0
  %571 = vmatmul.mubr.bf16.gmra.mrb[0].mxu0 %v272
  %v572 = vpop.f32.mrb[0].mxu0
  %v573 = vadd.f32 0.0, %v572
  %v574 = vpop.f32.mrb[0].mxu0
  %v575 = vpop.f32.mrb[0].mxu0
  %v576 = vadd.f32 0.0, %v575
  %v577 = vpop.f32.mrb[0].mxu0
  %578 = vmatprep.mubr.bf16.mxu0 0
  %579 = vmatmul.mubr.bf16.gmra.mrb[0].mxu0 %v273
  %v580 = vpop.f32.mrb[0].mxu0
  %v581 = vadd.f32 0.0, %v580
  %v582 = vpop.f32.mrb[0].mxu0
  %v583 = vpop.f32.mrb[0].mxu0
  %v584 = vadd.f32 0.0, %v583
  %v585 = vpop.f32.mrb[0].mxu0
  %586 = vmatprep.mubr.bf16.mxu0 0
  %587 = vmatmul.mubr.bf16.gmra.mrb[0].mxu0 %v274
  %v588 = vpop.f32.mrb[0].mxu0
  %v589 = vadd.f32 0.0, %v588
  %v590 = vpop.f32.mrb[0].mxu0
  %v591 = vpop.f32.mrb[0].mxu0
  %v592 = vadd.f32 0.0, %v591
  %v593 = vpop.f32.mrb[0].mxu0
  %594 = vmatprep.mubr.bf16.mxu0 0
  %595 = vmatmul.mubr.bf16.gmra.mrb[0].mxu0 %v275
  %v596 = vpop.f32.mrb[0].mxu0
  %v597 = vadd.f32 0.0, %v596
  %v598 = vpop.f32.mrb[0].mxu0
  %v599 = vpop.f32.mrb[0].mxu0
  %v600 = vadd.f32 0.0, %v599
  %v601 = vpop.f32.mrb[0].mxu0
  %602 = vmatprep.mubr.bf16.mxu0 0
  %603 = vmatmul.mubr.bf16.gmra.mrb[0].mxu0 %v276
  %v604 = vpop.f32.mrb[0].mxu0
  %v605 = vadd.f32 0.0, %v604
  %v606 = vpop.f32.mrb[0].mxu0
  %v607 = vpop.f32.mrb[0].mxu0
  %v608 = vadd.f32 0.0, %v607
  %v609 = vpop.f32.mrb[0].mxu0
  %610 = vmatprep.mubr.bf16.mxu0 0
  %611 = vmatmul.mubr.bf16.gmra.mrb[0].mxu0 %v277
  %v612 = vpop.f32.mrb[0].mxu0
  %v613 = vadd.f32 0.0, %v612
  %v614 = vpop.f32.mrb[0].mxu0
  %v615 = vpop.f32.mrb[0].mxu0
  %v616 = vadd.f32 0.0, %v615
  %v617 = vpop.f32.mrb[0].mxu0
  %618 = vmatprep.mubr.bf16.mxu0 0
  %619 = vmatmul.mubr.bf16.gmra.mrb[0].mxu0 %v278
  %v620 = vpop.f32.mrb[0].mxu0
  %v621 = vadd.f32 0.0, %v620
  %v622 = vpop.f32.mrb[0].mxu0
  %v623 = vpop.f32.mrb[0].mxu0
  %v624 = vadd.f32 0.0, %v623
  %v625 = vpop.f32.mrb[0].mxu0
  %626 = vmatprep.mubr.bf16.mxu0 0
  %627 = vmatmul.mubr.bf16.gmra.mrb[0].mxu0 %v279
  %v628 = vpop.f32.mrb[0].mxu0
  %v629 = vadd.f32 0.0, %v628
  %v630 = vpop.f32.mrb[0].mxu0
  %v631 = vpop.f32.mrb[0].mxu0
  %v632 = vadd.f32 0.0, %v631
  %v633 = vpop.f32.mrb[0].mxu0
  %634 = vmatprep.mubr.bf16.mxu0 0
  %635 = vmatmul.mubr.bf16.gmra.mrb[0].mxu0 %v280
  %v636 = vpop.f32.mrb[0].mxu0
  %v637 = vadd.f32 0.0, %v636
  %v638 = vpop.f32.mrb[0].mxu0
  %v639 = vpop.f32.mrb[0].mxu0
  %v640 = vadd.f32 0.0, %v639
  %v641 = vpop.f32.mrb[0].mxu0
  %642 = vmatprep.mubr.bf16.mxu0 0
  %643 = vmatmul.mubr.bf16.gmra.mrb[0].mxu0 %v281
  %v644 = vpop.f32.mrb[0].mxu0
  %v645 = vadd.f32 0.0, %v644
  %v646 = vpop.f32.mrb[0].mxu0
  %v647 = vpop.f32.mrb[0].mxu0
  %v648 = vadd.f32 0.0, %v647
  %v649 = vpop.f32.mrb[0].mxu0
  %650 = vdwg.mxu0
  %v651 = vld [vmem:[%s6] sm:$0x1]
  %v653 = vlaneseq
  %v654 = vshrl.u32 %v653, 7
  %v655 = vsub.s32 0, %v654
  %v656 = vrot.slane %v651, %v655
  %v658 = vmul.f32 %v397, %v656
  %v659 = vmul.f32 %v400, %v656
  %v660 = vmul.f32 %v405, %v656
  %v661 = vmul.f32 %v408, %v656
  %v662 = vmul.f32 %v413, %v656
  %v663 = vmul.f32 %v416, %v656
  %v664 = vmul.f32 %v421, %v656
  %v665 = vmul.f32 %v424, %v656
  %v666 = vmul.f32 %v429, %v656
  %v667 = vmul.f32 %v432, %v656
  %v668 = vmul.f32 %v437, %v656
  %v669 = vmul.f32 %v440, %v656
  %v670 = vmul.f32 %v445, %v656
  %v671 = vmul.f32 %v448, %v656
  %v672 = vmul.f32 %v453, %v656
  %v673 = vmul.f32 %v456, %v656
  %v674 = vmul.f32 %v461, %v656
  %v675 = vmul.f32 %v464, %v656
  %v676 = vmul.f32 %v469, %v656
  %v677 = vmul.f32 %v472, %v656
  %v678 = vmul.f32 %v477, %v656
  %v679 = vmul.f32 %v480, %v656
  %v680 = vmul.f32 %v485, %v656
  %v681 = vmul.f32 %v488, %v656
  %v682 = vmul.f32 %v493, %v656
  %v683 = vmul.f32 %v496, %v656
  %v684 = vmul.f32 %v501, %v656
  %v685 = vmul.f32 %v504, %v656
  %v686 = vmul.f32 %v509, %v656
  %v687 = vmul.f32 %v512, %v656
  %v688 = vmul.f32 %v517, %v656
  %v689 = vmul.f32 %v520, %v656
  %v690 = vmul.f32 %v525, %v656
  %v691 = vmul.f32 %v528, %v656
  %v692 = vmul.f32 %v533, %v656
  %v693 = vmul.f32 %v536, %v656
  %v694 = vmul.f32 %v541, %v656
  %v695 = vmul.f32 %v544, %v656
  %v696 = vmul.f32 %v549, %v656
  %v697 = vmul.f32 %v552, %v656
  %v698 = vmul.f32 %v557, %v656
  %v699 = vmul.f32 %v560, %v656
  %v700 = vmul.f32 %v565, %v656
  %v701 = vmul.f32 %v568, %v656
  %v702 = vmul.f32 %v573, %v656
  %v703 = vmul.f32 %v576, %v656
  %v704 = vmul.f32 %v581, %v656
  %v705 = vmul.f32 %v584, %v656
  %v706 = vmul.f32 %v589, %v656
  %v707 = vmul.f32 %v592, %v656
  %v708 = vmul.f32 %v597, %v656
  %v709 = vmul.f32 %v600, %v656
  %v710 = vmul.f32 %v605, %v656
  %v711 = vmul.f32 %v608, %v656
  %v712 = vmul.f32 %v613, %v656
  %v713 = vmul.f32 %v616, %v656
  %v714 = vmul.f32 %v621, %v656
  %v715 = vmul.f32 %v624, %v656
  %v716 = vmul.f32 %v629, %v656
  %v717 = vmul.f32 %v632, %v656
  %v718 = vmul.f32 %v637, %v656
  %v719 = vmul.f32 %v640, %v656
  %v720 = vmul.f32 %v645, %v656
  %v721 = vmul.f32 %v648, %v656
  %v722 = vld [vmem:[%s7] sm:$0x1]
  %v724 = vlaneseq
  %v725 = vshrl.u32 %v724, 7
  %v726 = vsub.s32 0, %v725
  %v727 = vrot.slane %v722, %v726
  %v729 = vadd.f32 %v658, %v727
  %v730 = vadd.f32 %v659, %v727
  %v731 = vadd.f32 %v660, %v727
  %v732 = vadd.f32 %v661, %v727
  %v733 = vadd.f32 %v662, %v727
  %v734 = vadd.f32 %v663, %v727
  %v735 = vadd.f32 %v664, %v727
  %v736 = vadd.f32 %v665, %v727
  %v737 = vadd.f32 %v666, %v727
  %v738 = vadd.f32 %v667, %v727
  %v739 = vadd.f32 %v668, %v727
  %v740 = vadd.f32 %v669, %v727
  %v741 = vadd.f32 %v670, %v727
  %v742 = vadd.f32 %v671, %v727
  %v743 = vadd.f32 %v672, %v727
  %v744 = vadd.f32 %v673, %v727
  %v745 = vadd.f32 %v674, %v727
  %v746 = vadd.f32 %v675, %v727
  %v747 = vadd.f32 %v676, %v727
  %v748 = vadd.f32 %v677, %v727
  %v749 = vadd.f32 %v678, %v727
  %v750 = vadd.f32 %v679, %v727
  %v751 = vadd.f32 %v680, %v727
  %v752 = vadd.f32 %v681, %v727
  %v753 = vadd.f32 %v682, %v727
  %v754 = vadd.f32 %v683, %v727
  %v755 = vadd.f32 %v684, %v727
  %v756 = vadd.f32 %v685, %v727
  %v757 = vadd.f32 %v686, %v727
  %v758 = vadd.f32 %v687, %v727
  %v759 = vadd.f32 %v688, %v727
  %v760 = vadd.f32 %v689, %v727
  %v761 = vadd.f32 %v690, %v727
  %v762 = vadd.f32 %v691, %v727
  %v763 = vadd.f32 %v692, %v727
  %v764 = vadd.f32 %v693, %v727
  %v765 = vadd.f32 %v694, %v727
  %v766 = vadd.f32 %v695, %v727
  %v767 = vadd.f32 %v696, %v727
  %v768 = vadd.f32 %v697, %v727
  %v769 = vadd.f32 %v698, %v727
  %v770 = vadd.f32 %v699, %v727
  %v771 = vadd.f32 %v700, %v727
  %v772 = vadd.f32 %v701, %v727
  %v773 = vadd.f32 %v702, %v727
  %v774 = vadd.f32 %v703, %v727
  %v775 = vadd.f32 %v704, %v727
  %v776 = vadd.f32 %v705, %v727
  %v777 = vadd.f32 %v706, %v727
  %v778 = vadd.f32 %v707, %v727
  %v779 = vadd.f32 %v708, %v727
  %v780 = vadd.f32 %v709, %v727
  %v781 = vadd.f32 %v710, %v727
  %v782 = vadd.f32 %v711, %v727
  %v783 = vadd.f32 %v712, %v727
  %v784 = vadd.f32 %v713, %v727
  %v785 = vadd.f32 %v714, %v727
  %v786 = vadd.f32 %v715, %v727
  %v787 = vadd.f32 %v716, %v727
  %v788 = vadd.f32 %v717, %v727
  %v789 = vadd.f32 %v718, %v727
  %v790 = vadd.f32 %v719, %v727
  %v791 = vadd.f32 %v720, %v727
  %v792 = vadd.f32 %v721, %v727
  %vm793 = vcmp.gt.f32.partialorder %v729, 0.0
  %vm794 = vcmp.gt.f32.partialorder %v730, 0.0
  %vm795 = vcmp.gt.f32.partialorder %v731, 0.0
  %vm796 = vcmp.gt.f32.partialorder %v732, 0.0
  %vm797 = vcmp.gt.f32.partialorder %v733, 0.0
  %vm798 = vcmp.gt.f32.partialorder %v734, 0.0
  %vm799 = vcmp.gt.f32.partialorder %v735, 0.0
  %vm800 = vcmp.gt.f32.partialorder %v736, 0.0
  %vm801 = vcmp.gt.f32.partialorder %v737, 0.0
  %vm802 = vcmp.gt.f32.partialorder %v738, 0.0
  %vm803 = vcmp.gt.f32.partialorder %v739, 0.0
  %vm804 = vcmp.gt.f32.partialorder %v740, 0.0
  %vm805 = vcmp.gt.f32.partialorder %v741, 0.0
  %vm806 = vcmp.gt.f32.partialorder %v742, 0.0
  %vm807 = vcmp.gt.f32.partialorder %v743, 0.0
  %vm808 = vcmp.gt.f32.partialorder %v744, 0.0
  %vm809 = vcmp.gt.f32.partialorder %v745, 0.0
  %vm810 = vcmp.gt.f32.partialorder %v746, 0.0
  %vm811 = vcmp.gt.f32.partialorder %v747, 0.0
  %vm812 = vcmp.gt.f32.partialorder %v748, 0.0
  %vm813 = vcmp.gt.f32.partialorder %v749, 0.0
  %vm814 = vcmp.gt.f32.partialorder %v750, 0.0
  %vm815 = vcmp.gt.f32.partialorder %v751, 0.0
  %vm816 = vcmp.gt.f32.partialorder %v752, 0.0
  %vm817 = vcmp.gt.f32.partialorder %v753, 0.0
  %vm818 = vcmp.gt.f32.partialorder %v754, 0.0
  %vm819 = vcmp.gt.f32.partialorder %v755, 0.0
  %vm820 = vcmp.gt.f32.partialorder %v756, 0.0
  %vm821 = vcmp.gt.f32.partialorder %v757, 0.0
  %vm822 = vcmp.gt.f32.partialorder %v758, 0.0
  %vm823 = vcmp.gt.f32.partialorder %v759, 0.0
  %vm824 = vcmp.gt.f32.partialorder %v760, 0.0
  %vm825 = vcmp.gt.f32.partialorder %v761, 0.0
  %vm826 = vcmp.gt.f32.partialorder %v762, 0.0
  %vm827 = vcmp.gt.f32.partialorder %v763, 0.0
  %vm828 = vcmp.gt.f32.partialorder %v764, 0.0
  %vm829 = vcmp.gt.f32.partialorder %v765, 0.0
  %vm830 = vcmp.gt.f32.partialorder %v766, 0.0
  %vm831 = vcmp.gt.f32.partialorder %v767, 0.0
  %vm832 = vcmp.gt.f32.partialorder %v768, 0.0
  %vm833 = vcmp.gt.f32.partialorder %v769, 0.0
  %vm834 = vcmp.gt.f32.partialorder %v770, 0.0
  %vm835 = vcmp.gt.f32.partialorder %v771, 0.0
  %vm836 = vcmp.gt.f32.partialorder %v772, 0.0
  %vm837 = vcmp.gt.f32.partialorder %v773, 0.0
  %vm838 = vcmp.gt.f32.partialorder %v774, 0.0
  %vm839 = vcmp.gt.f32.partialorder %v775, 0.0
  %vm840 = vcmp.gt.f32.partialorder %v776, 0.0
  %vm841 = vcmp.gt.f32.partialorder %v777, 0.0
  %vm842 = vcmp.gt.f32.partialorder %v778, 0.0
  %vm843 = vcmp.gt.f32.partialorder %v779, 0.0
  %vm844 = vcmp.gt.f32.partialorder %v780, 0.0
  %vm845 = vcmp.gt.f32.partialorder %v781, 0.0
  %vm846 = vcmp.gt.f32.partialorder %v782, 0.0
  %vm847 = vcmp.gt.f32.partialorder %v783, 0.0
  %vm848 = vcmp.gt.f32.partialorder %v784, 0.0
  %vm849 = vcmp.gt.f32.partialorder %v785, 0.0
  %vm850 = vcmp.gt.f32.partialorder %v786, 0.0
  %vm851 = vcmp.gt.f32.partialorder %v787, 0.0
  %vm852 = vcmp.gt.f32.partialorder %v788, 0.0
  %vm853 = vcmp.gt.f32.partialorder %v789, 0.0
  %vm854 = vcmp.gt.f32.partialorder %v790, 0.0
  %vm855 = vcmp.gt.f32.partialorder %v791, 0.0
  %vm856 = vcmp.gt.f32.partialorder %v792, 0.0
  %v857 = vmul.f32 %v729, 0.1
  %v858 = vmul.f32 %v730, 0.1
  %v859 = vmul.f32 %v731, 0.1
  %v860 = vmul.f32 %v732, 0.1
  %v861 = vmul.f32 %v733, 0.1
  %v862 = vmul.f32 %v734, 0.1
  %v863 = vmul.f32 %v735, 0.1
  %v864 = vmul.f32 %v736, 0.1
  %v865 = vmul.f32 %v737, 0.1
  %v866 = vmul.f32 %v738, 0.1
  %v867 = vmul.f32 %v739, 0.1
  %v868 = vmul.f32 %v740, 0.1
  %v869 = vmul.f32 %v741, 0.1
  %v870 = vmul.f32 %v742, 0.1
  %v871 = vmul.f32 %v743, 0.1
  %v872 = vmul.f32 %v744, 0.1
  %v873 = vmul.f32 %v745, 0.1
  %v874 = vmul.f32 %v746, 0.1
  %v875 = vmul.f32 %v747, 0.1
  %v876 = vmul.f32 %v748, 0.1
  %v877 = vmul.f32 %v749, 0.1
  %v878 = vmul.f32 %v750, 0.1
  %v879 = vmul.f32 %v751, 0.1
  %v880 = vmul.f32 %v752, 0.1
  %v881 = vmul.f32 %v753, 0.1
  %v882 = vmul.f32 %v754, 0.1
  %v883 = vmul.f32 %v755, 0.1
  %v884 = vmul.f32 %v756, 0.1
  %v885 = vmul.f32 %v757, 0.1
  %v886 = vmul.f32 %v758, 0.1
  %v887 = vmul.f32 %v759, 0.1
  %v888 = vmul.f32 %v760, 0.1
  %v889 = vmul.f32 %v761, 0.1
  %v890 = vmul.f32 %v762, 0.1
  %v891 = vmul.f32 %v763, 0.1
  %v892 = vmul.f32 %v764, 0.1
  %v893 = vmul.f32 %v765, 0.1
  %v894 = vmul.f32 %v766, 0.1
  %v895 = vmul.f32 %v767, 0.1
  %v896 = vmul.f32 %v768, 0.1
  %v897 = vmul.f32 %v769, 0.1
  %v898 = vmul.f32 %v770, 0.1
  %v899 = vmul.f32 %v771, 0.1
  %v900 = vmul.f32 %v772, 0.1
  %v901 = vmul.f32 %v773, 0.1
  %v902 = vmul.f32 %v774, 0.1
  %v903 = vmul.f32 %v775, 0.1
  %v904 = vmul.f32 %v776, 0.1
  %v905 = vmul.f32 %v777, 0.1
  %v906 = vmul.f32 %v778, 0.1
  %v907 = vmul.f32 %v779, 0.1
  %v908 = vmul.f32 %v780, 0.1
  %v909 = vmul.f32 %v781, 0.1
  %v910 = vmul.f32 %v782, 0.1
  %v911 = vmul.f32 %v783, 0.1
  %v912 = vmul.f32 %v784, 0.1
  %v913 = vmul.f32 %v785, 0.1
  %v914 = vmul.f32 %v786, 0.1
  %v915 = vmul.f32 %v787, 0.1
  %v916 = vmul.f32 %v788, 0.1
  %v917 = vmul.f32 %v789, 0.1
  %v918 = vmul.f32 %v790, 0.1
  %v919 = vmul.f32 %v791, 0.1
  %v920 = vmul.f32 %v792, 0.1
  %v921 = vsel %vm793, %v729, %v857
  %v922 = vsel %vm794, %v730, %v858
  %v923 = vsel %vm795, %v731, %v859
  %v924 = vsel %vm796, %v732, %v860
  %v925 = vsel %vm797, %v733, %v861
  %v926 = vsel %vm798, %v734, %v862
  %v927 = vsel %vm799, %v735, %v863
  %v928 = vsel %vm800, %v736, %v864
  %v929 = vsel %vm801, %v737, %v865
  %v930 = vsel %vm802, %v738, %v866
  %v931 = vsel %vm803, %v739, %v867
  %v932 = vsel %vm804, %v740, %v868
  %v933 = vsel %vm805, %v741, %v869
  %v934 = vsel %vm806, %v742, %v870
  %v935 = vsel %vm807, %v743, %v871
  %v936 = vsel %vm808, %v744, %v872
  %v937 = vsel %vm809, %v745, %v873
  %v938 = vsel %vm810, %v746, %v874
  %v939 = vsel %vm811, %v747, %v875
  %v940 = vsel %vm812, %v748, %v876
  %v941 = vsel %vm813, %v749, %v877
  %v942 = vsel %vm814, %v750, %v878
  %v943 = vsel %vm815, %v751, %v879
  %v944 = vsel %vm816, %v752, %v880
  %v945 = vsel %vm817, %v753, %v881
  %v946 = vsel %vm818, %v754, %v882
  %v947 = vsel %vm819, %v755, %v883
  %v948 = vsel %vm820, %v756, %v884
  %v949 = vsel %vm821, %v757, %v885
  %v950 = vsel %vm822, %v758, %v886
  %v951 = vsel %vm823, %v759, %v887
  %v952 = vsel %vm824, %v760, %v888
  %v953 = vsel %vm825, %v761, %v889
  %v954 = vsel %vm826, %v762, %v890
  %v955 = vsel %vm827, %v763, %v891
  %v956 = vsel %vm828, %v764, %v892
  %v957 = vsel %vm829, %v765, %v893
  %v958 = vsel %vm830, %v766, %v894
  %v959 = vsel %vm831, %v767, %v895
  %v960 = vsel %vm832, %v768, %v896
  %v961 = vsel %vm833, %v769, %v897
  %v962 = vsel %vm834, %v770, %v898
  %v963 = vsel %vm835, %v771, %v899
  %v964 = vsel %vm836, %v772, %v900
  %v965 = vsel %vm837, %v773, %v901
  %v966 = vsel %vm838, %v774, %v902
  %v967 = vsel %vm839, %v775, %v903
  %v968 = vsel %vm840, %v776, %v904
  %v969 = vsel %vm841, %v777, %v905
  %v970 = vsel %vm842, %v778, %v906
  %v971 = vsel %vm843, %v779, %v907
  %v972 = vsel %vm844, %v780, %v908
  %v973 = vsel %vm845, %v781, %v909
  %v974 = vsel %vm846, %v782, %v910
  %v975 = vsel %vm847, %v783, %v911
  %v976 = vsel %vm848, %v784, %v912
  %v977 = vsel %vm849, %v785, %v913
  %v978 = vsel %vm850, %v786, %v914
  %v979 = vsel %vm851, %v787, %v915
  %v980 = vsel %vm852, %v788, %v916
  %v981 = vsel %vm853, %v789, %v917
  %v982 = vsel %vm854, %v790, %v918
  %v983 = vsel %vm855, %v791, %v919
  %v984 = vsel %vm856, %v792, %v920
  %v985 = vpack.c.bf16 %v922, %v921
  %v986 = vpack.c.bf16 %v924, %v923
  %v987 = vpack.c.bf16 %v926, %v925
  %v988 = vpack.c.bf16 %v928, %v927
  %v989 = vpack.c.bf16 %v930, %v929
  %v990 = vpack.c.bf16 %v932, %v931
  %v991 = vpack.c.bf16 %v934, %v933
  %v992 = vpack.c.bf16 %v936, %v935
  %v993 = vpack.c.bf16 %v938, %v937
  %v994 = vpack.c.bf16 %v940, %v939
  %v995 = vpack.c.bf16 %v942, %v941
  %v996 = vpack.c.bf16 %v944, %v943
  %v997 = vpack.c.bf16 %v946, %v945
  %v998 = vpack.c.bf16 %v948, %v947
  %v999 = vpack.c.bf16 %v950, %v949
  %v1000 = vpack.c.bf16 %v952, %v951
  %v1001 = vpack.c.bf16 %v954, %v953
  %v1002 = vpack.c.bf16 %v956, %v955
  %v1003 = vpack.c.bf16 %v958, %v957
  %v1004 = vpack.c.bf16 %v960, %v959
  %v1005 = vpack.c.bf16 %v962, %v961
  %v1006 = vpack.c.bf16 %v964, %v963
  %v1007 = vpack.c.bf16 %v966, %v965
  %v1008 = vpack.c.bf16 %v968, %v967
  %v1009 = vpack.c.bf16 %v970, %v969
  %v1010 = vpack.c.bf16 %v972, %v971
  %v1011 = vpack.c.bf16 %v974, %v973
  %v1012 = vpack.c.bf16 %v976, %v975
  %v1013 = vpack.c.bf16 %v978, %v977
  %v1014 = vpack.c.bf16 %v980, %v979
  %v1015 = vpack.c.bf16 %v982, %v981
  %v1016 = vpack.c.bf16 %v984, %v983
  %v1017 = vld [vmem:[%s1] sm:$0xf]
  %v1018 = vld [vmem:[%s1 + $0x4] sm:$0xf]
  %v1019 = vld [vmem:[%s1 + $0x8] sm:$0xf]
  %v1020 = vld [vmem:[%s1 + $0xc] sm:$0xf]
  %v1021 = vld [vmem:[%s1 + $0x10] sm:$0xf]
  %v1022 = vld [vmem:[%s1 + $0x14] sm:$0xf]
  %v1023 = vld [vmem:[%s1 + $0x18] sm:$0xf]
  %v1024 = vld [vmem:[%s1 + $0x1c] sm:$0xf]
  %v1025 = vld [vmem:[%s1 + $0x20] sm:$0xf]
  %v1026 = vld [vmem:[%s1 + $0x24] sm:$0xf]
  %v1027 = vld [vmem:[%s1 + $0x28] sm:$0xf]
  %v1028 = vld [vmem:[%s1 + $0x2c] sm:$0xf]
  %v1029 = vld [vmem:[%s1 + $0x30] sm:$0xf]
  %v1030 = vld [vmem:[%s1 + $0x34] sm:$0xf]
  %v1031 = vld [vmem:[%s1 + $0x38] sm:$0xf]
  %v1032 = vld [vmem:[%s1 + $0x3c] sm:$0xf]
  %v1033 = vld [vmem:[%s1 + $0x40] sm:$0xf]
  %v1034 = vld [vmem:[%s1 + $0x44] sm:$0xf]
  %v1035 = vld [vmem:[%s1 + $0x48] sm:$0xf]
  %v1036 = vld [vmem:[%s1 + $0x4c] sm:$0xf]
  %v1037 = vld [vmem:[%s1 + $0x50] sm:$0xf]
  %v1038 = vld [vmem:[%s1 + $0x54] sm:$0xf]
  %v1039 = vld [vmem:[%s1 + $0x58] sm:$0xf]
  %v1040 = vld [vmem:[%s1 + $0x5c] sm:$0xf]
  %v1041 = vld [vmem:[%s1 + $0x60] sm:$0xf]
  %v1042 = vld [vmem:[%s1 + $0x64] sm:$0xf]
  %v1043 = vld [vmem:[%s1 + $0x68] sm:$0xf]
  %v1044 = vld [vmem:[%s1 + $0x6c] sm:$0xf]
  %v1045 = vld [vmem:[%s1 + $0x70] sm:$0xf]
  %v1046 = vld [vmem:[%s1 + $0x74] sm:$0xf]
  %v1047 = vld [vmem:[%s1 + $0x78] sm:$0xf]
  %v1048 = vld [vmem:[%s1 + $0x7c] sm:$0xf]
  %v1049 = vld [vmem:[%s1 + $0x80] sm:$0xf]
  %v1050 = vld [vmem:[%s1 + $0x84] sm:$0xf]
  %v1051 = vld [vmem:[%s1 + $0x88] sm:$0xf]
  %v1052 = vld [vmem:[%s1 + $0x8c] sm:$0xf]
  %v1053 = vld [vmem:[%s1 + $0x90] sm:$0xf]
  %v1054 = vld [vmem:[%s1 + $0x94] sm:$0xf]
  %v1055 = vld [vmem:[%s1 + $0x98] sm:$0xf]
  %v1056 = vld [vmem:[%s1 + $0x9c] sm:$0xf]
  %v1057 = vld [vmem:[%s1 + $0xa0] sm:$0xf]
  %v1058 = vld [vmem:[%s1 + $0xa4] sm:$0xf]
  %v1059 = vld [vmem:[%s1 + $0xa8] sm:$0xf]
  %v1060 = vld [vmem:[%s1 + $0xac] sm:$0xf]
  %v1061 = vld [vmem:[%s1 + $0xb0] sm:$0xf]
  %v1062 = vld [vmem:[%s1 + $0xb4] sm:$0xf]
  %v1063 = vld [vmem:[%s1 + $0xb8] sm:$0xf]
  %v1064 = vld [vmem:[%s1 + $0xbc] sm:$0xf]
  %v1065 = vld [vmem:[%s1 + $0xc0] sm:$0xf]
  %v1066 = vld [vmem:[%s1 + $0xc4] sm:$0xf]
  %v1067 = vld [vmem:[%s1 + $0xc8] sm:$0xf]
  %v1068 = vld [vmem:[%s1 + $0xcc] sm:$0xf]
  %v1069 = vld [vmem:[%s1 + $0xd0] sm:$0xf]
  %v1070 = vld [vmem:[%s1 + $0xd4] sm:$0xf]
  %v1071 = vld [vmem:[%s1 + $0xd8] sm:$0xf]
  %v1072 = vld [vmem:[%s1 + $0xdc] sm:$0xf]
  %v1073 = vld [vmem:[%s1 + $0xe0] sm:$0xf]
  %v1074 = vld [vmem:[%s1 + $0xe4] sm:$0xf]
  %v1075 = vld [vmem:[%s1 + $0xe8] sm:$0xf]
  %v1076 = vld [vmem:[%s1 + $0xec] sm:$0xf]
  %v1077 = vld [vmem:[%s1 + $0xf0] sm:$0xf]
  %v1078 = vld [vmem:[%s1 + $0xf4] sm:$0xf]
  %v1079 = vld [vmem:[%s1 + $0xf8] sm:$0xf]
  %v1080 = vld [vmem:[%s1 + $0xfc] sm:$0xf]
  %v1081 = vld [vmem:[%s3] sm:$0xf]
  %v1082 = vld [vmem:[%s3 + $0x4] sm:$0xf]
  %v1083 = vld [vmem:[%s3 + $0x8] sm:$0xf]
  %v1084 = vld [vmem:[%s3 + $0xc] sm:$0xf]
  %v1085 = vld [vmem:[%s3 + $0x10] sm:$0xf]
  %v1086 = vld [vmem:[%s3 + $0x14] sm:$0xf]
  %v1087 = vld [vmem:[%s3 + $0x18] sm:$0xf]
  %v1088 = vld [vmem:[%s3 + $0x1c] sm:$0xf]
  %v1089 = vld [vmem:[%s3 + $0x20] sm:$0xf]
  %v1090 = vld [vmem:[%s3 + $0x24] sm:$0xf]
  %v1091 = vld [vmem:[%s3 + $0x28] sm:$0xf]
  %v1092 = vld [vmem:[%s3 + $0x2c] sm:$0xf]
  %v1093 = vld [vmem:[%s3 + $0x30] sm:$0xf]
  %v1094 = vld [vmem:[%s3 + $0x34] sm:$0xf]
  %v1095 = vld [vmem:[%s3 + $0x38] sm:$0xf]
  %v1096 = vld [vmem:[%s3 + $0x3c] sm:$0xf]
  %v1161 = vunpack.c.l.b16 %v1017
  %v1162 = vunpack.c.l.b16 %v1018
  %v1163 = vunpack.c.l.b16 %v1019
  %v1164 = vunpack.c.l.b16 %v1020
  %v1165 = vunpack.c.l.b16 %v1021
  %v1166 = vunpack.c.l.b16 %v1022
  %v1167 = vunpack.c.l.b16 %v1023
  %v1168 = vunpack.c.l.b16 %v1024
  %v1169 = vunpack.c.l.b16 %v1025
  %v1170 = vunpack.c.l.b16 %v1026
  %v1171 = vunpack.c.l.b16 %v1027
  %v1172 = vunpack.c.l.b16 %v1028
  %v1173 = vunpack.c.l.b16 %v1029
  %v1174 = vunpack.c.l.b16 %v1030
  %v1175 = vunpack.c.l.b16 %v1031
  %v1176 = vunpack.c.l.b16 %v1032
  %v1177 = vunpack.c.l.b16 %v1033
  %v1178 = vunpack.c.l.b16 %v1034
  %v1179 = vunpack.c.l.b16 %v1035
  %v1180 = vunpack.c.l.b16 %v1036
  %v1181 = vunpack.c.l.b16 %v1037
  %v1182 = vunpack.c.l.b16 %v1038
  %v1183 = vunpack.c.l.b16 %v1039
  %v1184 = vunpack.c.l.b16 %v1040
  %v1185 = vunpack.c.l.b16 %v1041
  %v1186 = vunpack.c.l.b16 %v1042
  %v1187 = vunpack.c.l.b16 %v1043
  %v1188 = vunpack.c.l.b16 %v1044
  %v1189 = vunpack.c.l.b16 %v1045
  %v1190 = vunpack.c.l.b16 %v1046
  %v1191 = vunpack.c.l.b16 %v1047
  %v1192 = vunpack.c.l.b16 %v1048
  %v1193 = vunpack.c.l.b16 %v1049
  %v1194 = vunpack.c.l.b16 %v1050
  %v1195 = vunpack.c.l.b16 %v1051
  %v1196 = vunpack.c.l.b16 %v1052
  %v1197 = vunpack.c.l.b16 %v1053
  %v1198 = vunpack.c.l.b16 %v1054
  %v1199 = vunpack.c.l.b16 %v1055
  %v1200 = vunpack.c.l.b16 %v1056
  %v1201 = vunpack.c.l.b16 %v1057
  %v1202 = vunpack.c.l.b16 %v1058
  %v1203 = vunpack.c.l.b16 %v1059
  %v1204 = vunpack.c.l.b16 %v1060
  %v1205 = vunpack.c.l.b16 %v1061
  %v1206 = vunpack.c.l.b16 %v1062
  %v1207 = vunpack.c.l.b16 %v1063
  %v1208 = vunpack.c.l.b16 %v1064
  %v1209 = vunpack.c.l.b16 %v1065
  %v1210 = vunpack.c.l.b16 %v1066
  %v1211 = vunpack.c.l.b16 %v1067
  %v1212 = vunpack.c.l.b16 %v1068
  %v1213 = vunpack.c.l.b16 %v1069
  %v1214 = vunpack.c.l.b16 %v1070
  %v1215 = vunpack.c.l.b16 %v1071
  %v1216 = vunpack.c.l.b16 %v1072
  %v1217 = vunpack.c.l.b16 %v1073
  %v1218 = vunpack.c.l.b16 %v1074
  %v1219 = vunpack.c.l.b16 %v1075
  %v1220 = vunpack.c.l.b16 %v1076
  %v1221 = vunpack.c.l.b16 %v1077
  %v1222 = vunpack.c.l.b16 %v1078
  %v1223 = vunpack.c.l.b16 %v1079
  %v1224 = vunpack.c.l.b16 %v1080
  %v1225 = vpack.c.b16 %v1162, %v1161
  %v1226 = vpack.c.b16 %v1164, %v1163
  %v1227 = vpack.c.b16 %v1166, %v1165
  %v1228 = vpack.c.b16 %v1168, %v1167
  %v1229 = vpack.c.b16 %v1170, %v1169
  %v1230 = vpack.c.b16 %v1172, %v1171
  %v1231 = vpack.c.b16 %v1174, %v1173
  %v1232 = vpack.c.b16 %v1176, %v1175
  %v1233 = vpack.c.b16 %v1178, %v1177
  %v1234 = vpack.c.b16 %v1180, %v1179
  %v1235 = vpack.c.b16 %v1182, %v1181
  %v1236 = vpack.c.b16 %v1184, %v1183
  %v1237 = vpack.c.b16 %v1186, %v1185
  %v1238 = vpack.c.b16 %v1188, %v1187
  %v1239 = vpack.c.b16 %v1190, %v1189
  %v1240 = vpack.c.b16 %v1192, %v1191
  %v1241 = vpack.c.b16 %v1194, %v1193
  %v1242 = vpack.c.b16 %v1196, %v1195
  %v1243 = vpack.c.b16 %v1198, %v1197
  %v1244 = vpack.c.b16 %v1200, %v1199
  %v1245 = vpack.c.b16 %v1202, %v1201
  %v1246 = vpack.c.b16 %v1204, %v1203
  %v1247 = vpack.c.b16 %v1206, %v1205
  %v1248 = vpack.c.b16 %v1208, %v1207
  %v1249 = vpack.c.b16 %v1210, %v1209
  %v1250 = vpack.c.b16 %v1212, %v1211
  %v1251 = vpack.c.b16 %v1214, %v1213
  %v1252 = vpack.c.b16 %v1216, %v1215
  %v1253 = vpack.c.b16 %v1218, %v1217
  %v1254 = vpack.c.b16 %v1220, %v1219
  %v1255 = vpack.c.b16 %v1222, %v1221
  %v1256 = vpack.c.b16 %v1224, %v1223
  %v1305 = vunpack.c.l.b16 %v1081
  %v1306 = vunpack.c.l.b16 %v1082
  %v1307 = vunpack.c.l.b16 %v1083
  %v1308 = vunpack.c.l.b16 %v1084
  %v1309 = vunpack.c.l.b16 %v1085
  %v1310 = vunpack.c.l.b16 %v1086
  %v1311 = vunpack.c.l.b16 %v1087
  %v1312 = vunpack.c.l.b16 %v1088
  %v1313 = vunpack.c.l.b16 %v1089
  %v1314 = vunpack.c.l.b16 %v1090
  %v1315 = vunpack.c.l.b16 %v1091
  %v1316 = vunpack.c.l.b16 %v1092
  %v1317 = vunpack.c.l.b16 %v1093
  %v1318 = vunpack.c.l.b16 %v1094
  %v1319 = vunpack.c.l.b16 %v1095
  %v1320 = vunpack.c.l.b16 %v1096
  %v1321 = vpack.c.b16 %v1306, %v1305
  %v1322 = vpack.c.b16 %v1308, %v1307
  %v1323 = vpack.c.b16 %v1310, %v1309
  %v1324 = vpack.c.b16 %v1312, %v1311
  %v1325 = vpack.c.b16 %v1314, %v1313
  %v1326 = vpack.c.b16 %v1316, %v1315
  %v1327 = vpack.c.b16 %v1318, %v1317
  %v1328 = vpack.c.b16 %v1320, %v1319
  %1337 = vmatprep.subr.bf16.mxu0 0
  %1338 = vmatpush1.bf16.msra.mxu0 %v1321
  %1339 = vmatprep.subr.bf16.mxu0 0
  %1340 = vmatpush1.bf16.msra.mxu0 %v1322
  %1341 = vmatprep.subr.bf16.mxu0 0
  %1342 = vmatpush1.bf16.msra.mxu0 %v1323
  %1343 = vmatprep.subr.bf16.mxu0 0
  %1344 = vmatpush1.bf16.msra.mxu0 %v1324
  %1345 = vmatprep.subr.bf16.mxu0 0
  %1346 = vmatpush1.bf16.msra.mxu0 %v1325
  %1347 = vmatprep.subr.bf16.mxu0 0
  %1348 = vmatpush1.bf16.msra.mxu0 %v1326
  %1349 = vmatprep.subr.bf16.mxu0 0
  %1350 = vmatpush1.bf16.msra.mxu0 %v1327
  %1351 = vmatprep.subr.bf16.mxu0 0
  %1352 = vmatpush1.bf16.msra.mxu0 %v1328
  %1353 = vmatprep.subr.bf16.mxu0 0
  %1354 = vmatpush1.bf16.msra.mxu0 0
  %1355 = vmatprep.subr.bf16.mxu0 0
  %1356 = vmatpush1.bf16.msra.mxu0 0
  %1357 = vmatprep.subr.bf16.mxu0 0
  %1358 = vmatpush1.bf16.msra.mxu0 0
  %1359 = vmatprep.subr.bf16.mxu0 0
  %1360 = vmatpush1.bf16.msra.mxu0 0
  %1361 = vmatprep.subr.bf16.mxu0 0
  %1362 = vmatpush1.bf16.msra.mxu0 0
  %1363 = vmatprep.subr.bf16.mxu0 0
  %1364 = vmatpush1.bf16.msra.mxu0 0
  %1365 = vmatprep.subr.bf16.mxu0 0
  %1366 = vmatpush1.bf16.msra.mxu0 0
  %1367 = vmatprep.subr.bf16.mxu0 0
  %1368 = vmatpush1.bf16.msra.mxu0 0
  %1369 = vmatprep.mubr.bf16.mxu0 0
  %1370 = vmatmul.mubr.bf16.gmra.mrb[0].mxu0 %v1225
  %v1371 = vpop.f32.mrb[0].mxu0
  %v1372 = vadd.f32 0.0, %v1371
  %v1373 = vpop.f32.mrb[0].mxu0
  %v1374 = vpop.f32.mrb[0].mxu0
  %v1375 = vadd.f32 0.0, %v1374
  %v1376 = vpop.f32.mrb[0].mxu0
  %1377 = vmatprep.mubr.bf16.mxu0 0
  %1378 = vmatmul.mubr.bf16.gmra.mrb[0].mxu0 %v1226
  %v1379 = vpop.f32.mrb[0].mxu0
  %v1380 = vadd.f32 0.0, %v1379
  %v1381 = vpop.f32.mrb[0].mxu0
  %v1382 = vpop.f32.mrb[0].mxu0
  %v1383 = vadd.f32 0.0, %v1382
  %v1384 = vpop.f32.mrb[0].mxu0
  %1385 = vmatprep.mubr.bf16.mxu0 0
  %1386 = vmatmul.mubr.bf16.gmra.mrb[0].mxu0 %v1227
  %v1387 = vpop.f32.mrb[0].mxu0
  %v1388 = vadd.f32 0.0, %v1387
  %v1389 = vpop.f32.mrb[0].mxu0
  %v1390 = vpop.f32.mrb[0].mxu0
  %v1391 = vadd.f32 0.0, %v1390
  %v1392 = vpop.f32.mrb[0].mxu0
  %1393 = vmatprep.mubr.bf16.mxu0 0
  %1394 = vmatmul.mubr.bf16.gmra.mrb[0].mxu0 %v1228
  %v1395 = vpop.f32.mrb[0].mxu0
  %v1396 = vadd.f32 0.0, %v1395
  %v1397 = vpop.f32.mrb[0].mxu0
  %v1398 = vpop.f32.mrb[0].mxu0
  %v1399 = vadd.f32 0.0, %v1398
  %v1400 = vpop.f32.mrb[0].mxu0
  %1401 = vmatprep.mubr.bf16.mxu0 0
  %1402 = vmatmul.mubr.bf16.gmra.mrb[0].mxu0 %v1229
  %v1403 = vpop.f32.mrb[0].mxu0
  %v1404 = vadd.f32 0.0, %v1403
  %v1405 = vpop.f32.mrb[0].mxu0
  %v1406 = vpop.f32.mrb[0].mxu0
  %v1407 = vadd.f32 0.0, %v1406
  %v1408 = vpop.f32.mrb[0].mxu0
  %1409 = vmatprep.mubr.bf16.mxu0 0
  %1410 = vmatmul.mubr.bf16.gmra.mrb[0].mxu0 %v1230
  %v1411 = vpop.f32.mrb[0].mxu0
  %v1412 = vadd.f32 0.0, %v1411
  %v1413 = vpop.f32.mrb[0].mxu0
  %v1414 = vpop.f32.mrb[0].mxu0
  %v1415 = vadd.f32 0.0, %v1414
  %v1416 = vpop.f32.mrb[0].mxu0
  %1417 = vmatprep.mubr.bf16.mxu0 0
  %1418 = vmatmul.mubr.bf16.gmra.mrb[0].mxu0 %v1231
  %v1419 = vpop.f32.mrb[0].mxu0
  %v1420 = vadd.f32 0.0, %v1419
  %v1421 = vpop.f32.mrb[0].mxu0
  %v1422 = vpop.f32.mrb[0].mxu0
  %v1423 = vadd.f32 0.0, %v1422
  %v1424 = vpop.f32.mrb[0].mxu0
  %1425 = vmatprep.mubr.bf16.mxu0 0
  %1426 = vmatmul.mubr.bf16.gmra.mrb[0].mxu0 %v1232
  %v1427 = vpop.f32.mrb[0].mxu0
  %v1428 = vadd.f32 0.0, %v1427
  %v1429 = vpop.f32.mrb[0].mxu0
  %v1430 = vpop.f32.mrb[0].mxu0
  %v1431 = vadd.f32 0.0, %v1430
  %v1432 = vpop.f32.mrb[0].mxu0
  %1433 = vmatprep.mubr.bf16.mxu0 0
  %1434 = vmatmul.mubr.bf16.gmra.mrb[0].mxu0 %v1233
  %v1435 = vpop.f32.mrb[0].mxu0
  %v1436 = vadd.f32 0.0, %v1435
  %v1437 = vpop.f32.mrb[0].mxu0
  %v1438 = vpop.f32.mrb[0].mxu0
  %v1439 = vadd.f32 0.0, %v1438
  %v1440 = vpop.f32.mrb[0].mxu0
  %1441 = vmatprep.mubr.bf16.mxu0 0
  %1442 = vmatmul.mubr.bf16.gmra.mrb[0].mxu0 %v1234
  %v1443 = vpop.f32.mrb[0].mxu0
  %v1444 = vadd.f32 0.0, %v1443
  %v1445 = vpop.f32.mrb[0].mxu0
  %v1446 = vpop.f32.mrb[0].mxu0
  %v1447 = vadd.f32 0.0, %v1446
  %v1448 = vpop.f32.mrb[0].mxu0
  %1449 = vmatprep.mubr.bf16.mxu0 0
  %1450 = vmatmul.mubr.bf16.gmra.mrb[0].mxu0 %v1235
  %v1451 = vpop.f32.mrb[0].mxu0
  %v1452 = vadd.f32 0.0, %v1451
  %v1453 = vpop.f32.mrb[0].mxu0
  %v1454 = vpop.f32.mrb[0].mxu0
  %v1455 = vadd.f32 0.0, %v1454
  %v1456 = vpop.f32.mrb[0].mxu0
  %1457 = vmatprep.mubr.bf16.mxu0 0
  %1458 = vmatmul.mubr.bf16.gmra.mrb[0].mxu0 %v1236
  %v1459 = vpop.f32.mrb[0].mxu0
  %v1460 = vadd.f32 0.0, %v1459
  %v1461 = vpop.f32.mrb[0].mxu0
  %v1462 = vpop.f32.mrb[0].mxu0
  %v1463 = vadd.f32 0.0, %v1462
  %v1464 = vpop.f32.mrb[0].mxu0
  %1465 = vmatprep.mubr.bf16.mxu0 0
  %1466 = vmatmul.mubr.bf16.gmra.mrb[0].mxu0 %v1237
  %v1467 = vpop.f32.mrb[0].mxu0
  %v1468 = vadd.f32 0.0, %v1467
  %v1469 = vpop.f32.mrb[0].mxu0
  %v1470 = vpop.f32.mrb[0].mxu0
  %v1471 = vadd.f32 0.0, %v1470
  %v1472 = vpop.f32.mrb[0].mxu0
  %1473 = vmatprep.mubr.bf16.mxu0 0
  %1474 = vmatmul.mubr.bf16.gmra.mrb[0].mxu0 %v1238
  %v1475 = vpop.f32.mrb[0].mxu0
  %v1476 = vadd.f32 0.0, %v1475
  %v1477 = vpop.f32.mrb[0].mxu0
  %v1478 = vpop.f32.mrb[0].mxu0
  %v1479 = vadd.f32 0.0, %v1478
  %v1480 = vpop.f32.mrb[0].mxu0
  %1481 = vmatprep.mubr.bf16.mxu0 0
  %1482 = vmatmul.mubr.bf16.gmra.mrb[0].mxu0 %v1239
  %v1483 = vpop.f32.mrb[0].mxu0
  %v1484 = vadd.f32 0.0, %v1483
  %v1485 = vpop.f32.mrb[0].mxu0
  %v1486 = vpop.f32.mrb[0].mxu0
  %v1487 = vadd.f32 0.0, %v1486
  %v1488 = vpop.f32.mrb[0].mxu0
  %1489 = vmatprep.mubr.bf16.mxu0 0
  %1490 = vmatmul.mubr.bf16.gmra.mrb[0].mxu0 %v1240
  %v1491 = vpop.f32.mrb[0].mxu0
  %v1492 = vadd.f32 0.0, %v1491
  %v1493 = vpop.f32.mrb[0].mxu0
  %v1494 = vpop.f32.mrb[0].mxu0
  %v1495 = vadd.f32 0.0, %v1494
  %v1496 = vpop.f32.mrb[0].mxu0
  %1497 = vmatprep.mubr.bf16.mxu0 0
  %1498 = vmatmul.mubr.bf16.gmra.mrb[0].mxu0 %v1241
  %v1499 = vpop.f32.mrb[0].mxu0
  %v1500 = vadd.f32 0.0, %v1499
  %v1501 = vpop.f32.mrb[0].mxu0
  %v1502 = vpop.f32.mrb[0].mxu0
  %v1503 = vadd.f32 0.0, %v1502
  %v1504 = vpop.f32.mrb[0].mxu0
  %1505 = vmatprep.mubr.bf16.mxu0 0
  %1506 = vmatmul.mubr.bf16.gmra.mrb[0].mxu0 %v1242
  %v1507 = vpop.f32.mrb[0].mxu0
  %v1508 = vadd.f32 0.0, %v1507
  %v1509 = vpop.f32.mrb[0].mxu0
  %v1510 = vpop.f32.mrb[0].mxu0
  %v1511 = vadd.f32 0.0, %v1510
  %v1512 = vpop.f32.mrb[0].mxu0
  %1513 = vmatprep.mubr.bf16.mxu0 0
  %1514 = vmatmul.mubr.bf16.gmra.mrb[0].mxu0 %v1243
  %v1515 = vpop.f32.mrb[0].mxu0
  %v1516 = vadd.f32 0.0, %v1515
  %v1517 = vpop.f32.mrb[0].mxu0
  %v1518 = vpop.f32.mrb[0].mxu0
  %v1519 = vadd.f32 0.0, %v1518
  %v1520 = vpop.f32.mrb[0].mxu0
  %1521 = vmatprep.mubr.bf16.mxu0 0
  %1522 = vmatmul.mubr.bf16.gmra.mrb[0].mxu0 %v1244
  %v1523 = vpop.f32.mrb[0].mxu0
  %v1524 = vadd.f32 0.0, %v1523
  %v1525 = vpop.f32.mrb[0].mxu0
  %v1526 = vpop.f32.mrb[0].mxu0
  %v1527 = vadd.f32 0.0, %v1526
  %v1528 = vpop.f32.mrb[0].mxu0
  %1529 = vmatprep.mubr.bf16.mxu0 0
  %1530 = vmatmul.mubr.bf16.gmra.mrb[0].mxu0 %v1245
  %v1531 = vpop.f32.mrb[0].mxu0
  %v1532 = vadd.f32 0.0, %v1531
  %v1533 = vpop.f32.mrb[0].mxu0
  %v1534 = vpop.f32.mrb[0].mxu0
  %v1535 = vadd.f32 0.0, %v1534
  %v1536 = vpop.f32.mrb[0].mxu0
  %1537 = vmatprep.mubr.bf16.mxu0 0
  %1538 = vmatmul.mubr.bf16.gmra.mrb[0].mxu0 %v1246
  %v1539 = vpop.f32.mrb[0].mxu0
  %v1540 = vadd.f32 0.0, %v1539
  %v1541 = vpop.f32.mrb[0].mxu0
  %v1542 = vpop.f32.mrb[0].mxu0
  %v1543 = vadd.f32 0.0, %v1542
  %v1544 = vpop.f32.mrb[0].mxu0
  %1545 = vmatprep.mubr.bf16.mxu0 0
  %1546 = vmatmul.mubr.bf16.gmra.mrb[0].mxu0 %v1247
  %v1547 = vpop.f32.mrb[0].mxu0
  %v1548 = vadd.f32 0.0, %v1547
  %v1549 = vpop.f32.mrb[0].mxu0
  %v1550 = vpop.f32.mrb[0].mxu0
  %v1551 = vadd.f32 0.0, %v1550
  %v1552 = vpop.f32.mrb[0].mxu0
  %1553 = vmatprep.mubr.bf16.mxu0 0
  %1554 = vmatmul.mubr.bf16.gmra.mrb[0].mxu0 %v1248
  %v1555 = vpop.f32.mrb[0].mxu0
  %v1556 = vadd.f32 0.0, %v1555
  %v1557 = vpop.f32.mrb[0].mxu0
  %v1558 = vpop.f32.mrb[0].mxu0
  %v1559 = vadd.f32 0.0, %v1558
  %v1560 = vpop.f32.mrb[0].mxu0
  %1561 = vmatprep.mubr.bf16.mxu0 0
  %1562 = vmatmul.mubr.bf16.gmra.mrb[0].mxu0 %v1249
  %v1563 = vpop.f32.mrb[0].mxu0
  %v1564 = vadd.f32 0.0, %v1563
  %v1565 = vpop.f32.mrb[0].mxu0
  %v1566 = vpop.f32.mrb[0].mxu0
  %v1567 = vadd.f32 0.0, %v1566
  %v1568 = vpop.f32.mrb[0].mxu0
  %1569 = vmatprep.mubr.bf16.mxu0 0
  %1570 = vmatmul.mubr.bf16.gmra.mrb[0].mxu0 %v1250
  %v1571 = vpop.f32.mrb[0].mxu0
  %v1572 = vadd.f32 0.0, %v1571
  %v1573 = vpop.f32.mrb[0].mxu0
  %v1574 = vpop.f32.mrb[0].mxu0
  %v1575 = vadd.f32 0.0, %v1574
  %v1576 = vpop.f32.mrb[0].mxu0
  %1577 = vmatprep.mubr.bf16.mxu0 0
  %1578 = vmatmul.mubr.bf16.gmra.mrb[0].mxu0 %v1251
  %v1579 = vpop.f32.mrb[0].mxu0
  %v1580 = vadd.f32 0.0, %v1579
  %v1581 = vpop.f32.mrb[0].mxu0
  %v1582 = vpop.f32.mrb[0].mxu0
  %v1583 = vadd.f32 0.0, %v1582
  %v1584 = vpop.f32.mrb[0].mxu0
  %1585 = vmatprep.mubr.bf16.mxu0 0
  %1586 = vmatmul.mubr.bf16.gmra.mrb[0].mxu0 %v1252
  %v1587 = vpop.f32.mrb[0].mxu0
  %v1588 = vadd.f32 0.0, %v1587
  %v1589 = vpop.f32.mrb[0].mxu0
  %v1590 = vpop.f32.mrb[0].mxu0
  %v1591 = vadd.f32 0.0, %v1590
  %v1592 = vpop.f32.mrb[0].mxu0
  %1593 = vmatprep.mubr.bf16.mxu0 0
  %1594 = vmatmul.mubr.bf16.gmra.mrb[0].mxu0 %v1253
  %v1595 = vpop.f32.mrb[0].mxu0
  %v1596 = vadd.f32 0.0, %v1595
  %v1597 = vpop.f32.mrb[0].mxu0
  %v1598 = vpop.f32.mrb[0].mxu0
  %v1599 = vadd.f32 0.0, %v1598
  %v1600 = vpop.f32.mrb[0].mxu0
  %1601 = vmatprep.mubr.bf16.mxu0 0
  %1602 = vmatmul.mubr.bf16.gmra.mrb[0].mxu0 %v1254
  %v1603 = vpop.f32.mrb[0].mxu0
  %v1604 = vadd.f32 0.0, %v1603
  %v1605 = vpop.f32.mrb[0].mxu0
  %v1606 = vpop.f32.mrb[0].mxu0
  %v1607 = vadd.f32 0.0, %v1606
  %v1608 = vpop.f32.mrb[0].mxu0
  %1609 = vmatprep.mubr.bf16.mxu0 0
  %1610 = vmatmul.mubr.bf16.gmra.mrb[0].mxu0 %v1255
  %v1611 = vpop.f32.mrb[0].mxu0
  %v1612 = vadd.f32 0.0, %v1611
  %v1613 = vpop.f32.mrb[0].mxu0
  %v1614 = vpop.f32.mrb[0].mxu0
  %v1615 = vadd.f32 0.0, %v1614
  %v1616 = vpop.f32.mrb[0].mxu0
  %1617 = vmatprep.mubr.bf16.mxu0 0
  %1618 = vmatmul.mubr.bf16.gmra.mrb[0].mxu0 %v1256
  %v1619 = vpop.f32.mrb[0].mxu0
  %v1620 = vadd.f32 0.0, %v1619
  %v1621 = vpop.f32.mrb[0].mxu0
  %v1622 = vpop.f32.mrb[0].mxu0
  %v1623 = vadd.f32 0.0, %v1622
  %v1624 = vpop.f32.mrb[0].mxu0
  %1625 = vdwg.mxu0
  %v1626 = vld [vmem:[%s8] sm:$0x1]
  %v1628 = vlaneseq
  %v1629 = vshrl.u32 %v1628, 7
  %v1630 = vsub.s32 0, %v1629
  %v1631 = vrot.slane %v1626, %v1630
  %v1633 = vmul.f32 %v1372, %v1631
  %v1634 = vmul.f32 %v1375, %v1631
  %v1635 = vmul.f32 %v1380, %v1631
  %v1636 = vmul.f32 %v1383, %v1631
  %v1637 = vmul.f32 %v1388, %v1631
  %v1638 = vmul.f32 %v1391, %v1631
  %v1639 = vmul.f32 %v1396, %v1631
  %v1640 = vmul.f32 %v1399, %v1631
  %v1641 = vmul.f32 %v1404, %v1631
  %v1642 = vmul.f32 %v1407, %v1631
  %v1643 = vmul.f32 %v1412, %v1631
  %v1644 = vmul.f32 %v1415, %v1631
  %v1645 = vmul.f32 %v1420, %v1631
  %v1646 = vmul.f32 %v1423, %v1631
  %v1647 = vmul.f32 %v1428, %v1631
  %v1648 = vmul.f32 %v1431, %v1631
  %v1649 = vmul.f32 %v1436, %v1631
  %v1650 = vmul.f32 %v1439, %v1631
  %v1651 = vmul.f32 %v1444, %v1631
  %v1652 = vmul.f32 %v1447, %v1631
  %v1653 = vmul.f32 %v1452, %v1631
  %v1654 = vmul.f32 %v1455, %v1631
  %v1655 = vmul.f32 %v1460, %v1631
  %v1656 = vmul.f32 %v1463, %v1631
  %v1657 = vmul.f32 %v1468, %v1631
  %v1658 = vmul.f32 %v1471, %v1631
  %v1659 = vmul.f32 %v1476, %v1631
  %v1660 = vmul.f32 %v1479, %v1631
  %v1661 = vmul.f32 %v1484, %v1631
  %v1662 = vmul.f32 %v1487, %v1631
  %v1663 = vmul.f32 %v1492, %v1631
  %v1664 = vmul.f32 %v1495, %v1631
  %v1665 = vmul.f32 %v1500, %v1631
  %v1666 = vmul.f32 %v1503, %v1631
  %v1667 = vmul.f32 %v1508, %v1631
  %v1668 = vmul.f32 %v1511, %v1631
  %v1669 = vmul.f32 %v1516, %v1631
  %v1670 = vmul.f32 %v1519, %v1631
  %v1671 = vmul.f32 %v1524, %v1631
  %v1672 = vmul.f32 %v1527, %v1631
  %v1673 = vmul.f32 %v1532, %v1631
  %v1674 = vmul.f32 %v1535, %v1631
  %v1675 = vmul.f32 %v1540, %v1631
  %v1676 = vmul.f32 %v1543, %v1631
  %v1677 = vmul.f32 %v1548, %v1631
  %v1678 = vmul.f32 %v1551, %v1631
  %v1679 = vmul.f32 %v1556, %v1631
  %v1680 = vmul.f32 %v1559, %v1631
  %v1681 = vmul.f32 %v1564, %v1631
  %v1682 = vmul.f32 %v1567, %v1631
  %v1683 = vmul.f32 %v1572, %v1631
  %v1684 = vmul.f32 %v1575, %v1631
  %v1685 = vmul.f32 %v1580, %v1631
  %v1686 = vmul.f32 %v1583, %v1631
  %v1687 = vmul.f32 %v1588, %v1631
  %v1688 = vmul.f32 %v1591, %v1631
  %v1689 = vmul.f32 %v1596, %v1631
  %v1690 = vmul.f32 %v1599, %v1631
  %v1691 = vmul.f32 %v1604, %v1631
  %v1692 = vmul.f32 %v1607, %v1631
  %v1693 = vmul.f32 %v1612, %v1631
  %v1694 = vmul.f32 %v1615, %v1631
  %v1695 = vmul.f32 %v1620, %v1631
  %v1696 = vmul.f32 %v1623, %v1631
  %v1697 = vld [vmem:[%s9] sm:$0x1]
  %v1699 = vlaneseq
  %v1700 = vshrl.u32 %v1699, 7
  %v1701 = vsub.s32 0, %v1700
  %v1702 = vrot.slane %v1697, %v1701
  %v1704 = vadd.f32 %v1633, %v1702
  %v1705 = vadd.f32 %v1634, %v1702
  %v1706 = vadd.f32 %v1635, %v1702
  %v1707 = vadd.f32 %v1636, %v1702
  %v1708 = vadd.f32 %v1637, %v1702
  %v1709 = vadd.f32 %v1638, %v1702
  %v1710 = vadd.f32 %v1639, %v1702
  %v1711 = vadd.f32 %v1640, %v1702
  %v1712 = vadd.f32 %v1641, %v1702
  %v1713 = vadd.f32 %v1642, %v1702
  %v1714 = vadd.f32 %v1643, %v1702
  %v1715 = vadd.f32 %v1644, %v1702
  %v1716 = vadd.f32 %v1645, %v1702
  %v1717 = vadd.f32 %v1646, %v1702
  %v1718 = vadd.f32 %v1647, %v1702
  %v1719 = vadd.f32 %v1648, %v1702
  %v1720 = vadd.f32 %v1649, %v1702
  %v1721 = vadd.f32 %v1650, %v1702
  %v1722 = vadd.f32 %v1651, %v1702
  %v1723 = vadd.f32 %v1652, %v1702
  %v1724 = vadd.f32 %v1653, %v1702
  %v1725 = vadd.f32 %v1654, %v1702
  %v1726 = vadd.f32 %v1655, %v1702
  %v1727 = vadd.f32 %v1656, %v1702
  %v1728 = vadd.f32 %v1657, %v1702
  %v1729 = vadd.f32 %v1658, %v1702
  %v1730 = vadd.f32 %v1659, %v1702
  %v1731 = vadd.f32 %v1660, %v1702
  %v1732 = vadd.f32 %v1661, %v1702
  %v1733 = vadd.f32 %v1662, %v1702
  %v1734 = vadd.f32 %v1663, %v1702
  %v1735 = vadd.f32 %v1664, %v1702
  %v1736 = vadd.f32 %v1665, %v1702
  %v1737 = vadd.f32 %v1666, %v1702
  %v1738 = vadd.f32 %v1667, %v1702
  %v1739 = vadd.f32 %v1668, %v1702
  %v1740 = vadd.f32 %v1669, %v1702
  %v1741 = vadd.f32 %v1670, %v1702
  %v1742 = vadd.f32 %v1671, %v1702
  %v1743 = vadd.f32 %v1672, %v1702
  %v1744 = vadd.f32 %v1673, %v1702
  %v1745 = vadd.f32 %v1674, %v1702
  %v1746 = vadd.f32 %v1675, %v1702
  %v1747 = vadd.f32 %v1676, %v1702
  %v1748 = vadd.f32 %v1677, %v1702
  %v1749 = vadd.f32 %v1678, %v1702
  %v1750 = vadd.f32 %v1679, %v1702
  %v1751 = vadd.f32 %v1680, %v1702
  %v1752 = vadd.f32 %v1681, %v1702
  %v1753 = vadd.f32 %v1682, %v1702
  %v1754 = vadd.f32 %v1683, %v1702
  %v1755 = vadd.f32 %v1684, %v1702
  %v1756 = vadd.f32 %v1685, %v1702
  %v1757 = vadd.f32 %v1686, %v1702
  %v1758 = vadd.f32 %v1687, %v1702
  %v1759 = vadd.f32 %v1688, %v1702
  %v1760 = vadd.f32 %v1689, %v1702
  %v1761 = vadd.f32 %v1690, %v1702
  %v1762 = vadd.f32 %v1691, %v1702
  %v1763 = vadd.f32 %v1692, %v1702
  %v1764 = vadd.f32 %v1693, %v1702
  %v1765 = vadd.f32 %v1694, %v1702
  %v1766 = vadd.f32 %v1695, %v1702
  %v1767 = vadd.f32 %v1696, %v1702
  %vm1768 = vcmp.gt.f32.partialorder %v1704, 0.0
  %vm1769 = vcmp.gt.f32.partialorder %v1705, 0.0
  %vm1770 = vcmp.gt.f32.partialorder %v1706, 0.0
  %vm1771 = vcmp.gt.f32.partialorder %v1707, 0.0
  %vm1772 = vcmp.gt.f32.partialorder %v1708, 0.0
  %vm1773 = vcmp.gt.f32.partialorder %v1709, 0.0
  %vm1774 = vcmp.gt.f32.partialorder %v1710, 0.0
  %vm1775 = vcmp.gt.f32.partialorder %v1711, 0.0
  %vm1776 = vcmp.gt.f32.partialorder %v1712, 0.0
  %vm1777 = vcmp.gt.f32.partialorder %v1713, 0.0
  %vm1778 = vcmp.gt.f32.partialorder %v1714, 0.0
  %vm1779 = vcmp.gt.f32.partialorder %v1715, 0.0
  %vm1780 = vcmp.gt.f32.partialorder %v1716, 0.0
  %vm1781 = vcmp.gt.f32.partialorder %v1717, 0.0
  %vm1782 = vcmp.gt.f32.partialorder %v1718, 0.0
  %vm1783 = vcmp.gt.f32.partialorder %v1719, 0.0
  %vm1784 = vcmp.gt.f32.partialorder %v1720, 0.0
  %vm1785 = vcmp.gt.f32.partialorder %v1721, 0.0
  %vm1786 = vcmp.gt.f32.partialorder %v1722, 0.0
  %vm1787 = vcmp.gt.f32.partialorder %v1723, 0.0
  %vm1788 = vcmp.gt.f32.partialorder %v1724, 0.0
  %vm1789 = vcmp.gt.f32.partialorder %v1725, 0.0
  %vm1790 = vcmp.gt.f32.partialorder %v1726, 0.0
  %vm1791 = vcmp.gt.f32.partialorder %v1727, 0.0
  %vm1792 = vcmp.gt.f32.partialorder %v1728, 0.0
  %vm1793 = vcmp.gt.f32.partialorder %v1729, 0.0
  %vm1794 = vcmp.gt.f32.partialorder %v1730, 0.0
  %vm1795 = vcmp.gt.f32.partialorder %v1731, 0.0
  %vm1796 = vcmp.gt.f32.partialorder %v1732, 0.0
  %vm1797 = vcmp.gt.f32.partialorder %v1733, 0.0
  %vm1798 = vcmp.gt.f32.partialorder %v1734, 0.0
  %vm1799 = vcmp.gt.f32.partialorder %v1735, 0.0
  %vm1800 = vcmp.gt.f32.partialorder %v1736, 0.0
  %vm1801 = vcmp.gt.f32.partialorder %v1737, 0.0
  %vm1802 = vcmp.gt.f32.partialorder %v1738, 0.0
  %vm1803 = vcmp.gt.f32.partialorder %v1739, 0.0
  %vm1804 = vcmp.gt.f32.partialorder %v1740, 0.0
  %vm1805 = vcmp.gt.f32.partialorder %v1741, 0.0
  %vm1806 = vcmp.gt.f32.partialorder %v1742, 0.0
  %vm1807 = vcmp.gt.f32.partialorder %v1743, 0.0
  %vm1808 = vcmp.gt.f32.partialorder %v1744, 0.0
  %vm1809 = vcmp.gt.f32.partialorder %v1745, 0.0
  %vm1810 = vcmp.gt.f32.partialorder %v1746, 0.0
  %vm1811 = vcmp.gt.f32.partialorder %v1747, 0.0
  %vm1812 = vcmp.gt.f32.partialorder %v1748, 0.0
  %vm1813 = vcmp.gt.f32.partialorder %v1749, 0.0
  %vm1814 = vcmp.gt.f32.partialorder %v1750, 0.0
  %vm1815 = vcmp.gt.f32.partialorder %v1751, 0.0
  %vm1816 = vcmp.gt.f32.partialorder %v1752, 0.0
  %vm1817 = vcmp.gt.f32.partialorder %v1753, 0.0
  %vm1818 = vcmp.gt.f32.partialorder %v1754, 0.0
  %vm1819 = vcmp.gt.f32.partialorder %v1755, 0.0
  %vm1820 = vcmp.gt.f32.partialorder %v1756, 0.0
  %vm1821 = vcmp.gt.f32.partialorder %v1757, 0.0
  %vm1822 = vcmp.gt.f32.partialorder %v1758, 0.0
  %vm1823 = vcmp.gt.f32.partialorder %v1759, 0.0
  %vm1824 = vcmp.gt.f32.partialorder %v1760, 0.0
  %vm1825 = vcmp.gt.f32.partialorder %v1761, 0.0
  %vm1826 = vcmp.gt.f32.partialorder %v1762, 0.0
  %vm1827 = vcmp.gt.f32.partialorder %v1763, 0.0
  %vm1828 = vcmp.gt.f32.partialorder %v1764, 0.0
  %vm1829 = vcmp.gt.f32.partialorder %v1765, 0.0
  %vm1830 = vcmp.gt.f32.partialorder %v1766, 0.0
  %vm1831 = vcmp.gt.f32.partialorder %v1767, 0.0
  %v1832 = vmul.f32 %v1704, 0.1
  %v1833 = vmul.f32 %v1705, 0.1
  %v1834 = vmul.f32 %v1706, 0.1
  %v1835 = vmul.f32 %v1707, 0.1
  %v1836 = vmul.f32 %v1708, 0.1
  %v1837 = vmul.f32 %v1709, 0.1
  %v1838 = vmul.f32 %v1710, 0.1
  %v1839 = vmul.f32 %v1711, 0.1
  %v1840 = vmul.f32 %v1712, 0.1
  %v1841 = vmul.f32 %v1713, 0.1
  %v1842 = vmul.f32 %v1714, 0.1
  %v1843 = vmul.f32 %v1715, 0.1
  %v1844 = vmul.f32 %v1716, 0.1
  %v1845 = vmul.f32 %v1717, 0.1
  %v1846 = vmul.f32 %v1718, 0.1
  %v1847 = vmul.f32 %v1719, 0.1
  %v1848 = vmul.f32 %v1720, 0.1
  %v1849 = vmul.f32 %v1721, 0.1
  %v1850 = vmul.f32 %v1722, 0.1
  %v1851 = vmul.f32 %v1723, 0.1
  %v1852 = vmul.f32 %v1724, 0.1
  %v1853 = vmul.f32 %v1725, 0.1
  %v1854 = vmul.f32 %v1726, 0.1
  %v1855 = vmul.f32 %v1727, 0.1
  %v1856 = vmul.f32 %v1728, 0.1
  %v1857 = vmul.f32 %v1729, 0.1
  %v1858 = vmul.f32 %v1730, 0.1
  %v1859 = vmul.f32 %v1731, 0.1
  %v1860 = vmul.f32 %v1732, 0.1
  %v1861 = vmul.f32 %v1733, 0.1
  %v1862 = vmul.f32 %v1734, 0.1
  %v1863 = vmul.f32 %v1735, 0.1
  %v1864 = vmul.f32 %v1736, 0.1
  %v1865 = vmul.f32 %v1737, 0.1
  %v1866 = vmul.f32 %v1738, 0.1
  %v1867 = vmul.f32 %v1739, 0.1
  %v1868 = vmul.f32 %v1740, 0.1
  %v1869 = vmul.f32 %v1741, 0.1
  %v1870 = vmul.f32 %v1742, 0.1
  %v1871 = vmul.f32 %v1743, 0.1
  %v1872 = vmul.f32 %v1744, 0.1
  %v1873 = vmul.f32 %v1745, 0.1
  %v1874 = vmul.f32 %v1746, 0.1
  %v1875 = vmul.f32 %v1747, 0.1
  %v1876 = vmul.f32 %v1748, 0.1
  %v1877 = vmul.f32 %v1749, 0.1
  %v1878 = vmul.f32 %v1750, 0.1
  %v1879 = vmul.f32 %v1751, 0.1
  %v1880 = vmul.f32 %v1752, 0.1
  %v1881 = vmul.f32 %v1753, 0.1
  %v1882 = vmul.f32 %v1754, 0.1
  %v1883 = vmul.f32 %v1755, 0.1
  %v1884 = vmul.f32 %v1756, 0.1
  %v1885 = vmul.f32 %v1757, 0.1
  %v1886 = vmul.f32 %v1758, 0.1
  %v1887 = vmul.f32 %v1759, 0.1
  %v1888 = vmul.f32 %v1760, 0.1
  %v1889 = vmul.f32 %v1761, 0.1
  %v1890 = vmul.f32 %v1762, 0.1
  %v1891 = vmul.f32 %v1763, 0.1
  %v1892 = vmul.f32 %v1764, 0.1
  %v1893 = vmul.f32 %v1765, 0.1
  %v1894 = vmul.f32 %v1766, 0.1
  %v1895 = vmul.f32 %v1767, 0.1
  %v1896 = vsel %vm1768, %v1704, %v1832
  %v1897 = vsel %vm1769, %v1705, %v1833
  %v1898 = vsel %vm1770, %v1706, %v1834
  %v1899 = vsel %vm1771, %v1707, %v1835
  %v1900 = vsel %vm1772, %v1708, %v1836
  %v1901 = vsel %vm1773, %v1709, %v1837
  %v1902 = vsel %vm1774, %v1710, %v1838
  %v1903 = vsel %vm1775, %v1711, %v1839
  %v1904 = vsel %vm1776, %v1712, %v1840
  %v1905 = vsel %vm1777, %v1713, %v1841
  %v1906 = vsel %vm1778, %v1714, %v1842
  %v1907 = vsel %vm1779, %v1715, %v1843
  %v1908 = vsel %vm1780, %v1716, %v1844
  %v1909 = vsel %vm1781, %v1717, %v1845
  %v1910 = vsel %vm1782, %v1718, %v1846
  %v1911 = vsel %vm1783, %v1719, %v1847
  %v1912 = vsel %vm1784, %v1720, %v1848
  %v1913 = vsel %vm1785, %v1721, %v1849
  %v1914 = vsel %vm1786, %v1722, %v1850
  %v1915 = vsel %vm1787, %v1723, %v1851
  %v1916 = vsel %vm1788, %v1724, %v1852
  %v1917 = vsel %vm1789, %v1725, %v1853
  %v1918 = vsel %vm1790, %v1726, %v1854
  %v1919 = vsel %vm1791, %v1727, %v1855
  %v1920 = vsel %vm1792, %v1728, %v1856
  %v1921 = vsel %vm1793, %v1729, %v1857
  %v1922 = vsel %vm1794, %v1730, %v1858
  %v1923 = vsel %vm1795, %v1731, %v1859
  %v1924 = vsel %vm1796, %v1732, %v1860
  %v1925 = vsel %vm1797, %v1733, %v1861
  %v1926 = vsel %vm1798, %v1734, %v1862
  %v1927 = vsel %vm1799, %v1735, %v1863
  %v1928 = vsel %vm1800, %v1736, %v1864
  %v1929 = vsel %vm1801, %v1737, %v1865
  %v1930 = vsel %vm1802, %v1738, %v1866
  %v1931 = vsel %vm1803, %v1739, %v1867
  %v1932 = vsel %vm1804, %v1740, %v1868
  %v1933 = vsel %vm1805, %v1741, %v1869
  %v1934 = vsel %vm1806, %v1742, %v1870
  %v1935 = vsel %vm1807, %v1743, %v1871
  %v1936 = vsel %vm1808, %v1744, %v1872
  %v1937 = vsel %vm1809, %v1745, %v1873
  %v1938 = vsel %vm1810, %v1746, %v1874
  %v1939 = vsel %vm1811, %v1747, %v1875
  %v1940 = vsel %vm1812, %v1748, %v1876
  %v1941 = vsel %vm1813, %v1749, %v1877
  %v1942 = vsel %vm1814, %v1750, %v1878
  %v1943 = vsel %vm1815, %v1751, %v1879
  %v1944 = vsel %vm1816, %v1752, %v1880
  %v1945 = vsel %vm1817, %v1753, %v1881
  %v1946 = vsel %vm1818, %v1754, %v1882
  %v1947 = vsel %vm1819, %v1755, %v1883
  %v1948 = vsel %vm1820, %v1756, %v1884
  %v1949 = vsel %vm1821, %v1757, %v1885
  %v1950 = vsel %vm1822, %v1758, %v1886
  %v1951 = vsel %vm1823, %v1759, %v1887
  %v1952 = vsel %vm1824, %v1760, %v1888
  %v1953 = vsel %vm1825, %v1761, %v1889
  %v1954 = vsel %vm1826, %v1762, %v1890
  %v1955 = vsel %vm1827, %v1763, %v1891
  %v1956 = vsel %vm1828, %v1764, %v1892
  %v1957 = vsel %vm1829, %v1765, %v1893
  %v1958 = vsel %vm1830, %v1766, %v1894
  %v1959 = vsel %vm1831, %v1767, %v1895
  %v1960 = vpack.c.bf16 %v1897, %v1896
  %v1961 = vpack.c.bf16 %v1899, %v1898
  %v1962 = vpack.c.bf16 %v1901, %v1900
  %v1963 = vpack.c.bf16 %v1903, %v1902
  %v1964 = vpack.c.bf16 %v1905, %v1904
  %v1965 = vpack.c.bf16 %v1907, %v1906
  %v1966 = vpack.c.bf16 %v1909, %v1908
  %v1967 = vpack.c.bf16 %v1911, %v1910
  %v1968 = vpack.c.bf16 %v1913, %v1912
  %v1969 = vpack.c.bf16 %v1915, %v1914
  %v1970 = vpack.c.bf16 %v1917, %v1916
  %v1971 = vpack.c.bf16 %v1919, %v1918
  %v1972 = vpack.c.bf16 %v1921, %v1920
  %v1973 = vpack.c.bf16 %v1923, %v1922
  %v1974 = vpack.c.bf16 %v1925, %v1924
  %v1975 = vpack.c.bf16 %v1927, %v1926
  %v1976 = vpack.c.bf16 %v1929, %v1928
  %v1977 = vpack.c.bf16 %v1931, %v1930
  %v1978 = vpack.c.bf16 %v1933, %v1932
  %v1979 = vpack.c.bf16 %v1935, %v1934
  %v1980 = vpack.c.bf16 %v1937, %v1936
  %v1981 = vpack.c.bf16 %v1939, %v1938
  %v1982 = vpack.c.bf16 %v1941, %v1940
  %v1983 = vpack.c.bf16 %v1943, %v1942
  %v1984 = vpack.c.bf16 %v1945, %v1944
  %v1985 = vpack.c.bf16 %v1947, %v1946
  %v1986 = vpack.c.bf16 %v1949, %v1948
  %v1987 = vpack.c.bf16 %v1951, %v1950
  %v1988 = vpack.c.bf16 %v1953, %v1952
  %v1989 = vpack.c.bf16 %v1955, %v1954
  %v1990 = vpack.c.bf16 %v1957, %v1956
  %v1991 = vpack.c.bf16 %v1959, %v1958
  %v1992 = vld [vmem:[%s4] sm:$0xf]
  %v1993 = vld [vmem:[%s4 + $0x4] sm:$0xf]
  %v1994 = vld [vmem:[%s4 + $0x8] sm:$0xf]
  %v1995 = vld [vmem:[%s4 + $0xc] sm:$0xf]
  %v1996 = vld [vmem:[%s4 + $0x10] sm:$0xf]
  %v1997 = vld [vmem:[%s4 + $0x14] sm:$0xf]
  %v1998 = vld [vmem:[%s4 + $0x18] sm:$0xf]
  %v1999 = vld [vmem:[%s4 + $0x1c] sm:$0xf]
  %v2000 = vld [vmem:[%s4 + $0x20] sm:$0xf]
  %v2001 = vld [vmem:[%s4 + $0x24] sm:$0xf]
  %v2002 = vld [vmem:[%s4 + $0x28] sm:$0xf]
  %v2003 = vld [vmem:[%s4 + $0x2c] sm:$0xf]
  %v2004 = vld [vmem:[%s4 + $0x30] sm:$0xf]
  %v2005 = vld [vmem:[%s4 + $0x34] sm:$0xf]
  %v2006 = vld [vmem:[%s4 + $0x38] sm:$0xf]
  %v2007 = vld [vmem:[%s4 + $0x3c] sm:$0xf]
  %v2008 = vld [vmem:[%s5] sm:$0xf]
  %v2009 = vld [vmem:[%s5 + $0x4] sm:$0xf]
  %v2010 = vld [vmem:[%s5 + $0x8] sm:$0xf]
  %v2011 = vld [vmem:[%s5 + $0xc] sm:$0xf]
  %v2012 = vld [vmem:[%s5 + $0x10] sm:$0xf]
  %v2013 = vld [vmem:[%s5 + $0x14] sm:$0xf]
  %v2014 = vld [vmem:[%s5 + $0x18] sm:$0xf]
  %v2015 = vld [vmem:[%s5 + $0x1c] sm:$0xf]
  %v2016 = vld [vmem:[%s5 + $0x20] sm:$0xf]
  %v2017 = vld [vmem:[%s5 + $0x24] sm:$0xf]
  %v2018 = vld [vmem:[%s5 + $0x28] sm:$0xf]
  %v2019 = vld [vmem:[%s5 + $0x2c] sm:$0xf]
  %v2020 = vld [vmem:[%s5 + $0x30] sm:$0xf]
  %v2021 = vld [vmem:[%s5 + $0x34] sm:$0xf]
  %v2022 = vld [vmem:[%s5 + $0x38] sm:$0xf]
  %v2023 = vld [vmem:[%s5 + $0x3c] sm:$0xf]
  %v2040 = vunpack.c.l.b16 %v2008
  %v2041 = vunpack.c.l.b16 %v2009
  %v2042 = vunpack.c.l.b16 %v2010
  %v2043 = vunpack.c.l.b16 %v2011
  %v2044 = vunpack.c.l.b16 %v2012
  %v2045 = vunpack.c.l.b16 %v2013
  %v2046 = vunpack.c.l.b16 %v2014
  %v2047 = vunpack.c.l.b16 %v2015
  %v2048 = vunpack.c.l.b16 %v2016
  %v2049 = vunpack.c.l.b16 %v2017
  %v2050 = vunpack.c.l.b16 %v2018
  %v2051 = vunpack.c.l.b16 %v2019
  %v2052 = vunpack.c.l.b16 %v2020
  %v2053 = vunpack.c.l.b16 %v2021
  %v2054 = vunpack.c.l.b16 %v2022
  %v2055 = vunpack.c.l.b16 %v2023
  %v2056 = vpack.c.b16 %v2041, %v2040
  %v2057 = vpack.c.b16 %v2043, %v2042
  %v2058 = vpack.c.b16 %v2045, %v2044
  %v2059 = vpack.c.b16 %v2047, %v2046
  %v2060 = vpack.c.b16 %v2049, %v2048
  %v2061 = vpack.c.b16 %v2051, %v2050
  %v2062 = vpack.c.b16 %v2053, %v2052
  %v2063 = vpack.c.b16 %v2055, %v2054
  %2072 = vmatprep.subr.bf16.mxu0 0
  %2073 = vmatpush1.bf16.msra.mxu0 %v2056
  %2074 = vmatprep.subr.bf16.mxu0 0
  %2075 = vmatpush1.bf16.msra.mxu0 %v2057
  %2076 = vmatprep.subr.bf16.mxu0 0
  %2077 = vmatpush1.bf16.msra.mxu0 %v2058
  %2078 = vmatprep.subr.bf16.mxu0 0
  %2079 = vmatpush1.bf16.msra.mxu0 %v2059
  %2080 = vmatprep.subr.bf16.mxu0 0
  %2081 = vmatpush1.bf16.msra.mxu0 %v2060
  %2082 = vmatprep.subr.bf16.mxu0 0
  %2083 = vmatpush1.bf16.msra.mxu0 %v2061
  %2084 = vmatprep.subr.bf16.mxu0 0
  %2085 = vmatpush1.bf16.msra.mxu0 %v2062
  %2086 = vmatprep.subr.bf16.mxu0 0
  %2087 = vmatpush1.bf16.msra.mxu0 %v2063
  %2088 = vmatprep.subr.bf16.mxu0 0
  %2089 = vmatpush1.bf16.msra.mxu0 0
  %2090 = vmatprep.subr.bf16.mxu0 0
  %2091 = vmatpush1.bf16.msra.mxu0 0
  %2092 = vmatprep.subr.bf16.mxu0 0
  %2093 = vmatpush1.bf16.msra.mxu0 0
  %2094 = vmatprep.subr.bf16.mxu0 0
  %2095 = vmatpush1.bf16.msra.mxu0 0
  %2096 = vmatprep.subr.bf16.mxu0 0
  %2097 = vmatpush1.bf16.msra.mxu0 0
  %2098 = vmatprep.subr.bf16.mxu0 0
  %2099 = vmatpush1.bf16.msra.mxu0 0
  %2100 = vmatprep.subr.bf16.mxu0 0
  %2101 = vmatpush1.bf16.msra.mxu0 0
  %2102 = vmatprep.subr.bf16.mxu0 0
  %2103 = vmatpush1.bf16.msra.mxu0 0
  %2104 = vmatprep.mubr.bf16.mxu0 0
  %2105 = vmatmul.mubr.bf16.gmra.mrb[0].mxu0 %v1960
  %v2106 = vpop.f32.mrb[0].mxu0
  %v2107 = vadd.f32 0.0, %v2106
  %v2108 = vpop.f32.mrb[0].mxu0
  %v2109 = vpop.f32.mrb[0].mxu0
  %v2110 = vadd.f32 0.0, %v2109
  %v2111 = vpop.f32.mrb[0].mxu0
  %2112 = vmatprep.mubr.bf16.mxu0 0
  %2113 = vmatmul.mubr.bf16.gmra.mrb[0].mxu0 %v1961
  %v2114 = vpop.f32.mrb[0].mxu0
  %v2115 = vadd.f32 0.0, %v2114
  %v2116 = vpop.f32.mrb[0].mxu0
  %v2117 = vpop.f32.mrb[0].mxu0
  %v2118 = vadd.f32 0.0, %v2117
  %v2119 = vpop.f32.mrb[0].mxu0
  %2120 = vmatprep.mubr.bf16.mxu0 0
  %2121 = vmatmul.mubr.bf16.gmra.mrb[0].mxu0 %v1962
  %v2122 = vpop.f32.mrb[0].mxu0
  %v2123 = vadd.f32 0.0, %v2122
  %v2124 = vpop.f32.mrb[0].mxu0
  %v2125 = vpop.f32.mrb[0].mxu0
  %v2126 = vadd.f32 0.0, %v2125
  %v2127 = vpop.f32.mrb[0].mxu0
  %2128 = vmatprep.mubr.bf16.mxu0 0
  %2129 = vmatmul.mubr.bf16.gmra.mrb[0].mxu0 %v1963
  %v2130 = vpop.f32.mrb[0].mxu0
  %v2131 = vadd.f32 0.0, %v2130
  %v2132 = vpop.f32.mrb[0].mxu0
  %v2133 = vpop.f32.mrb[0].mxu0
  %v2134 = vadd.f32 0.0, %v2133
  %v2135 = vpop.f32.mrb[0].mxu0
  %2136 = vmatprep.mubr.bf16.mxu0 0
  %2137 = vmatmul.mubr.bf16.gmra.mrb[0].mxu0 %v1964
  %v2138 = vpop.f32.mrb[0].mxu0
  %v2139 = vadd.f32 0.0, %v2138
  %v2140 = vpop.f32.mrb[0].mxu0
  %v2141 = vpop.f32.mrb[0].mxu0
  %v2142 = vadd.f32 0.0, %v2141
  %v2143 = vpop.f32.mrb[0].mxu0
  %2144 = vmatprep.mubr.bf16.mxu0 0
  %2145 = vmatmul.mubr.bf16.gmra.mrb[0].mxu0 %v1965
  %v2146 = vpop.f32.mrb[0].mxu0
  %v2147 = vadd.f32 0.0, %v2146
  %v2148 = vpop.f32.mrb[0].mxu0
  %v2149 = vpop.f32.mrb[0].mxu0
  %v2150 = vadd.f32 0.0, %v2149
  %v2151 = vpop.f32.mrb[0].mxu0
  %2152 = vmatprep.mubr.bf16.mxu0 0
  %2153 = vmatmul.mubr.bf16.gmra.mrb[0].mxu0 %v1966
  %v2154 = vpop.f32.mrb[0].mxu0
  %v2155 = vadd.f32 0.0, %v2154
  %v2156 = vpop.f32.mrb[0].mxu0
  %v2157 = vpop.f32.mrb[0].mxu0
  %v2158 = vadd.f32 0.0, %v2157
  %v2159 = vpop.f32.mrb[0].mxu0
  %2160 = vmatprep.mubr.bf16.mxu0 0
  %2161 = vmatmul.mubr.bf16.gmra.mrb[0].mxu0 %v1967
  %v2162 = vpop.f32.mrb[0].mxu0
  %v2163 = vadd.f32 0.0, %v2162
  %v2164 = vpop.f32.mrb[0].mxu0
  %v2165 = vpop.f32.mrb[0].mxu0
  %v2166 = vadd.f32 0.0, %v2165
  %v2167 = vpop.f32.mrb[0].mxu0
  %2168 = vmatprep.mubr.bf16.mxu0 0
  %2169 = vmatmul.mubr.bf16.gmra.mrb[0].mxu0 %v1968
  %v2170 = vpop.f32.mrb[0].mxu0
  %v2171 = vadd.f32 0.0, %v2170
  %v2172 = vpop.f32.mrb[0].mxu0
  %v2173 = vpop.f32.mrb[0].mxu0
  %v2174 = vadd.f32 0.0, %v2173
  %v2175 = vpop.f32.mrb[0].mxu0
  %2176 = vmatprep.mubr.bf16.mxu0 0
  %2177 = vmatmul.mubr.bf16.gmra.mrb[0].mxu0 %v1969
  %v2178 = vpop.f32.mrb[0].mxu0
  %v2179 = vadd.f32 0.0, %v2178
  %v2180 = vpop.f32.mrb[0].mxu0
  %v2181 = vpop.f32.mrb[0].mxu0
  %v2182 = vadd.f32 0.0, %v2181
  %v2183 = vpop.f32.mrb[0].mxu0
  %2184 = vmatprep.mubr.bf16.mxu0 0
  %2185 = vmatmul.mubr.bf16.gmra.mrb[0].mxu0 %v1970
  %v2186 = vpop.f32.mrb[0].mxu0
  %v2187 = vadd.f32 0.0, %v2186
  %v2188 = vpop.f32.mrb[0].mxu0
  %v2189 = vpop.f32.mrb[0].mxu0
  %v2190 = vadd.f32 0.0, %v2189
  %v2191 = vpop.f32.mrb[0].mxu0
  %2192 = vmatprep.mubr.bf16.mxu0 0
  %2193 = vmatmul.mubr.bf16.gmra.mrb[0].mxu0 %v1971
  %v2194 = vpop.f32.mrb[0].mxu0
  %v2195 = vadd.f32 0.0, %v2194
  %v2196 = vpop.f32.mrb[0].mxu0
  %v2197 = vpop.f32.mrb[0].mxu0
  %v2198 = vadd.f32 0.0, %v2197
  %v2199 = vpop.f32.mrb[0].mxu0
  %2200 = vmatprep.mubr.bf16.mxu0 0
  %2201 = vmatmul.mubr.bf16.gmra.mrb[0].mxu0 %v1972
  %v2202 = vpop.f32.mrb[0].mxu0
  %v2203 = vadd.f32 0.0, %v2202
  %v2204 = vpop.f32.mrb[0].mxu0
  %v2205 = vpop.f32.mrb[0].mxu0
  %v2206 = vadd.f32 0.0, %v2205
  %v2207 = vpop.f32.mrb[0].mxu0
  %2208 = vmatprep.mubr.bf16.mxu0 0
  %2209 = vmatmul.mubr.bf16.gmra.mrb[0].mxu0 %v1973
  %v2210 = vpop.f32.mrb[0].mxu0
  %v2211 = vadd.f32 0.0, %v2210
  %v2212 = vpop.f32.mrb[0].mxu0
  %v2213 = vpop.f32.mrb[0].mxu0
  %v2214 = vadd.f32 0.0, %v2213
  %v2215 = vpop.f32.mrb[0].mxu0
  %2216 = vmatprep.mubr.bf16.mxu0 0
  %2217 = vmatmul.mubr.bf16.gmra.mrb[0].mxu0 %v1974
  %v2218 = vpop.f32.mrb[0].mxu0
  %v2219 = vadd.f32 0.0, %v2218
  %v2220 = vpop.f32.mrb[0].mxu0
  %v2221 = vpop.f32.mrb[0].mxu0
  %v2222 = vadd.f32 0.0, %v2221
  %v2223 = vpop.f32.mrb[0].mxu0
  %2224 = vmatprep.mubr.bf16.mxu0 0
  %2225 = vmatmul.mubr.bf16.gmra.mrb[0].mxu0 %v1975
  %v2226 = vpop.f32.mrb[0].mxu0
  %v2227 = vadd.f32 0.0, %v2226
  %v2228 = vpop.f32.mrb[0].mxu0
  %v2229 = vpop.f32.mrb[0].mxu0
  %v2230 = vadd.f32 0.0, %v2229
  %v2231 = vpop.f32.mrb[0].mxu0
  %2232 = vmatprep.mubr.bf16.mxu0 0
  %2233 = vmatmul.mubr.bf16.gmra.mrb[0].mxu0 %v1976
  %v2234 = vpop.f32.mrb[0].mxu0
  %v2235 = vadd.f32 0.0, %v2234
  %v2236 = vpop.f32.mrb[0].mxu0
  %v2237 = vpop.f32.mrb[0].mxu0
  %v2238 = vadd.f32 0.0, %v2237
  %v2239 = vpop.f32.mrb[0].mxu0
  %2240 = vmatprep.mubr.bf16.mxu0 0
  %2241 = vmatmul.mubr.bf16.gmra.mrb[0].mxu0 %v1977
  %v2242 = vpop.f32.mrb[0].mxu0
  %v2243 = vadd.f32 0.0, %v2242
  %v2244 = vpop.f32.mrb[0].mxu0
  %v2245 = vpop.f32.mrb[0].mxu0
  %v2246 = vadd.f32 0.0, %v2245
  %v2247 = vpop.f32.mrb[0].mxu0
  %2248 = vmatprep.mubr.bf16.mxu0 0
  %2249 = vmatmul.mubr.bf16.gmra.mrb[0].mxu0 %v1978
  %v2250 = vpop.f32.mrb[0].mxu0
  %v2251 = vadd.f32 0.0, %v2250
  %v2252 = vpop.f32.mrb[0].mxu0
  %v2253 = vpop.f32.mrb[0].mxu0
  %v2254 = vadd.f32 0.0, %v2253
  %v2255 = vpop.f32.mrb[0].mxu0
  %2256 = vmatprep.mubr.bf16.mxu0 0
  %2257 = vmatmul.mubr.bf16.gmra.mrb[0].mxu0 %v1979
  %v2258 = vpop.f32.mrb[0].mxu0
  %v2259 = vadd.f32 0.0, %v2258
  %v2260 = vpop.f32.mrb[0].mxu0
  %v2261 = vpop.f32.mrb[0].mxu0
  %v2262 = vadd.f32 0.0, %v2261
  %v2263 = vpop.f32.mrb[0].mxu0
  %2264 = vmatprep.mubr.bf16.mxu0 0
  %2265 = vmatmul.mubr.bf16.gmra.mrb[0].mxu0 %v1980
  %v2266 = vpop.f32.mrb[0].mxu0
  %v2267 = vadd.f32 0.0, %v2266
  %v2268 = vpop.f32.mrb[0].mxu0
  %v2269 = vpop.f32.mrb[0].mxu0
  %v2270 = vadd.f32 0.0, %v2269
  %v2271 = vpop.f32.mrb[0].mxu0
  %2272 = vmatprep.mubr.bf16.mxu0 0
  %2273 = vmatmul.mubr.bf16.gmra.mrb[0].mxu0 %v1981
  %v2274 = vpop.f32.mrb[0].mxu0
  %v2275 = vadd.f32 0.0, %v2274
  %v2276 = vpop.f32.mrb[0].mxu0
  %v2277 = vpop.f32.mrb[0].mxu0
  %v2278 = vadd.f32 0.0, %v2277
  %v2279 = vpop.f32.mrb[0].mxu0
  %2280 = vmatprep.mubr.bf16.mxu0 0
  %2281 = vmatmul.mubr.bf16.gmra.mrb[0].mxu0 %v1982
  %v2282 = vpop.f32.mrb[0].mxu0
  %v2283 = vadd.f32 0.0, %v2282
  %v2284 = vpop.f32.mrb[0].mxu0
  %v2285 = vpop.f32.mrb[0].mxu0
  %v2286 = vadd.f32 0.0, %v2285
  %v2287 = vpop.f32.mrb[0].mxu0
  %2288 = vmatprep.mubr.bf16.mxu0 0
  %2289 = vmatmul.mubr.bf16.gmra.mrb[0].mxu0 %v1983
  %v2290 = vpop.f32.mrb[0].mxu0
  %v2291 = vadd.f32 0.0, %v2290
  %v2292 = vpop.f32.mrb[0].mxu0
  %v2293 = vpop.f32.mrb[0].mxu0
  %v2294 = vadd.f32 0.0, %v2293
  %v2295 = vpop.f32.mrb[0].mxu0
  %2296 = vmatprep.mubr.bf16.mxu0 0
  %2297 = vmatmul.mubr.bf16.gmra.mrb[0].mxu0 %v1984
  %v2298 = vpop.f32.mrb[0].mxu0
  %v2299 = vadd.f32 0.0, %v2298
  %v2300 = vpop.f32.mrb[0].mxu0
  %v2301 = vpop.f32.mrb[0].mxu0
  %v2302 = vadd.f32 0.0, %v2301
  %v2303 = vpop.f32.mrb[0].mxu0
  %2304 = vmatprep.mubr.bf16.mxu0 0
  %2305 = vmatmul.mubr.bf16.gmra.mrb[0].mxu0 %v1985
  %v2306 = vpop.f32.mrb[0].mxu0
  %v2307 = vadd.f32 0.0, %v2306
  %v2308 = vpop.f32.mrb[0].mxu0
  %v2309 = vpop.f32.mrb[0].mxu0
  %v2310 = vadd.f32 0.0, %v2309
  %v2311 = vpop.f32.mrb[0].mxu0
  %2312 = vmatprep.mubr.bf16.mxu0 0
  %2313 = vmatmul.mubr.bf16.gmra.mrb[0].mxu0 %v1986
  %v2314 = vpop.f32.mrb[0].mxu0
  %v2315 = vadd.f32 0.0, %v2314
  %v2316 = vpop.f32.mrb[0].mxu0
  %v2317 = vpop.f32.mrb[0].mxu0
  %v2318 = vadd.f32 0.0, %v2317
  %v2319 = vpop.f32.mrb[0].mxu0
  %2320 = vmatprep.mubr.bf16.mxu0 0
  %2321 = vmatmul.mubr.bf16.gmra.mrb[0].mxu0 %v1987
  %v2322 = vpop.f32.mrb[0].mxu0
  %v2323 = vadd.f32 0.0, %v2322
  %v2324 = vpop.f32.mrb[0].mxu0
  %v2325 = vpop.f32.mrb[0].mxu0
  %v2326 = vadd.f32 0.0, %v2325
  %v2327 = vpop.f32.mrb[0].mxu0
  %2328 = vmatprep.mubr.bf16.mxu0 0
  %2329 = vmatmul.mubr.bf16.gmra.mrb[0].mxu0 %v1988
  %v2330 = vpop.f32.mrb[0].mxu0
  %v2331 = vadd.f32 0.0, %v2330
  %v2332 = vpop.f32.mrb[0].mxu0
  %v2333 = vpop.f32.mrb[0].mxu0
  %v2334 = vadd.f32 0.0, %v2333
  %v2335 = vpop.f32.mrb[0].mxu0
  %2336 = vmatprep.mubr.bf16.mxu0 0
  %2337 = vmatmul.mubr.bf16.gmra.mrb[0].mxu0 %v1989
  %v2338 = vpop.f32.mrb[0].mxu0
  %v2339 = vadd.f32 0.0, %v2338
  %v2340 = vpop.f32.mrb[0].mxu0
  %v2341 = vpop.f32.mrb[0].mxu0
  %v2342 = vadd.f32 0.0, %v2341
  %v2343 = vpop.f32.mrb[0].mxu0
  %2344 = vmatprep.mubr.bf16.mxu0 0
  %2345 = vmatmul.mubr.bf16.gmra.mrb[0].mxu0 %v1990
  %v2346 = vpop.f32.mrb[0].mxu0
  %v2347 = vadd.f32 0.0, %v2346
  %v2348 = vpop.f32.mrb[0].mxu0
  %v2349 = vpop.f32.mrb[0].mxu0
  %v2350 = vadd.f32 0.0, %v2349
  %v2351 = vpop.f32.mrb[0].mxu0
  %2352 = vmatprep.mubr.bf16.mxu0 0
  %2353 = vmatmul.mubr.bf16.gmra.mrb[0].mxu0 %v1991
  %v2354 = vpop.f32.mrb[0].mxu0
  %v2355 = vadd.f32 0.0, %v2354
  %v2356 = vpop.f32.mrb[0].mxu0
  %v2357 = vpop.f32.mrb[0].mxu0
  %v2358 = vadd.f32 0.0, %v2357
  %v2359 = vpop.f32.mrb[0].mxu0
  %2360 = vdwg.mxu0
  %v2377 = vunpack.c.l.b16 %v1992
  %v2378 = vunpack.c.l.b16 %v1993
  %v2379 = vunpack.c.l.b16 %v1994
  %v2380 = vunpack.c.l.b16 %v1995
  %v2381 = vunpack.c.l.b16 %v1996
  %v2382 = vunpack.c.l.b16 %v1997
  %v2383 = vunpack.c.l.b16 %v1998
  %v2384 = vunpack.c.l.b16 %v1999
  %v2385 = vunpack.c.l.b16 %v2000
  %v2386 = vunpack.c.l.b16 %v2001
  %v2387 = vunpack.c.l.b16 %v2002
  %v2388 = vunpack.c.l.b16 %v2003
  %v2389 = vunpack.c.l.b16 %v2004
  %v2390 = vunpack.c.l.b16 %v2005
  %v2391 = vunpack.c.l.b16 %v2006
  %v2392 = vunpack.c.l.b16 %v2007
  %v2393 = vpack.c.b16 %v2378, %v2377
  %v2394 = vpack.c.b16 %v2380, %v2379
  %v2395 = vpack.c.b16 %v2382, %v2381
  %v2396 = vpack.c.b16 %v2384, %v2383
  %v2397 = vpack.c.b16 %v2386, %v2385
  %v2398 = vpack.c.b16 %v2388, %v2387
  %v2399 = vpack.c.b16 %v2390, %v2389
  %v2400 = vpack.c.b16 %v2392, %v2391
  %2409 = vmatprep.subr.bf16.mxu0 0
  %2410 = vmatpush1.bf16.msra.mxu0 %v2393
  %2411 = vmatprep.subr.bf16.mxu0 0
  %2412 = vmatpush1.bf16.msra.mxu0 %v2394
  %2413 = vmatprep.subr.bf16.mxu0 0
  %2414 = vmatpush1.bf16.msra.mxu0 %v2395
  %2415 = vmatprep.subr.bf16.mxu0 0
  %2416 = vmatpush1.bf16.msra.mxu0 %v2396
  %2417 = vmatprep.subr.bf16.mxu0 0
  %2418 = vmatpush1.bf16.msra.mxu0 %v2397
  %2419 = vmatprep.subr.bf16.mxu0 0
  %2420 = vmatpush1.bf16.msra.mxu0 %v2398
  %2421 = vmatprep.subr.bf16.mxu0 0
  %2422 = vmatpush1.bf16.msra.mxu0 %v2399
  %2423 = vmatprep.subr.bf16.mxu0 0
  %2424 = vmatpush1.bf16.msra.mxu0 %v2400
  %2425 = vmatprep.subr.bf16.mxu0 0
  %2426 = vmatpush1.bf16.msra.mxu0 0
  %2427 = vmatprep.subr.bf16.mxu0 0
  %2428 = vmatpush1.bf16.msra.mxu0 0
  %2429 = vmatprep.subr.bf16.mxu0 0
  %2430 = vmatpush1.bf16.msra.mxu0 0
  %2431 = vmatprep.subr.bf16.mxu0 0
  %2432 = vmatpush1.bf16.msra.mxu0 0
  %2433 = vmatprep.subr.bf16.mxu0 0
  %2434 = vmatpush1.bf16.msra.mxu0 0
  %2435 = vmatprep.subr.bf16.mxu0 0
  %2436 = vmatpush1.bf16.msra.mxu0 0
  %2437 = vmatprep.subr.bf16.mxu0 0
  %2438 = vmatpush1.bf16.msra.mxu0 0
  %2439 = vmatprep.subr.bf16.mxu0 0
  %2440 = vmatpush1.bf16.msra.mxu0 0
  %2441 = vmatprep.mubr.bf16.mxu0 0
  %2442 = vmatmul.mubr.bf16.gmra.mrb[0].mxu0 %v985
  %v2443 = vpop.f32.mrb[0].mxu0
  %v2444 = vadd.f32 %v2107, %v2443
  %v2445 = vpop.f32.mrb[0].mxu0
  %v2446 = vpop.f32.mrb[0].mxu0
  %v2447 = vadd.f32 %v2110, %v2446
  %v2448 = vpop.f32.mrb[0].mxu0
  %2449 = vmatprep.mubr.bf16.mxu0 0
  %2450 = vmatmul.mubr.bf16.gmra.mrb[0].mxu0 %v986
  %v2451 = vpop.f32.mrb[0].mxu0
  %v2452 = vadd.f32 %v2115, %v2451
  %v2453 = vpop.f32.mrb[0].mxu0
  %v2454 = vpop.f32.mrb[0].mxu0
  %v2455 = vadd.f32 %v2118, %v2454
  %v2456 = vpop.f32.mrb[0].mxu0
  %2457 = vmatprep.mubr.bf16.mxu0 0
  %2458 = vmatmul.mubr.bf16.gmra.mrb[0].mxu0 %v987
  %v2459 = vpop.f32.mrb[0].mxu0
  %v2460 = vadd.f32 %v2123, %v2459
  %v2461 = vpop.f32.mrb[0].mxu0
  %v2462 = vpop.f32.mrb[0].mxu0
  %v2463 = vadd.f32 %v2126, %v2462
  %v2464 = vpop.f32.mrb[0].mxu0
  %2465 = vmatprep.mubr.bf16.mxu0 0
  %2466 = vmatmul.mubr.bf16.gmra.mrb[0].mxu0 %v988
  %v2467 = vpop.f32.mrb[0].mxu0
  %v2468 = vadd.f32 %v2131, %v2467
  %v2469 = vpop.f32.mrb[0].mxu0
  %v2470 = vpop.f32.mrb[0].mxu0
  %v2471 = vadd.f32 %v2134, %v2470
  %v2472 = vpop.f32.mrb[0].mxu0
  %2473 = vmatprep.mubr.bf16.mxu0 0
  %2474 = vmatmul.mubr.bf16.gmra.mrb[0].mxu0 %v989
  %v2475 = vpop.f32.mrb[0].mxu0
  %v2476 = vadd.f32 %v2139, %v2475
  %v2477 = vpop.f32.mrb[0].mxu0
  %v2478 = vpop.f32.mrb[0].mxu0
  %v2479 = vadd.f32 %v2142, %v2478
  %v2480 = vpop.f32.mrb[0].mxu0
  %2481 = vmatprep.mubr.bf16.mxu0 0
  %2482 = vmatmul.mubr.bf16.gmra.mrb[0].mxu0 %v990
  %v2483 = vpop.f32.mrb[0].mxu0
  %v2484 = vadd.f32 %v2147, %v2483
  %v2485 = vpop.f32.mrb[0].mxu0
  %v2486 = vpop.f32.mrb[0].mxu0
  %v2487 = vadd.f32 %v2150, %v2486
  %v2488 = vpop.f32.mrb[0].mxu0
  %2489 = vmatprep.mubr.bf16.mxu0 0
  %2490 = vmatmul.mubr.bf16.gmra.mrb[0].mxu0 %v991
  %v2491 = vpop.f32.mrb[0].mxu0
  %v2492 = vadd.f32 %v2155, %v2491
  %v2493 = vpop.f32.mrb[0].mxu0
  %v2494 = vpop.f32.mrb[0].mxu0
  %v2495 = vadd.f32 %v2158, %v2494
  %v2496 = vpop.f32.mrb[0].mxu0
  %2497 = vmatprep.mubr.bf16.mxu0 0
  %2498 = vmatmul.mubr.bf16.gmra.mrb[0].mxu0 %v992
  %v2499 = vpop.f32.mrb[0].mxu0
  %v2500 = vadd.f32 %v2163, %v2499
  %v2501 = vpop.f32.mrb[0].mxu0
  %v2502 = vpop.f32.mrb[0].mxu0
  %v2503 = vadd.f32 %v2166, %v2502
  %v2504 = vpop.f32.mrb[0].mxu0
  %2505 = vmatprep.mubr.bf16.mxu0 0
  %2506 = vmatmul.mubr.bf16.gmra.mrb[0].mxu0 %v993
  %v2507 = vpop.f32.mrb[0].mxu0
  %v2508 = vadd.f32 %v2171, %v2507
  %v2509 = vpop.f32.mrb[0].mxu0
  %v2510 = vpop.f32.mrb[0].mxu0
  %v2511 = vadd.f32 %v2174, %v2510
  %v2512 = vpop.f32.mrb[0].mxu0
  %2513 = vmatprep.mubr.bf16.mxu0 0
  %2514 = vmatmul.mubr.bf16.gmra.mrb[0].mxu0 %v994
  %v2515 = vpop.f32.mrb[0].mxu0
  %v2516 = vadd.f32 %v2179, %v2515
  %v2517 = vpop.f32.mrb[0].mxu0
  %v2518 = vpop.f32.mrb[0].mxu0
  %v2519 = vadd.f32 %v2182, %v2518
  %v2520 = vpop.f32.mrb[0].mxu0
  %2521 = vmatprep.mubr.bf16.mxu0 0
  %2522 = vmatmul.mubr.bf16.gmra.mrb[0].mxu0 %v995
  %v2523 = vpop.f32.mrb[0].mxu0
  %v2524 = vadd.f32 %v2187, %v2523
  %v2525 = vpop.f32.mrb[0].mxu0
  %v2526 = vpop.f32.mrb[0].mxu0
  %v2527 = vadd.f32 %v2190, %v2526
  %v2528 = vpop.f32.mrb[0].mxu0
  %2529 = vmatprep.mubr.bf16.mxu0 0
  %2530 = vmatmul.mubr.bf16.gmra.mrb[0].mxu0 %v996
  %v2531 = vpop.f32.mrb[0].mxu0
  %v2532 = vadd.f32 %v2195, %v2531
  %v2533 = vpop.f32.mrb[0].mxu0
  %v2534 = vpop.f32.mrb[0].mxu0
  %v2535 = vadd.f32 %v2198, %v2534
  %v2536 = vpop.f32.mrb[0].mxu0
  %2537 = vmatprep.mubr.bf16.mxu0 0
  %2538 = vmatmul.mubr.bf16.gmra.mrb[0].mxu0 %v997
  %v2539 = vpop.f32.mrb[0].mxu0
  %v2540 = vadd.f32 %v2203, %v2539
  %v2541 = vpop.f32.mrb[0].mxu0
  %v2542 = vpop.f32.mrb[0].mxu0
  %v2543 = vadd.f32 %v2206, %v2542
  %v2544 = vpop.f32.mrb[0].mxu0
  %2545 = vmatprep.mubr.bf16.mxu0 0
  %2546 = vmatmul.mubr.bf16.gmra.mrb[0].mxu0 %v998
  %v2547 = vpop.f32.mrb[0].mxu0
  %v2548 = vadd.f32 %v2211, %v2547
  %v2549 = vpop.f32.mrb[0].mxu0
  %v2550 = vpop.f32.mrb[0].mxu0
  %v2551 = vadd.f32 %v2214, %v2550
  %v2552 = vpop.f32.mrb[0].mxu0
  %2553 = vmatprep.mubr.bf16.mxu0 0
  %2554 = vmatmul.mubr.bf16.gmra.mrb[0].mxu0 %v999
  %v2555 = vpop.f32.mrb[0].mxu0
  %v2556 = vadd.f32 %v2219, %v2555
  %v2557 = vpop.f32.mrb[0].mxu0
  %v2558 = vpop.f32.mrb[0].mxu0
  %v2559 = vadd.f32 %v2222, %v2558
  %v2560 = vpop.f32.mrb[0].mxu0
  %2561 = vmatprep.mubr.bf16.mxu0 0
  %2562 = vmatmul.mubr.bf16.gmra.mrb[0].mxu0 %v1000
  %v2563 = vpop.f32.mrb[0].mxu0
  %v2564 = vadd.f32 %v2227, %v2563
  %v2565 = vpop.f32.mrb[0].mxu0
  %v2566 = vpop.f32.mrb[0].mxu0
  %v2567 = vadd.f32 %v2230, %v2566
  %v2568 = vpop.f32.mrb[0].mxu0
  %2569 = vmatprep.mubr.bf16.mxu0 0
  %2570 = vmatmul.mubr.bf16.gmra.mrb[0].mxu0 %v1001
  %v2571 = vpop.f32.mrb[0].mxu0
  %v2572 = vadd.f32 %v2235, %v2571
  %v2573 = vpop.f32.mrb[0].mxu0
  %v2574 = vpop.f32.mrb[0].mxu0
  %v2575 = vadd.f32 %v2238, %v2574
  %v2576 = vpop.f32.mrb[0].mxu0
  %2577 = vmatprep.mubr.bf16.mxu0 0
  %2578 = vmatmul.mubr.bf16.gmra.mrb[0].mxu0 %v1002
  %v2579 = vpop.f32.mrb[0].mxu0
  %v2580 = vadd.f32 %v2243, %v2579
  %v2581 = vpop.f32.mrb[0].mxu0
  %v2582 = vpop.f32.mrb[0].mxu0
  %v2583 = vadd.f32 %v2246, %v2582
  %v2584 = vpop.f32.mrb[0].mxu0
  %2585 = vmatprep.mubr.bf16.mxu0 0
  %2586 = vmatmul.mubr.bf16.gmra.mrb[0].mxu0 %v1003
  %v2587 = vpop.f32.mrb[0].mxu0
  %v2588 = vadd.f32 %v2251, %v2587
  %v2589 = vpop.f32.mrb[0].mxu0
  %v2590 = vpop.f32.mrb[0].mxu0
  %v2591 = vadd.f32 %v2254, %v2590
  %v2592 = vpop.f32.mrb[0].mxu0
  %2593 = vmatprep.mubr.bf16.mxu0 0
  %2594 = vmatmul.mubr.bf16.gmra.mrb[0].mxu0 %v1004
  %v2595 = vpop.f32.mrb[0].mxu0
  %v2596 = vadd.f32 %v2259, %v2595
  %v2597 = vpop.f32.mrb[0].mxu0
  %v2598 = vpop.f32.mrb[0].mxu0
  %v2599 = vadd.f32 %v2262, %v2598
  %v2600 = vpop.f32.mrb[0].mxu0
  %2601 = vmatprep.mubr.bf16.mxu0 0
  %2602 = vmatmul.mubr.bf16.gmra.mrb[0].mxu0 %v1005
  %v2603 = vpop.f32.mrb[0].mxu0
  %v2604 = vadd.f32 %v2267, %v2603
  %v2605 = vpop.f32.mrb[0].mxu0
  %v2606 = vpop.f32.mrb[0].mxu0
  %v2607 = vadd.f32 %v2270, %v2606
  %v2608 = vpop.f32.mrb[0].mxu0
  %2609 = vmatprep.mubr.bf16.mxu0 0
  %2610 = vmatmul.mubr.bf16.gmra.mrb[0].mxu0 %v1006
  %v2611 = vpop.f32.mrb[0].mxu0
  %v2612 = vadd.f32 %v2275, %v2611
  %v2613 = vpop.f32.mrb[0].mxu0
  %v2614 = vpop.f32.mrb[0].mxu0
  %v2615 = vadd.f32 %v2278, %v2614
  %v2616 = vpop.f32.mrb[0].mxu0
  %2617 = vmatprep.mubr.bf16.mxu0 0
  %2618 = vmatmul.mubr.bf16.gmra.mrb[0].mxu0 %v1007
  %v2619 = vpop.f32.mrb[0].mxu0
  %v2620 = vadd.f32 %v2283, %v2619
  %v2621 = vpop.f32.mrb[0].mxu0
  %v2622 = vpop.f32.mrb[0].mxu0
  %v2623 = vadd.f32 %v2286, %v2622
  %v2624 = vpop.f32.mrb[0].mxu0
  %2625 = vmatprep.mubr.bf16.mxu0 0
  %2626 = vmatmul.mubr.bf16.gmra.mrb[0].mxu0 %v1008
  %v2627 = vpop.f32.mrb[0].mxu0
  %v2628 = vadd.f32 %v2291, %v2627
  %v2629 = vpop.f32.mrb[0].mxu0
  %v2630 = vpop.f32.mrb[0].mxu0
  %v2631 = vadd.f32 %v2294, %v2630
  %v2632 = vpop.f32.mrb[0].mxu0
  %2633 = vmatprep.mubr.bf16.mxu0 0
  %2634 = vmatmul.mubr.bf16.gmra.mrb[0].mxu0 %v1009
  %v2635 = vpop.f32.mrb[0].mxu0
  %v2636 = vadd.f32 %v2299, %v2635
  %v2637 = vpop.f32.mrb[0].mxu0
  %v2638 = vpop.f32.mrb[0].mxu0
  %v2639 = vadd.f32 %v2302, %v2638
  %v2640 = vpop.f32.mrb[0].mxu0
  %2641 = vmatprep.mubr.bf16.mxu0 0
  %2642 = vmatmul.mubr.bf16.gmra.mrb[0].mxu0 %v1010
  %v2643 = vpop.f32.mrb[0].mxu0
  %v2644 = vadd.f32 %v2307, %v2643
  %v2645 = vpop.f32.mrb[0].mxu0
  %v2646 = vpop.f32.mrb[0].mxu0
  %v2647 = vadd.f32 %v2310, %v2646
  %v2648 = vpop.f32.mrb[0].mxu0
  %2649 = vmatprep.mubr.bf16.mxu0 0
  %2650 = vmatmul.mubr.bf16.gmra.mrb[0].mxu0 %v1011
  %v2651 = vpop.f32.mrb[0].mxu0
  %v2652 = vadd.f32 %v2315, %v2651
  %v2653 = vpop.f32.mrb[0].mxu0
  %v2654 = vpop.f32.mrb[0].mxu0
  %v2655 = vadd.f32 %v2318, %v2654
  %v2656 = vpop.f32.mrb[0].mxu0
  %2657 = vmatprep.mubr.bf16.mxu0 0
  %2658 = vmatmul.mubr.bf16.gmra.mrb[0].mxu0 %v1012
  %v2659 = vpop.f32.mrb[0].mxu0
  %v2660 = vadd.f32 %v2323, %v2659
  %v2661 = vpop.f32.mrb[0].mxu0
  %v2662 = vpop.f32.mrb[0].mxu0
  %v2663 = vadd.f32 %v2326, %v2662
  %v2664 = vpop.f32.mrb[0].mxu0
  %2665 = vmatprep.mubr.bf16.mxu0 0
  %2666 = vmatmul.mubr.bf16.gmra.mrb[0].mxu0 %v1013
  %v2667 = vpop.f32.mrb[0].mxu0
  %v2668 = vadd.f32 %v2331, %v2667
  %v2669 = vpop.f32.mrb[0].mxu0
  %v2670 = vpop.f32.mrb[0].mxu0
  %v2671 = vadd.f32 %v2334, %v2670
  %v2672 = vpop.f32.mrb[0].mxu0
  %2673 = vmatprep.mubr.bf16.mxu0 0
  %2674 = vmatmul.mubr.bf16.gmra.mrb[0].mxu0 %v1014
  %v2675 = vpop.f32.mrb[0].mxu0
  %v2676 = vadd.f32 %v2339, %v2675
  %v2677 = vpop.f32.mrb[0].mxu0
  %v2678 = vpop.f32.mrb[0].mxu0
  %v2679 = vadd.f32 %v2342, %v2678
  %v2680 = vpop.f32.mrb[0].mxu0
  %2681 = vmatprep.mubr.bf16.mxu0 0
  %2682 = vmatmul.mubr.bf16.gmra.mrb[0].mxu0 %v1015
  %v2683 = vpop.f32.mrb[0].mxu0
  %v2684 = vadd.f32 %v2347, %v2683
  %v2685 = vpop.f32.mrb[0].mxu0
  %v2686 = vpop.f32.mrb[0].mxu0
  %v2687 = vadd.f32 %v2350, %v2686
  %v2688 = vpop.f32.mrb[0].mxu0
  %2689 = vmatprep.mubr.bf16.mxu0 0
  %2690 = vmatmul.mubr.bf16.gmra.mrb[0].mxu0 %v1016
  %v2691 = vpop.f32.mrb[0].mxu0
  %v2692 = vadd.f32 %v2355, %v2691
  %v2693 = vpop.f32.mrb[0].mxu0
  %v2694 = vpop.f32.mrb[0].mxu0
  %v2695 = vadd.f32 %v2358, %v2694
  %v2696 = vpop.f32.mrb[0].mxu0
  %2697 = vdwg.mxu0
  %v2698 = vld [vmem:[%s10] sm:$0x1]
  %v2700 = vlaneseq
  %v2701 = vshrl.u32 %v2700, 7
  %v2702 = vsub.s32 0, %v2701
  %v2703 = vrot.slane %v2698, %v2702
  %v2705 = vmul.f32 %v2444, %v2703
  %v2706 = vmul.f32 %v2447, %v2703
  %v2707 = vmul.f32 %v2452, %v2703
  %v2708 = vmul.f32 %v2455, %v2703
  %v2709 = vmul.f32 %v2460, %v2703
  %v2710 = vmul.f32 %v2463, %v2703
  %v2711 = vmul.f32 %v2468, %v2703
  %v2712 = vmul.f32 %v2471, %v2703
  %v2713 = vmul.f32 %v2476, %v2703
  %v2714 = vmul.f32 %v2479, %v2703
  %v2715 = vmul.f32 %v2484, %v2703
  %v2716 = vmul.f32 %v2487, %v2703
  %v2717 = vmul.f32 %v2492, %v2703
  %v2718 = vmul.f32 %v2495, %v2703
  %v2719 = vmul.f32 %v2500, %v2703
  %v2720 = vmul.f32 %v2503, %v2703
  %v2721 = vmul.f32 %v2508, %v2703
  %v2722 = vmul.f32 %v2511, %v2703
  %v2723 = vmul.f32 %v2516, %v2703
  %v2724 = vmul.f32 %v2519, %v2703
  %v2725 = vmul.f32 %v2524, %v2703
  %v2726 = vmul.f32 %v2527, %v2703
  %v2727 = vmul.f32 %v2532, %v2703
  %v2728 = vmul.f32 %v2535, %v2703
  %v2729 = vmul.f32 %v2540, %v2703
  %v2730 = vmul.f32 %v2543, %v2703
  %v2731 = vmul.f32 %v2548, %v2703
  %v2732 = vmul.f32 %v2551, %v2703
  %v2733 = vmul.f32 %v2556, %v2703
  %v2734 = vmul.f32 %v2559, %v2703
  %v2735 = vmul.f32 %v2564, %v2703
  %v2736 = vmul.f32 %v2567, %v2703
  %v2737 = vmul.f32 %v2572, %v2703
  %v2738 = vmul.f32 %v2575, %v2703
  %v2739 = vmul.f32 %v2580, %v2703
  %v2740 = vmul.f32 %v2583, %v2703
  %v2741 = vmul.f32 %v2588, %v2703
  %v2742 = vmul.f32 %v2591, %v2703
  %v2743 = vmul.f32 %v2596, %v2703
  %v2744 = vmul.f32 %v2599, %v2703
  %v2745 = vmul.f32 %v2604, %v2703
  %v2746 = vmul.f32 %v2607, %v2703
  %v2747 = vmul.f32 %v2612, %v2703
  %v2748 = vmul.f32 %v2615, %v2703
  %v2749 = vmul.f32 %v2620, %v2703
  %v2750 = vmul.f32 %v2623, %v2703
  %v2751 = vmul.f32 %v2628, %v2703
  %v2752 = vmul.f32 %v2631, %v2703
  %v2753 = vmul.f32 %v2636, %v2703
  %v2754 = vmul.f32 %v2639, %v2703
  %v2755 = vmul.f32 %v2644, %v2703
  %v2756 = vmul.f32 %v2647, %v2703
  %v2757 = vmul.f32 %v2652, %v2703
  %v2758 = vmul.f32 %v2655, %v2703
  %v2759 = vmul.f32 %v2660, %v2703
  %v2760 = vmul.f32 %v2663, %v2703
  %v2761 = vmul.f32 %v2668, %v2703
  %v2762 = vmul.f32 %v2671, %v2703
  %v2763 = vmul.f32 %v2676, %v2703
  %v2764 = vmul.f32 %v2679, %v2703
  %v2765 = vmul.f32 %v2684, %v2703
  %v2766 = vmul.f32 %v2687, %v2703
  %v2767 = vmul.f32 %v2692, %v2703
  %v2768 = vmul.f32 %v2695, %v2703
  %v2769 = vld [vmem:[%s11] sm:$0x1]
  %v2771 = vlaneseq
  %v2772 = vshrl.u32 %v2771, 7
  %v2773 = vsub.s32 0, %v2772
  %v2774 = vrot.slane %v2769, %v2773
  %v2776 = vadd.f32 %v2705, %v2774
  %v2777 = vadd.f32 %v2706, %v2774
  %v2778 = vadd.f32 %v2707, %v2774
  %v2779 = vadd.f32 %v2708, %v2774
  %v2780 = vadd.f32 %v2709, %v2774
  %v2781 = vadd.f32 %v2710, %v2774
  %v2782 = vadd.f32 %v2711, %v2774
  %v2783 = vadd.f32 %v2712, %v2774
  %v2784 = vadd.f32 %v2713, %v2774
  %v2785 = vadd.f32 %v2714, %v2774
  %v2786 = vadd.f32 %v2715, %v2774
  %v2787 = vadd.f32 %v2716, %v2774
  %v2788 = vadd.f32 %v2717, %v2774
  %v2789 = vadd.f32 %v2718, %v2774
  %v2790 = vadd.f32 %v2719, %v2774
  %v2791 = vadd.f32 %v2720, %v2774
  %v2792 = vadd.f32 %v2721, %v2774
  %v2793 = vadd.f32 %v2722, %v2774
  %v2794 = vadd.f32 %v2723, %v2774
  %v2795 = vadd.f32 %v2724, %v2774
  %v2796 = vadd.f32 %v2725, %v2774
  %v2797 = vadd.f32 %v2726, %v2774
  %v2798 = vadd.f32 %v2727, %v2774
  %v2799 = vadd.f32 %v2728, %v2774
  %v2800 = vadd.f32 %v2729, %v2774
  %v2801 = vadd.f32 %v2730, %v2774
  %v2802 = vadd.f32 %v2731, %v2774
  %v2803 = vadd.f32 %v2732, %v2774
  %v2804 = vadd.f32 %v2733, %v2774
  %v2805 = vadd.f32 %v2734, %v2774
  %v2806 = vadd.f32 %v2735, %v2774
  %v2807 = vadd.f32 %v2736, %v2774
  %v2808 = vadd.f32 %v2737, %v2774
  %v2809 = vadd.f32 %v2738, %v2774
  %v2810 = vadd.f32 %v2739, %v2774
  %v2811 = vadd.f32 %v2740, %v2774
  %v2812 = vadd.f32 %v2741, %v2774
  %v2813 = vadd.f32 %v2742, %v2774
  %v2814 = vadd.f32 %v2743, %v2774
  %v2815 = vadd.f32 %v2744, %v2774
  %v2816 = vadd.f32 %v2745, %v2774
  %v2817 = vadd.f32 %v2746, %v2774
  %v2818 = vadd.f32 %v2747, %v2774
  %v2819 = vadd.f32 %v2748, %v2774
  %v2820 = vadd.f32 %v2749, %v2774
  %v2821 = vadd.f32 %v2750, %v2774
  %v2822 = vadd.f32 %v2751, %v2774
  %v2823 = vadd.f32 %v2752, %v2774
  %v2824 = vadd.f32 %v2753, %v2774
  %v2825 = vadd.f32 %v2754, %v2774
  %v2826 = vadd.f32 %v2755, %v2774
  %v2827 = vadd.f32 %v2756, %v2774
  %v2828 = vadd.f32 %v2757, %v2774
  %v2829 = vadd.f32 %v2758, %v2774
  %v2830 = vadd.f32 %v2759, %v2774
  %v2831 = vadd.f32 %v2760, %v2774
  %v2832 = vadd.f32 %v2761, %v2774
  %v2833 = vadd.f32 %v2762, %v2774
  %v2834 = vadd.f32 %v2763, %v2774
  %v2835 = vadd.f32 %v2764, %v2774
  %v2836 = vadd.f32 %v2765, %v2774
  %v2837 = vadd.f32 %v2766, %v2774
  %v2838 = vadd.f32 %v2767, %v2774
  %v2839 = vadd.f32 %v2768, %v2774
  %vm2840 = vcmp.gt.f32.partialorder %v2776, 0.0
  %vm2841 = vcmp.gt.f32.partialorder %v2777, 0.0
  %vm2842 = vcmp.gt.f32.partialorder %v2778, 0.0
  %vm2843 = vcmp.gt.f32.partialorder %v2779, 0.0
  %vm2844 = vcmp.gt.f32.partialorder %v2780, 0.0
  %vm2845 = vcmp.gt.f32.partialorder %v2781, 0.0
  %vm2846 = vcmp.gt.f32.partialorder %v2782, 0.0
  %vm2847 = vcmp.gt.f32.partialorder %v2783, 0.0
  %vm2848 = vcmp.gt.f32.partialorder %v2784, 0.0
  %vm2849 = vcmp.gt.f32.partialorder %v2785, 0.0
  %vm2850 = vcmp.gt.f32.partialorder %v2786, 0.0
  %vm2851 = vcmp.gt.f32.partialorder %v2787, 0.0
  %vm2852 = vcmp.gt.f32.partialorder %v2788, 0.0
  %vm2853 = vcmp.gt.f32.partialorder %v2789, 0.0
  %vm2854 = vcmp.gt.f32.partialorder %v2790, 0.0
  %vm2855 = vcmp.gt.f32.partialorder %v2791, 0.0
  %vm2856 = vcmp.gt.f32.partialorder %v2792, 0.0
  %vm2857 = vcmp.gt.f32.partialorder %v2793, 0.0
  %vm2858 = vcmp.gt.f32.partialorder %v2794, 0.0
  %vm2859 = vcmp.gt.f32.partialorder %v2795, 0.0
  %vm2860 = vcmp.gt.f32.partialorder %v2796, 0.0
  %vm2861 = vcmp.gt.f32.partialorder %v2797, 0.0
  %vm2862 = vcmp.gt.f32.partialorder %v2798, 0.0
  %vm2863 = vcmp.gt.f32.partialorder %v2799, 0.0
  %vm2864 = vcmp.gt.f32.partialorder %v2800, 0.0
  %vm2865 = vcmp.gt.f32.partialorder %v2801, 0.0
  %vm2866 = vcmp.gt.f32.partialorder %v2802, 0.0
  %vm2867 = vcmp.gt.f32.partialorder %v2803, 0.0
  %vm2868 = vcmp.gt.f32.partialorder %v2804, 0.0
  %vm2869 = vcmp.gt.f32.partialorder %v2805, 0.0
  %vm2870 = vcmp.gt.f32.partialorder %v2806, 0.0
  %vm2871 = vcmp.gt.f32.partialorder %v2807, 0.0
  %vm2872 = vcmp.gt.f32.partialorder %v2808, 0.0
  %vm2873 = vcmp.gt.f32.partialorder %v2809, 0.0
  %vm2874 = vcmp.gt.f32.partialorder %v2810, 0.0
  %vm2875 = vcmp.gt.f32.partialorder %v2811, 0.0
  %vm2876 = vcmp.gt.f32.partialorder %v2812, 0.0
  %vm2877 = vcmp.gt.f32.partialorder %v2813, 0.0
  %vm2878 = vcmp.gt.f32.partialorder %v2814, 0.0
  %vm2879 = vcmp.gt.f32.partialorder %v2815, 0.0
  %vm2880 = vcmp.gt.f32.partialorder %v2816, 0.0
  %vm2881 = vcmp.gt.f32.partialorder %v2817, 0.0
  %vm2882 = vcmp.gt.f32.partialorder %v2818, 0.0
  %vm2883 = vcmp.gt.f32.partialorder %v2819, 0.0
  %vm2884 = vcmp.gt.f32.partialorder %v2820, 0.0
  %vm2885 = vcmp.gt.f32.partialorder %v2821, 0.0
  %vm2886 = vcmp.gt.f32.partialorder %v2822, 0.0
  %vm2887 = vcmp.gt.f32.partialorder %v2823, 0.0
  %vm2888 = vcmp.gt.f32.partialorder %v2824, 0.0
  %vm2889 = vcmp.gt.f32.partialorder %v2825, 0.0
  %vm2890 = vcmp.gt.f32.partialorder %v2826, 0.0
  %vm2891 = vcmp.gt.f32.partialorder %v2827, 0.0
  %vm2892 = vcmp.gt.f32.partialorder %v2828, 0.0
  %vm2893 = vcmp.gt.f32.partialorder %v2829, 0.0
  %vm2894 = vcmp.gt.f32.partialorder %v2830, 0.0
  %vm2895 = vcmp.gt.f32.partialorder %v2831, 0.0
  %vm2896 = vcmp.gt.f32.partialorder %v2832, 0.0
  %vm2897 = vcmp.gt.f32.partialorder %v2833, 0.0
  %vm2898 = vcmp.gt.f32.partialorder %v2834, 0.0
  %vm2899 = vcmp.gt.f32.partialorder %v2835, 0.0
  %vm2900 = vcmp.gt.f32.partialorder %v2836, 0.0
  %vm2901 = vcmp.gt.f32.partialorder %v2837, 0.0
  %vm2902 = vcmp.gt.f32.partialorder %v2838, 0.0
  %vm2903 = vcmp.gt.f32.partialorder %v2839, 0.0
  %v2904 = vmul.f32 %v2776, 0.1
  %v2905 = vmul.f32 %v2777, 0.1
  %v2906 = vmul.f32 %v2778, 0.1
  %v2907 = vmul.f32 %v2779, 0.1
  %v2908 = vmul.f32 %v2780, 0.1
  %v2909 = vmul.f32 %v2781, 0.1
  %v2910 = vmul.f32 %v2782, 0.1
  %v2911 = vmul.f32 %v2783, 0.1
  %v2912 = vmul.f32 %v2784, 0.1
  %v2913 = vmul.f32 %v2785, 0.1
  %v2914 = vmul.f32 %v2786, 0.1
  %v2915 = vmul.f32 %v2787, 0.1
  %v2916 = vmul.f32 %v2788, 0.1
  %v2917 = vmul.f32 %v2789, 0.1
  %v2918 = vmul.f32 %v2790, 0.1
  %v2919 = vmul.f32 %v2791, 0.1
  %v2920 = vmul.f32 %v2792, 0.1
  %v2921 = vmul.f32 %v2793, 0.1
  %v2922 = vmul.f32 %v2794, 0.1
  %v2923 = vmul.f32 %v2795, 0.1
  %v2924 = vmul.f32 %v2796, 0.1
  %v2925 = vmul.f32 %v2797, 0.1
  %v2926 = vmul.f32 %v2798, 0.1
  %v2927 = vmul.f32 %v2799, 0.1
  %v2928 = vmul.f32 %v2800, 0.1
  %v2929 = vmul.f32 %v2801, 0.1
  %v2930 = vmul.f32 %v2802, 0.1
  %v2931 = vmul.f32 %v2803, 0.1
  %v2932 = vmul.f32 %v2804, 0.1
  %v2933 = vmul.f32 %v2805, 0.1
  %v2934 = vmul.f32 %v2806, 0.1
  %v2935 = vmul.f32 %v2807, 0.1
  %v2936 = vmul.f32 %v2808, 0.1
  %v2937 = vmul.f32 %v2809, 0.1
  %v2938 = vmul.f32 %v2810, 0.1
  %v2939 = vmul.f32 %v2811, 0.1
  %v2940 = vmul.f32 %v2812, 0.1
  %v2941 = vmul.f32 %v2813, 0.1
  %v2942 = vmul.f32 %v2814, 0.1
  %v2943 = vmul.f32 %v2815, 0.1
  %v2944 = vmul.f32 %v2816, 0.1
  %v2945 = vmul.f32 %v2817, 0.1
  %v2946 = vmul.f32 %v2818, 0.1
  %v2947 = vmul.f32 %v2819, 0.1
  %v2948 = vmul.f32 %v2820, 0.1
  %v2949 = vmul.f32 %v2821, 0.1
  %v2950 = vmul.f32 %v2822, 0.1
  %v2951 = vmul.f32 %v2823, 0.1
  %v2952 = vmul.f32 %v2824, 0.1
  %v2953 = vmul.f32 %v2825, 0.1
  %v2954 = vmul.f32 %v2826, 0.1
  %v2955 = vmul.f32 %v2827, 0.1
  %v2956 = vmul.f32 %v2828, 0.1
  %v2957 = vmul.f32 %v2829, 0.1
  %v2958 = vmul.f32 %v2830, 0.1
  %v2959 = vmul.f32 %v2831, 0.1
  %v2960 = vmul.f32 %v2832, 0.1
  %v2961 = vmul.f32 %v2833, 0.1
  %v2962 = vmul.f32 %v2834, 0.1
  %v2963 = vmul.f32 %v2835, 0.1
  %v2964 = vmul.f32 %v2836, 0.1
  %v2965 = vmul.f32 %v2837, 0.1
  %v2966 = vmul.f32 %v2838, 0.1
  %v2967 = vmul.f32 %v2839, 0.1
  %v2968 = vsel %vm2840, %v2776, %v2904
  %v2969 = vsel %vm2841, %v2777, %v2905
  %v2970 = vsel %vm2842, %v2778, %v2906
  %v2971 = vsel %vm2843, %v2779, %v2907
  %v2972 = vsel %vm2844, %v2780, %v2908
  %v2973 = vsel %vm2845, %v2781, %v2909
  %v2974 = vsel %vm2846, %v2782, %v2910
  %v2975 = vsel %vm2847, %v2783, %v2911
  %v2976 = vsel %vm2848, %v2784, %v2912
  %v2977 = vsel %vm2849, %v2785, %v2913
  %v2978 = vsel %vm2850, %v2786, %v2914
  %v2979 = vsel %vm2851, %v2787, %v2915
  %v2980 = vsel %vm2852, %v2788, %v2916
  %v2981 = vsel %vm2853, %v2789, %v2917
  %v2982 = vsel %vm2854, %v2790, %v2918
  %v2983 = vsel %vm2855, %v2791, %v2919
  %v2984 = vsel %vm2856, %v2792, %v2920
  %v2985 = vsel %vm2857, %v2793, %v2921
  %v2986 = vsel %vm2858, %v2794, %v2922
  %v2987 = vsel %vm2859, %v2795, %v2923
  %v2988 = vsel %vm2860, %v2796, %v2924
  %v2989 = vsel %vm2861, %v2797, %v2925
  %v2990 = vsel %vm2862, %v2798, %v2926
  %v2991 = vsel %vm2863, %v2799, %v2927
  %v2992 = vsel %vm2864, %v2800, %v2928
  %v2993 = vsel %vm2865, %v2801, %v2929
  %v2994 = vsel %vm2866, %v2802, %v2930
  %v2995 = vsel %vm2867, %v2803, %v2931
  %v2996 = vsel %vm2868, %v2804, %v2932
  %v2997 = vsel %vm2869, %v2805, %v2933
  %v2998 = vsel %vm2870, %v2806, %v2934
  %v2999 = vsel %vm2871, %v2807, %v2935
  %v3000 = vsel %vm2872, %v2808, %v2936
  %v3001 = vsel %vm2873, %v2809, %v2937
  %v3002 = vsel %vm2874, %v2810, %v2938
  %v3003 = vsel %vm2875, %v2811, %v2939
  %v3004 = vsel %vm2876, %v2812, %v2940
  %v3005 = vsel %vm2877, %v2813, %v2941
  %v3006 = vsel %vm2878, %v2814, %v2942
  %v3007 = vsel %vm2879, %v2815, %v2943
  %v3008 = vsel %vm2880, %v2816, %v2944
  %v3009 = vsel %vm2881, %v2817, %v2945
  %v3010 = vsel %vm2882, %v2818, %v2946
  %v3011 = vsel %vm2883, %v2819, %v2947
  %v3012 = vsel %vm2884, %v2820, %v2948
  %v3013 = vsel %vm2885, %v2821, %v2949
  %v3014 = vsel %vm2886, %v2822, %v2950
  %v3015 = vsel %vm2887, %v2823, %v2951
  %v3016 = vsel %vm2888, %v2824, %v2952
  %v3017 = vsel %vm2889, %v2825, %v2953
  %v3018 = vsel %vm2890, %v2826, %v2954
  %v3019 = vsel %vm2891, %v2827, %v2955
  %v3020 = vsel %vm2892, %v2828, %v2956
  %v3021 = vsel %vm2893, %v2829, %v2957
  %v3022 = vsel %vm2894, %v2830, %v2958
  %v3023 = vsel %vm2895, %v2831, %v2959
  %v3024 = vsel %vm2896, %v2832, %v2960
  %v3025 = vsel %vm2897, %v2833, %v2961
  %v3026 = vsel %vm2898, %v2834, %v2962
  %v3027 = vsel %vm2899, %v2835, %v2963
  %v3028 = vsel %vm2900, %v2836, %v2964
  %v3029 = vsel %vm2901, %v2837, %v2965
  %v3030 = vsel %vm2902, %v2838, %v2966
  %v3031 = vsel %vm2903, %v2839, %v2967
  %3032 = vst [vmem:[%s12] sm:$0xff] %v2968
  %3033 = vst [vmem:[%s12 + $0x8] sm:$0xff] %v2969
  %3034 = vst [vmem:[%s12 + $0x10] sm:$0xff] %v2970
  %3035 = vst [vmem:[%s12 + $0x18] sm:$0xff] %v2971
  %3036 = vst [vmem:[%s12 + $0x20] sm:$0xff] %v2972
  %3037 = vst [vmem:[%s12 + $0x28] sm:$0xff] %v2973
  %3038 = vst [vmem:[%s12 + $0x30] sm:$0xff] %v2974
  %3039 = vst [vmem:[%s12 + $0x38] sm:$0xff] %v2975
  %3040 = vst [vmem:[%s12 + $0x40] sm:$0xff] %v2976
  %3041 = vst [vmem:[%s12 + $0x48] sm:$0xff] %v2977
  %3042 = vst [vmem:[%s12 + $0x50] sm:$0xff] %v2978
  %3043 = vst [vmem:[%s12 + $0x58] sm:$0xff] %v2979
  %3044 = vst [vmem:[%s12 + $0x60] sm:$0xff] %v2980
  %3045 = vst [vmem:[%s12 + $0x68] sm:$0xff] %v2981
  %3046 = vst [vmem:[%s12 + $0x70] sm:$0xff] %v2982
  %3047 = vst [vmem:[%s12 + $0x78] sm:$0xff] %v2983
  %3048 = vst [vmem:[%s12 + $0x80] sm:$0xff] %v2984
  %3049 = vst [vmem:[%s12 + $0x88] sm:$0xff] %v2985
  %3050 = vst [vmem:[%s12 + $0x90] sm:$0xff] %v2986
  %3051 = vst [vmem:[%s12 + $0x98] sm:$0xff] %v2987
  %3052 = vst [vmem:[%s12 + $0xa0] sm:$0xff] %v2988
  %3053 = vst [vmem:[%s12 + $0xa8] sm:$0xff] %v2989
  %3054 = vst [vmem:[%s12 + $0xb0] sm:$0xff] %v2990
  %3055 = vst [vmem:[%s12 + $0xb8] sm:$0xff] %v2991
  %3056 = vst [vmem:[%s12 + $0xc0] sm:$0xff] %v2992
  %3057 = vst [vmem:[%s12 + $0xc8] sm:$0xff] %v2993
  %3058 = vst [vmem:[%s12 + $0xd0] sm:$0xff] %v2994
  %3059 = vst [vmem:[%s12 + $0xd8] sm:$0xff] %v2995
  %3060 = vst [vmem:[%s12 + $0xe0] sm:$0xff] %v2996
  %3061 = vst [vmem:[%s12 + $0xe8] sm:$0xff] %v2997
  %3062 = vst [vmem:[%s12 + $0xf0] sm:$0xff] %v2998
  %3063 = vst [vmem:[%s12 + $0xf8] sm:$0xff] %v2999
  %3064 = vst [vmem:[%s12 + $0x100] sm:$0xff] %v3000
  %3065 = vst [vmem:[%s12 + $0x108] sm:$0xff] %v3001
  %3066 = vst [vmem:[%s12 + $0x110] sm:$0xff] %v3002
  %3067 = vst [vmem:[%s12 + $0x118] sm:$0xff] %v3003
  %3068 = vst [vmem:[%s12 + $0x120] sm:$0xff] %v3004
  %3069 = vst [vmem:[%s12 + $0x128] sm:$0xff] %v3005
  %3070 = vst [vmem:[%s12 + $0x130] sm:$0xff] %v3006
  %3071 = vst [vmem:[%s12 + $0x138] sm:$0xff] %v3007
  %3072 = vst [vmem:[%s12 + $0x140] sm:$0xff] %v3008
  %3073 = vst [vmem:[%s12 + $0x148] sm:$0xff] %v3009
  %3074 = vst [vmem:[%s12 + $0x150] sm:$0xff] %v3010
  %3075 = vst [vmem:[%s12 + $0x158] sm:$0xff] %v3011
  %3076 = vst [vmem:[%s12 + $0x160] sm:$0xff] %v3012
  %3077 = vst [vmem:[%s12 + $0x168] sm:$0xff] %v3013
  %3078 = vst [vmem:[%s12 + $0x170] sm:$0xff] %v3014
  %3079 = vst [vmem:[%s12 + $0x178] sm:$0xff] %v3015
  %3080 = vst [vmem:[%s12 + $0x180] sm:$0xff] %v3016
  %3081 = vst [vmem:[%s12 + $0x188] sm:$0xff] %v3017
  %3082 = vst [vmem:[%s12 + $0x190] sm:$0xff] %v3018
  %3083 = vst [vmem:[%s12 + $0x198] sm:$0xff] %v3019
  %3084 = vst [vmem:[%s12 + $0x1a0] sm:$0xff] %v3020
  %3085 = vst [vmem:[%s12 + $0x1a8] sm:$0xff] %v3021
  %3086 = vst [vmem:[%s12 + $0x1b0] sm:$0xff] %v3022
  %3087 = vst [vmem:[%s12 + $0x1b8] sm:$0xff] %v3023
  %3088 = vst [vmem:[%s12 + $0x1c0] sm:$0xff] %v3024
  %3089 = vst [vmem:[%s12 + $0x1c8] sm:$0xff] %v3025
  %3090 = vst [vmem:[%s12 + $0x1d0] sm:$0xff] %v3026
  %3091 = vst [vmem:[%s12 + $0x1d8] sm:$0xff] %v3027
  %3092 = vst [vmem:[%s12 + $0x1e0] sm:$0xff] %v3028
  %3093 = vst [vmem:[%s12 + $0x1e8] sm:$0xff] %v3029
  %3094 = vst [vmem:[%s12 + $0x1f0] sm:$0xff] %v3030
  %3095 = vst [vmem:[%s12 + $0x1f8] sm:$0xff] %v3031
  // Predicated region
  $region50: #{_lambda_.5} parent=0 // pred_check
    _
  $region51: #{_lambda_.5} parent=0 // pred_check_branch
    %3097 = sbr.rel (0) target = $region53
  $region52: #{_lambda_.5} parent=0 // pred_region
    _
  $region53: #{_lambda_.5} parent=0 // pred_fallthru
    _
  // Predicated region
  $region54: #{_lambda_.5} parent=0 // pred_check
    _
  $region55: #{_lambda_.5} parent=0 // pred_check_branch
    %3099 = sbr.rel (0) target = $region57
  $region56: #{_lambda_.5} parent=0 // pred_region
    _
  $region57: #{_lambda_.5} parent=0 // pred_fallthru
    _

// kernel: _lambda_.4
$region0: #{_lambda_.4}
  #allocation0 [shape = 'u32[]', space=smem, size = 0x4, offset = 0x4, fixed_abs, tag = 'smem constant byte address 0x4 - core index']
  #allocation1 [shape = 'u32[144,128]{1,0:T(1,128)}', space=vmem, size = 0x12000, scoped, tag = 'internal scratch']
  %s0 = inlined_call_operand.vmem [shape: bf16[2,256,128], index: 0, kind: input, shape index: {}]
  %s1 = inlined_call_operand.vmem [shape: bf16[3,128,128], index: 1, kind: input, shape index: {}]
  %s2 = inlined_call_operand.vmem [shape: bf16[3,128,128], index: 2, kind: input, shape index: {}]
  %s3 = inlined_call_operand.vmem [shape: f32[1,128], index: 3, kind: input, shape index: {}]
  %s4 = inlined_call_operand.vmem [shape: f32[1,128], index: 4, kind: input, shape index: {}]
  %s5 = inlined_call_operand.vmem [shape: f32[1,128], index: 5, kind: input, shape index: {}]
  %s6 = inlined_call_operand.vmem [shape: f32[1,128], index: 6, kind: input, shape index: {}]
  %s7 = inlined_call_operand.vmem [shape: bf16[2,256,128], index: 7, kind: output, shape index: {}]
  %s8 = sld [smem:[#allocation0]]
  $region61: #{_lambda_.4} parent=0
    _
  %s10 = ssub.s32 1, %s8
  %s11 = scalar_select 0, %s10, %s8
  loop: start=0, step=1, limit=4
  $region2: #{_lambda_.4} parent=0 // loop_pre_header
    _
  $region3: #{_lambda_.4} parent=0 // loop_header
    %s13 = sphi 0, %s17
    %p14 = scmp.ge.s32.totalorder %s13, 4
    %s23 = sphi 0, %s25
    %s26 = sphi 0, %s23
    %s27 = sphi 0, %s26
    %s43 = sphi 0, %s27
    %s47 = sphi 0, %s47
    %s49 = sphi 0, %s47
    %s50 = sphi 0, %s49
    %s64 = sphi 0, %s50
    %s68 = sphi 0, %s68
    %s70 = sphi 0, %s68
    %s71 = sphi 0, %s70
    %s85 = sphi 0, %s71
    %s89 = sphi 0, %s89
    %s91 = sphi 0, %s89
    %s92 = sphi 0, %s91
    %s106 = sphi 0, %s92
    %s110 = sphi 0, %s110
    %s112 = sphi 0, %s110
    %s113 = sphi 0, %s112
    %s127 = sphi 0, %s113
    %s131 = sphi 0, %s131
    %s133 = sphi 0, %s131
    %s134 = sphi 0, %s133
    %s148 = sphi 0, %s134
    %s152 = sphi 0, %s152
    %s154 = sphi 0, %s152
    %s155 = sphi 0, %s154
    %s169 = sphi 0, %s155
    %s175 = sphi 0, %s177
    %s178 = sphi 0, %s175
    %s179 = sphi 0, %s178
    %s195 = sphi 0, %s179
  $region4: #{_lambda_.4} parent=0 // loop_header_branch
    %16 = sbr.rel (%p14) target = $region8
  $region5: #{_lambda_.4} parent=0 // loop_body
    %s18 = ssub.s32 %s13, 1
    %s19 = ssub.s32 %s13, 2
    %s20 = sadd.s32 %s13, 1
    %s21 = ssub.s32 %s13, %s20
    %p22 = scmp.eq.s32.totalorder %s21, 0
    %s24 = sadd.s32 %s23, 1
    %s25 = scalar_select %p22, %s23, %s24
    %p28 = pneg %p22
    %p29 = scmp.eq.s32.totalorder %s13, 1
    %p30 = por %p28, %p29
    %p31 = scmp.ne.s32.totalorder %s23, %s26
    %p32 = scmp.eq.s32.totalorder %s13, 0
    %p33 = por %p31, %p32
    %p34 = scmp.ne.s32.totalorder %s23, %s26
    %p35 = scmp.eq.s32.totalorder %s18, 1
    %p36 = por %p34, %p35
    %p37 = scmp.ne.s32.totalorder %s26, %s27
    %p38 = scmp.eq.s32.totalorder %s18, 0
    %p39 = por %p37, %p38
    %p40 = scmp.ne.s32.totalorder %s26, %s27
    %p41 = scmp.eq.s32.totalorder %s19, 1
    %p42 = por %p40, %p41
    %p44 = scmp.ne.s32.totalorder %s27, %s43
    %p45 = scmp.eq.s32.totalorder %s19, 0
    %p46 = por %p44, %p45
    %s48 = sadd.s32 %s47, 1
    %p51 = scmp.eq.s32.totalorder %s13, 1
    %p52 = scmp.ne.s32.totalorder %s47, %s49
    %p53 = scmp.eq.s32.totalorder %s13, 0
    %p54 = por %p52, %p53
    %p55 = scmp.ne.s32.totalorder %s47, %s49
    %p56 = scmp.eq.s32.totalorder %s18, 1
    %p57 = por %p55, %p56
    %p58 = scmp.ne.s32.totalorder %s49, %s50
    %p59 = scmp.eq.s32.totalorder %s18, 0
    %p60 = por %p58, %p59
    %p61 = scmp.ne.s32.totalorder %s49, %s50
    %p62 = scmp.eq.s32.totalorder %s19, 1
    %p63 = por %p61, %p62
    %p65 = scmp.ne.s32.totalorder %s50, %s64
    %p66 = scmp.eq.s32.totalorder %s19, 0
    %p67 = por %p65, %p66
    %s69 = sadd.s32 %s68, 1
    %p72 = scmp.eq.s32.totalorder %s13, 1
    %p73 = scmp.ne.s32.totalorder %s68, %s70
    %p74 = scmp.eq.s32.totalorder %s13, 0
    %p75 = por %p73, %p74
    %p76 = scmp.ne.s32.totalorder %s68, %s70
    %p77 = scmp.eq.s32.totalorder %s18, 1
    %p78 = por %p76, %p77
    %p79 = scmp.ne.s32.totalorder %s70, %s71
    %p80 = scmp.eq.s32.totalorder %s18, 0
    %p81 = por %p79, %p80
    %p82 = scmp.ne.s32.totalorder %s70, %s71
    %p83 = scmp.eq.s32.totalorder %s19, 1
    %p84 = por %p82, %p83
    %p86 = scmp.ne.s32.totalorder %s71, %s85
    %p87 = scmp.eq.s32.totalorder %s19, 0
    %p88 = por %p86, %p87
    %s90 = sadd.s32 %s89, 1
    %p93 = scmp.eq.s32.totalorder %s13, 1
    %p94 = scmp.ne.s32.totalorder %s89, %s91
    %p95 = scmp.eq.s32.totalorder %s13, 0
    %p96 = por %p94, %p95
    %p97 = scmp.ne.s32.totalorder %s89, %s91
    %p98 = scmp.eq.s32.totalorder %s18, 1
    %p99 = por %p97, %p98
    %p100 = scmp.ne.s32.totalorder %s91, %s92
    %p101 = scmp.eq.s32.totalorder %s18, 0
    %p102 = por %p100, %p101
    %p103 = scmp.ne.s32.totalorder %s91, %s92
    %p104 = scmp.eq.s32.totalorder %s19, 1
    %p105 = por %p103, %p104
    %p107 = scmp.ne.s32.totalorder %s92, %s106
    %p108 = scmp.eq.s32.totalorder %s19, 0
    %p109 = por %p107, %p108
    %s111 = sadd.s32 %s110, 1
    %p114 = scmp.eq.s32.totalorder %s13, 1
    %p115 = scmp.ne.s32.totalorder %s110, %s112
    %p116 = scmp.eq.s32.totalorder %s13, 0
    %p117 = por %p115, %p116
    %p118 = scmp.ne.s32.totalorder %s110, %s112
    %p119 = scmp.eq.s32.totalorder %s18, 1
    %p120 = por %p118, %p119
    %p121 = scmp.ne.s32.totalorder %s112, %s113
    %p122 = scmp.eq.s32.totalorder %s18, 0
    %p123 = por %p121, %p122
    %p124 = scmp.ne.s32.totalorder %s112, %s113
    %p125 = scmp.eq.s32.totalorder %s19, 1
    %p126 = por %p124, %p125
    %p128 = scmp.ne.s32.totalorder %s113, %s127
    %p129 = scmp.eq.s32.totalorder %s19, 0
    %p130 = por %p128, %p129
    %s132 = sadd.s32 %s131, 1
    %p135 = scmp.eq.s32.totalorder %s13, 1
    %p136 = scmp.ne.s32.totalorder %s131, %s133
    %p137 = scmp.eq.s32.totalorder %s13, 0
    %p138 = por %p136, %p137
    %p139 = scmp.ne.s32.totalorder %s131, %s133
    %p140 = scmp.eq.s32.totalorder %s18, 1
    %p141 = por %p139, %p140
    %p142 = scmp.ne.s32.totalorder %s133, %s134
    %p143 = scmp.eq.s32.totalorder %s18, 0
    %p144 = por %p142, %p143
    %p145 = scmp.ne.s32.totalorder %s133, %s134
    %p146 = scmp.eq.s32.totalorder %s19, 1
    %p147 = por %p145, %p146
    %p149 = scmp.ne.s32.totalorder %s134, %s148
    %p150 = scmp.eq.s32.totalorder %s19, 0
    %p151 = por %p149, %p150
    %s153 = sadd.s32 %s152, 1
    %p156 = scmp.eq.s32.totalorder %s13, 1
    %p157 = scmp.ne.s32.totalorder %s152, %s154
    %p158 = scmp.eq.s32.totalorder %s13, 0
    %p159 = por %p157, %p158
    %p160 = scmp.ne.s32.totalorder %s152, %s154
    %p161 = scmp.eq.s32.totalorder %s18, 1
    %p162 = por %p160, %p161
    %p163 = scmp.ne.s32.totalorder %s154, %s155
    %p164 = scmp.eq.s32.totalorder %s18, 0
    %p165 = por %p163, %p164
    %p166 = scmp.ne.s32.totalorder %s154, %s155
    %p167 = scmp.eq.s32.totalorder %s19, 1
    %p168 = por %p166, %p167
    %p170 = scmp.ne.s32.totalorder %s155, %s169
    %p171 = scmp.eq.s32.totalorder %s19, 0
    %p172 = por %p170, %p171
    %s173 = ssub.s32 %s13, %s20
    %p174 = scmp.eq.s32.totalorder %s173, 0
    %s176 = sadd.s32 %s175, 1
    %s177 = scalar_select %p174, %s175, %s176
    %p180 = pneg %p174
    %p181 = scmp.eq.s32.totalorder %s13, 1
    %p182 = por %p180, %p181
    %p183 = scmp.ne.s32.totalorder %s175, %s178
    %p184 = scmp.eq.s32.totalorder %s13, 0
    %p185 = por %p183, %p184
    %p186 = scmp.ne.s32.totalorder %s175, %s178
    %p187 = scmp.eq.s32.totalorder %s18, 1
    %p188 = por %p186, %p187
    %p189 = scmp.ne.s32.totalorder %s178, %s179
    %p190 = scmp.eq.s32.totalorder %s18, 0
    %p191 = por %p189, %p190
    %p192 = scmp.ne.s32.totalorder %s178, %s179
    %p193 = scmp.eq.s32.totalorder %s19, 1
    %p194 = por %p192, %p193
    %p196 = scmp.ne.s32.totalorder %s179, %s195
    %p197 = scmp.eq.s32.totalorder %s19, 0
    %p198 = por %p196, %p197
    %p199 = scmp.le.s32.totalorder 1, %s13
    %p200 = scmp.lt.s32.totalorder %s13, 3
    %p201 = pnand %p199, %p200
    %p202 = pneg %p201
    // Predicated region
    $region9: #{_lambda_.4} parent=5 // pred_check
      _
    $region10: #{_lambda_.4} parent=5 // pred_check_branch
      %204 = sbr.rel (%p201) target = $region12
    $region11: #{_lambda_.4} parent=5 // pred_region
      %s205 = ssub.s32 %s13, 1
      // Predicated region
      $region13: #{_lambda_.4} parent=11 // pred_check
        %p206 = pneg %p60
      $region14: #{_lambda_.4} parent=11 // pred_check_branch
        %208 = sbr.rel (%p206) target = $region16
      $region15: #{_lambda_.4} parent=11 // pred_region
        _
      $region16: #{_lambda_.4} parent=11 // pred_fallthru
        _
      // Predicated region
      $region17: #{_lambda_.4} parent=11 // pred_check
        %p209 = pneg %p81
      $region18: #{_lambda_.4} parent=11 // pred_check_branch
        %211 = sbr.rel (%p209) target = $region20
      $region19: #{_lambda_.4} parent=11 // pred_region
        _
      $region20: #{_lambda_.4} parent=11 // pred_fallthru
        _
      // Predicated region
      $region21: #{_lambda_.4} parent=11 // pred_check
        %p212 = pneg %p102
      $region22: #{_lambda_.4} parent=11 // pred_check_branch
        %214 = sbr.rel (%p212) target = $region24
      $region23: #{_lambda_.4} parent=11 // pred_region
        _
      $region24: #{_lambda_.4} parent=11 // pred_fallthru
        _
      // Predicated region
      $region25: #{_lambda_.4} parent=11 // pred_check
        %p215 = pneg %p123
      $region26: #{_lambda_.4} parent=11 // pred_check_branch
        %217 = sbr.rel (%p215) target = $region28
      $region27: #{_lambda_.4} parent=11 // pred_region
        _
      $region28: #{_lambda_.4} parent=11 // pred_fallthru
        _
      // Predicated region
      $region29: #{_lambda_.4} parent=11 // pred_check
        %p218 = pneg %p144
      $region30: #{_lambda_.4} parent=11 // pred_check_branch
        %220 = sbr.rel (%p218) target = $region32
      $region31: #{_lambda_.4} parent=11 // pred_region
        _
      $region32: #{_lambda_.4} parent=11 // pred_fallthru
        _
      // Predicated region
      $region33: #{_lambda_.4} parent=11 // pred_check
        %p221 = pneg %p165
      $region34: #{_lambda_.4} parent=11 // pred_check_branch
        %223 = sbr.rel (%p221) target = $region36
      $region35: #{_lambda_.4} parent=11 // pred_region
        _
      $region36: #{_lambda_.4} parent=11 // pred_fallthru
        _
    $region12: #{_lambda_.4} parent=5 // pred_fallthru
      _
    %p224 = scmp.lt.s32.totalorder %s13, 2
    // Predicated region
    $region37: #{_lambda_.4} parent=5 // pred_check
      %p225 = pneg %p224
    $region38: #{_lambda_.4} parent=5 // pred_check_branch
      %227 = sbr.rel (%p225) target = $region40
    $region39: #{_lambda_.4} parent=5 // pred_region
      // Predicated region
      $region41: #{_lambda_.4} parent=39 // pred_check
        %p228 = pneg %p33
      $region42: #{_lambda_.4} parent=39 // pred_check_branch
        %230 = sbr.rel (%p228) target = $region44
      $region43: #{_lambda_.4} parent=39 // pred_region
        %p231 = scmp.lt.s32.totalorder %s13, 1
        %s232 = scalar_select %p231, %s13, 1
        %s233 = smul.addr %s232, 32
        %s234 = smul.addr %s233, 4
        %s235 = scalar_lea.vmem %s0, %s234
      $region44: #{_lambda_.4} parent=39 // pred_fallthru
        _
    $region40: #{_lambda_.4} parent=5 // pred_fallthru
      _
    %p236 = scmp.le.s32.totalorder 1, %s13
    %p237 = scmp.lt.s32.totalorder %s13, 3
    %p238 = pnand %p236, %p237
    %p239 = pneg %p238
    // Predicated region
    $region45: #{_lambda_.4} parent=5 // pred_check
      _
    $region46: #{_lambda_.4} parent=5 // pred_check_branch
      %241 = sbr.rel (%p238) target = $region48
    $region47: #{_lambda_.4} parent=5 // pred_region
      %s242 = ssub.s32 %s13, 1
      %p243 = scmp.lt.s32.totalorder %s18, 1
      %s244 = scalar_select %p243, %s18, 1
      %s245 = smul.addr %s244, 32
      %s246 = smul.addr %s245, 4
      %s247 = scalar_lea.vmem %s0, %s246
      %p248 = pneg %p39
      %p249 = pneg %p36
      %p250 = pneg %p60
      %p251 = pneg %p57
      %p252 = pneg %p81
      %p253 = pneg %p78
      %p254 = pneg %p102
      %p255 = pneg %p99
      %p256 = pneg %p123
      %p257 = pneg %p120
      %p258 = pneg %p144
      %p259 = pneg %p141
      %p260 = pneg %p165
      %p261 = pneg %p162
      %p262 = pneg %p191
      %p263 = pneg %p188
      %p264 = scmp.lt.s32.totalorder %s18, 1
      %s265 = scalar_select %p264, %s18, 1
      %s266 = smul.addr %s265, 32
      %s267 = smul.addr %s266, 4
      %s268 = scalar_lea.vmem %s7, %s267
      %p269 = scmp.lt.s32.totalorder %s18, 1
      %s270 = scalar_select %p269, %s18, 1
      %s271 = smul.addr %s270, 32
      %s272 = smul.addr %s271, 4
      %s273 = scalar_lea.vmem %s0, %s272
      %p274 = scmp.lt.s32.totalorder %s18, 1
      %s275 = scalar_select %p274, %s18, 1
      %s276 = smul.addr %s275, 32
      %s277 = smul.addr %s276, 4
      %s278 = scalar_lea.vmem %s7, %s277
      %v282 = vld [vmem:[%s273] sm:$0xf]
      %v283 = vld [vmem:[%s273 + $0x4] sm:$0xf]
      %v284 = vld [vmem:[%s273 + $0x8] sm:$0xf]
      %v285 = vld [vmem:[%s273 + $0xc] sm:$0xf]
      %v286 = vld [vmem:[%s273 + $0x10] sm:$0xf]
      %v287 = vld [vmem:[%s273 + $0x14] sm:$0xf]
      %v288 = vld [vmem:[%s273 + $0x18] sm:$0xf]
      %v289 = vld [vmem:[%s273 + $0x1c] sm:$0xf]
      %v290 = vld [vmem:[%s273 + $0x20] sm:$0xf]
      %v291 = vld [vmem:[%s273 + $0x24] sm:$0xf]
      %v292 = vld [vmem:[%s273 + $0x28] sm:$0xf]
      %v293 = vld [vmem:[%s273 + $0x2c] sm:$0xf]
      %v294 = vld [vmem:[%s273 + $0x30] sm:$0xf]
      %v295 = vld [vmem:[%s273 + $0x34] sm:$0xf]
      %v296 = vld [vmem:[%s273 + $0x38] sm:$0xf]
      %v297 = vld [vmem:[%s273 + $0x3c] sm:$0xf]
      %v298 = vld [vmem:[%s273 + $0x40] sm:$0xf]
      %v299 = vld [vmem:[%s273 + $0x44] sm:$0xf]
      %v300 = vld [vmem:[%s273 + $0x48] sm:$0xf]
      %v301 = vld [vmem:[%s273 + $0x4c] sm:$0xf]
      %v302 = vld [vmem:[%s273 + $0x50] sm:$0xf]
      %v303 = vld [vmem:[%s273 + $0x54] sm:$0xf]
      %v304 = vld [vmem:[%s273 + $0x58] sm:$0xf]
      %v305 = vld [vmem:[%s273 + $0x5c] sm:$0xf]
      %v306 = vld [vmem:[%s273 + $0x60] sm:$0xf]
      %v307 = vld [vmem:[%s273 + $0x64] sm:$0xf]
      %v308 = vld [vmem:[%s273 + $0x68] sm:$0xf]
      %v309 = vld [vmem:[%s273 + $0x6c] sm:$0xf]
      %v310 = vld [vmem:[%s273 + $0x70] sm:$0xf]
      %v311 = vld [vmem:[%s273 + $0x74] sm:$0xf]
      %v312 = vld [vmem:[%s273 + $0x78] sm:$0xf]
      %v313 = vld [vmem:[%s273 + $0x7c] sm:$0xf]
      %v314 = vlaneseq
      %v315 = vshrl.u32 %v314, 7
      %v316 = vadd.s32 %v315, 8
      %v317 = vadd.s32 %v315, 16
      %v318 = vadd.s32 %v315, 24
      %v319 = vadd.s32 %v315, 32
      %v320 = vadd.s32 %v315, 40
      %v321 = vadd.s32 %v315, 48
      %v322 = vadd.s32 %v315, 56
      %v323 = vadd.s32 %v315, 64
      %v324 = vadd.s32 %v315, 72
      %v325 = vadd.s32 %v315, 80
      %v326 = vadd.s32 %v315, 88
      %v327 = vadd.s32 %v315, 96
      %v328 = vadd.s32 %v315, 104
      %v329 = vadd.s32 %v315, 112
      %v330 = vadd.s32 %v315, 120
      %v331 = vadd.s32 %v315, 128
      %v332 = vadd.s32 %v315, 136
      %v333 = vadd.s32 %v315, 144
      %v334 = vadd.s32 %v315, 152
      %v335 = vadd.s32 %v315, 160
      %v336 = vadd.s32 %v315, 168
      %v337 = vadd.s32 %v315, 176
      %v338 = vadd.s32 %v315, 184
      %v339 = vadd.s32 %v315, 192
      %v340 = vadd.s32 %v315, 200
      %v341 = vadd.s32 %v315, 208
      %v342 = vadd.s32 %v315, 216
      %v343 = vadd.s32 %v315, 224
      %v344 = vadd.s32 %v315, 232
      %v345 = vadd.s32 %v315, 240
      %v346 = vadd.s32 %v315, 248
      %vm347 = vcmp.lt.s32.totalorder %v315, 0
      %v348 = vsub.s32 0, %v315
      %v349 = vsel %vm347, %v348, %v315
      %v350 = vshrl.u32 %v349, 4
      %v351 = vand.u32 %v349, 15
      %v352 = vsub.s32 0, %v351
      %v353 = vsel %vm347, %v352, %v351
      %vm354 = vcmp.lt.s32.totalorder %v316, 0
      %v355 = vsub.s32 0, %v316
      %v356 = vsel %vm354, %v355, %v316
      %v357 = vshrl.u32 %v356, 4
      %v358 = vand.u32 %v356, 15
      %v359 = vsub.s32 0, %v358
      %v360 = vsel %vm354, %v359, %v358
      %vm361 = vcmp.lt.s32.totalorder %v317, 0
      %v362 = vsub.s32 0, %v317
      %v363 = vsel %vm361, %v362, %v317
      %v364 = vshrl.u32 %v363, 4
      %v365 = vand.u32 %v363, 15
      %v366 = vsub.s32 0, %v365
      %v367 = vsel %vm361, %v366, %v365
      %vm368 = vcmp.lt.s32.totalorder %v318, 0
      %v369 = vsub.s32 0, %v318
      %v370 = vsel %vm368, %v369, %v318
      %v371 = vshrl.u32 %v370, 4
      %v372 = vand.u32 %v370, 15
      %v373 = vsub.s32 0, %v372
      %v374 = vsel %vm368, %v373, %v372
      %vm375 = vcmp.lt.s32.totalorder %v319, 0
      %v376 = vsub.s32 0, %v319
      %v377 = vsel %vm375, %v376, %v319
      %v378 = vshrl.u32 %v377, 4
      %v379 = vand.u32 %v377, 15
      %v380 = vsub.s32 0, %v379
      %v381 = vsel %vm375, %v380, %v379
      %vm382 = vcmp.lt.s32.totalorder %v320, 0
      %v383 = vsub.s32 0, %v320
      %v384 = vsel %vm382, %v383, %v320
      %v385 = vshrl.u32 %v384, 4
      %v386 = vand.u32 %v384, 15
      %v387 = vsub.s32 0, %v386
      %v388 = vsel %vm382, %v387, %v386
      %vm389 = vcmp.lt.s32.totalorder %v321, 0
      %v390 = vsub.s32 0, %v321
      %v391 = vsel %vm389, %v390, %v321
      %v392 = vshrl.u32 %v391, 4
      %v393 = vand.u32 %v391, 15
      %v394 = vsub.s32 0, %v393
      %v395 = vsel %vm389, %v394, %v393
      %vm396 = vcmp.lt.s32.totalorder %v322, 0
      %v397 = vsub.s32 0, %v322
      %v398 = vsel %vm396, %v397, %v322
      %v399 = vshrl.u32 %v398, 4
      %v400 = vand.u32 %v398, 15
      %v401 = vsub.s32 0, %v400
      %v402 = vsel %vm396, %v401, %v400
      %vm403 = vcmp.lt.s32.totalorder %v323, 0
      %v404 = vsub.s32 0, %v323
      %v405 = vsel %vm403, %v404, %v323
      %v406 = vshrl.u32 %v405, 4
      %v407 = vand.u32 %v405, 15
      %v408 = vsub.s32 0, %v407
      %v409 = vsel %vm403, %v408, %v407
      %vm410 = vcmp.lt.s32.totalorder %v324, 0
      %v411 = vsub.s32 0, %v324
      %v412 = vsel %vm410, %v411, %v324
      %v413 = vshrl.u32 %v412, 4
      %v414 = vand.u32 %v412, 15
      %v415 = vsub.s32 0, %v414
      %v416 = vsel %vm410, %v415, %v414
      %vm417 = vcmp.lt.s32.totalorder %v325, 0
      %v418 = vsub.s32 0, %v325
      %v419 = vsel %vm417, %v418, %v325
      %v420 = vshrl.u32 %v419, 4
      %v421 = vand.u32 %v419, 15
      %v422 = vsub.s32 0, %v421
      %v423 = vsel %vm417, %v422, %v421
      %vm424 = vcmp.lt.s32.totalorder %v326, 0
      %v425 = vsub.s32 0, %v326
      %v426 = vsel %vm424, %v425, %v326
      %v427 = vshrl.u32 %v426, 4
      %v428 = vand.u32 %v426, 15
      %v429 = vsub.s32 0, %v428
      %v430 = vsel %vm424, %v429, %v428
      %vm431 = vcmp.lt.s32.totalorder %v327, 0
      %v432 = vsub.s32 0, %v327
      %v433 = vsel %vm431, %v432, %v327
      %v434 = vshrl.u32 %v433, 4
      %v435 = vand.u32 %v433, 15
      %v436 = vsub.s32 0, %v435
      %v437 = vsel %vm431, %v436, %v435
      %vm438 = vcmp.lt.s32.totalorder %v328, 0
      %v439 = vsub.s32 0, %v328
      %v440 = vsel %vm438, %v439, %v328
      %v441 = vshrl.u32 %v440, 4
      %v442 = vand.u32 %v440, 15
      %v443 = vsub.s32 0, %v442
      %v444 = vsel %vm438, %v443, %v442
      %vm445 = vcmp.lt.s32.totalorder %v329, 0
      %v446 = vsub.s32 0, %v329
      %v447 = vsel %vm445, %v446, %v329
      %v448 = vshrl.u32 %v447, 4
      %v449 = vand.u32 %v447, 15
      %v450 = vsub.s32 0, %v449
      %v451 = vsel %vm445, %v450, %v449
      %vm452 = vcmp.lt.s32.totalorder %v330, 0
      %v453 = vsub.s32 0, %v330
      %v454 = vsel %vm452, %v453, %v330
      %v455 = vshrl.u32 %v454, 4
      %v456 = vand.u32 %v454, 15
      %v457 = vsub.s32 0, %v456
      %v458 = vsel %vm452, %v457, %v456
      %vm459 = vcmp.lt.s32.totalorder %v331, 0
      %v460 = vsub.s32 0, %v331
      %v461 = vsel %vm459, %v460, %v331
      %v462 = vshrl.u32 %v461, 4
      %v463 = vand.u32 %v461, 15
      %v464 = vsub.s32 0, %v463
      %v465 = vsel %vm459, %v464, %v463
      %vm466 = vcmp.lt.s32.totalorder %v332, 0
      %v467 = vsub.s32 0, %v332
      %v468 = vsel %vm466, %v467, %v332
      %v469 = vshrl.u32 %v468, 4
      %v470 = vand.u32 %v468, 15
      %v471 = vsub.s32 0, %v470
      %v472 = vsel %vm466, %v471, %v470
      %vm473 = vcmp.lt.s32.totalorder %v333, 0
      %v474 = vsub.s32 0, %v333
      %v475 = vsel %vm473, %v474, %v333
      %v476 = vshrl.u32 %v475, 4
      %v477 = vand.u32 %v475, 15
      %v478 = vsub.s32 0, %v477
      %v479 = vsel %vm473, %v478, %v477
      %vm480 = vcmp.lt.s32.totalorder %v334, 0
      %v481 = vsub.s32 0, %v334
      %v482 = vsel %vm480, %v481, %v334
      %v483 = vshrl.u32 %v482, 4
      %v484 = vand.u32 %v482, 15
      %v485 = vsub.s32 0, %v484
      %v486 = vsel %vm480, %v485, %v484
      %vm487 = vcmp.lt.s32.totalorder %v335, 0
      %v488 = vsub.s32 0, %v335
      %v489 = vsel %vm487, %v488, %v335
      %v490 = vshrl.u32 %v489, 4
      %v491 = vand.u32 %v489, 15
      %v492 = vsub.s32 0, %v491
      %v493 = vsel %vm487, %v492, %v491
      %vm494 = vcmp.lt.s32.totalorder %v336, 0
      %v495 = vsub.s32 0, %v336
      %v496 = vsel %vm494, %v495, %v336
      %v497 = vshrl.u32 %v496, 4
      %v498 = vand.u32 %v496, 15
      %v499 = vsub.s32 0, %v498
      %v500 = vsel %vm494, %v499, %v498
      %vm501 = vcmp.lt.s32.totalorder %v337, 0
      %v502 = vsub.s32 0, %v337
      %v503 = vsel %vm501, %v502, %v337
      %v504 = vshrl.u32 %v503, 4
      %v505 = vand.u32 %v503, 15
      %v506 = vsub.s32 0, %v505
      %v507 = vsel %vm501, %v506, %v505
      %vm508 = vcmp.lt.s32.totalorder %v338, 0
      %v509 = vsub.s32 0, %v338
      %v510 = vsel %vm508, %v509, %v338
      %v511 = vshrl.u32 %v510, 4
      %v512 = vand.u32 %v510, 15
      %v513 = vsub.s32 0, %v512
      %v514 = vsel %vm508, %v513, %v512
      %vm515 = vcmp.lt.s32.totalorder %v339, 0
      %v516 = vsub.s32 0, %v339
      %v517 = vsel %vm515, %v516, %v339
      %v518 = vshrl.u32 %v517, 4
      %v519 = vand.u32 %v517, 15
      %v520 = vsub.s32 0, %v519
      %v521 = vsel %vm515, %v520, %v519
      %vm522 = vcmp.lt.s32.totalorder %v340, 0
      %v523 = vsub.s32 0, %v340
      %v524 = vsel %vm522, %v523, %v340
      %v525 = vshrl.u32 %v524, 4
      %v526 = vand.u32 %v524, 15
      %v527 = vsub.s32 0, %v526
      %v528 = vsel %vm522, %v527, %v526
      %vm529 = vcmp.lt.s32.totalorder %v341, 0
      %v530 = vsub.s32 0, %v341
      %v531 = vsel %vm529, %v530, %v341
      %v532 = vshrl.u32 %v531, 4
      %v533 = vand.u32 %v531, 15
      %v534 = vsub.s32 0, %v533
      %v535 = vsel %vm529, %v534, %v533
      %vm536 = vcmp.lt.s32.totalorder %v342, 0
      %v537 = vsub.s32 0, %v342
      %v538 = vsel %vm536, %v537, %v342
      %v539 = vshrl.u32 %v538, 4
      %v540 = vand.u32 %v538, 15
      %v541 = vsub.s32 0, %v540
      %v542 = vsel %vm536, %v541, %v540
      %vm543 = vcmp.lt.s32.totalorder %v343, 0
      %v544 = vsub.s32 0, %v343
      %v545 = vsel %vm543, %v544, %v343
      %v546 = vshrl.u32 %v545, 4
      %v547 = vand.u32 %v545, 15
      %v548 = vsub.s32 0, %v547
      %v549 = vsel %vm543, %v548, %v547
      %vm550 = vcmp.lt.s32.totalorder %v344, 0
      %v551 = vsub.s32 0, %v344
      %v552 = vsel %vm550, %v551, %v344
      %v553 = vshrl.u32 %v552, 4
      %v554 = vand.u32 %v552, 15
      %v555 = vsub.s32 0, %v554
      %v556 = vsel %vm550, %v555, %v554
      %vm557 = vcmp.lt.s32.totalorder %v345, 0
      %v558 = vsub.s32 0, %v345
      %v559 = vsel %vm557, %v558, %v345
      %v560 = vshrl.u32 %v559, 4
      %v561 = vand.u32 %v559, 15
      %v562 = vsub.s32 0, %v561
      %v563 = vsel %vm557, %v562, %v561
      %vm564 = vcmp.lt.s32.totalorder %v346, 0
      %v565 = vsub.s32 0, %v346
      %v566 = vsel %vm564, %v565, %v346
      %v567 = vshrl.u32 %v566, 4
      %v568 = vand.u32 %v566, 15
      %v569 = vsub.s32 0, %v568
      %v570 = vsel %vm564, %v569, %v568
      %vm571 = vcmp.ne.s32.totalorder %v353, 0
      %vm572 = vcmp.ne.s32.totalorder %v360, 0
      %vm573 = vcmp.ne.s32.totalorder %v367, 0
      %vm574 = vcmp.ne.s32.totalorder %v374, 0
      %vm575 = vcmp.ne.s32.totalorder %v381, 0
      %vm576 = vcmp.ne.s32.totalorder %v388, 0
      %vm577 = vcmp.ne.s32.totalorder %v395, 0
      %vm578 = vcmp.ne.s32.totalorder %v402, 0
      %vm579 = vcmp.ne.s32.totalorder %v409, 0
      %vm580 = vcmp.ne.s32.totalorder %v416, 0
      %vm581 = vcmp.ne.s32.totalorder %v423, 0
      %vm582 = vcmp.ne.s32.totalorder %v430, 0
      %vm583 = vcmp.ne.s32.totalorder %v437, 0
      %vm584 = vcmp.ne.s32.totalorder %v444, 0
      %vm585 = vcmp.ne.s32.totalorder %v451, 0
      %vm586 = vcmp.ne.s32.totalorder %v458, 0
      %vm587 = vcmp.ne.s32.totalorder %v465, 0
      %vm588 = vcmp.ne.s32.totalorder %v472, 0
      %vm589 = vcmp.ne.s32.totalorder %v479, 0
      %vm590 = vcmp.ne.s32.totalorder %v486, 0
      %vm591 = vcmp.ne.s32.totalorder %v493, 0
      %vm592 = vcmp.ne.s32.totalorder %v500, 0
      %vm593 = vcmp.ne.s32.totalorder %v507, 0
      %vm594 = vcmp.ne.s32.totalorder %v514, 0
      %vm595 = vcmp.ne.s32.totalorder %v521, 0
      %vm596 = vcmp.ne.s32.totalorder %v528, 0
      %vm597 = vcmp.ne.s32.totalorder %v535, 0
      %vm598 = vcmp.ne.s32.totalorder %v542, 0
      %vm599 = vcmp.ne.s32.totalorder %v549, 0
      %vm600 = vcmp.ne.s32.totalorder %v556, 0
      %vm601 = vcmp.ne.s32.totalorder %v563, 0
      %vm602 = vcmp.ne.s32.totalorder %v570, 0
      %vm603 = vcmp.lt.s32.totalorder %v353, 0
      %vm604 = vcmp.lt.s32.totalorder %v360, 0
      %vm605 = vcmp.lt.s32.totalorder %v367, 0
      %vm606 = vcmp.lt.s32.totalorder %v374, 0
      %vm607 = vcmp.lt.s32.totalorder %v381, 0
      %vm608 = vcmp.lt.s32.totalorder %v388, 0
      %vm609 = vcmp.lt.s32.totalorder %v395, 0
      %vm610 = vcmp.lt.s32.totalorder %v402, 0
      %vm611 = vcmp.lt.s32.totalorder %v409, 0
      %vm612 = vcmp.lt.s32.totalorder %v416, 0
      %vm613 = vcmp.lt.s32.totalorder %v423, 0
      %vm614 = vcmp.lt.s32.totalorder %v430, 0
      %vm615 = vcmp.lt.s32.totalorder %v437, 0
      %vm616 = vcmp.lt.s32.totalorder %v444, 0
      %vm617 = vcmp.lt.s32.totalorder %v451, 0
      %vm618 = vcmp.lt.s32.totalorder %v458, 0
      %vm619 = vcmp.lt.s32.totalorder %v465, 0
      %vm620 = vcmp.lt.s32.totalorder %v472, 0
      %vm621 = vcmp.lt.s32.totalorder %v479, 0
      %vm622 = vcmp.lt.s32.totalorder %v486, 0
      %vm623 = vcmp.lt.s32.totalorder %v493, 0
      %vm624 = vcmp.lt.s32.totalorder %v500, 0
      %vm625 = vcmp.lt.s32.totalorder %v507, 0
      %vm626 = vcmp.lt.s32.totalorder %v514, 0
      %vm627 = vcmp.lt.s32.totalorder %v521, 0
      %vm628 = vcmp.lt.s32.totalorder %v528, 0
      %vm629 = vcmp.lt.s32.totalorder %v535, 0
      %vm630 = vcmp.lt.s32.totalorder %v542, 0
      %vm631 = vcmp.lt.s32.totalorder %v549, 0
      %vm632 = vcmp.lt.s32.totalorder %v556, 0
      %vm633 = vcmp.lt.s32.totalorder %v563, 0
      %vm634 = vcmp.lt.s32.totalorder %v570, 0
      %vm635 = vmand %vm603, %vm571
      %vm636 = vmand %vm604, %vm572
      %vm637 = vmand %vm605, %vm573
      %vm638 = vmand %vm606, %vm574
      %vm639 = vmand %vm607, %vm575
      %vm640 = vmand %vm608, %vm576
      %vm641 = vmand %vm609, %vm577
      %vm642 = vmand %vm610, %vm578
      %vm643 = vmand %vm611, %vm579
      %vm644 = vmand %vm612, %vm580
      %vm645 = vmand %vm613, %vm581
      %vm646 = vmand %vm614, %vm582
      %vm647 = vmand %vm615, %vm583
      %vm648 = vmand %vm616, %vm584
      %vm649 = vmand %vm617, %vm585
      %vm650 = vmand %vm618, %vm586
      %vm651 = vmand %vm619, %vm587
      %vm652 = vmand %vm620, %vm588
      %vm653 = vmand %vm621, %vm589
      %vm654 = vmand %vm622, %vm590
      %vm655 = vmand %vm623, %vm591
      %vm656 = vmand %vm624, %vm592
      %vm657 = vmand %vm625, %vm593
      %vm658 = vmand %vm626, %vm594
      %vm659 = vmand %vm627, %vm595
      %vm660 = vmand %vm628, %vm596
      %vm661 = vmand %vm629, %vm597
      %vm662 = vmand %vm630, %vm598
      %vm663 = vmand %vm631, %vm599
      %vm664 = vmand %vm632, %vm600
      %vm665 = vmand %vm633, %vm601
      %vm666 = vmand %vm634, %vm602
      %v667 = vadd.s32 %v353, 16
      %v668 = vadd.s32 %v360, 16
      %v669 = vadd.s32 %v367, 16
      %v670 = vadd.s32 %v374, 16
      %v671 = vadd.s32 %v381, 16
      %v672 = vadd.s32 %v388, 16
      %v673 = vadd.s32 %v395, 16
      %v674 = vadd.s32 %v402, 16
      %v675 = vadd.s32 %v409, 16
      %v676 = vadd.s32 %v416, 16
      %v677 = vadd.s32 %v423, 16
      %v678 = vadd.s32 %v430, 16
      %v679 = vadd.s32 %v437, 16
      %v680 = vadd.s32 %v444, 16
      %v681 = vadd.s32 %v451, 16
      %v682 = vadd.s32 %v458, 16
      %v683 = vadd.s32 %v465, 16
      %v684 = vadd.s32 %v472, 16
      %v685 = vadd.s32 %v479, 16
      %v686 = vadd.s32 %v486, 16
      %v687 = vadd.s32 %v493, 16
      %v688 = vadd.s32 %v500, 16
      %v689 = vadd.s32 %v507, 16
      %v690 = vadd.s32 %v514, 16
      %v691 = vadd.s32 %v521, 16
      %v692 = vadd.s32 %v528, 16
      %v693 = vadd.s32 %v535, 16
      %v694 = vadd.s32 %v542, 16
      %v695 = vadd.s32 %v549, 16
      %v696 = vadd.s32 %v556, 16
      %v697 = vadd.s32 %v563, 16
      %v698 = vadd.s32 %v570, 16
      %v699 = vsel %vm635, %v667, %v353
      %v700 = vsel %vm636, %v668, %v360
      %v701 = vsel %vm637, %v669, %v367
      %v702 = vsel %vm638, %v670, %v374
      %v703 = vsel %vm639, %v671, %v381
      %v704 = vsel %vm640, %v672, %v388
      %v705 = vsel %vm641, %v673, %v395
      %v706 = vsel %vm642, %v674, %v402
      %v707 = vsel %vm643, %v675, %v409
      %v708 = vsel %vm644, %v676, %v416
      %v709 = vsel %vm645, %v677, %v423
      %v710 = vsel %vm646, %v678, %v430
      %v711 = vsel %vm647, %v679, %v437
      %v712 = vsel %vm648, %v680, %v444
      %v713 = vsel %vm649, %v681, %v451
      %v714 = vsel %vm650, %v682, %v458
      %v715 = vsel %vm651, %v683, %v465
      %v716 = vsel %vm652, %v684, %v472
      %v717 = vsel %vm653, %v685, %v479
      %v718 = vsel %vm654, %v686, %v486
      %v719 = vsel %vm655, %v687, %v493
      %v720 = vsel %vm656, %v688, %v500
      %v721 = vsel %vm657, %v689, %v507
      %v722 = vsel %vm658, %v690, %v514
      %v723 = vsel %vm659, %v691, %v521
      %v724 = vsel %vm660, %v692, %v528
      %v725 = vsel %vm661, %v693, %v535
      %v726 = vsel %vm662, %v694, %v542
      %v727 = vsel %vm663, %v695, %v549
      %v728 = vsel %vm664, %v696, %v556
      %v729 = vsel %vm665, %v697, %v563
      %v730 = vsel %vm666, %v698, %v570
      %vm731 = vcmp.gt.s32.totalorder %v699, 0
      %vm732 = vcmp.gt.s32.totalorder %v700, 0
      %vm733 = vcmp.gt.s32.totalorder %v701, 0
      %vm734 = vcmp.gt.s32.totalorder %v702, 0
      %vm735 = vcmp.gt.s32.totalorder %v703, 0
      %vm736 = vcmp.gt.s32.totalorder %v704, 0
      %vm737 = vcmp.gt.s32.totalorder %v705, 0
      %vm738 = vcmp.gt.s32.totalorder %v706, 0
      %vm739 = vcmp.gt.s32.totalorder %v707, 0
      %vm740 = vcmp.gt.s32.totalorder %v708, 0
      %vm741 = vcmp.gt.s32.totalorder %v709, 0
      %vm742 = vcmp.gt.s32.totalorder %v710, 0
      %vm743 = vcmp.gt.s32.totalorder %v711, 0
      %vm744 = vcmp.gt.s32.totalorder %v712, 0
      %vm745 = vcmp.gt.s32.totalorder %v713, 0
      %vm746 = vcmp.gt.s32.totalorder %v714, 0
      %vm747 = vcmp.gt.s32.totalorder %v715, 0
      %vm748 = vcmp.gt.s32.totalorder %v716, 0
      %vm749 = vcmp.gt.s32.totalorder %v717, 0
      %vm750 = vcmp.gt.s32.totalorder %v718, 0
      %vm751 = vcmp.gt.s32.totalorder %v719, 0
      %vm752 = vcmp.gt.s32.totalorder %v720, 0
      %vm753 = vcmp.gt.s32.totalorder %v721, 0
      %vm754 = vcmp.gt.s32.totalorder %v722, 0
      %vm755 = vcmp.gt.s32.totalorder %v723, 0
      %vm756 = vcmp.gt.s32.totalorder %v724, 0
      %vm757 = vcmp.gt.s32.totalorder %v725, 0
      %vm758 = vcmp.gt.s32.totalorder %v726, 0
      %vm759 = vcmp.gt.s32.totalorder %v727, 0
      %vm760 = vcmp.gt.s32.totalorder %v728, 0
      %vm761 = vcmp.gt.s32.totalorder %v729, 0
      %vm762 = vcmp.gt.s32.totalorder %v730, 0
      %vm763 = vcmp.lt.s32.totalorder %v699, 15
      %vm764 = vcmp.lt.s32.totalorder %v700, 15
      %vm765 = vcmp.lt.s32.totalorder %v701, 15
      %vm766 = vcmp.lt.s32.totalorder %v702, 15
      %vm767 = vcmp.lt.s32.totalorder %v703, 15
      %vm768 = vcmp.lt.s32.totalorder %v704, 15
      %vm769 = vcmp.lt.s32.totalorder %v705, 15
      %vm770 = vcmp.lt.s32.totalorder %v706, 15
      %vm771 = vcmp.lt.s32.totalorder %v707, 15
      %vm772 = vcmp.lt.s32.totalorder %v708, 15
      %vm773 = vcmp.lt.s32.totalorder %v709, 15
      %vm774 = vcmp.lt.s32.totalorder %v710, 15
      %vm775 = vcmp.lt.s32.totalorder %v711, 15
      %vm776 = vcmp.lt.s32.totalorder %v712, 15
      %vm777 = vcmp.lt.s32.totalorder %v713, 15
      %vm778 = vcmp.lt.s32.totalorder %v714, 15
      %vm779 = vcmp.lt.s32.totalorder %v715, 15
      %vm780 = vcmp.lt.s32.totalorder %v716, 15
      %vm781 = vcmp.lt.s32.totalorder %v717, 15
      %vm782 = vcmp.lt.s32.totalorder %v718, 15
      %vm783 = vcmp.lt.s32.totalorder %v719, 15
      %vm784 = vcmp.lt.s32.totalorder %v720, 15
      %vm785 = vcmp.lt.s32.totalorder %v721, 15
      %vm786 = vcmp.lt.s32.totalorder %v722, 15
      %vm787 = vcmp.lt.s32.totalorder %v723, 15
      %vm788 = vcmp.lt.s32.totalorder %v724, 15
      %vm789 = vcmp.lt.s32.totalorder %v725, 15
      %vm790 = vcmp.lt.s32.totalorder %v726, 15
      %vm791 = vcmp.lt.s32.totalorder %v727, 15
      %vm792 = vcmp.lt.s32.totalorder %v728, 15
      %vm793 = vcmp.lt.s32.totalorder %v729, 15
      %vm794 = vcmp.lt.s32.totalorder %v730, 15
      %v827 = vunpack.c.l.b16 %v282
      %v828 = vunpack.c.l.b16 %v283
      %v829 = vunpack.c.l.b16 %v284
      %v830 = vunpack.c.l.b16 %v285
      %v831 = vunpack.c.l.b16 %v286
      %v832 = vunpack.c.l.b16 %v287
      %v833 = vunpack.c.l.b16 %v288
      %v834 = vunpack.c.l.b16 %v289
      %v835 = vunpack.c.l.b16 %v290
      %v836 = vunpack.c.l.b16 %v291
      %v837 = vunpack.c.l.b16 %v292
      %v838 = vunpack.c.l.b16 %v293
      %v839 = vunpack.c.l.b16 %v294
      %v840 = vunpack.c.l.b16 %v295
      %v841 = vunpack.c.l.b16 %v296
      %v842 = vunpack.c.l.b16 %v297
      %v843 = vunpack.c.l.b16 %v298
      %v844 = vunpack.c.l.b16 %v299
      %v845 = vunpack.c.l.b16 %v300
      %v846 = vunpack.c.l.b16 %v301
      %v847 = vunpack.c.l.b16 %v302
      %v848 = vunpack.c.l.b16 %v303
      %v849 = vunpack.c.l.b16 %v304
      %v850 = vunpack.c.l.b16 %v305
      %v851 = vunpack.c.l.b16 %v306
      %v852 = vunpack.c.l.b16 %v307
      %v853 = vunpack.c.l.b16 %v308
      %v854 = vunpack.c.l.b16 %v309
      %v855 = vunpack.c.l.b16 %v310
      %v856 = vunpack.c.l.b16 %v311
      %v857 = vunpack.c.l.b16 %v312
      %v858 = vunpack.c.l.b16 %v313
      %v859 = vpack.c.b16 %v828, %v827
      %v860 = vpack.c.b16 %v830, %v829
      %v861 = vpack.c.b16 %v832, %v831
      %v862 = vpack.c.b16 %v834, %v833
      %v863 = vpack.c.b16 %v836, %v835
      %v864 = vpack.c.b16 %v838, %v837
      %v865 = vpack.c.b16 %v840, %v839
      %v866 = vpack.c.b16 %v842, %v841
      %v867 = vpack.c.b16 %v844, %v843
      %v868 = vpack.c.b16 %v846, %v845
      %v869 = vpack.c.b16 %v848, %v847
      %v870 = vpack.c.b16 %v850, %v849
      %v871 = vpack.c.b16 %v852, %v851
      %v872 = vpack.c.b16 %v854, %v853
      %v873 = vpack.c.b16 %v856, %v855
      %v874 = vpack.c.b16 %v858, %v857
      %vm875 = vsmask.f32 256
      %v877 = vshrl.u32 %v859, 16
      %v879 = vrot.slane %v877, 7
      %v880 = vshll.u32 %v859, 16
      %v882 = vor.u32 %v879, %v880
      %v884 = vshrl.u32 %v860, 16
      %v886 = vrot.slane %v884, 7
      %v887 = vshll.u32 %v860, 16
      %v889 = vor.u32 %v886, %v887
      %v890 = vsel %vm875, %v879, %v889
      %v892 = vshrl.u32 %v861, 16
      %v894 = vrot.slane %v892, 7
      %v895 = vshll.u32 %v861, 16
      %v897 = vor.u32 %v894, %v895
      %v898 = vsel %vm875, %v886, %v897
      %v900 = vshrl.u32 %v862, 16
      %v902 = vrot.slane %v900, 7
      %v903 = vshll.u32 %v862, 16
      %v905 = vor.u32 %v902, %v903
      %v906 = vsel %vm875, %v894, %v905
      %v908 = vshrl.u32 %v863, 16
      %v910 = vrot.slane %v908, 7
      %v911 = vshll.u32 %v863, 16
      %v913 = vor.u32 %v910, %v911
      %v914 = vsel %vm875, %v902, %v913
      %v916 = vshrl.u32 %v864, 16
      %v918 = vrot.slane %v916, 7
      %v919 = vshll.u32 %v864, 16
      %v921 = vor.u32 %v918, %v919
      %v922 = vsel %vm875, %v910, %v921
      %v924 = vshrl.u32 %v865, 16
      %v926 = vrot.slane %v924, 7
      %v927 = vshll.u32 %v865, 16
      %v929 = vor.u32 %v926, %v927
      %v930 = vsel %vm875, %v918, %v929
      %v932 = vshrl.u32 %v866, 16
      %v934 = vrot.slane %v932, 7
      %v935 = vshll.u32 %v866, 16
      %v937 = vor.u32 %v934, %v935
      %v938 = vsel %vm875, %v926, %v937
      %v940 = vshrl.u32 %v867, 16
      %v942 = vrot.slane %v940, 7
      %v943 = vshll.u32 %v867, 16
      %v945 = vor.u32 %v942, %v943
      %v946 = vsel %vm875, %v934, %v945
      %v948 = vshrl.u32 %v868, 16
      %v950 = vrot.slane %v948, 7
      %v951 = vshll.u32 %v868, 16
      %v953 = vor.u32 %v950, %v951
      %v954 = vsel %vm875, %v942, %v953
      %v956 = vshrl.u32 %v869, 16
      %v958 = vrot.slane %v956, 7
      %v959 = vshll.u32 %v869, 16
      %v961 = vor.u32 %v958, %v959
      %v962 = vsel %vm875, %v950, %v961
      %v964 = vshrl.u32 %v870, 16
      %v966 = vrot.slane %v964, 7
      %v967 = vshll.u32 %v870, 16
      %v969 = vor.u32 %v966, %v967
      %v970 = vsel %vm875, %v958, %v969
      %v972 = vshrl.u32 %v871, 16
      %v974 = vrot.slane %v972, 7
      %v975 = vshll.u32 %v871, 16
      %v977 = vor.u32 %v974, %v975
      %v978 = vsel %vm875, %v966, %v977
      %v980 = vshrl.u32 %v872, 16
      %v982 = vrot.slane %v980, 7
      %v983 = vshll.u32 %v872, 16
      %v985 = vor.u32 %v982, %v983
      %v986 = vsel %vm875, %v974, %v985
      %v988 = vshrl.u32 %v873, 16
      %v990 = vrot.slane %v988, 7
      %v991 = vshll.u32 %v873, 16
      %v993 = vor.u32 %v990, %v991
      %v994 = vsel %vm875, %v982, %v993
      %v996 = vshrl.u32 %v874, 16
      %v998 = vrot.slane %v996, 7
      %v999 = vshll.u32 %v874, 16
      %v1001 = vor.u32 %v998, %v999
      %v1002 = vsel %vm875, %v990, %v1001
      %vm1019 = vcmask 1040384
      %vm1020 = vmand %vm1019, %vm875
      %v1021 = vsel %vm1020, 0, %v882
      %vm1022 = vmpackc.low %vm731, %vm731
      %vm1023 = vmpackc.low %vm732, %vm732
      %vm1024 = vmpackc.low %vm733, %vm733
      %vm1025 = vmpackc.low %vm734, %vm734
      %vm1026 = vmpackc.low %vm735, %vm735
      %vm1027 = vmpackc.low %vm736, %vm736
      %vm1028 = vmpackc.low %vm737, %vm737
      %vm1029 = vmpackc.low %vm738, %vm738
      %vm1030 = vmpackc.low %vm739, %vm739
      %vm1031 = vmpackc.low %vm740, %vm740
      %vm1032 = vmpackc.low %vm741, %vm741
      %vm1033 = vmpackc.low %vm742, %vm742
      %vm1034 = vmpackc.low %vm743, %vm743
      %vm1035 = vmpackc.low %vm744, %vm744
      %vm1036 = vmpackc.low %vm745, %vm745
      %vm1037 = vmpackc.low %vm746, %vm746
      %vm1038 = vmpackc.low %vm747, %vm747
      %vm1039 = vmpackc.low %vm748, %vm748
      %vm1040 = vmpackc.low %vm749, %vm749
      %vm1041 = vmpackc.low %vm750, %vm750
      %vm1042 = vmpackc.low %vm751, %vm751
      %vm1043 = vmpackc.low %vm752, %vm752
      %vm1044 = vmpackc.low %vm753, %vm753
      %vm1045 = vmpackc.low %vm754, %vm754
      %vm1046 = vmpackc.low %vm755, %vm755
      %vm1047 = vmpackc.low %vm756, %vm756
      %vm1048 = vmpackc.low %vm757, %vm757
      %vm1049 = vmpackc.low %vm758, %vm758
      %vm1050 = vmpackc.low %vm759, %vm759
      %vm1051 = vmpackc.low %vm760, %vm760
      %vm1052 = vmpackc.low %vm761, %vm761
      %vm1053 = vmpackc.low %vm762, %vm762
      %v1054 = vsel %vm1022, 65537, 0
      %v1055 = vsel %vm1023, 65537, 0
      %v1056 = vsel %vm1024, 65537, 0
      %v1057 = vsel %vm1025, 65537, 0
      %v1058 = vsel %vm1026, 65537, 0
      %v1059 = vsel %vm1027, 65537, 0
      %v1060 = vsel %vm1028, 65537, 0
      %v1061 = vsel %vm1029, 65537, 0
      %v1062 = vsel %vm1030, 65537, 0
      %v1063 = vsel %vm1031, 65537, 0
      %v1064 = vsel %vm1032, 65537, 0
      %v1065 = vsel %vm1033, 65537, 0
      %v1066 = vsel %vm1034, 65537, 0
      %v1067 = vsel %vm1035, 65537, 0
      %v1068 = vsel %vm1036, 65537, 0
      %v1069 = vsel %vm1037, 65537, 0
      %v1070 = vsel %vm1038, 65537, 0
      %v1071 = vsel %vm1039, 65537, 0
      %v1072 = vsel %vm1040, 65537, 0
      %v1073 = vsel %vm1041, 65537, 0
      %v1074 = vsel %vm1042, 65537, 0
      %v1075 = vsel %vm1043, 65537, 0
      %v1076 = vsel %vm1044, 65537, 0
      %v1077 = vsel %vm1045, 65537, 0
      %v1078 = vsel %vm1046, 65537, 0
      %v1079 = vsel %vm1047, 65537, 0
      %v1080 = vsel %vm1048, 65537, 0
      %v1081 = vsel %vm1049, 65537, 0
      %v1082 = vsel %vm1050, 65537, 0
      %v1083 = vsel %vm1051, 65537, 0
      %v1084 = vsel %vm1052, 65537, 0
      %v1085 = vsel %vm1053, 65537, 0
      %v1086 = vunpack.c.l.b16 %v1054
      %v1087 = vunpack.c.l.b16 %v1055
      %v1088 = vunpack.c.l.b16 %v1056
      %v1089 = vunpack.c.l.b16 %v1057
      %v1090 = vunpack.c.l.b16 %v1058
      %v1091 = vunpack.c.l.b16 %v1059
      %v1092 = vunpack.c.l.b16 %v1060
      %v1093 = vunpack.c.l.b16 %v1061
      %v1094 = vunpack.c.l.b16 %v1062
      %v1095 = vunpack.c.l.b16 %v1063
      %v1096 = vunpack.c.l.b16 %v1064
      %v1097 = vunpack.c.l.b16 %v1065
      %v1098 = vunpack.c.l.b16 %v1066
      %v1099 = vunpack.c.l.b16 %v1067
      %v1100 = vunpack.c.l.b16 %v1068
      %v1101 = vunpack.c.l.b16 %v1069
      %v1102 = vunpack.c.l.b16 %v1070
      %v1103 = vunpack.c.l.b16 %v1071
      %v1104 = vunpack.c.l.b16 %v1072
      %v1105 = vunpack.c.l.b16 %v1073
      %v1106 = vunpack.c.l.b16 %v1074
      %v1107 = vunpack.c.l.b16 %v1075
      %v1108 = vunpack.c.l.b16 %v1076
      %v1109 = vunpack.c.l.b16 %v1077
      %v1110 = vunpack.c.l.b16 %v1078
      %v1111 = vunpack.c.l.b16 %v1079
      %v1112 = vunpack.c.l.b16 %v1080
      %v1113 = vunpack.c.l.b16 %v1081
      %v1114 = vunpack.c.l.b16 %v1082
      %v1115 = vunpack.c.l.b16 %v1083
      %v1116 = vunpack.c.l.b16 %v1084
      %v1117 = vunpack.c.l.b16 %v1085
      %v1118 = vpack.c.b16 %v1087, %v1086
      %v1119 = vpack.c.b16 %v1089, %v1088
      %v1120 = vpack.c.b16 %v1091, %v1090
      %v1121 = vpack.c.b16 %v1093, %v1092
      %v1122 = vpack.c.b16 %v1095, %v1094
      %v1123 = vpack.c.b16 %v1097, %v1096
      %v1124 = vpack.c.b16 %v1099, %v1098
      %v1125 = vpack.c.b16 %v1101, %v1100
      %v1126 = vpack.c.b16 %v1103, %v1102
      %v1127 = vpack.c.b16 %v1105, %v1104
      %v1128 = vpack.c.b16 %v1107, %v1106
      %v1129 = vpack.c.b16 %v1109, %v1108
      %v1130 = vpack.c.b16 %v1111, %v1110
      %v1131 = vpack.c.b16 %v1113, %v1112
      %v1132 = vpack.c.b16 %v1115, %v1114
      %v1133 = vpack.c.b16 %v1117, %v1116
      %vm1134 = vcmp.ne.s16.totalorder %v1118, 0
      %vm1135 = vcmp.ne.s16.totalorder %v1119, 0
      %vm1136 = vcmp.ne.s16.totalorder %v1120, 0
      %vm1137 = vcmp.ne.s16.totalorder %v1121, 0
      %vm1138 = vcmp.ne.s16.totalorder %v1122, 0
      %vm1139 = vcmp.ne.s16.totalorder %v1123, 0
      %vm1140 = vcmp.ne.s16.totalorder %v1124, 0
      %vm1141 = vcmp.ne.s16.totalorder %v1125, 0
      %vm1142 = vcmp.ne.s16.totalorder %v1126, 0
      %vm1143 = vcmp.ne.s16.totalorder %v1127, 0
      %vm1144 = vcmp.ne.s16.totalorder %v1128, 0
      %vm1145 = vcmp.ne.s16.totalorder %v1129, 0
      %vm1146 = vcmp.ne.s16.totalorder %v1130, 0
      %vm1147 = vcmp.ne.s16.totalorder %v1131, 0
      %vm1148 = vcmp.ne.s16.totalorder %v1132, 0
      %vm1149 = vcmp.ne.s16.totalorder %v1133, 0
      %v1150 = vsel %vm1134, %v1021, 0
      %v1151 = vsel %vm1135, %v890, 0
      %v1152 = vsel %vm1136, %v898, 0
      %v1153 = vsel %vm1137, %v906, 0
      %v1154 = vsel %vm1138, %v914, 0
      %v1155 = vsel %vm1139, %v922, 0
      %v1156 = vsel %vm1140, %v930, 0
      %v1157 = vsel %vm1141, %v938, 0
      %v1158 = vsel %vm1142, %v946, 0
      %v1159 = vsel %vm1143, %v954, 0
      %v1160 = vsel %vm1144, %v962, 0
      %v1161 = vsel %vm1145, %v970, 0
      %v1162 = vsel %vm1146, %v978, 0
      %v1163 = vsel %vm1147, %v986, 0
      %v1164 = vsel %vm1148, %v994, 0
      %v1165 = vsel %vm1149, %v1002, 0
      %vm1166 = vsmask.f32 7424
      %v1167 = vrot.slane %v880, 1
      %v1168 = vor.u32 %v877, %v1167
      %v1169 = vrot.slane %v887, 1
      %v1170 = vsel %vm1166, %v1168, %v1169
      %v1171 = vor.u32 %v884, %v1169
      %v1172 = vrot.slane %v895, 1
      %v1173 = vsel %vm1166, %v1171, %v1172
      %v1174 = vor.u32 %v892, %v1172
      %v1175 = vrot.slane %v903, 1
      %v1176 = vsel %vm1166, %v1174, %v1175
      %v1177 = vor.u32 %v900, %v1175
      %v1178 = vrot.slane %v911, 1
      %v1179 = vsel %vm1166, %v1177, %v1178
      %v1180 = vor.u32 %v908, %v1178
      %v1181 = vrot.slane %v919, 1
      %v1182 = vsel %vm1166, %v1180, %v1181
      %v1183 = vor.u32 %v916, %v1181
      %v1184 = vrot.slane %v927, 1
      %v1185 = vsel %vm1166, %v1183, %v1184
      %v1186 = vor.u32 %v924, %v1184
      %v1187 = vrot.slane %v935, 1
      %v1188 = vsel %vm1166, %v1186, %v1187
      %v1189 = vor.u32 %v932, %v1187
      %v1190 = vrot.slane %v943, 1
      %v1191 = vsel %vm1166, %v1189, %v1190
      %v1192 = vor.u32 %v940, %v1190
      %v1193 = vrot.slane %v951, 1
      %v1194 = vsel %vm1166, %v1192, %v1193
      %v1195 = vor.u32 %v948, %v1193
      %v1196 = vrot.slane %v959, 1
      %v1197 = vsel %vm1166, %v1195, %v1196
      %v1198 = vor.u32 %v956, %v1196
      %v1199 = vrot.slane %v967, 1
      %v1200 = vsel %vm1166, %v1198, %v1199
      %v1201 = vor.u32 %v964, %v1199
      %v1202 = vrot.slane %v975, 1
      %v1203 = vsel %vm1166, %v1201, %v1202
      %v1204 = vor.u32 %v972, %v1202
      %v1205 = vrot.slane %v983, 1
      %v1206 = vsel %vm1166, %v1204, %v1205
      %v1207 = vor.u32 %v980, %v1205
      %v1208 = vrot.slane %v991, 1
      %v1209 = vsel %vm1166, %v1207, %v1208
      %v1210 = vor.u32 %v988, %v1208
      %v1211 = vrot.slane %v999, 1
      %v1212 = vsel %vm1166, %v1210, %v1211
      %v1213 = vor.u32 %v996, %v1211
      %vm1230 = vcmask 1047552
      %vm1231 = vmand %vm1230, %vm1166
      %v1232 = vsel %vm1231, %v1213, 0
      %vm1233 = vmpackc.low %vm763, %vm763
      %vm1234 = vmpackc.low %vm764, %vm764
      %vm1235 = vmpackc.low %vm765, %vm765
      %vm1236 = vmpackc.low %vm766, %vm766
      %vm1237 = vmpackc.low %vm767, %vm767
      %vm1238 = vmpackc.low %vm768, %vm768
      %vm1239 = vmpackc.low %vm769, %vm769
      %vm1240 = vmpackc.low %vm770, %vm770
      %vm1241 = vmpackc.low %vm771, %vm771
      %vm1242 = vmpackc.low %vm772, %vm772
      %vm1243 = vmpackc.low %vm773, %vm773
      %vm1244 = vmpackc.low %vm774, %vm774
      %vm1245 = vmpackc.low %vm775, %vm775
      %vm1246 = vmpackc.low %vm776, %vm776
      %vm1247 = vmpackc.low %vm777, %vm777
      %vm1248 = vmpackc.low %vm778, %vm778
      %vm1249 = vmpackc.low %vm779, %vm779
      %vm1250 = vmpackc.low %vm780, %vm780
      %vm1251 = vmpackc.low %vm781, %vm781
      %vm1252 = vmpackc.low %vm782, %vm782
      %vm1253 = vmpackc.low %vm783, %vm783
      %vm1254 = vmpackc.low %vm784, %vm784
      %vm1255 = vmpackc.low %vm785, %vm785
      %vm1256 = vmpackc.low %vm786, %vm786
      %vm1257 = vmpackc.low %vm787, %vm787
      %vm1258 = vmpackc.low %vm788, %vm788
      %vm1259 = vmpackc.low %vm789, %vm789
      %vm1260 = vmpackc.low %vm790, %vm790
      %vm1261 = vmpackc.low %vm791, %vm791
      %vm1262 = vmpackc.low %vm792, %vm792
      %vm1263 = vmpackc.low %vm793, %vm793
      %vm1264 = vmpackc.low %vm794, %vm794
      %v1265 = vsel %vm1233, 65537, 0
      %v1266 = vsel %vm1234, 65537, 0
      %v1267 = vsel %vm1235, 65537, 0
      %v1268 = vsel %vm1236, 65537, 0
      %v1269 = vsel %vm1237, 65537, 0
      %v1270 = vsel %vm1238, 65537, 0
      %v1271 = vsel %vm1239, 65537, 0
      %v1272 = vsel %vm1240, 65537, 0
      %v1273 = vsel %vm1241, 65537, 0
      %v1274 = vsel %vm1242, 65537, 0
      %v1275 = vsel %vm1243, 65537, 0
      %v1276 = vsel %vm1244, 65537, 0
      %v1277 = vsel %vm1245, 65537, 0
      %v1278 = vsel %vm1246, 65537, 0
      %v1279 = vsel %vm1247, 65537, 0
      %v1280 = vsel %vm1248, 65537, 0
      %v1281 = vsel %vm1249, 65537, 0
      %v1282 = vsel %vm1250, 65537, 0
      %v1283 = vsel %vm1251, 65537, 0
      %v1284 = vsel %vm1252, 65537, 0
      %v1285 = vsel %vm1253, 65537, 0
      %v1286 = vsel %vm1254, 65537, 0
      %v1287 = vsel %vm1255, 65537, 0
      %v1288 = vsel %vm1256, 65537, 0
      %v1289 = vsel %vm1257, 65537, 0
      %v1290 = vsel %vm1258, 65537, 0
      %v1291 = vsel %vm1259, 65537, 0
      %v1292 = vsel %vm1260, 65537, 0
      %v1293 = vsel %vm1261, 65537, 0
      %v1294 = vsel %vm1262, 65537, 0
      %v1295 = vsel %vm1263, 65537, 0
      %v1296 = vsel %vm1264, 65537, 0
      %v1297 = vunpack.c.l.b16 %v1265
      %v1298 = vunpack.c.l.b16 %v1266
      %v1299 = vunpack.c.l.b16 %v1267
      %v1300 = vunpack.c.l.b16 %v1268
      %v1301 = vunpack.c.l.b16 %v1269
      %v1302 = vunpack.c.l.b16 %v1270
      %v1303 = vunpack.c.l.b16 %v1271
      %v1304 = vunpack.c.l.b16 %v1272
      %v1305 = vunpack.c.l.b16 %v1273
      %v1306 = vunpack.c.l.b16 %v1274
      %v1307 = vunpack.c.l.b16 %v1275
      %v1308 = vunpack.c.l.b16 %v1276
      %v1309 = vunpack.c.l.b16 %v1277
      %v1310 = vunpack.c.l.b16 %v1278
      %v1311 = vunpack.c.l.b16 %v1279
      %v1312 = vunpack.c.l.b16 %v1280
      %v1313 = vunpack.c.l.b16 %v1281
      %v1314 = vunpack.c.l.b16 %v1282
      %v1315 = vunpack.c.l.b16 %v1283
      %v1316 = vunpack.c.l.b16 %v1284
      %v1317 = vunpack.c.l.b16 %v1285
      %v1318 = vunpack.c.l.b16 %v1286
      %v1319 = vunpack.c.l.b16 %v1287
      %v1320 = vunpack.c.l.b16 %v1288
      %v1321 = vunpack.c.l.b16 %v1289
      %v1322 = vunpack.c.l.b16 %v1290
      %v1323 = vunpack.c.l.b16 %v1291
      %v1324 = vunpack.c.l.b16 %v1292
      %v1325 = vunpack.c.l.b16 %v1293
      %v1326 = vunpack.c.l.b16 %v1294
      %v1327 = vunpack.c.l.b16 %v1295
      %v1328 = vunpack.c.l.b16 %v1296
      %v1329 = vpack.c.b16 %v1298, %v1297
      %v1330 = vpack.c.b16 %v1300, %v1299
      %v1331 = vpack.c.b16 %v1302, %v1301
      %v1332 = vpack.c.b16 %v1304, %v1303
      %v1333 = vpack.c.b16 %v1306, %v1305
      %v1334 = vpack.c.b16 %v1308, %v1307
      %v1335 = vpack.c.b16 %v1310, %v1309
      %v1336 = vpack.c.b16 %v1312, %v1311
      %v1337 = vpack.c.b16 %v1314, %v1313
      %v1338 = vpack.c.b16 %v1316, %v1315
      %v1339 = vpack.c.b16 %v1318, %v1317
      %v1340 = vpack.c.b16 %v1320, %v1319
      %v1341 = vpack.c.b16 %v1322, %v1321
      %v1342 = vpack.c.b16 %v1324, %v1323
      %v1343 = vpack.c.b16 %v1326, %v1325
      %v1344 = vpack.c.b16 %v1328, %v1327
      %vm1345 = vcmp.ne.s16.totalorder %v1329, 0
      %vm1346 = vcmp.ne.s16.totalorder %v1330, 0
      %vm1347 = vcmp.ne.s16.totalorder %v1331, 0
      %vm1348 = vcmp.ne.s16.totalorder %v1332, 0
      %vm1349 = vcmp.ne.s16.totalorder %v1333, 0
      %vm1350 = vcmp.ne.s16.totalorder %v1334, 0
      %vm1351 = vcmp.ne.s16.totalorder %v1335, 0
      %vm1352 = vcmp.ne.s16.totalorder %v1336, 0
      %vm1353 = vcmp.ne.s16.totalorder %v1337, 0
      %vm1354 = vcmp.ne.s16.totalorder %v1338, 0
      %vm1355 = vcmp.ne.s16.totalorder %v1339, 0
      %vm1356 = vcmp.ne.s16.totalorder %v1340, 0
      %vm1357 = vcmp.ne.s16.totalorder %v1341, 0
      %vm1358 = vcmp.ne.s16.totalorder %v1342, 0
      %vm1359 = vcmp.ne.s16.totalorder %v1343, 0
      %vm1360 = vcmp.ne.s16.totalorder %v1344, 0
      %v1361 = vsel %vm1345, %v1170, 0
      %v1362 = vsel %vm1346, %v1173, 0
      %v1363 = vsel %vm1347, %v1176, 0
      %v1364 = vsel %vm1348, %v1179, 0
      %v1365 = vsel %vm1349, %v1182, 0
      %v1366 = vsel %vm1350, %v1185, 0
      %v1367 = vsel %vm1351, %v1188, 0
      %v1368 = vsel %vm1352, %v1191, 0
      %v1369 = vsel %vm1353, %v1194, 0
      %v1370 = vsel %vm1354, %v1197, 0
      %v1371 = vsel %vm1355, %v1200, 0
      %v1372 = vsel %vm1356, %v1203, 0
      %v1373 = vsel %vm1357, %v1206, 0
      %v1374 = vsel %vm1358, %v1209, 0
      %v1375 = vsel %vm1359, %v1212, 0
      %v1376 = vsel %vm1360, %v1232, 0
      %v1377 = vld [vmem:[%s1] sm:$0xf]
      %v1378 = vld [vmem:[%s1 + $0x4] sm:$0xf]
      %v1379 = vld [vmem:[%s1 + $0x8] sm:$0xf]
      %v1380 = vld [vmem:[%s1 + $0xc] sm:$0xf]
      %v1381 = vld [vmem:[%s1 + $0x10] sm:$0xf]
      %v1382 = vld [vmem:[%s1 + $0x14] sm:$0xf]
      %v1383 = vld [vmem:[%s1 + $0x18] sm:$0xf]
      %v1384 = vld [vmem:[%s1 + $0x1c] sm:$0xf]
      %v1385 = vld [vmem:[%s1 + $0x20] sm:$0xf]
      %v1386 = vld [vmem:[%s1 + $0x24] sm:$0xf]
      %v1387 = vld [vmem:[%s1 + $0x28] sm:$0xf]
      %v1388 = vld [vmem:[%s1 + $0x2c] sm:$0xf]
      %v1389 = vld [vmem:[%s1 + $0x30] sm:$0xf]
      %v1390 = vld [vmem:[%s1 + $0x34] sm:$0xf]
      %v1391 = vld [vmem:[%s1 + $0x38] sm:$0xf]
      %v1392 = vld [vmem:[%s1 + $0x3c] sm:$0xf]
      %s1393 = scalar_lea.vmem %s1, 64
      %v1394 = vld [vmem:[%s1393] sm:$0xf]
      %v1395 = vld [vmem:[%s1393 + $0x4] sm:$0xf]
      %v1396 = vld [vmem:[%s1393 + $0x8] sm:$0xf]
      %v1397 = vld [vmem:[%s1393 + $0xc] sm:$0xf]
      %v1398 = vld [vmem:[%s1393 + $0x10] sm:$0xf]
      %v1399 = vld [vmem:[%s1393 + $0x14] sm:$0xf]
      %v1400 = vld [vmem:[%s1393 + $0x18] sm:$0xf]
      %v1401 = vld [vmem:[%s1393 + $0x1c] sm:$0xf]
      %v1402 = vld [vmem:[%s1393 + $0x20] sm:$0xf]
      %v1403 = vld [vmem:[%s1393 + $0x24] sm:$0xf]
      %v1404 = vld [vmem:[%s1393 + $0x28] sm:$0xf]
      %v1405 = vld [vmem:[%s1393 + $0x2c] sm:$0xf]
      %v1406 = vld [vmem:[%s1393 + $0x30] sm:$0xf]
      %v1407 = vld [vmem:[%s1393 + $0x34] sm:$0xf]
      %v1408 = vld [vmem:[%s1393 + $0x38] sm:$0xf]
      %v1409 = vld [vmem:[%s1393 + $0x3c] sm:$0xf]
      %v1442 = vunpack.c.l.b16 %v1394
      %v1443 = vunpack.c.l.b16 %v1395
      %v1444 = vunpack.c.l.b16 %v1396
      %v1445 = vunpack.c.l.b16 %v1397
      %v1446 = vunpack.c.l.b16 %v1398
      %v1447 = vunpack.c.l.b16 %v1399
      %v1448 = vunpack.c.l.b16 %v1400
      %v1449 = vunpack.c.l.b16 %v1401
      %v1450 = vunpack.c.l.b16 %v1402
      %v1451 = vunpack.c.l.b16 %v1403
      %v1452 = vunpack.c.l.b16 %v1404
      %v1453 = vunpack.c.l.b16 %v1405
      %v1454 = vunpack.c.l.b16 %v1406
      %v1455 = vunpack.c.l.b16 %v1407
      %v1456 = vunpack.c.l.b16 %v1408
      %v1457 = vunpack.c.l.b16 %v1409
      %v1458 = vpack.c.b16 %v1443, %v1442
      %v1459 = vpack.c.b16 %v1445, %v1444
      %v1460 = vpack.c.b16 %v1447, %v1446
      %v1461 = vpack.c.b16 %v1449, %v1448
      %v1462 = vpack.c.b16 %v1451, %v1450
      %v1463 = vpack.c.b16 %v1453, %v1452
      %v1464 = vpack.c.b16 %v1455, %v1454
      %v1465 = vpack.c.b16 %v1457, %v1456
      %1474 = vmatprep.subr.bf16.mxu0 0
      %1475 = vmatpush1.bf16.msra.mxu0 %v1458
      %1476 = vmatprep.subr.bf16.mxu0 0
      %1477 = vmatpush1.bf16.msra.mxu0 %v1459
      %1478 = vmatprep.subr.bf16.mxu0 0
      %1479 = vmatpush1.bf16.msra.mxu0 %v1460
      %1480 = vmatprep.subr.bf16.mxu0 0
      %1481 = vmatpush1.bf16.msra.mxu0 %v1461
      %1482 = vmatprep.subr.bf16.mxu0 0
      %1483 = vmatpush1.bf16.msra.mxu0 %v1462
      %1484 = vmatprep.subr.bf16.mxu0 0
      %1485 = vmatpush1.bf16.msra.mxu0 %v1463
      %1486 = vmatprep.subr.bf16.mxu0 0
      %1487 = vmatpush1.bf16.msra.mxu0 %v1464
      %1488 = vmatprep.subr.bf16.mxu0 0
      %1489 = vmatpush1.bf16.msra.mxu0 %v1465
      %1490 = vmatprep.subr.bf16.mxu0 0
      %1491 = vmatpush1.bf16.msra.mxu0 0
      %1492 = vmatprep.subr.bf16.mxu0 0
      %1493 = vmatpush1.bf16.msra.mxu0 0
      %1494 = vmatprep.subr.bf16.mxu0 0
      %1495 = vmatpush1.bf16.msra.mxu0 0
      %1496 = vmatprep.subr.bf16.mxu0 0
      %1497 = vmatpush1.bf16.msra.mxu0 0
      %1498 = vmatprep.subr.bf16.mxu0 0
      %1499 = vmatpush1.bf16.msra.mxu0 0
      %1500 = vmatprep.subr.bf16.mxu0 0
      %1501 = vmatpush1.bf16.msra.mxu0 0
      %1502 = vmatprep.subr.bf16.mxu0 0
      %1503 = vmatpush1.bf16.msra.mxu0 0
      %1504 = vmatprep.subr.bf16.mxu0 0
      %1505 = vmatpush1.bf16.msra.mxu0 0
      %1506 = vmatprep.mubr.bf16.mxu0 0
      %1507 = vmatmul.mubr.bf16.gmra.mrb[0].mxu0 %v859
      %v1508 = vpop.f32.mrb[0].mxu0
      %v1509 = vadd.f32 0.0, %v1508
      %v1510 = vpop.f32.mrb[0].mxu0
      %v1511 = vpop.f32.mrb[0].mxu0
      %v1512 = vadd.f32 0.0, %v1511
      %v1513 = vpop.f32.mrb[0].mxu0
      %1514 = vmatprep.mubr.bf16.mxu0 0
      %1515 = vmatmul.mubr.bf16.gmra.mrb[0].mxu0 %v860
      %v1516 = vpop.f32.mrb[0].mxu0
      %v1517 = vadd.f32 0.0, %v1516
      %v1518 = vpop.f32.mrb[0].mxu0
      %v1519 = vpop.f32.mrb[0].mxu0
      %v1520 = vadd.f32 0.0, %v1519
      %v1521 = vpop.f32.mrb[0].mxu0
      %1522 = vmatprep.mubr.bf16.mxu0 0
      %1523 = vmatmul.mubr.bf16.gmra.mrb[0].mxu0 %v861
      %v1524 = vpop.f32.mrb[0].mxu0
      %v1525 = vadd.f32 0.0, %v1524
      %v1526 = vpop.f32.mrb[0].mxu0
      %v1527 = vpop.f32.mrb[0].mxu0
      %v1528 = vadd.f32 0.0, %v1527
      %v1529 = vpop.f32.mrb[0].mxu0
      %1530 = vmatprep.mubr.bf16.mxu0 0
      %1531 = vmatmul.mubr.bf16.gmra.mrb[0].mxu0 %v862
      %v1532 = vpop.f32.mrb[0].mxu0
      %v1533 = vadd.f32 0.0, %v1532
      %v1534 = vpop.f32.mrb[0].mxu0
      %v1535 = vpop.f32.mrb[0].mxu0
      %v1536 = vadd.f32 0.0, %v1535
      %v1537 = vpop.f32.mrb[0].mxu0
      %1538 = vmatprep.mubr.bf16.mxu0 0
      %1539 = vmatmul.mubr.bf16.gmra.mrb[0].mxu0 %v863
      %v1540 = vpop.f32.mrb[0].mxu0
      %v1541 = vadd.f32 0.0, %v1540
      %v1542 = vpop.f32.mrb[0].mxu0
      %v1543 = vpop.f32.mrb[0].mxu0
      %v1544 = vadd.f32 0.0, %v1543
      %v1545 = vpop.f32.mrb[0].mxu0
      %1546 = vmatprep.mubr.bf16.mxu0 0
      %1547 = vmatmul.mubr.bf16.gmra.mrb[0].mxu0 %v864
      %v1548 = vpop.f32.mrb[0].mxu0
      %v1549 = vadd.f32 0.0, %v1548
      %v1550 = vpop.f32.mrb[0].mxu0
      %v1551 = vpop.f32.mrb[0].mxu0
      %v1552 = vadd.f32 0.0, %v1551
      %v1553 = vpop.f32.mrb[0].mxu0
      %1554 = vmatprep.mubr.bf16.mxu0 0
      %1555 = vmatmul.mubr.bf16.gmra.mrb[0].mxu0 %v865
      %v1556 = vpop.f32.mrb[0].mxu0
      %v1557 = vadd.f32 0.0, %v1556
      %v1558 = vpop.f32.mrb[0].mxu0
      %v1559 = vpop.f32.mrb[0].mxu0
      %v1560 = vadd.f32 0.0, %v1559
      %v1561 = vpop.f32.mrb[0].mxu0
      %1562 = vmatprep.mubr.bf16.mxu0 0
      %1563 = vmatmul.mubr.bf16.gmra.mrb[0].mxu0 %v866
      %v1564 = vpop.f32.mrb[0].mxu0
      %v1565 = vadd.f32 0.0, %v1564
      %v1566 = vpop.f32.mrb[0].mxu0
      %v1567 = vpop.f32.mrb[0].mxu0
      %v1568 = vadd.f32 0.0, %v1567
      %v1569 = vpop.f32.mrb[0].mxu0
      %1570 = vmatprep.mubr.bf16.mxu0 0
      %1571 = vmatmul.mubr.bf16.gmra.mrb[0].mxu0 %v867
      %v1572 = vpop.f32.mrb[0].mxu0
      %v1573 = vadd.f32 0.0, %v1572
      %v1574 = vpop.f32.mrb[0].mxu0
      %v1575 = vpop.f32.mrb[0].mxu0
      %v1576 = vadd.f32 0.0, %v1575
      %v1577 = vpop.f32.mrb[0].mxu0
      %1578 = vmatprep.mubr.bf16.mxu0 0
      %1579 = vmatmul.mubr.bf16.gmra.mrb[0].mxu0 %v868
      %v1580 = vpop.f32.mrb[0].mxu0
      %v1581 = vadd.f32 0.0, %v1580
      %v1582 = vpop.f32.mrb[0].mxu0
      %v1583 = vpop.f32.mrb[0].mxu0
      %v1584 = vadd.f32 0.0, %v1583
      %v1585 = vpop.f32.mrb[0].mxu0
      %1586 = vmatprep.mubr.bf16.mxu0 0
      %1587 = vmatmul.mubr.bf16.gmra.mrb[0].mxu0 %v869
      %v1588 = vpop.f32.mrb[0].mxu0
      %v1589 = vadd.f32 0.0, %v1588
      %v1590 = vpop.f32.mrb[0].mxu0
      %v1591 = vpop.f32.mrb[0].mxu0
      %v1592 = vadd.f32 0.0, %v1591
      %v1593 = vpop.f32.mrb[0].mxu0
      %1594 = vmatprep.mubr.bf16.mxu0 0
      %1595 = vmatmul.mubr.bf16.gmra.mrb[0].mxu0 %v870
      %v1596 = vpop.f32.mrb[0].mxu0
      %v1597 = vadd.f32 0.0, %v1596
      %v1598 = vpop.f32.mrb[0].mxu0
      %v1599 = vpop.f32.mrb[0].mxu0
      %v1600 = vadd.f32 0.0, %v1599
      %v1601 = vpop.f32.mrb[0].mxu0
      %1602 = vmatprep.mubr.bf16.mxu0 0
      %1603 = vmatmul.mubr.bf16.gmra.mrb[0].mxu0 %v871
      %v1604 = vpop.f32.mrb[0].mxu0
      %v1605 = vadd.f32 0.0, %v1604
      %v1606 = vpop.f32.mrb[0].mxu0
      %v1607 = vpop.f32.mrb[0].mxu0
      %v1608 = vadd.f32 0.0, %v1607
      %v1609 = vpop.f32.mrb[0].mxu0
      %1610 = vmatprep.mubr.bf16.mxu0 0
      %1611 = vmatmul.mubr.bf16.gmra.mrb[0].mxu0 %v872
      %v1612 = vpop.f32.mrb[0].mxu0
      %v1613 = vadd.f32 0.0, %v1612
      %v1614 = vpop.f32.mrb[0].mxu0
      %v1615 = vpop.f32.mrb[0].mxu0
      %v1616 = vadd.f32 0.0, %v1615
      %v1617 = vpop.f32.mrb[0].mxu0
      %1618 = vmatprep.mubr.bf16.mxu0 0
      %1619 = vmatmul.mubr.bf16.gmra.mrb[0].mxu0 %v873
      %v1620 = vpop.f32.mrb[0].mxu0
      %v1621 = vadd.f32 0.0, %v1620
      %v1622 = vpop.f32.mrb[0].mxu0
      %v1623 = vpop.f32.mrb[0].mxu0
      %v1624 = vadd.f32 0.0, %v1623
      %v1625 = vpop.f32.mrb[0].mxu0
      %1626 = vmatprep.mubr.bf16.mxu0 0
      %1627 = vmatmul.mubr.bf16.gmra.mrb[0].mxu0 %v874
      %v1628 = vpop.f32.mrb[0].mxu0
      %v1629 = vadd.f32 0.0, %v1628
      %v1630 = vpop.f32.mrb[0].mxu0
      %v1631 = vpop.f32.mrb[0].mxu0
      %v1632 = vadd.f32 0.0, %v1631
      %v1633 = vpop.f32.mrb[0].mxu0
      %1634 = vdwg.mxu0
      %v1651 = vunpack.c.l.b16 %v1377
      %v1652 = vunpack.c.l.b16 %v1378
      %v1653 = vunpack.c.l.b16 %v1379
      %v1654 = vunpack.c.l.b16 %v1380
      %v1655 = vunpack.c.l.b16 %v1381
      %v1656 = vunpack.c.l.b16 %v1382
      %v1657 = vunpack.c.l.b16 %v1383
      %v1658 = vunpack.c.l.b16 %v1384
      %v1659 = vunpack.c.l.b16 %v1385
      %v1660 = vunpack.c.l.b16 %v1386
      %v1661 = vunpack.c.l.b16 %v1387
      %v1662 = vunpack.c.l.b16 %v1388
      %v1663 = vunpack.c.l.b16 %v1389
      %v1664 = vunpack.c.l.b16 %v1390
      %v1665 = vunpack.c.l.b16 %v1391
      %v1666 = vunpack.c.l.b16 %v1392
      %v1667 = vpack.c.b16 %v1652, %v1651
      %v1668 = vpack.c.b16 %v1654, %v1653
      %v1669 = vpack.c.b16 %v1656, %v1655
      %v1670 = vpack.c.b16 %v1658, %v1657
      %v1671 = vpack.c.b16 %v1660, %v1659
      %v1672 = vpack.c.b16 %v1662, %v1661
      %v1673 = vpack.c.b16 %v1664, %v1663
      %v1674 = vpack.c.b16 %v1666, %v1665
      %1683 = vmatprep.subr.bf16.mxu0 0
      %1684 = vmatpush1.bf16.msra.mxu0 %v1667
      %1685 = vmatprep.subr.bf16.mxu0 0
      %1686 = vmatpush1.bf16.msra.mxu0 %v1668
      %1687 = vmatprep.subr.bf16.mxu0 0
      %1688 = vmatpush1.bf16.msra.mxu0 %v1669
      %1689 = vmatprep.subr.bf16.mxu0 0
      %1690 = vmatpush1.bf16.msra.mxu0 %v1670
      %1691 = vmatprep.subr.bf16.mxu0 0
      %1692 = vmatpush1.bf16.msra.mxu0 %v1671
      %1693 = vmatprep.subr.bf16.mxu0 0
      %1694 = vmatpush1.bf16.msra.mxu0 %v1672
      %1695 = vmatprep.subr.bf16.mxu0 0
      %1696 = vmatpush1.bf16.msra.mxu0 %v1673
      %1697 = vmatprep.subr.bf16.mxu0 0
      %1698 = vmatpush1.bf16.msra.mxu0 %v1674
      %1699 = vmatprep.subr.bf16.mxu0 0
      %1700 = vmatpush1.bf16.msra.mxu0 0
      %1701 = vmatprep.subr.bf16.mxu0 0
      %1702 = vmatpush1.bf16.msra.mxu0 0
      %1703 = vmatprep.subr.bf16.mxu0 0
      %1704 = vmatpush1.bf16.msra.mxu0 0
      %1705 = vmatprep.subr.bf16.mxu0 0
      %1706 = vmatpush1.bf16.msra.mxu0 0
      %1707 = vmatprep.subr.bf16.mxu0 0
      %1708 = vmatpush1.bf16.msra.mxu0 0
      %1709 = vmatprep.subr.bf16.mxu0 0
      %1710 = vmatpush1.bf16.msra.mxu0 0
      %1711 = vmatprep.subr.bf16.mxu0 0
      %1712 = vmatpush1.bf16.msra.mxu0 0
      %1713 = vmatprep.subr.bf16.mxu0 0
      %1714 = vmatpush1.bf16.msra.mxu0 0
      %1715 = vmatprep.mubr.bf16.mxu0 0
      %1716 = vmatmul.mubr.bf16.gmra.mrb[0].mxu0 %v1150
      %v1717 = vpop.f32.mrb[0].mxu0
      %v1718 = vadd.f32 %v1509, %v1717
      %v1719 = vpop.f32.mrb[0].mxu0
      %v1720 = vpop.f32.mrb[0].mxu0
      %v1721 = vadd.f32 %v1512, %v1720
      %v1722 = vpop.f32.mrb[0].mxu0
      %1723 = vmatprep.mubr.bf16.mxu0 0
      %1724 = vmatmul.mubr.bf16.gmra.mrb[0].mxu0 %v1151
      %v1725 = vpop.f32.mrb[0].mxu0
      %v1726 = vadd.f32 %v1517, %v1725
      %v1727 = vpop.f32.mrb[0].mxu0
      %v1728 = vpop.f32.mrb[0].mxu0
      %v1729 = vadd.f32 %v1520, %v1728
      %v1730 = vpop.f32.mrb[0].mxu0
      %1731 = vmatprep.mubr.bf16.mxu0 0
      %1732 = vmatmul.mubr.bf16.gmra.mrb[0].mxu0 %v1152
      %v1733 = vpop.f32.mrb[0].mxu0
      %v1734 = vadd.f32 %v1525, %v1733
      %v1735 = vpop.f32.mrb[0].mxu0
      %v1736 = vpop.f32.mrb[0].mxu0
      %v1737 = vadd.f32 %v1528, %v1736
      %v1738 = vpop.f32.mrb[0].mxu0
      %1739 = vmatprep.mubr.bf16.mxu0 0
      %1740 = vmatmul.mubr.bf16.gmra.mrb[0].mxu0 %v1153
      %v1741 = vpop.f32.mrb[0].mxu0
      %v1742 = vadd.f32 %v1533, %v1741
      %v1743 = vpop.f32.mrb[0].mxu0
      %v1744 = vpop.f32.mrb[0].mxu0
      %v1745 = vadd.f32 %v1536, %v1744
      %v1746 = vpop.f32.mrb[0].mxu0
      %1747 = vmatprep.mubr.bf16.mxu0 0
      %1748 = vmatmul.mubr.bf16.gmra.mrb[0].mxu0 %v1154
      %v1749 = vpop.f32.mrb[0].mxu0
      %v1750 = vadd.f32 %v1541, %v1749
      %v1751 = vpop.f32.mrb[0].mxu0
      %v1752 = vpop.f32.mrb[0].mxu0
      %v1753 = vadd.f32 %v1544, %v1752
      %v1754 = vpop.f32.mrb[0].mxu0
      %1755 = vmatprep.mubr.bf16.mxu0 0
      %1756 = vmatmul.mubr.bf16.gmra.mrb[0].mxu0 %v1155
      %v1757 = vpop.f32.mrb[0].mxu0
      %v1758 = vadd.f32 %v1549, %v1757
      %v1759 = vpop.f32.mrb[0].mxu0
      %v1760 = vpop.f32.mrb[0].mxu0
      %v1761 = vadd.f32 %v1552, %v1760
      %v1762 = vpop.f32.mrb[0].mxu0
      %1763 = vmatprep.mubr.bf16.mxu0 0
      %1764 = vmatmul.mubr.bf16.gmra.mrb[0].mxu0 %v1156
      %v1765 = vpop.f32.mrb[0].mxu0
      %v1766 = vadd.f32 %v1557, %v1765
      %v1767 = vpop.f32.mrb[0].mxu0
      %v1768 = vpop.f32.mrb[0].mxu0
      %v1769 = vadd.f32 %v1560, %v1768
      %v1770 = vpop.f32.mrb[0].mxu0
      %1771 = vmatprep.mubr.bf16.mxu0 0
      %1772 = vmatmul.mubr.bf16.gmra.mrb[0].mxu0 %v1157
      %v1773 = vpop.f32.mrb[0].mxu0
      %v1774 = vadd.f32 %v1565, %v1773
      %v1775 = vpop.f32.mrb[0].mxu0
      %v1776 = vpop.f32.mrb[0].mxu0
      %v1777 = vadd.f32 %v1568, %v1776
      %v1778 = vpop.f32.mrb[0].mxu0
      %1779 = vmatprep.mubr.bf16.mxu0 0
      %1780 = vmatmul.mubr.bf16.gmra.mrb[0].mxu0 %v1158
      %v1781 = vpop.f32.mrb[0].mxu0
      %v1782 = vadd.f32 %v1573, %v1781
      %v1783 = vpop.f32.mrb[0].mxu0
      %v1784 = vpop.f32.mrb[0].mxu0
      %v1785 = vadd.f32 %v1576, %v1784
      %v1786 = vpop.f32.mrb[0].mxu0
      %1787 = vmatprep.mubr.bf16.mxu0 0
      %1788 = vmatmul.mubr.bf16.gmra.mrb[0].mxu0 %v1159
      %v1789 = vpop.f32.mrb[0].mxu0
      %v1790 = vadd.f32 %v1581, %v1789
      %v1791 = vpop.f32.mrb[0].mxu0
      %v1792 = vpop.f32.mrb[0].mxu0
      %v1793 = vadd.f32 %v1584, %v1792
      %v1794 = vpop.f32.mrb[0].mxu0
      %1795 = vmatprep.mubr.bf16.mxu0 0
      %1796 = vmatmul.mubr.bf16.gmra.mrb[0].mxu0 %v1160
      %v1797 = vpop.f32.mrb[0].mxu0
      %v1798 = vadd.f32 %v1589, %v1797
      %v1799 = vpop.f32.mrb[0].mxu0
      %v1800 = vpop.f32.mrb[0].mxu0
      %v1801 = vadd.f32 %v1592, %v1800
      %v1802 = vpop.f32.mrb[0].mxu0
      %1803 = vmatprep.mubr.bf16.mxu0 0
      %1804 = vmatmul.mubr.bf16.gmra.mrb[0].mxu0 %v1161
      %v1805 = vpop.f32.mrb[0].mxu0
      %v1806 = vadd.f32 %v1597, %v1805
      %v1807 = vpop.f32.mrb[0].mxu0
      %v1808 = vpop.f32.mrb[0].mxu0
      %v1809 = vadd.f32 %v1600, %v1808
      %v1810 = vpop.f32.mrb[0].mxu0
      %1811 = vmatprep.mubr.bf16.mxu0 0
      %1812 = vmatmul.mubr.bf16.gmra.mrb[0].mxu0 %v1162
      %v1813 = vpop.f32.mrb[0].mxu0
      %v1814 = vadd.f32 %v1605, %v1813
      %v1815 = vpop.f32.mrb[0].mxu0
      %v1816 = vpop.f32.mrb[0].mxu0
      %v1817 = vadd.f32 %v1608, %v1816
      %v1818 = vpop.f32.mrb[0].mxu0
      %1819 = vmatprep.mubr.bf16.mxu0 0
      %1820 = vmatmul.mubr.bf16.gmra.mrb[0].mxu0 %v1163
      %v1821 = vpop.f32.mrb[0].mxu0
      %v1822 = vadd.f32 %v1613, %v1821
      %v1823 = vpop.f32.mrb[0].mxu0
      %v1824 = vpop.f32.mrb[0].mxu0
      %v1825 = vadd.f32 %v1616, %v1824
      %v1826 = vpop.f32.mrb[0].mxu0
      %1827 = vmatprep.mubr.bf16.mxu0 0
      %1828 = vmatmul.mubr.bf16.gmra.mrb[0].mxu0 %v1164
      %v1829 = vpop.f32.mrb[0].mxu0
      %v1830 = vadd.f32 %v1621, %v1829
      %v1831 = vpop.f32.mrb[0].mxu0
      %v1832 = vpop.f32.mrb[0].mxu0
      %v1833 = vadd.f32 %v1624, %v1832
      %v1834 = vpop.f32.mrb[0].mxu0
      %1835 = vmatprep.mubr.bf16.mxu0 0
      %1836 = vmatmul.mubr.bf16.gmra.mrb[0].mxu0 %v1165
      %v1837 = vpop.f32.mrb[0].mxu0
      %v1838 = vadd.f32 %v1629, %v1837
      %v1839 = vpop.f32.mrb[0].mxu0
      %v1840 = vpop.f32.mrb[0].mxu0
      %v1841 = vadd.f32 %v1632, %v1840
      %v1842 = vpop.f32.mrb[0].mxu0
      %1843 = vdwg.mxu0
      %s1844 = scalar_lea.vmem %s1, 128
      %v1845 = vld [vmem:[%s1844] sm:$0xf]
      %v1846 = vld [vmem:[%s1844 + $0x4] sm:$0xf]
      %v1847 = vld [vmem:[%s1844 + $0x8] sm:$0xf]
      %v1848 = vld [vmem:[%s1844 + $0xc] sm:$0xf]
      %v1849 = vld [vmem:[%s1844 + $0x10] sm:$0xf]
      %v1850 = vld [vmem:[%s1844 + $0x14] sm:$0xf]
      %v1851 = vld [vmem:[%s1844 + $0x18] sm:$0xf]
      %v1852 = vld [vmem:[%s1844 + $0x1c] sm:$0xf]
      %v1853 = vld [vmem:[%s1844 + $0x20] sm:$0xf]
      %v1854 = vld [vmem:[%s1844 + $0x24] sm:$0xf]
      %v1855 = vld [vmem:[%s1844 + $0x28] sm:$0xf]
      %v1856 = vld [vmem:[%s1844 + $0x2c] sm:$0xf]
      %v1857 = vld [vmem:[%s1844 + $0x30] sm:$0xf]
      %v1858 = vld [vmem:[%s1844 + $0x34] sm:$0xf]
      %v1859 = vld [vmem:[%s1844 + $0x38] sm:$0xf]
      %v1860 = vld [vmem:[%s1844 + $0x3c] sm:$0xf]
      %v1877 = vunpack.c.l.b16 %v1845
      %v1878 = vunpack.c.l.b16 %v1846
      %v1879 = vunpack.c.l.b16 %v1847
      %v1880 = vunpack.c.l.b16 %v1848
      %v1881 = vunpack.c.l.b16 %v1849
      %v1882 = vunpack.c.l.b16 %v1850
      %v1883 = vunpack.c.l.b16 %v1851
      %v1884 = vunpack.c.l.b16 %v1852
      %v1885 = vunpack.c.l.b16 %v1853
      %v1886 = vunpack.c.l.b16 %v1854
      %v1887 = vunpack.c.l.b16 %v1855
      %v1888 = vunpack.c.l.b16 %v1856
      %v1889 = vunpack.c.l.b16 %v1857
      %v1890 = vunpack.c.l.b16 %v1858
      %v1891 = vunpack.c.l.b16 %v1859
      %v1892 = vunpack.c.l.b16 %v1860
      %v1893 = vpack.c.b16 %v1878, %v1877
      %v1894 = vpack.c.b16 %v1880, %v1879
      %v1895 = vpack.c.b16 %v1882, %v1881
      %v1896 = vpack.c.b16 %v1884, %v1883
      %v1897 = vpack.c.b16 %v1886, %v1885
      %v1898 = vpack.c.b16 %v1888, %v1887
      %v1899 = vpack.c.b16 %v1890, %v1889
      %v1900 = vpack.c.b16 %v1892, %v1891
      %1909 = vmatprep.subr.bf16.mxu0 0
      %1910 = vmatpush1.bf16.msra.mxu0 %v1893
      %1911 = vmatprep.subr.bf16.mxu0 0
      %1912 = vmatpush1.bf16.msra.mxu0 %v1894
      %1913 = vmatprep.subr.bf16.mxu0 0
      %1914 = vmatpush1.bf16.msra.mxu0 %v1895
      %1915 = vmatprep.subr.bf16.mxu0 0
      %1916 = vmatpush1.bf16.msra.mxu0 %v1896
      %1917 = vmatprep.subr.bf16.mxu0 0
      %1918 = vmatpush1.bf16.msra.mxu0 %v1897
      %1919 = vmatprep.subr.bf16.mxu0 0
      %1920 = vmatpush1.bf16.msra.mxu0 %v1898
      %1921 = vmatprep.subr.bf16.mxu0 0
      %1922 = vmatpush1.bf16.msra.mxu0 %v1899
      %1923 = vmatprep.subr.bf16.mxu0 0
      %1924 = vmatpush1.bf16.msra.mxu0 %v1900
      %1925 = vmatprep.subr.bf16.mxu0 0
      %1926 = vmatpush1.bf16.msra.mxu0 0
      %1927 = vmatprep.subr.bf16.mxu0 0
      %1928 = vmatpush1.bf16.msra.mxu0 0
      %1929 = vmatprep.subr.bf16.mxu0 0
      %1930 = vmatpush1.bf16.msra.mxu0 0
      %1931 = vmatprep.subr.bf16.mxu0 0
      %1932 = vmatpush1.bf16.msra.mxu0 0
      %1933 = vmatprep.subr.bf16.mxu0 0
      %1934 = vmatpush1.bf16.msra.mxu0 0
      %1935 = vmatprep.subr.bf16.mxu0 0
      %1936 = vmatpush1.bf16.msra.mxu0 0
      %1937 = vmatprep.subr.bf16.mxu0 0
      %1938 = vmatpush1.bf16.msra.mxu0 0
      %1939 = vmatprep.subr.bf16.mxu0 0
      %1940 = vmatpush1.bf16.msra.mxu0 0
      %1941 = vmatprep.mubr.bf16.mxu0 0
      %1942 = vmatmul.mubr.bf16.gmra.mrb[0].mxu0 %v1361
      %v1943 = vpop.f32.mrb[0].mxu0
      %v1944 = vadd.f32 0.0, %v1943
      %v1945 = vpop.f32.mrb[0].mxu0
      %v1946 = vpop.f32.mrb[0].mxu0
      %v1947 = vadd.f32 0.0, %v1946
      %v1948 = vpop.f32.mrb[0].mxu0
      %1949 = vmatprep.mubr.bf16.mxu0 0
      %1950 = vmatmul.mubr.bf16.gmra.mrb[0].mxu0 %v1362
      %v1951 = vpop.f32.mrb[0].mxu0
      %v1952 = vadd.f32 0.0, %v1951
      %v1953 = vpop.f32.mrb[0].mxu0
      %v1954 = vpop.f32.mrb[0].mxu0
      %v1955 = vadd.f32 0.0, %v1954
      %v1956 = vpop.f32.mrb[0].mxu0
      %1957 = vmatprep.mubr.bf16.mxu0 0
      %1958 = vmatmul.mubr.bf16.gmra.mrb[0].mxu0 %v1363
      %v1959 = vpop.f32.mrb[0].mxu0
      %v1960 = vadd.f32 0.0, %v1959
      %v1961 = vpop.f32.mrb[0].mxu0
      %v1962 = vpop.f32.mrb[0].mxu0
      %v1963 = vadd.f32 0.0, %v1962
      %v1964 = vpop.f32.mrb[0].mxu0
      %1965 = vmatprep.mubr.bf16.mxu0 0
      %1966 = vmatmul.mubr.bf16.gmra.mrb[0].mxu0 %v1364
      %v1967 = vpop.f32.mrb[0].mxu0
      %v1968 = vadd.f32 0.0, %v1967
      %v1969 = vpop.f32.mrb[0].mxu0
      %v1970 = vpop.f32.mrb[0].mxu0
      %v1971 = vadd.f32 0.0, %v1970
      %v1972 = vpop.f32.mrb[0].mxu0
      %1973 = vmatprep.mubr.bf16.mxu0 0
      %1974 = vmatmul.mubr.bf16.gmra.mrb[0].mxu0 %v1365
      %v1975 = vpop.f32.mrb[0].mxu0
      %v1976 = vadd.f32 0.0, %v1975
      %v1977 = vpop.f32.mrb[0].mxu0
      %v1978 = vpop.f32.mrb[0].mxu0
      %v1979 = vadd.f32 0.0, %v1978
      %v1980 = vpop.f32.mrb[0].mxu0
      %1981 = vmatprep.mubr.bf16.mxu0 0
      %1982 = vmatmul.mubr.bf16.gmra.mrb[0].mxu0 %v1366
      %v1983 = vpop.f32.mrb[0].mxu0
      %v1984 = vadd.f32 0.0, %v1983
      %v1985 = vpop.f32.mrb[0].mxu0
      %v1986 = vpop.f32.mrb[0].mxu0
      %v1987 = vadd.f32 0.0, %v1986
      %v1988 = vpop.f32.mrb[0].mxu0
      %1989 = vmatprep.mubr.bf16.mxu0 0
      %1990 = vmatmul.mubr.bf16.gmra.mrb[0].mxu0 %v1367
      %v1991 = vpop.f32.mrb[0].mxu0
      %v1992 = vadd.f32 0.0, %v1991
      %v1993 = vpop.f32.mrb[0].mxu0
      %v1994 = vpop.f32.mrb[0].mxu0
      %v1995 = vadd.f32 0.0, %v1994
      %v1996 = vpop.f32.mrb[0].mxu0
      %1997 = vmatprep.mubr.bf16.mxu0 0
      %1998 = vmatmul.mubr.bf16.gmra.mrb[0].mxu0 %v1368
      %v1999 = vpop.f32.mrb[0].mxu0
      %v2000 = vadd.f32 0.0, %v1999
      %v2001 = vpop.f32.mrb[0].mxu0
      %v2002 = vpop.f32.mrb[0].mxu0
      %v2003 = vadd.f32 0.0, %v2002
      %v2004 = vpop.f32.mrb[0].mxu0
      %2005 = vmatprep.mubr.bf16.mxu0 0
      %2006 = vmatmul.mubr.bf16.gmra.mrb[0].mxu0 %v1369
      %v2007 = vpop.f32.mrb[0].mxu0
      %v2008 = vadd.f32 0.0, %v2007
      %v2009 = vpop.f32.mrb[0].mxu0
      %v2010 = vpop.f32.mrb[0].mxu0
      %v2011 = vadd.f32 0.0, %v2010
      %v2012 = vpop.f32.mrb[0].mxu0
      %2013 = vmatprep.mubr.bf16.mxu0 0
      %2014 = vmatmul.mubr.bf16.gmra.mrb[0].mxu0 %v1370
      %v2015 = vpop.f32.mrb[0].mxu0
      %v2016 = vadd.f32 0.0, %v2015
      %v2017 = vpop.f32.mrb[0].mxu0
      %v2018 = vpop.f32.mrb[0].mxu0
      %v2019 = vadd.f32 0.0, %v2018
      %v2020 = vpop.f32.mrb[0].mxu0
      %2021 = vmatprep.mubr.bf16.mxu0 0
      %2022 = vmatmul.mubr.bf16.gmra.mrb[0].mxu0 %v1371
      %v2023 = vpop.f32.mrb[0].mxu0
      %v2024 = vadd.f32 0.0, %v2023
      %v2025 = vpop.f32.mrb[0].mxu0
      %v2026 = vpop.f32.mrb[0].mxu0
      %v2027 = vadd.f32 0.0, %v2026
      %v2028 = vpop.f32.mrb[0].mxu0
      %2029 = vmatprep.mubr.bf16.mxu0 0
      %2030 = vmatmul.mubr.bf16.gmra.mrb[0].mxu0 %v1372
      %v2031 = vpop.f32.mrb[0].mxu0
      %v2032 = vadd.f32 0.0, %v2031
      %v2033 = vpop.f32.mrb[0].mxu0
      %v2034 = vpop.f32.mrb[0].mxu0
      %v2035 = vadd.f32 0.0, %v2034
      %v2036 = vpop.f32.mrb[0].mxu0
      %2037 = vmatprep.mubr.bf16.mxu0 0
      %2038 = vmatmul.mubr.bf16.gmra.mrb[0].mxu0 %v1373
      %v2039 = vpop.f32.mrb[0].mxu0
      %v2040 = vadd.f32 0.0, %v2039
      %v2041 = vpop.f32.mrb[0].mxu0
      %v2042 = vpop.f32.mrb[0].mxu0
      %v2043 = vadd.f32 0.0, %v2042
      %v2044 = vpop.f32.mrb[0].mxu0
      %2045 = vmatprep.mubr.bf16.mxu0 0
      %2046 = vmatmul.mubr.bf16.gmra.mrb[0].mxu0 %v1374
      %v2047 = vpop.f32.mrb[0].mxu0
      %v2048 = vadd.f32 0.0, %v2047
      %v2049 = vpop.f32.mrb[0].mxu0
      %v2050 = vpop.f32.mrb[0].mxu0
      %v2051 = vadd.f32 0.0, %v2050
      %v2052 = vpop.f32.mrb[0].mxu0
      %2053 = vmatprep.mubr.bf16.mxu0 0
      %2054 = vmatmul.mubr.bf16.gmra.mrb[0].mxu0 %v1375
      %v2055 = vpop.f32.mrb[0].mxu0
      %v2056 = vadd.f32 0.0, %v2055
      %v2057 = vpop.f32.mrb[0].mxu0
      %v2058 = vpop.f32.mrb[0].mxu0
      %v2059 = vadd.f32 0.0, %v2058
      %v2060 = vpop.f32.mrb[0].mxu0
      %2061 = vmatprep.mubr.bf16.mxu0 0
      %2062 = vmatmul.mubr.bf16.gmra.mrb[0].mxu0 %v1376
      %v2063 = vpop.f32.mrb[0].mxu0
      %v2064 = vadd.f32 0.0, %v2063
      %v2065 = vpop.f32.mrb[0].mxu0
      %v2066 = vpop.f32.mrb[0].mxu0
      %v2067 = vadd.f32 0.0, %v2066
      %v2068 = vpop.f32.mrb[0].mxu0
      %2069 = vdwg.mxu0
      %v2070 = vadd.f32 %v1718, %v1944
      %v2071 = vadd.f32 %v1721, %v1947
      %v2072 = vadd.f32 %v1726, %v1952
      %v2073 = vadd.f32 %v1729, %v1955
      %v2074 = vadd.f32 %v1734, %v1960
      %v2075 = vadd.f32 %v1737, %v1963
      %v2076 = vadd.f32 %v1742, %v1968
      %v2077 = vadd.f32 %v1745, %v1971
      %v2078 = vadd.f32 %v1750, %v1976
      %v2079 = vadd.f32 %v1753, %v1979
      %v2080 = vadd.f32 %v1758, %v1984
      %v2081 = vadd.f32 %v1761, %v1987
      %v2082 = vadd.f32 %v1766, %v1992
      %v2083 = vadd.f32 %v1769, %v1995
      %v2084 = vadd.f32 %v1774, %v2000
      %v2085 = vadd.f32 %v1777, %v2003
      %v2086 = vadd.f32 %v1782, %v2008
      %v2087 = vadd.f32 %v1785, %v2011
      %v2088 = vadd.f32 %v1790, %v2016
      %v2089 = vadd.f32 %v1793, %v2019
      %v2090 = vadd.f32 %v1798, %v2024
      %v2091 = vadd.f32 %v1801, %v2027
      %v2092 = vadd.f32 %v1806, %v2032
      %v2093 = vadd.f32 %v1809, %v2035
      %v2094 = vadd.f32 %v1814, %v2040
      %v2095 = vadd.f32 %v1817, %v2043
      %v2096 = vadd.f32 %v1822, %v2048
      %v2097 = vadd.f32 %v1825, %v2051
      %v2098 = vadd.f32 %v1830, %v2056
      %v2099 = vadd.f32 %v1833, %v2059
      %v2100 = vadd.f32 %v1838, %v2064
      %v2101 = vadd.f32 %v1841, %v2067
      %v2102 = vld [vmem:[%s3] sm:$0x1]
      %v2104 = vlaneseq
      %v2105 = vshrl.u32 %v2104, 7
      %v2106 = vsub.s32 0, %v2105
      %v2107 = vrot.slane %v2102, %v2106
      %v2109 = vmul.f32 %v2070, %v2107
      %v2110 = vmul.f32 %v2071, %v2107
      %v2111 = vmul.f32 %v2072, %v2107
      %v2112 = vmul.f32 %v2073, %v2107
      %v2113 = vmul.f32 %v2074, %v2107
      %v2114 = vmul.f32 %v2075, %v2107
      %v2115 = vmul.f32 %v2076, %v2107
      %v2116 = vmul.f32 %v2077, %v2107
      %v2117 = vmul.f32 %v2078, %v2107
      %v2118 = vmul.f32 %v2079, %v2107
      %v2119 = vmul.f32 %v2080, %v2107
      %v2120 = vmul.f32 %v2081, %v2107
      %v2121 = vmul.f32 %v2082, %v2107
      %v2122 = vmul.f32 %v2083, %v2107
      %v2123 = vmul.f32 %v2084, %v2107
      %v2124 = vmul.f32 %v2085, %v2107
      %v2125 = vmul.f32 %v2086, %v2107
      %v2126 = vmul.f32 %v2087, %v2107
      %v2127 = vmul.f32 %v2088, %v2107
      %v2128 = vmul.f32 %v2089, %v2107
      %v2129 = vmul.f32 %v2090, %v2107
      %v2130 = vmul.f32 %v2091, %v2107
      %v2131 = vmul.f32 %v2092, %v2107
      %v2132 = vmul.f32 %v2093, %v2107
      %v2133 = vmul.f32 %v2094, %v2107
      %v2134 = vmul.f32 %v2095, %v2107
      %v2135 = vmul.f32 %v2096, %v2107
      %v2136 = vmul.f32 %v2097, %v2107
      %v2137 = vmul.f32 %v2098, %v2107
      %v2138 = vmul.f32 %v2099, %v2107
      %v2139 = vmul.f32 %v2100, %v2107
      %v2140 = vmul.f32 %v2101, %v2107
      %v2141 = vld [vmem:[%s4] sm:$0x1]
      %v2143 = vlaneseq
      %v2144 = vshrl.u32 %v2143, 7
      %v2145 = vsub.s32 0, %v2144
      %v2146 = vrot.slane %v2141, %v2145
      %v2148 = vadd.f32 %v2109, %v2146
      %v2149 = vadd.f32 %v2110, %v2146
      %v2150 = vadd.f32 %v2111, %v2146
      %v2151 = vadd.f32 %v2112, %v2146
      %v2152 = vadd.f32 %v2113, %v2146
      %v2153 = vadd.f32 %v2114, %v2146
      %v2154 = vadd.f32 %v2115, %v2146
      %v2155 = vadd.f32 %v2116, %v2146
      %v2156 = vadd.f32 %v2117, %v2146
      %v2157 = vadd.f32 %v2118, %v2146
      %v2158 = vadd.f32 %v2119, %v2146
      %v2159 = vadd.f32 %v2120, %v2146
      %v2160 = vadd.f32 %v2121, %v2146
      %v2161 = vadd.f32 %v2122, %v2146
      %v2162 = vadd.f32 %v2123, %v2146
      %v2163 = vadd.f32 %v2124, %v2146
      %v2164 = vadd.f32 %v2125, %v2146
      %v2165 = vadd.f32 %v2126, %v2146
      %v2166 = vadd.f32 %v2127, %v2146
      %v2167 = vadd.f32 %v2128, %v2146
      %v2168 = vadd.f32 %v2129, %v2146
      %v2169 = vadd.f32 %v2130, %v2146
      %v2170 = vadd.f32 %v2131, %v2146
      %v2171 = vadd.f32 %v2132, %v2146
      %v2172 = vadd.f32 %v2133, %v2146
      %v2173 = vadd.f32 %v2134, %v2146
      %v2174 = vadd.f32 %v2135, %v2146
      %v2175 = vadd.f32 %v2136, %v2146
      %v2176 = vadd.f32 %v2137, %v2146
      %v2177 = vadd.f32 %v2138, %v2146
      %v2178 = vadd.f32 %v2139, %v2146
      %v2179 = vadd.f32 %v2140, %v2146
      %vm2180 = vcmp.gt.f32.partialorder %v2148, 0.0
      %vm2181 = vcmp.gt.f32.partialorder %v2149, 0.0
      %vm2182 = vcmp.gt.f32.partialorder %v2150, 0.0
      %vm2183 = vcmp.gt.f32.partialorder %v2151, 0.0
      %vm2184 = vcmp.gt.f32.partialorder %v2152, 0.0
      %vm2185 = vcmp.gt.f32.partialorder %v2153, 0.0
      %vm2186 = vcmp.gt.f32.partialorder %v2154, 0.0
      %vm2187 = vcmp.gt.f32.partialorder %v2155, 0.0
      %vm2188 = vcmp.gt.f32.partialorder %v2156, 0.0
      %vm2189 = vcmp.gt.f32.partialorder %v2157, 0.0
      %vm2190 = vcmp.gt.f32.partialorder %v2158, 0.0
      %vm2191 = vcmp.gt.f32.partialorder %v2159, 0.0
      %vm2192 = vcmp.gt.f32.partialorder %v2160, 0.0
      %vm2193 = vcmp.gt.f32.partialorder %v2161, 0.0
      %vm2194 = vcmp.gt.f32.partialorder %v2162, 0.0
      %vm2195 = vcmp.gt.f32.partialorder %v2163, 0.0
      %vm2196 = vcmp.gt.f32.partialorder %v2164, 0.0
      %vm2197 = vcmp.gt.f32.partialorder %v2165, 0.0
      %vm2198 = vcmp.gt.f32.partialorder %v2166, 0.0
      %vm2199 = vcmp.gt.f32.partialorder %v2167, 0.0
      %vm2200 = vcmp.gt.f32.partialorder %v2168, 0.0
      %vm2201 = vcmp.gt.f32.partialorder %v2169, 0.0
      %vm2202 = vcmp.gt.f32.partialorder %v2170, 0.0
      %vm2203 = vcmp.gt.f32.partialorder %v2171, 0.0
      %vm2204 = vcmp.gt.f32.partialorder %v2172, 0.0
      %vm2205 = vcmp.gt.f32.partialorder %v2173, 0.0
      %vm2206 = vcmp.gt.f32.partialorder %v2174, 0.0
      %vm2207 = vcmp.gt.f32.partialorder %v2175, 0.0
      %vm2208 = vcmp.gt.f32.partialorder %v2176, 0.0
      %vm2209 = vcmp.gt.f32.partialorder %v2177, 0.0
      %vm2210 = vcmp.gt.f32.partialorder %v2178, 0.0
      %vm2211 = vcmp.gt.f32.partialorder %v2179, 0.0
      %v2212 = vmul.f32 %v2148, 0.1
      %v2213 = vmul.f32 %v2149, 0.1
      %v2214 = vmul.f32 %v2150, 0.1
      %v2215 = vmul.f32 %v2151, 0.1
      %v2216 = vmul.f32 %v2152, 0.1
      %v2217 = vmul.f32 %v2153, 0.1
      %v2218 = vmul.f32 %v2154, 0.1
      %v2219 = vmul.f32 %v2155, 0.1
      %v2220 = vmul.f32 %v2156, 0.1
      %v2221 = vmul.f32 %v2157, 0.1
      %v2222 = vmul.f32 %v2158, 0.1
      %v2223 = vmul.f32 %v2159, 0.1
      %v2224 = vmul.f32 %v2160, 0.1
      %v2225 = vmul.f32 %v2161, 0.1
      %v2226 = vmul.f32 %v2162, 0.1
      %v2227 = vmul.f32 %v2163, 0.1
      %v2228 = vmul.f32 %v2164, 0.1
      %v2229 = vmul.f32 %v2165, 0.1
      %v2230 = vmul.f32 %v2166, 0.1
      %v2231 = vmul.f32 %v2167, 0.1
      %v2232 = vmul.f32 %v2168, 0.1
      %v2233 = vmul.f32 %v2169, 0.1
      %v2234 = vmul.f32 %v2170, 0.1
      %v2235 = vmul.f32 %v2171, 0.1
      %v2236 = vmul.f32 %v2172, 0.1
      %v2237 = vmul.f32 %v2173, 0.1
      %v2238 = vmul.f32 %v2174, 0.1
      %v2239 = vmul.f32 %v2175, 0.1
      %v2240 = vmul.f32 %v2176, 0.1
      %v2241 = vmul.f32 %v2177, 0.1
      %v2242 = vmul.f32 %v2178, 0.1
      %v2243 = vmul.f32 %v2179, 0.1
      %v2244 = vsel %vm2180, %v2148, %v2212
      %v2245 = vsel %vm2181, %v2149, %v2213
      %v2246 = vsel %vm2182, %v2150, %v2214
      %v2247 = vsel %vm2183, %v2151, %v2215
      %v2248 = vsel %vm2184, %v2152, %v2216
      %v2249 = vsel %vm2185, %v2153, %v2217
      %v2250 = vsel %vm2186, %v2154, %v2218
      %v2251 = vsel %vm2187, %v2155, %v2219
      %v2252 = vsel %vm2188, %v2156, %v2220
      %v2253 = vsel %vm2189, %v2157, %v2221
      %v2254 = vsel %vm2190, %v2158, %v2222
      %v2255 = vsel %vm2191, %v2159, %v2223
      %v2256 = vsel %vm2192, %v2160, %v2224
      %v2257 = vsel %vm2193, %v2161, %v2225
      %v2258 = vsel %vm2194, %v2162, %v2226
      %v2259 = vsel %vm2195, %v2163, %v2227
      %v2260 = vsel %vm2196, %v2164, %v2228
      %v2261 = vsel %vm2197, %v2165, %v2229
      %v2262 = vsel %vm2198, %v2166, %v2230
      %v2263 = vsel %vm2199, %v2167, %v2231
      %v2264 = vsel %vm2200, %v2168, %v2232
      %v2265 = vsel %vm2201, %v2169, %v2233
      %v2266 = vsel %vm2202, %v2170, %v2234
      %v2267 = vsel %vm2203, %v2171, %v2235
      %v2268 = vsel %vm2204, %v2172, %v2236
      %v2269 = vsel %vm2205, %v2173, %v2237
      %v2270 = vsel %vm2206, %v2174, %v2238
      %v2271 = vsel %vm2207, %v2175, %v2239
      %v2272 = vsel %vm2208, %v2176, %v2240
      %v2273 = vsel %vm2209, %v2177, %v2241
      %v2274 = vsel %vm2210, %v2178, %v2242
      %v2275 = vsel %vm2211, %v2179, %v2243
      %v2276 = vpack.c.bf16 %v2245, %v2244
      %v2277 = vpack.c.bf16 %v2247, %v2246
      %v2278 = vpack.c.bf16 %v2249, %v2248
      %v2279 = vpack.c.bf16 %v2251, %v2250
      %v2280 = vpack.c.bf16 %v2253, %v2252
      %v2281 = vpack.c.bf16 %v2255, %v2254
      %v2282 = vpack.c.bf16 %v2257, %v2256
      %v2283 = vpack.c.bf16 %v2259, %v2258
      %v2284 = vpack.c.bf16 %v2261, %v2260
      %v2285 = vpack.c.bf16 %v2263, %v2262
      %v2286 = vpack.c.bf16 %v2265, %v2264
      %v2287 = vpack.c.bf16 %v2267, %v2266
      %v2288 = vpack.c.bf16 %v2269, %v2268
      %v2289 = vpack.c.bf16 %v2271, %v2270
      %v2290 = vpack.c.bf16 %v2273, %v2272
      %v2291 = vpack.c.bf16 %v2275, %v2274
      %v2292 = vld [vmem:[%s2] sm:$0xf]
      %v2293 = vld [vmem:[%s2 + $0x4] sm:$0xf]
      %v2294 = vld [vmem:[%s2 + $0x8] sm:$0xf]
      %v2295 = vld [vmem:[%s2 + $0xc] sm:$0xf]
      %v2296 = vld [vmem:[%s2 + $0x10] sm:$0xf]
      %v2297 = vld [vmem:[%s2 + $0x14] sm:$0xf]
      %v2298 = vld [vmem:[%s2 + $0x18] sm:$0xf]
      %v2299 = vld [vmem:[%s2 + $0x1c] sm:$0xf]
      %v2300 = vld [vmem:[%s2 + $0x20] sm:$0xf]
      %v2301 = vld [vmem:[%s2 + $0x24] sm:$0xf]
      %v2302 = vld [vmem:[%s2 + $0x28] sm:$0xf]
      %v2303 = vld [vmem:[%s2 + $0x2c] sm:$0xf]
      %v2304 = vld [vmem:[%s2 + $0x30] sm:$0xf]
      %v2305 = vld [vmem:[%s2 + $0x34] sm:$0xf]
      %v2306 = vld [vmem:[%s2 + $0x38] sm:$0xf]
      %v2307 = vld [vmem:[%s2 + $0x3c] sm:$0xf]
      %s2308 = scalar_lea.vmem %s2, 64
      %v2309 = vld [vmem:[%s2308] sm:$0xf]
      %v2310 = vld [vmem:[%s2308 + $0x4] sm:$0xf]
      %v2311 = vld [vmem:[%s2308 + $0x8] sm:$0xf]
      %v2312 = vld [vmem:[%s2308 + $0xc] sm:$0xf]
      %v2313 = vld [vmem:[%s2308 + $0x10] sm:$0xf]
      %v2314 = vld [vmem:[%s2308 + $0x14] sm:$0xf]
      %v2315 = vld [vmem:[%s2308 + $0x18] sm:$0xf]
      %v2316 = vld [vmem:[%s2308 + $0x1c] sm:$0xf]
      %v2317 = vld [vmem:[%s2308 + $0x20] sm:$0xf]
      %v2318 = vld [vmem:[%s2308 + $0x24] sm:$0xf]
      %v2319 = vld [vmem:[%s2308 + $0x28] sm:$0xf]
      %v2320 = vld [vmem:[%s2308 + $0x2c] sm:$0xf]
      %v2321 = vld [vmem:[%s2308 + $0x30] sm:$0xf]
      %v2322 = vld [vmem:[%s2308 + $0x34] sm:$0xf]
      %v2323 = vld [vmem:[%s2308 + $0x38] sm:$0xf]
      %v2324 = vld [vmem:[%s2308 + $0x3c] sm:$0xf]
      %v2341 = vunpack.c.l.b16 %v2309
      %v2342 = vunpack.c.l.b16 %v2310
      %v2343 = vunpack.c.l.b16 %v2311
      %v2344 = vunpack.c.l.b16 %v2312
      %v2345 = vunpack.c.l.b16 %v2313
      %v2346 = vunpack.c.l.b16 %v2314
      %v2347 = vunpack.c.l.b16 %v2315
      %v2348 = vunpack.c.l.b16 %v2316
      %v2349 = vunpack.c.l.b16 %v2317
      %v2350 = vunpack.c.l.b16 %v2318
      %v2351 = vunpack.c.l.b16 %v2319
      %v2352 = vunpack.c.l.b16 %v2320
      %v2353 = vunpack.c.l.b16 %v2321
      %v2354 = vunpack.c.l.b16 %v2322
      %v2355 = vunpack.c.l.b16 %v2323
      %v2356 = vunpack.c.l.b16 %v2324
      %v2357 = vpack.c.b16 %v2342, %v2341
      %v2358 = vpack.c.b16 %v2344, %v2343
      %v2359 = vpack.c.b16 %v2346, %v2345
      %v2360 = vpack.c.b16 %v2348, %v2347
      %v2361 = vpack.c.b16 %v2350, %v2349
      %v2362 = vpack.c.b16 %v2352, %v2351
      %v2363 = vpack.c.b16 %v2354, %v2353
      %v2364 = vpack.c.b16 %v2356, %v2355
      %2373 = vmatprep.subr.bf16.mxu0 0
      %2374 = vmatpush1.bf16.msra.mxu0 %v2357
      %2375 = vmatprep.subr.bf16.mxu0 0
      %2376 = vmatpush1.bf16.msra.mxu0 %v2358
      %2377 = vmatprep.subr.bf16.mxu0 0
      %2378 = vmatpush1.bf16.msra.mxu0 %v2359
      %2379 = vmatprep.subr.bf16.mxu0 0
      %2380 = vmatpush1.bf16.msra.mxu0 %v2360
      %2381 = vmatprep.subr.bf16.mxu0 0
      %2382 = vmatpush1.bf16.msra.mxu0 %v2361
      %2383 = vmatprep.subr.bf16.mxu0 0
      %2384 = vmatpush1.bf16.msra.mxu0 %v2362
      %2385 = vmatprep.subr.bf16.mxu0 0
      %2386 = vmatpush1.bf16.msra.mxu0 %v2363
      %2387 = vmatprep.subr.bf16.mxu0 0
      %2388 = vmatpush1.bf16.msra.mxu0 %v2364
      %2389 = vmatprep.subr.bf16.mxu0 0
      %2390 = vmatpush1.bf16.msra.mxu0 0
      %2391 = vmatprep.subr.bf16.mxu0 0
      %2392 = vmatpush1.bf16.msra.mxu0 0
      %2393 = vmatprep.subr.bf16.mxu0 0
      %2394 = vmatpush1.bf16.msra.mxu0 0
      %2395 = vmatprep.subr.bf16.mxu0 0
      %2396 = vmatpush1.bf16.msra.mxu0 0
      %2397 = vmatprep.subr.bf16.mxu0 0
      %2398 = vmatpush1.bf16.msra.mxu0 0
      %2399 = vmatprep.subr.bf16.mxu0 0
      %2400 = vmatpush1.bf16.msra.mxu0 0
      %2401 = vmatprep.subr.bf16.mxu0 0
      %2402 = vmatpush1.bf16.msra.mxu0 0
      %2403 = vmatprep.subr.bf16.mxu0 0
      %2404 = vmatpush1.bf16.msra.mxu0 0
      %2405 = vmatprep.mubr.bf16.mxu0 0
      %2406 = vmatmul.mubr.bf16.gmra.mrb[0].mxu0 %v2276
      %v2407 = vpop.f32.mrb[0].mxu0
      %v2408 = vadd.f32 0.0, %v2407
      %v2409 = vpop.f32.mrb[0].mxu0
      %v2410 = vpop.f32.mrb[0].mxu0
      %v2411 = vadd.f32 0.0, %v2410
      %v2412 = vpop.f32.mrb[0].mxu0
      %2413 = vmatprep.mubr.bf16.mxu0 0
      %2414 = vmatmul.mubr.bf16.gmra.mrb[0].mxu0 %v2277
      %v2415 = vpop.f32.mrb[0].mxu0
      %v2416 = vadd.f32 0.0, %v2415
      %v2417 = vpop.f32.mrb[0].mxu0
      %v2418 = vpop.f32.mrb[0].mxu0
      %v2419 = vadd.f32 0.0, %v2418
      %v2420 = vpop.f32.mrb[0].mxu0
      %2421 = vmatprep.mubr.bf16.mxu0 0
      %2422 = vmatmul.mubr.bf16.gmra.mrb[0].mxu0 %v2278
      %v2423 = vpop.f32.mrb[0].mxu0
      %v2424 = vadd.f32 0.0, %v2423
      %v2425 = vpop.f32.mrb[0].mxu0
      %v2426 = vpop.f32.mrb[0].mxu0
      %v2427 = vadd.f32 0.0, %v2426
      %v2428 = vpop.f32.mrb[0].mxu0
      %2429 = vmatprep.mubr.bf16.mxu0 0
      %2430 = vmatmul.mubr.bf16.gmra.mrb[0].mxu0 %v2279
      %v2431 = vpop.f32.mrb[0].mxu0
      %v2432 = vadd.f32 0.0, %v2431
      %v2433 = vpop.f32.mrb[0].mxu0
      %v2434 = vpop.f32.mrb[0].mxu0
      %v2435 = vadd.f32 0.0, %v2434
      %v2436 = vpop.f32.mrb[0].mxu0
      %2437 = vmatprep.mubr.bf16.mxu0 0
      %2438 = vmatmul.mubr.bf16.gmra.mrb[0].mxu0 %v2280
      %v2439 = vpop.f32.mrb[0].mxu0
      %v2440 = vadd.f32 0.0, %v2439
      %v2441 = vpop.f32.mrb[0].mxu0
      %v2442 = vpop.f32.mrb[0].mxu0
      %v2443 = vadd.f32 0.0, %v2442
      %v2444 = vpop.f32.mrb[0].mxu0
      %2445 = vmatprep.mubr.bf16.mxu0 0
      %2446 = vmatmul.mubr.bf16.gmra.mrb[0].mxu0 %v2281
      %v2447 = vpop.f32.mrb[0].mxu0
      %v2448 = vadd.f32 0.0, %v2447
      %v2449 = vpop.f32.mrb[0].mxu0
      %v2450 = vpop.f32.mrb[0].mxu0
      %v2451 = vadd.f32 0.0, %v2450
      %v2452 = vpop.f32.mrb[0].mxu0
      %2453 = vmatprep.mubr.bf16.mxu0 0
      %2454 = vmatmul.mubr.bf16.gmra.mrb[0].mxu0 %v2282
      %v2455 = vpop.f32.mrb[0].mxu0
      %v2456 = vadd.f32 0.0, %v2455
      %v2457 = vpop.f32.mrb[0].mxu0
      %v2458 = vpop.f32.mrb[0].mxu0
      %v2459 = vadd.f32 0.0, %v2458
      %v2460 = vpop.f32.mrb[0].mxu0
      %2461 = vmatprep.mubr.bf16.mxu0 0
      %2462 = vmatmul.mubr.bf16.gmra.mrb[0].mxu0 %v2283
      %v2463 = vpop.f32.mrb[0].mxu0
      %v2464 = vadd.f32 0.0, %v2463
      %v2465 = vpop.f32.mrb[0].mxu0
      %v2466 = vpop.f32.mrb[0].mxu0
      %v2467 = vadd.f32 0.0, %v2466
      %v2468 = vpop.f32.mrb[0].mxu0
      %2469 = vmatprep.mubr.bf16.mxu0 0
      %2470 = vmatmul.mubr.bf16.gmra.mrb[0].mxu0 %v2284
      %v2471 = vpop.f32.mrb[0].mxu0
      %v2472 = vadd.f32 0.0, %v2471
      %v2473 = vpop.f32.mrb[0].mxu0
      %v2474 = vpop.f32.mrb[0].mxu0
      %v2475 = vadd.f32 0.0, %v2474
      %v2476 = vpop.f32.mrb[0].mxu0
      %2477 = vmatprep.mubr.bf16.mxu0 0
      %2478 = vmatmul.mubr.bf16.gmra.mrb[0].mxu0 %v2285
      %v2479 = vpop.f32.mrb[0].mxu0
      %v2480 = vadd.f32 0.0, %v2479
      %v2481 = vpop.f32.mrb[0].mxu0
      %v2482 = vpop.f32.mrb[0].mxu0
      %v2483 = vadd.f32 0.0, %v2482
      %v2484 = vpop.f32.mrb[0].mxu0
      %2485 = vmatprep.mubr.bf16.mxu0 0
      %2486 = vmatmul.mubr.bf16.gmra.mrb[0].mxu0 %v2286
      %v2487 = vpop.f32.mrb[0].mxu0
      %v2488 = vadd.f32 0.0, %v2487
      %v2489 = vpop.f32.mrb[0].mxu0
      %v2490 = vpop.f32.mrb[0].mxu0
      %v2491 = vadd.f32 0.0, %v2490
      %v2492 = vpop.f32.mrb[0].mxu0
      %2493 = vmatprep.mubr.bf16.mxu0 0
      %2494 = vmatmul.mubr.bf16.gmra.mrb[0].mxu0 %v2287
      %v2495 = vpop.f32.mrb[0].mxu0
      %v2496 = vadd.f32 0.0, %v2495
      %v2497 = vpop.f32.mrb[0].mxu0
      %v2498 = vpop.f32.mrb[0].mxu0
      %v2499 = vadd.f32 0.0, %v2498
      %v2500 = vpop.f32.mrb[0].mxu0
      %2501 = vmatprep.mubr.bf16.mxu0 0
      %2502 = vmatmul.mubr.bf16.gmra.mrb[0].mxu0 %v2288
      %v2503 = vpop.f32.mrb[0].mxu0
      %v2504 = vadd.f32 0.0, %v2503
      %v2505 = vpop.f32.mrb[0].mxu0
      %v2506 = vpop.f32.mrb[0].mxu0
      %v2507 = vadd.f32 0.0, %v2506
      %v2508 = vpop.f32.mrb[0].mxu0
      %2509 = vmatprep.mubr.bf16.mxu0 0
      %2510 = vmatmul.mubr.bf16.gmra.mrb[0].mxu0 %v2289
      %v2511 = vpop.f32.mrb[0].mxu0
      %v2512 = vadd.f32 0.0, %v2511
      %v2513 = vpop.f32.mrb[0].mxu0
      %v2514 = vpop.f32.mrb[0].mxu0
      %v2515 = vadd.f32 0.0, %v2514
      %v2516 = vpop.f32.mrb[0].mxu0
      %2517 = vmatprep.mubr.bf16.mxu0 0
      %2518 = vmatmul.mubr.bf16.gmra.mrb[0].mxu0 %v2290
      %v2519 = vpop.f32.mrb[0].mxu0
      %v2520 = vadd.f32 0.0, %v2519
      %v2521 = vpop.f32.mrb[0].mxu0
      %v2522 = vpop.f32.mrb[0].mxu0
      %v2523 = vadd.f32 0.0, %v2522
      %v2524 = vpop.f32.mrb[0].mxu0
      %2525 = vmatprep.mubr.bf16.mxu0 0
      %2526 = vmatmul.mubr.bf16.gmra.mrb[0].mxu0 %v2291
      %v2527 = vpop.f32.mrb[0].mxu0
      %v2528 = vadd.f32 0.0, %v2527
      %v2529 = vpop.f32.mrb[0].mxu0
      %v2530 = vpop.f32.mrb[0].mxu0
      %v2531 = vadd.f32 0.0, %v2530
      %v2532 = vpop.f32.mrb[0].mxu0
      %2533 = vdwg.mxu0
      %v2550 = vunpack.c.l.b16 %v2292
      %v2551 = vunpack.c.l.b16 %v2293
      %v2552 = vunpack.c.l.b16 %v2294
      %v2553 = vunpack.c.l.b16 %v2295
      %v2554 = vunpack.c.l.b16 %v2296
      %v2555 = vunpack.c.l.b16 %v2297
      %v2556 = vunpack.c.l.b16 %v2298
      %v2557 = vunpack.c.l.b16 %v2299
      %v2558 = vunpack.c.l.b16 %v2300
      %v2559 = vunpack.c.l.b16 %v2301
      %v2560 = vunpack.c.l.b16 %v2302
      %v2561 = vunpack.c.l.b16 %v2303
      %v2562 = vunpack.c.l.b16 %v2304
      %v2563 = vunpack.c.l.b16 %v2305
      %v2564 = vunpack.c.l.b16 %v2306
      %v2565 = vunpack.c.l.b16 %v2307
      %v2566 = vpack.c.b16 %v2551, %v2550
      %v2567 = vpack.c.b16 %v2553, %v2552
      %v2568 = vpack.c.b16 %v2555, %v2554
      %v2569 = vpack.c.b16 %v2557, %v2556
      %v2570 = vpack.c.b16 %v2559, %v2558
      %v2571 = vpack.c.b16 %v2561, %v2560
      %v2572 = vpack.c.b16 %v2563, %v2562
      %v2573 = vpack.c.b16 %v2565, %v2564
      %2582 = vmatprep.subr.bf16.mxu0 0
      %2583 = vmatpush1.bf16.msra.mxu0 %v2566
      %2584 = vmatprep.subr.bf16.mxu0 0
      %2585 = vmatpush1.bf16.msra.mxu0 %v2567
      %2586 = vmatprep.subr.bf16.mxu0 0
      %2587 = vmatpush1.bf16.msra.mxu0 %v2568
      %2588 = vmatprep.subr.bf16.mxu0 0
      %2589 = vmatpush1.bf16.msra.mxu0 %v2569
      %2590 = vmatprep.subr.bf16.mxu0 0
      %2591 = vmatpush1.bf16.msra.mxu0 %v2570
      %2592 = vmatprep.subr.bf16.mxu0 0
      %2593 = vmatpush1.bf16.msra.mxu0 %v2571
      %2594 = vmatprep.subr.bf16.mxu0 0
      %2595 = vmatpush1.bf16.msra.mxu0 %v2572
      %2596 = vmatprep.subr.bf16.mxu0 0
      %2597 = vmatpush1.bf16.msra.mxu0 %v2573
      %2598 = vmatprep.subr.bf16.mxu0 0
      %2599 = vmatpush1.bf16.msra.mxu0 0
      %2600 = vmatprep.subr.bf16.mxu0 0
      %2601 = vmatpush1.bf16.msra.mxu0 0
      %2602 = vmatprep.subr.bf16.mxu0 0
      %2603 = vmatpush1.bf16.msra.mxu0 0
      %2604 = vmatprep.subr.bf16.mxu0 0
      %2605 = vmatpush1.bf16.msra.mxu0 0
      %2606 = vmatprep.subr.bf16.mxu0 0
      %2607 = vmatpush1.bf16.msra.mxu0 0
      %2608 = vmatprep.subr.bf16.mxu0 0
      %2609 = vmatpush1.bf16.msra.mxu0 0
      %2610 = vmatprep.subr.bf16.mxu0 0
      %2611 = vmatpush1.bf16.msra.mxu0 0
      %2612 = vmatprep.subr.bf16.mxu0 0
      %2613 = vmatpush1.bf16.msra.mxu0 0
      %2614 = vmatprep.mubr.bf16.mxu0 0
      %2615 = vmatmul.mubr.bf16.gmra.mrb[0].mxu0 0
      %v2616 = vpop.f32.mrb[0].mxu0
      %v2617 = vadd.f32 %v2408, %v2616
      %v2618 = vpop.f32.mrb[0].mxu0
      %v2619 = vpop.f32.mrb[0].mxu0
      %v2620 = vadd.f32 %v2411, %v2619
      %v2621 = vpop.f32.mrb[0].mxu0
      %2622 = vmatprep.mubr.bf16.mxu0 0
      %2623 = vmatmul.mubr.bf16.gmra.mrb[0].mxu0 %v2276
      %v2624 = vpop.f32.mrb[0].mxu0
      %v2625 = vadd.f32 %v2416, %v2624
      %v2626 = vpop.f32.mrb[0].mxu0
      %v2627 = vpop.f32.mrb[0].mxu0
      %v2628 = vadd.f32 %v2419, %v2627
      %v2629 = vpop.f32.mrb[0].mxu0
      %2630 = vmatprep.mubr.bf16.mxu0 0
      %2631 = vmatmul.mubr.bf16.gmra.mrb[0].mxu0 %v2277
      %v2632 = vpop.f32.mrb[0].mxu0
      %v2633 = vadd.f32 %v2424, %v2632
      %v2634 = vpop.f32.mrb[0].mxu0
      %v2635 = vpop.f32.mrb[0].mxu0
      %v2636 = vadd.f32 %v2427, %v2635
      %v2637 = vpop.f32.mrb[0].mxu0
      %2638 = vmatprep.mubr.bf16.mxu0 0
      %2639 = vmatmul.mubr.bf16.gmra.mrb[0].mxu0 %v2278
      %v2640 = vpop.f32.mrb[0].mxu0
      %v2641 = vadd.f32 %v2432, %v2640
      %v2642 = vpop.f32.mrb[0].mxu0
      %v2643 = vpop.f32.mrb[0].mxu0
      %v2644 = vadd.f32 %v2435, %v2643
      %v2645 = vpop.f32.mrb[0].mxu0
      %2646 = vmatprep.mubr.bf16.mxu0 0
      %2647 = vmatmul.mubr.bf16.gmra.mrb[0].mxu0 %v2279
      %v2648 = vpop.f32.mrb[0].mxu0
      %v2649 = vadd.f32 %v2440, %v2648
      %v2650 = vpop.f32.mrb[0].mxu0
      %v2651 = vpop.f32.mrb[0].mxu0
      %v2652 = vadd.f32 %v2443, %v2651
      %v2653 = vpop.f32.mrb[0].mxu0
      %2654 = vmatprep.mubr.bf16.mxu0 0
      %2655 = vmatmul.mubr.bf16.gmra.mrb[0].mxu0 %v2280
      %v2656 = vpop.f32.mrb[0].mxu0
      %v2657 = vadd.f32 %v2448, %v2656
      %v2658 = vpop.f32.mrb[0].mxu0
      %v2659 = vpop.f32.mrb[0].mxu0
      %v2660 = vadd.f32 %v2451, %v2659
      %v2661 = vpop.f32.mrb[0].mxu0
      %2662 = vmatprep.mubr.bf16.mxu0 0
      %2663 = vmatmul.mubr.bf16.gmra.mrb[0].mxu0 %v2281
      %v2664 = vpop.f32.mrb[0].mxu0
      %v2665 = vadd.f32 %v2456, %v2664
      %v2666 = vpop.f32.mrb[0].mxu0
      %v2667 = vpop.f32.mrb[0].mxu0
      %v2668 = vadd.f32 %v2459, %v2667
      %v2669 = vpop.f32.mrb[0].mxu0
      %2670 = vmatprep.mubr.bf16.mxu0 0
      %2671 = vmatmul.mubr.bf16.gmra.mrb[0].mxu0 %v2282
      %v2672 = vpop.f32.mrb[0].mxu0
      %v2673 = vadd.f32 %v2464, %v2672
      %v2674 = vpop.f32.mrb[0].mxu0
      %v2675 = vpop.f32.mrb[0].mxu0
      %v2676 = vadd.f32 %v2467, %v2675
      %v2677 = vpop.f32.mrb[0].mxu0
      %2678 = vmatprep.mubr.bf16.mxu0 0
      %2679 = vmatmul.mubr.bf16.gmra.mrb[0].mxu0 %v2283
      %v2680 = vpop.f32.mrb[0].mxu0
      %v2681 = vadd.f32 %v2472, %v2680
      %v2682 = vpop.f32.mrb[0].mxu0
      %v2683 = vpop.f32.mrb[0].mxu0
      %v2684 = vadd.f32 %v2475, %v2683
      %v2685 = vpop.f32.mrb[0].mxu0
      %2686 = vmatprep.mubr.bf16.mxu0 0
      %2687 = vmatmul.mubr.bf16.gmra.mrb[0].mxu0 %v2284
      %v2688 = vpop.f32.mrb[0].mxu0
      %v2689 = vadd.f32 %v2480, %v2688
      %v2690 = vpop.f32.mrb[0].mxu0
      %v2691 = vpop.f32.mrb[0].mxu0
      %v2692 = vadd.f32 %v2483, %v2691
      %v2693 = vpop.f32.mrb[0].mxu0
      %2694 = vmatprep.mubr.bf16.mxu0 0
      %2695 = vmatmul.mubr.bf16.gmra.mrb[0].mxu0 %v2285
      %v2696 = vpop.f32.mrb[0].mxu0
      %v2697 = vadd.f32 %v2488, %v2696
      %v2698 = vpop.f32.mrb[0].mxu0
      %v2699 = vpop.f32.mrb[0].mxu0
      %v2700 = vadd.f32 %v2491, %v2699
      %v2701 = vpop.f32.mrb[0].mxu0
      %2702 = vmatprep.mubr.bf16.mxu0 0
      %2703 = vmatmul.mubr.bf16.gmra.mrb[0].mxu0 %v2286
      %v2704 = vpop.f32.mrb[0].mxu0
      %v2705 = vadd.f32 %v2496, %v2704
      %v2706 = vpop.f32.mrb[0].mxu0
      %v2707 = vpop.f32.mrb[0].mxu0
      %v2708 = vadd.f32 %v2499, %v2707
      %v2709 = vpop.f32.mrb[0].mxu0
      %2710 = vmatprep.mubr.bf16.mxu0 0
      %2711 = vmatmul.mubr.bf16.gmra.mrb[0].mxu0 %v2287
      %v2712 = vpop.f32.mrb[0].mxu0
      %v2713 = vadd.f32 %v2504, %v2712
      %v2714 = vpop.f32.mrb[0].mxu0
      %v2715 = vpop.f32.mrb[0].mxu0
      %v2716 = vadd.f32 %v2507, %v2715
      %v2717 = vpop.f32.mrb[0].mxu0
      %2718 = vmatprep.mubr.bf16.mxu0 0
      %2719 = vmatmul.mubr.bf16.gmra.mrb[0].mxu0 %v2288
      %v2720 = vpop.f32.mrb[0].mxu0
      %v2721 = vadd.f32 %v2512, %v2720
      %v2722 = vpop.f32.mrb[0].mxu0
      %v2723 = vpop.f32.mrb[0].mxu0
      %v2724 = vadd.f32 %v2515, %v2723
      %v2725 = vpop.f32.mrb[0].mxu0
      %2726 = vmatprep.mubr.bf16.mxu0 0
      %2727 = vmatmul.mubr.bf16.gmra.mrb[0].mxu0 %v2289
      %v2728 = vpop.f32.mrb[0].mxu0
      %v2729 = vadd.f32 %v2520, %v2728
      %v2730 = vpop.f32.mrb[0].mxu0
      %v2731 = vpop.f32.mrb[0].mxu0
      %v2732 = vadd.f32 %v2523, %v2731
      %v2733 = vpop.f32.mrb[0].mxu0
      %2734 = vmatprep.mubr.bf16.mxu0 0
      %2735 = vmatmul.mubr.bf16.gmra.mrb[0].mxu0 %v2290
      %v2736 = vpop.f32.mrb[0].mxu0
      %v2737 = vadd.f32 %v2528, %v2736
      %v2738 = vpop.f32.mrb[0].mxu0
      %v2739 = vpop.f32.mrb[0].mxu0
      %v2740 = vadd.f32 %v2531, %v2739
      %v2741 = vpop.f32.mrb[0].mxu0
      %2742 = vdwg.mxu0
      %s2743 = scalar_lea.vmem %s2, 128
      %v2744 = vld [vmem:[%s2743] sm:$0xf]
      %v2745 = vld [vmem:[%s2743 + $0x4] sm:$0xf]
      %v2746 = vld [vmem:[%s2743 + $0x8] sm:$0xf]
      %v2747 = vld [vmem:[%s2743 + $0xc] sm:$0xf]
      %v2748 = vld [vmem:[%s2743 + $0x10] sm:$0xf]
      %v2749 = vld [vmem:[%s2743 + $0x14] sm:$0xf]
      %v2750 = vld [vmem:[%s2743 + $0x18] sm:$0xf]
      %v2751 = vld [vmem:[%s2743 + $0x1c] sm:$0xf]
      %v2752 = vld [vmem:[%s2743 + $0x20] sm:$0xf]
      %v2753 = vld [vmem:[%s2743 + $0x24] sm:$0xf]
      %v2754 = vld [vmem:[%s2743 + $0x28] sm:$0xf]
      %v2755 = vld [vmem:[%s2743 + $0x2c] sm:$0xf]
      %v2756 = vld [vmem:[%s2743 + $0x30] sm:$0xf]
      %v2757 = vld [vmem:[%s2743 + $0x34] sm:$0xf]
      %v2758 = vld [vmem:[%s2743 + $0x38] sm:$0xf]
      %v2759 = vld [vmem:[%s2743 + $0x3c] sm:$0xf]
      %v2776 = vunpack.c.l.b16 %v2744
      %v2777 = vunpack.c.l.b16 %v2745
      %v2778 = vunpack.c.l.b16 %v2746
      %v2779 = vunpack.c.l.b16 %v2747
      %v2780 = vunpack.c.l.b16 %v2748
      %v2781 = vunpack.c.l.b16 %v2749
      %v2782 = vunpack.c.l.b16 %v2750
      %v2783 = vunpack.c.l.b16 %v2751
      %v2784 = vunpack.c.l.b16 %v2752
      %v2785 = vunpack.c.l.b16 %v2753
      %v2786 = vunpack.c.l.b16 %v2754
      %v2787 = vunpack.c.l.b16 %v2755
      %v2788 = vunpack.c.l.b16 %v2756
      %v2789 = vunpack.c.l.b16 %v2757
      %v2790 = vunpack.c.l.b16 %v2758
      %v2791 = vunpack.c.l.b16 %v2759
      %v2792 = vpack.c.b16 %v2777, %v2776
      %v2793 = vpack.c.b16 %v2779, %v2778
      %v2794 = vpack.c.b16 %v2781, %v2780
      %v2795 = vpack.c.b16 %v2783, %v2782
      %v2796 = vpack.c.b16 %v2785, %v2784
      %v2797 = vpack.c.b16 %v2787, %v2786
      %v2798 = vpack.c.b16 %v2789, %v2788
      %v2799 = vpack.c.b16 %v2791, %v2790
      %2808 = vmatprep.subr.bf16.mxu0 0
      %2809 = vmatpush1.bf16.msra.mxu0 %v2792
      %2810 = vmatprep.subr.bf16.mxu0 0
      %2811 = vmatpush1.bf16.msra.mxu0 %v2793
      %2812 = vmatprep.subr.bf16.mxu0 0
      %2813 = vmatpush1.bf16.msra.mxu0 %v2794
      %2814 = vmatprep.subr.bf16.mxu0 0
      %2815 = vmatpush1.bf16.msra.mxu0 %v2795
      %2816 = vmatprep.subr.bf16.mxu0 0
      %2817 = vmatpush1.bf16.msra.mxu0 %v2796
      %2818 = vmatprep.subr.bf16.mxu0 0
      %2819 = vmatpush1.bf16.msra.mxu0 %v2797
      %2820 = vmatprep.subr.bf16.mxu0 0
      %2821 = vmatpush1.bf16.msra.mxu0 %v2798
      %2822 = vmatprep.subr.bf16.mxu0 0
      %2823 = vmatpush1.bf16.msra.mxu0 %v2799
      %2824 = vmatprep.subr.bf16.mxu0 0
      %2825 = vmatpush1.bf16.msra.mxu0 0
      %2826 = vmatprep.subr.bf16.mxu0 0
      %2827 = vmatpush1.bf16.msra.mxu0 0
      %2828 = vmatprep.subr.bf16.mxu0 0
      %2829 = vmatpush1.bf16.msra.mxu0 0
      %2830 = vmatprep.subr.bf16.mxu0 0
      %2831 = vmatpush1.bf16.msra.mxu0 0
      %2832 = vmatprep.subr.bf16.mxu0 0
      %2833 = vmatpush1.bf16.msra.mxu0 0
      %2834 = vmatprep.subr.bf16.mxu0 0
      %2835 = vmatpush1.bf16.msra.mxu0 0
      %2836 = vmatprep.subr.bf16.mxu0 0
      %2837 = vmatpush1.bf16.msra.mxu0 0
      %2838 = vmatprep.subr.bf16.mxu0 0
      %2839 = vmatpush1.bf16.msra.mxu0 0
      %2840 = vmatprep.mubr.bf16.mxu0 0
      %2841 = vmatmul.mubr.bf16.gmra.mrb[0].mxu0 %v2277
      %v2842 = vpop.f32.mrb[0].mxu0
      %v2843 = vadd.f32 0.0, %v2842
      %v2844 = vpop.f32.mrb[0].mxu0
      %v2845 = vpop.f32.mrb[0].mxu0
      %v2846 = vadd.f32 0.0, %v2845
      %v2847 = vpop.f32.mrb[0].mxu0
      %2848 = vmatprep.mubr.bf16.mxu0 0
      %2849 = vmatmul.mubr.bf16.gmra.mrb[0].mxu0 %v2278
      %v2850 = vpop.f32.mrb[0].mxu0
      %v2851 = vadd.f32 0.0, %v2850
      %v2852 = vpop.f32.mrb[0].mxu0
      %v2853 = vpop.f32.mrb[0].mxu0
      %v2854 = vadd.f32 0.0, %v2853
      %v2855 = vpop.f32.mrb[0].mxu0
      %2856 = vmatprep.mubr.bf16.mxu0 0
      %2857 = vmatmul.mubr.bf16.gmra.mrb[0].mxu0 %v2279
      %v2858 = vpop.f32.mrb[0].mxu0
      %v2859 = vadd.f32 0.0, %v2858
      %v2860 = vpop.f32.mrb[0].mxu0
      %v2861 = vpop.f32.mrb[0].mxu0
      %v2862 = vadd.f32 0.0, %v2861
      %v2863 = vpop.f32.mrb[0].mxu0
      %2864 = vmatprep.mubr.bf16.mxu0 0
      %2865 = vmatmul.mubr.bf16.gmra.mrb[0].mxu0 %v2280
      %v2866 = vpop.f32.mrb[0].mxu0
      %v2867 = vadd.f32 0.0, %v2866
      %v2868 = vpop.f32.mrb[0].mxu0
      %v2869 = vpop.f32.mrb[0].mxu0
      %v2870 = vadd.f32 0.0, %v2869
      %v2871 = vpop.f32.mrb[0].mxu0
      %2872 = vmatprep.mubr.bf16.mxu0 0
      %2873 = vmatmul.mubr.bf16.gmra.mrb[0].mxu0 %v2281
      %v2874 = vpop.f32.mrb[0].mxu0
      %v2875 = vadd.f32 0.0, %v2874
      %v2876 = vpop.f32.mrb[0].mxu0
      %v2877 = vpop.f32.mrb[0].mxu0
      %v2878 = vadd.f32 0.0, %v2877
      %v2879 = vpop.f32.mrb[0].mxu0
      %2880 = vmatprep.mubr.bf16.mxu0 0
      %2881 = vmatmul.mubr.bf16.gmra.mrb[0].mxu0 %v2282
      %v2882 = vpop.f32.mrb[0].mxu0
      %v2883 = vadd.f32 0.0, %v2882
      %v2884 = vpop.f32.mrb[0].mxu0
      %v2885 = vpop.f32.mrb[0].mxu0
      %v2886 = vadd.f32 0.0, %v2885
      %v2887 = vpop.f32.mrb[0].mxu0
      %2888 = vmatprep.mubr.bf16.mxu0 0
      %2889 = vmatmul.mubr.bf16.gmra.mrb[0].mxu0 %v2283
      %v2890 = vpop.f32.mrb[0].mxu0
      %v2891 = vadd.f32 0.0, %v2890
      %v2892 = vpop.f32.mrb[0].mxu0
      %v2893 = vpop.f32.mrb[0].mxu0
      %v2894 = vadd.f32 0.0, %v2893
      %v2895 = vpop.f32.mrb[0].mxu0
      %2896 = vmatprep.mubr.bf16.mxu0 0
      %2897 = vmatmul.mubr.bf16.gmra.mrb[0].mxu0 %v2284
      %v2898 = vpop.f32.mrb[0].mxu0
      %v2899 = vadd.f32 0.0, %v2898
      %v2900 = vpop.f32.mrb[0].mxu0
      %v2901 = vpop.f32.mrb[0].mxu0
      %v2902 = vadd.f32 0.0, %v2901
      %v2903 = vpop.f32.mrb[0].mxu0
      %2904 = vmatprep.mubr.bf16.mxu0 0
      %2905 = vmatmul.mubr.bf16.gmra.mrb[0].mxu0 %v2285
      %v2906 = vpop.f32.mrb[0].mxu0
      %v2907 = vadd.f32 0.0, %v2906
      %v2908 = vpop.f32.mrb[0].mxu0
      %v2909 = vpop.f32.mrb[0].mxu0
      %v2910 = vadd.f32 0.0, %v2909
      %v2911 = vpop.f32.mrb[0].mxu0
      %2912 = vmatprep.mubr.bf16.mxu0 0
      %2913 = vmatmul.mubr.bf16.gmra.mrb[0].mxu0 %v2286
      %v2914 = vpop.f32.mrb[0].mxu0
      %v2915 = vadd.f32 0.0, %v2914
      %v2916 = vpop.f32.mrb[0].mxu0
      %v2917 = vpop.f32.mrb[0].mxu0
      %v2918 = vadd.f32 0.0, %v2917
      %v2919 = vpop.f32.mrb[0].mxu0
      %2920 = vmatprep.mubr.bf16.mxu0 0
      %2921 = vmatmul.mubr.bf16.gmra.mrb[0].mxu0 %v2287
      %v2922 = vpop.f32.mrb[0].mxu0
      %v2923 = vadd.f32 0.0, %v2922
      %v2924 = vpop.f32.mrb[0].mxu0
      %v2925 = vpop.f32.mrb[0].mxu0
      %v2926 = vadd.f32 0.0, %v2925
      %v2927 = vpop.f32.mrb[0].mxu0
      %2928 = vmatprep.mubr.bf16.mxu0 0
      %2929 = vmatmul.mubr.bf16.gmra.mrb[0].mxu0 %v2288
      %v2930 = vpop.f32.mrb[0].mxu0
      %v2931 = vadd.f32 0.0, %v2930
      %v2932 = vpop.f32.mrb[0].mxu0
      %v2933 = vpop.f32.mrb[0].mxu0
      %v2934 = vadd.f32 0.0, %v2933
      %v2935 = vpop.f32.mrb[0].mxu0
      %2936 = vmatprep.mubr.bf16.mxu0 0
      %2937 = vmatmul.mubr.bf16.gmra.mrb[0].mxu0 %v2289
      %v2938 = vpop.f32.mrb[0].mxu0
      %v2939 = vadd.f32 0.0, %v2938
      %v2940 = vpop.f32.mrb[0].mxu0
      %v2941 = vpop.f32.mrb[0].mxu0
      %v2942 = vadd.f32 0.0, %v2941
      %v2943 = vpop.f32.mrb[0].mxu0
      %2944 = vmatprep.mubr.bf16.mxu0 0
      %2945 = vmatmul.mubr.bf16.gmra.mrb[0].mxu0 %v2290
      %v2946 = vpop.f32.mrb[0].mxu0
      %v2947 = vadd.f32 0.0, %v2946
      %v2948 = vpop.f32.mrb[0].mxu0
      %v2949 = vpop.f32.mrb[0].mxu0
      %v2950 = vadd.f32 0.0, %v2949
      %v2951 = vpop.f32.mrb[0].mxu0
      %2952 = vmatprep.mubr.bf16.mxu0 0
      %2953 = vmatmul.mubr.bf16.gmra.mrb[0].mxu0 %v2291
      %v2954 = vpop.f32.mrb[0].mxu0
      %v2955 = vadd.f32 0.0, %v2954
      %v2956 = vpop.f32.mrb[0].mxu0
      %v2957 = vpop.f32.mrb[0].mxu0
      %v2958 = vadd.f32 0.0, %v2957
      %v2959 = vpop.f32.mrb[0].mxu0
      %2960 = vmatprep.mubr.bf16.mxu0 0
      %2961 = vmatmul.mubr.bf16.gmra.mrb[0].mxu0 0
      %v2962 = vpop.f32.mrb[0].mxu0
      %v2963 = vadd.f32 0.0, %v2962
      %v2964 = vpop.f32.mrb[0].mxu0
      %v2965 = vpop.f32.mrb[0].mxu0
      %v2966 = vadd.f32 0.0, %v2965
      %v2967 = vpop.f32.mrb[0].mxu0
      %2968 = vdwg.mxu0
      %v2969 = vadd.f32 %v2617, %v2843
      %v2970 = vadd.f32 %v2620, %v2846
      %v2971 = vadd.f32 %v2625, %v2851
      %v2972 = vadd.f32 %v2628, %v2854
      %v2973 = vadd.f32 %v2633, %v2859
      %v2974 = vadd.f32 %v2636, %v2862
      %v2975 = vadd.f32 %v2641, %v2867
      %v2976 = vadd.f32 %v2644, %v2870
      %v2977 = vadd.f32 %v2649, %v2875
      %v2978 = vadd.f32 %v2652, %v2878
      %v2979 = vadd.f32 %v2657, %v2883
      %v2980 = vadd.f32 %v2660, %v2886
      %v2981 = vadd.f32 %v2665, %v2891
      %v2982 = vadd.f32 %v2668, %v2894
      %v2983 = vadd.f32 %v2673, %v2899
      %v2984 = vadd.f32 %v2676, %v2902
      %v2985 = vadd.f32 %v2681, %v2907
      %v2986 = vadd.f32 %v2684, %v2910
      %v2987 = vadd.f32 %v2689, %v2915
      %v2988 = vadd.f32 %v2692, %v2918
      %v2989 = vadd.f32 %v2697, %v2923
      %v2990 = vadd.f32 %v2700, %v2926
      %v2991 = vadd.f32 %v2705, %v2931
      %v2992 = vadd.f32 %v2708, %v2934
      %v2993 = vadd.f32 %v2713, %v2939
      %v2994 = vadd.f32 %v2716, %v2942
      %v2995 = vadd.f32 %v2721, %v2947
      %v2996 = vadd.f32 %v2724, %v2950
      %v2997 = vadd.f32 %v2729, %v2955
      %v2998 = vadd.f32 %v2732, %v2958
      %v2999 = vadd.f32 %v2737, %v2963
      %v3000 = vadd.f32 %v2740, %v2966
      %v3001 = vld [vmem:[%s5] sm:$0x1]
      %v3003 = vlaneseq
      %v3004 = vshrl.u32 %v3003, 7
      %v3005 = vsub.s32 0, %v3004
      %v3006 = vrot.slane %v3001, %v3005
      %v3008 = vmul.f32 %v2969, %v3006
      %v3009 = vmul.f32 %v2970, %v3006
      %v3010 = vmul.f32 %v2971, %v3006
      %v3011 = vmul.f32 %v2972, %v3006
      %v3012 = vmul.f32 %v2973, %v3006
      %v3013 = vmul.f32 %v2974, %v3006
      %v3014 = vmul.f32 %v2975, %v3006
      %v3015 = vmul.f32 %v2976, %v3006
      %v3016 = vmul.f32 %v2977, %v3006
      %v3017 = vmul.f32 %v2978, %v3006
      %v3018 = vmul.f32 %v2979, %v3006
      %v3019 = vmul.f32 %v2980, %v3006
      %v3020 = vmul.f32 %v2981, %v3006
      %v3021 = vmul.f32 %v2982, %v3006
      %v3022 = vmul.f32 %v2983, %v3006
      %v3023 = vmul.f32 %v2984, %v3006
      %v3024 = vmul.f32 %v2985, %v3006
      %v3025 = vmul.f32 %v2986, %v3006
      %v3026 = vmul.f32 %v2987, %v3006
      %v3027 = vmul.f32 %v2988, %v3006
      %v3028 = vmul.f32 %v2989, %v3006
      %v3029 = vmul.f32 %v2990, %v3006
      %v3030 = vmul.f32 %v2991, %v3006
      %v3031 = vmul.f32 %v2992, %v3006
      %v3032 = vmul.f32 %v2993, %v3006
      %v3033 = vmul.f32 %v2994, %v3006
      %v3034 = vmul.f32 %v2995, %v3006
      %v3035 = vmul.f32 %v2996, %v3006
      %v3036 = vmul.f32 %v2997, %v3006
      %v3037 = vmul.f32 %v2998, %v3006
      %v3038 = vmul.f32 %v2999, %v3006
      %v3039 = vmul.f32 %v3000, %v3006
      %v3040 = vld [vmem:[%s6] sm:$0x1]
      %v3042 = vlaneseq
      %v3043 = vshrl.u32 %v3042, 7
      %v3044 = vsub.s32 0, %v3043
      %v3045 = vrot.slane %v3040, %v3044
      %v3047 = vadd.f32 %v3008, %v3045
      %v3048 = vadd.f32 %v3009, %v3045
      %v3049 = vadd.f32 %v3010, %v3045
      %v3050 = vadd.f32 %v3011, %v3045
      %v3051 = vadd.f32 %v3012, %v3045
      %v3052 = vadd.f32 %v3013, %v3045
      %v3053 = vadd.f32 %v3014, %v3045
      %v3054 = vadd.f32 %v3015, %v3045
      %v3055 = vadd.f32 %v3016, %v3045
      %v3056 = vadd.f32 %v3017, %v3045
      %v3057 = vadd.f32 %v3018, %v3045
      %v3058 = vadd.f32 %v3019, %v3045
      %v3059 = vadd.f32 %v3020, %v3045
      %v3060 = vadd.f32 %v3021, %v3045
      %v3061 = vadd.f32 %v3022, %v3045
      %v3062 = vadd.f32 %v3023, %v3045
      %v3063 = vadd.f32 %v3024, %v3045
      %v3064 = vadd.f32 %v3025, %v3045
      %v3065 = vadd.f32 %v3026, %v3045
      %v3066 = vadd.f32 %v3027, %v3045
      %v3067 = vadd.f32 %v3028, %v3045
      %v3068 = vadd.f32 %v3029, %v3045
      %v3069 = vadd.f32 %v3030, %v3045
      %v3070 = vadd.f32 %v3031, %v3045
      %v3071 = vadd.f32 %v3032, %v3045
      %v3072 = vadd.f32 %v3033, %v3045
      %v3073 = vadd.f32 %v3034, %v3045
      %v3074 = vadd.f32 %v3035, %v3045
      %v3075 = vadd.f32 %v3036, %v3045
      %v3076 = vadd.f32 %v3037, %v3045
      %v3077 = vadd.f32 %v3038, %v3045
      %v3078 = vadd.f32 %v3039, %v3045
      %vm3079 = vcmp.gt.f32.partialorder %v3047, 0.0
      %vm3080 = vcmp.gt.f32.partialorder %v3048, 0.0
      %vm3081 = vcmp.gt.f32.partialorder %v3049, 0.0
      %vm3082 = vcmp.gt.f32.partialorder %v3050, 0.0
      %vm3083 = vcmp.gt.f32.partialorder %v3051, 0.0
      %vm3084 = vcmp.gt.f32.partialorder %v3052, 0.0
      %vm3085 = vcmp.gt.f32.partialorder %v3053, 0.0
      %vm3086 = vcmp.gt.f32.partialorder %v3054, 0.0
      %vm3087 = vcmp.gt.f32.partialorder %v3055, 0.0
      %vm3088 = vcmp.gt.f32.partialorder %v3056, 0.0
      %vm3089 = vcmp.gt.f32.partialorder %v3057, 0.0
      %vm3090 = vcmp.gt.f32.partialorder %v3058, 0.0
      %vm3091 = vcmp.gt.f32.partialorder %v3059, 0.0
      %vm3092 = vcmp.gt.f32.partialorder %v3060, 0.0
      %vm3093 = vcmp.gt.f32.partialorder %v3061, 0.0
      %vm3094 = vcmp.gt.f32.partialorder %v3062, 0.0
      %vm3095 = vcmp.gt.f32.partialorder %v3063, 0.0
      %vm3096 = vcmp.gt.f32.partialorder %v3064, 0.0
      %vm3097 = vcmp.gt.f32.partialorder %v3065, 0.0
      %vm3098 = vcmp.gt.f32.partialorder %v3066, 0.0
      %vm3099 = vcmp.gt.f32.partialorder %v3067, 0.0
      %vm3100 = vcmp.gt.f32.partialorder %v3068, 0.0
      %vm3101 = vcmp.gt.f32.partialorder %v3069, 0.0
      %vm3102 = vcmp.gt.f32.partialorder %v3070, 0.0
      %vm3103 = vcmp.gt.f32.partialorder %v3071, 0.0
      %vm3104 = vcmp.gt.f32.partialorder %v3072, 0.0
      %vm3105 = vcmp.gt.f32.partialorder %v3073, 0.0
      %vm3106 = vcmp.gt.f32.partialorder %v3074, 0.0
      %vm3107 = vcmp.gt.f32.partialorder %v3075, 0.0
      %vm3108 = vcmp.gt.f32.partialorder %v3076, 0.0
      %vm3109 = vcmp.gt.f32.partialorder %v3077, 0.0
      %vm3110 = vcmp.gt.f32.partialorder %v3078, 0.0
      %v3111 = vmul.f32 %v3047, 0.1
      %v3112 = vmul.f32 %v3048, 0.1
      %v3113 = vmul.f32 %v3049, 0.1
      %v3114 = vmul.f32 %v3050, 0.1
      %v3115 = vmul.f32 %v3051, 0.1
      %v3116 = vmul.f32 %v3052, 0.1
      %v3117 = vmul.f32 %v3053, 0.1
      %v3118 = vmul.f32 %v3054, 0.1
      %v3119 = vmul.f32 %v3055, 0.1
      %v3120 = vmul.f32 %v3056, 0.1
      %v3121 = vmul.f32 %v3057, 0.1
      %v3122 = vmul.f32 %v3058, 0.1
      %v3123 = vmul.f32 %v3059, 0.1
      %v3124 = vmul.f32 %v3060, 0.1
      %v3125 = vmul.f32 %v3061, 0.1
      %v3126 = vmul.f32 %v3062, 0.1
      %v3127 = vmul.f32 %v3063, 0.1
      %v3128 = vmul.f32 %v3064, 0.1
      %v3129 = vmul.f32 %v3065, 0.1
      %v3130 = vmul.f32 %v3066, 0.1
      %v3131 = vmul.f32 %v3067, 0.1
      %v3132 = vmul.f32 %v3068, 0.1
      %v3133 = vmul.f32 %v3069, 0.1
      %v3134 = vmul.f32 %v3070, 0.1
      %v3135 = vmul.f32 %v3071, 0.1
      %v3136 = vmul.f32 %v3072, 0.1
      %v3137 = vmul.f32 %v3073, 0.1
      %v3138 = vmul.f32 %v3074, 0.1
      %v3139 = vmul.f32 %v3075, 0.1
      %v3140 = vmul.f32 %v3076, 0.1
      %v3141 = vmul.f32 %v3077, 0.1
      %v3142 = vmul.f32 %v3078, 0.1
      %v3143 = vsel %vm3079, %v3047, %v3111
      %v3144 = vsel %vm3080, %v3048, %v3112
      %v3145 = vsel %vm3081, %v3049, %v3113
      %v3146 = vsel %vm3082, %v3050, %v3114
      %v3147 = vsel %vm3083, %v3051, %v3115
      %v3148 = vsel %vm3084, %v3052, %v3116
      %v3149 = vsel %vm3085, %v3053, %v3117
      %v3150 = vsel %vm3086, %v3054, %v3118
      %v3151 = vsel %vm3087, %v3055, %v3119
      %v3152 = vsel %vm3088, %v3056, %v3120
      %v3153 = vsel %vm3089, %v3057, %v3121
      %v3154 = vsel %vm3090, %v3058, %v3122
      %v3155 = vsel %vm3091, %v3059, %v3123
      %v3156 = vsel %vm3092, %v3060, %v3124
      %v3157 = vsel %vm3093, %v3061, %v3125
      %v3158 = vsel %vm3094, %v3062, %v3126
      %v3159 = vsel %vm3095, %v3063, %v3127
      %v3160 = vsel %vm3096, %v3064, %v3128
      %v3161 = vsel %vm3097, %v3065, %v3129
      %v3162 = vsel %vm3098, %v3066, %v3130
      %v3163 = vsel %vm3099, %v3067, %v3131
      %v3164 = vsel %vm3100, %v3068, %v3132
      %v3165 = vsel %vm3101, %v3069, %v3133
      %v3166 = vsel %vm3102, %v3070, %v3134
      %v3167 = vsel %vm3103, %v3071, %v3135
      %v3168 = vsel %vm3104, %v3072, %v3136
      %v3169 = vsel %vm3105, %v3073, %v3137
      %v3170 = vsel %vm3106, %v3074, %v3138
      %v3171 = vsel %vm3107, %v3075, %v3139
      %v3172 = vsel %vm3108, %v3076, %v3140
      %v3173 = vsel %vm3109, %v3077, %v3141
      %v3174 = vsel %vm3110, %v3078, %v3142
      %v3175 = vunpack.c.l.bf16 %v282
      %v3176 = vunpack.c.l.bf16 %v283
      %v3177 = vunpack.c.l.bf16 %v284
      %v3178 = vunpack.c.l.bf16 %v285
      %v3179 = vunpack.c.l.bf16 %v286
      %v3180 = vunpack.c.l.bf16 %v287
      %v3181 = vunpack.c.l.bf16 %v288
      %v3182 = vunpack.c.l.bf16 %v289
      %v3183 = vunpack.c.l.bf16 %v290
      %v3184 = vunpack.c.l.bf16 %v291
      %v3185 = vunpack.c.l.bf16 %v292
      %v3186 = vunpack.c.l.bf16 %v293
      %v3187 = vunpack.c.l.bf16 %v294
      %v3188 = vunpack.c.l.bf16 %v295
      %v3189 = vunpack.c.l.bf16 %v296
      %v3190 = vunpack.c.l.bf16 %v297
      %v3191 = vunpack.c.l.bf16 %v298
      %v3192 = vunpack.c.l.bf16 %v299
      %v3193 = vunpack.c.l.bf16 %v300
      %v3194 = vunpack.c.l.bf16 %v301
      %v3195 = vunpack.c.l.bf16 %v302
      %v3196 = vunpack.c.l.bf16 %v303
      %v3197 = vunpack.c.l.bf16 %v304
      %v3198 = vunpack.c.l.bf16 %v305
      %v3199 = vunpack.c.l.bf16 %v306
      %v3200 = vunpack.c.l.bf16 %v307
      %v3201 = vunpack.c.l.bf16 %v308
      %v3202 = vunpack.c.l.bf16 %v309
      %v3203 = vunpack.c.l.bf16 %v310
      %v3204 = vunpack.c.l.bf16 %v311
      %v3205 = vunpack.c.l.bf16 %v312
      %v3206 = vunpack.c.l.bf16 %v313
      %v3207 = vadd.f32 %v3175, %v3143
      %v3208 = vadd.f32 %v3176, %v3144
      %v3209 = vadd.f32 %v3177, %v3145
      %v3210 = vadd.f32 %v3178, %v3146
      %v3211 = vadd.f32 %v3179, %v3147
      %v3212 = vadd.f32 %v3180, %v3148
      %v3213 = vadd.f32 %v3181, %v3149
      %v3214 = vadd.f32 %v3182, %v3150
      %v3215 = vadd.f32 %v3183, %v3151
      %v3216 = vadd.f32 %v3184, %v3152
      %v3217 = vadd.f32 %v3185, %v3153
      %v3218 = vadd.f32 %v3186, %v3154
      %v3219 = vadd.f32 %v3187, %v3155
      %v3220 = vadd.f32 %v3188, %v3156
      %v3221 = vadd.f32 %v3189, %v3157
      %v3222 = vadd.f32 %v3190, %v3158
      %v3223 = vadd.f32 %v3191, %v3159
      %v3224 = vadd.f32 %v3192, %v3160
      %v3225 = vadd.f32 %v3193, %v3161
      %v3226 = vadd.f32 %v3194, %v3162
      %v3227 = vadd.f32 %v3195, %v3163
      %v3228 = vadd.f32 %v3196, %v3164
      %v3229 = vadd.f32 %v3197, %v3165
      %v3230 = vadd.f32 %v3198, %v3166
      %v3231 = vadd.f32 %v3199, %v3167
      %v3232 = vadd.f32 %v3200, %v3168
      %v3233 = vadd.f32 %v3201, %v3169
      %v3234 = vadd.f32 %v3202, %v3170
      %v3235 = vadd.f32 %v3203, %v3171
      %v3236 = vadd.f32 %v3204, %v3172
      %v3237 = vadd.f32 %v3205, %v3173
      %v3238 = vadd.f32 %v3206, %v3174
      %v3239 = vpack.c.bf16 %v3208, %v3207
      %v3240 = vpack.c.bf16 %v3210, %v3209
      %v3241 = vpack.c.bf16 %v3212, %v3211
      %v3242 = vpack.c.bf16 %v3214, %v3213
      %v3243 = vpack.c.bf16 %v3216, %v3215
      %v3244 = vpack.c.bf16 %v3218, %v3217
      %v3245 = vpack.c.bf16 %v3220, %v3219
      %v3246 = vpack.c.bf16 %v3222, %v3221
      %v3247 = vpack.c.bf16 %v3224, %v3223
      %v3248 = vpack.c.bf16 %v3226, %v3225
      %v3249 = vpack.c.bf16 %v3228, %v3227
      %v3250 = vpack.c.bf16 %v3230, %v3229
      %v3251 = vpack.c.bf16 %v3232, %v3231
      %v3252 = vpack.c.bf16 %v3234, %v3233
      %v3253 = vpack.c.bf16 %v3236, %v3235
      %v3254 = vpack.c.bf16 %v3238, %v3237
      %v3271 = vunpack.c.l.b16 %v3239
      %v3272 = vunpack.c.h.b16 %v3239
      %v3273 = vunpack.c.l.b16 %v3240
      %v3274 = vunpack.c.h.b16 %v3240
      %v3275 = vunpack.c.l.b16 %v3241
      %v3276 = vunpack.c.h.b16 %v3241
      %v3277 = vunpack.c.l.b16 %v3242
      %v3278 = vunpack.c.h.b16 %v3242
      %v3279 = vunpack.c.l.b16 %v3243
      %v3280 = vunpack.c.h.b16 %v3243
      %v3281 = vunpack.c.l.b16 %v3244
      %v3282 = vunpack.c.h.b16 %v3244
      %v3283 = vunpack.c.l.b16 %v3245
      %v3284 = vunpack.c.h.b16 %v3245
      %v3285 = vunpack.c.l.b16 %v3246
      %v3286 = vunpack.c.h.b16 %v3246
      %v3287 = vunpack.c.l.b16 %v3247
      %v3288 = vunpack.c.h.b16 %v3247
      %v3289 = vunpack.c.l.b16 %v3248
      %v3290 = vunpack.c.h.b16 %v3248
      %v3291 = vunpack.c.l.b16 %v3249
      %v3292 = vunpack.c.h.b16 %v3249
      %v3293 = vunpack.c.l.b16 %v3250
      %v3294 = vunpack.c.h.b16 %v3250
      %v3295 = vunpack.c.l.b16 %v3251
      %v3296 = vunpack.c.h.b16 %v3251
      %v3297 = vunpack.c.l.b16 %v3252
      %v3298 = vunpack.c.h.b16 %v3252
      %v3299 = vunpack.c.l.b16 %v3253
      %v3300 = vunpack.c.h.b16 %v3253
      %v3301 = vunpack.c.l.b16 %v3254
      %v3302 = vunpack.c.h.b16 %v3254
      %v3303 = vpack.c.b16 %v3271, %v3271
      %v3304 = vpack.c.b16 %v3272, %v3272
      %v3305 = vpack.c.b16 %v3273, %v3273
      %v3306 = vpack.c.b16 %v3274, %v3274
      %v3307 = vpack.c.b16 %v3275, %v3275
      %v3308 = vpack.c.b16 %v3276, %v3276
      %v3309 = vpack.c.b16 %v3277, %v3277
      %v3310 = vpack.c.b16 %v3278, %v3278
      %v3311 = vpack.c.b16 %v3279, %v3279
      %v3312 = vpack.c.b16 %v3280, %v3280
      %v3313 = vpack.c.b16 %v3281, %v3281
      %v3314 = vpack.c.b16 %v3282, %v3282
      %v3315 = vpack.c.b16 %v3283, %v3283
      %v3316 = vpack.c.b16 %v3284, %v3284
      %v3317 = vpack.c.b16 %v3285, %v3285
      %v3318 = vpack.c.b16 %v3286, %v3286
      %v3319 = vpack.c.b16 %v3287, %v3287
      %v3320 = vpack.c.b16 %v3288, %v3288
      %v3321 = vpack.c.b16 %v3289, %v3289
      %v3322 = vpack.c.b16 %v3290, %v3290
      %v3323 = vpack.c.b16 %v3291, %v3291
      %v3324 = vpack.c.b16 %v3292, %v3292
      %v3325 = vpack.c.b16 %v3293, %v3293
      %v3326 = vpack.c.b16 %v3294, %v3294
      %v3327 = vpack.c.b16 %v3295, %v3295
      %v3328 = vpack.c.b16 %v3296, %v3296
      %v3329 = vpack.c.b16 %v3297, %v3297
      %v3330 = vpack.c.b16 %v3298, %v3298
      %v3331 = vpack.c.b16 %v3299, %v3299
      %v3332 = vpack.c.b16 %v3300, %v3300
      %v3333 = vpack.c.b16 %v3301, %v3301
      %v3334 = vpack.c.b16 %v3302, %v3302
      %3367 = vst [vmem:[%s278] sm:$0xf] %v3303
      %3368 = vst [vmem:[%s278 + $0x4] sm:$0xf] %v3304
      %3369 = vst [vmem:[%s278 + $0x8] sm:$0xf] %v3305
      %3370 = vst [vmem:[%s278 + $0xc] sm:$0xf] %v3306
      %3371 = vst [vmem:[%s278 + $0x10] sm:$0xf] %v3307
      %3372 = vst [vmem:[%s278 + $0x14] sm:$0xf] %v3308
      %3373 = vst [vmem:[%s278 + $0x18] sm:$0xf] %v3309
      %3374 = vst [vmem:[%s278 + $0x1c] sm:$0xf] %v3310
      %3375 = vst [vmem:[%s278 + $0x20] sm:$0xf] %v3311
      %3376 = vst [vmem:[%s278 + $0x24] sm:$0xf] %v3312
      %3377 = vst [vmem:[%s278 + $0x28] sm:$0xf] %v3313
      %3378 = vst [vmem:[%s278 + $0x2c] sm:$0xf] %v3314
      %3379 = vst [vmem:[%s278 + $0x30] sm:$0xf] %v3315
      %3380 = vst [vmem:[%s278 + $0x34] sm:$0xf] %v3316
      %3381 = vst [vmem:[%s278 + $0x38] sm:$0xf] %v3317
      %3382 = vst [vmem:[%s278 + $0x3c] sm:$0xf] %v3318
      %3383 = vst [vmem:[%s278 + $0x40] sm:$0xf] %v3319
      %3384 = vst [vmem:[%s278 + $0x44] sm:$0xf] %v3320
      %3385 = vst [vmem:[%s278 + $0x48] sm:$0xf] %v3321
      %3386 = vst [vmem:[%s278 + $0x4c] sm:$0xf] %v3322
      %3387 = vst [vmem:[%s278 + $0x50] sm:$0xf] %v3323
      %3388 = vst [vmem:[%s278 + $0x54] sm:$0xf] %v3324
      %3389 = vst [vmem:[%s278 + $0x58] sm:$0xf] %v3325
      %3390 = vst [vmem:[%s278 + $0x5c] sm:$0xf] %v3326
      %3391 = vst [vmem:[%s278 + $0x60] sm:$0xf] %v3327
      %3392 = vst [vmem:[%s278 + $0x64] sm:$0xf] %v3328
      %3393 = vst [vmem:[%s278 + $0x68] sm:$0xf] %v3329
      %3394 = vst [vmem:[%s278 + $0x6c] sm:$0xf] %v3330
      %3395 = vst [vmem:[%s278 + $0x70] sm:$0xf] %v3331
      %3396 = vst [vmem:[%s278 + $0x74] sm:$0xf] %v3332
      %3397 = vst [vmem:[%s278 + $0x78] sm:$0xf] %v3333
      %3398 = vst [vmem:[%s278 + $0x7c] sm:$0xf] %v3334
      %p3399 = scmp.lt.s32.totalorder %s18, 1
      %s3400 = scalar_select %p3399, %s18, 1
      %s3401 = smul.addr %s3400, 32
      %s3402 = smul.addr %s3401, 4
      %s3403 = scalar_lea.vmem %s7, %s3402
      // Predicated region
      $region49: #{_lambda_.4} parent=47 // pred_check
        %p3404 = pneg %p188
      $region50: #{_lambda_.4} parent=47 // pred_check_branch
        %3406 = sbr.rel (%p3404) target = $region52
      $region51: #{_lambda_.4} parent=47 // pred_region
        _
      $region52: #{_lambda_.4} parent=47 // pred_fallthru
        _
    $region48: #{_lambda_.4} parent=5 // pred_fallthru
      _
    %p3407 = scmp.le.s32.totalorder 2, %s13
    // Predicated region
    $region53: #{_lambda_.4} parent=5 // pred_check
      %p3408 = pneg %p3407
    $region54: #{_lambda_.4} parent=5 // pred_check_branch
      %3410 = sbr.rel (%p3408) target = $region56
    $region55: #{_lambda_.4} parent=5 // pred_region
      %s3411 = ssub.s32 %s13, 2
      // Predicated region
      $region57: #{_lambda_.4} parent=55 // pred_check
        %p3412 = pneg %p194
      $region58: #{_lambda_.4} parent=55 // pred_check_branch
        %3414 = sbr.rel (%p3412) target = $region60
      $region59: #{_lambda_.4} parent=55 // pred_region
        %p3415 = scmp.lt.s32.totalorder %s19, 1
        %s3416 = scalar_select %p3415, %s19, 1
        %s3417 = smul.addr %s3416, 32
        %s3418 = smul.addr %s3417, 4
        %s3419 = scalar_lea.vmem %s7, %s3418
      $region60: #{_lambda_.4} parent=55 // pred_fallthru
        _
    $region56: #{_lambda_.4} parent=5 // pred_fallthru
      _
  $region6: #{_lambda_.4} parent=0 // loop_footer
    %s17 = sadd.s32 1, %s13
  $region7: #{_lambda_.4} parent=0 // loop_footer_branch
    %12 = sbr.rel target = $region3
  $region8: #{_lambda_.4} parent=0 // loop_exit
    _

</llo_original>
